<compile_context>
chip_gen: v5e
topology: v5e:2x2
jax: 0.10.0
libtpu: 0.0.40
codegen_flags: <defaults>
</compile_context>

<pallas_src>
from functools import partial

import jax
import jax.numpy as jnp
import numpy as np
from jax.experimental import pallas as pl
from jax.experimental.pallas import tpu as pltpu


# ---------------------------------------------------------------------------
# Fused Pallas kernel: the full generator for NB images per grid step.
# ---------------------------------------------------------------------------
def _generator_kernel(x_ref, w1_ref, b1_ref,
                      g2_ref, sc2_ref, b2_ref,
                      g3_ref, sc3_ref, b3_ref,
                      g4_ref, sc4_ref, b4_ref,
                      g5_ref, sc5_ref,
                      out_ref):
    f32 = jnp.float32

    def deconv(x, g_ref, sc_ref):
        # x: (NB*H, J*Cin) activations, one (image, row) pair per matmul row.
        blk = g_ref.shape[1] // 4              # 128-aligned per-kh column block
        xb = x.astype(g_ref.dtype)             # bf16 MXU operands
        z = None
        for kh in range(4):                    # 4 kernel-row taps, unrolled
            yk = jnp.dot(xb, g_ref[:, kh * blk:(kh + 1) * blk],
                         preferred_element_type=f32)
            zk = jnp.dot(sc_ref[kh], yk, preferred_element_type=f32)
            z = zk if z is None else z + zk
        return z                               # (NB*2H, blk): height-scattered + row-cropped

    # Layer 1: ConvTranspose2d(nz, 8*ngf, 4, 1, 0) on a 1x1 input == matmul.
    x = jnp.dot(x_ref[...].astype(w1_ref.dtype), w1_ref[...],
                preferred_element_type=f32)
    x = jnp.maximum(x + b1_ref[...], 0.0)                       # (NB*4, 4*8ngf)

    # Layers 2-4: ConvTranspose2d(., ., 4, 2, 1) + folded BN shift + ReLU.
    x = jnp.maximum(deconv(x, g2_ref, sc2_ref) + b2_ref[...], 0.0)
    x = jnp.maximum(deconv(x, g3_ref, sc3_ref) + b3_ref[...], 0.0)
    x = jnp.maximum(deconv(x, g4_ref, sc4_ref) + b4_ref[...], 0.0)

    # Layer 5: ConvTranspose2d(ngf, nc, 4, 2, 1) + Tanh.
    out_ref[...] = jnp.tanh(deconv(x, g5_ref, sc5_ref))


# ---------------------------------------------------------------------------
# Host-side parameter construction.
# ---------------------------------------------------------------------------
def _round_up(x, m):
    return (x + m - 1) // m * m


def make_generator_params(key, nz, ngf, nc, eps=1e-5):
    """Raw parameters: PyTorch-layout ConvTranspose2d weights + folded BN."""
    chans = [nz, ngf * 8, ngf * 4, ngf * 2, ngf, nc]
    fan = [nz, 4 * chans[1], 4 * chans[2], 4 * chans[3], 4 * chans[4]]
    layers = []
    for li in range(5):
        key, kw, kg, kb, km, kv = jax.random.split(key, 6)
        cin, cout = chans[li], chans[li + 1]
        std = (2.0 / fan[li]) ** 0.5 if li < 4 else (1.0 / fan[li]) ** 0.5
        w = std * jax.random.normal(kw, (cin, cout, 4, 4), jnp.float32)
        if li < 4:   # layers with BatchNorm2d (eval-mode running stats, folded)
            gamma = 1.0 + 0.02 * jax.random.normal(kg, (cout,), jnp.float32)
            beta = 0.02 * jax.random.normal(kb, (cout,), jnp.float32)
            mean = 0.1 * jax.random.normal(km, (cout,), jnp.float32)
            var = jnp.abs(jax.random.normal(kv, (cout,), jnp.float32)) + 0.5
            scale = gamma / jnp.sqrt(var + eps)
            shift = beta - mean * scale
        else:        # final layer: no BN
            scale = jnp.ones((cout,), jnp.float32)
            shift = jnp.zeros((cout,), jnp.float32)
        layers.append(dict(w=w, scale=scale, shift=shift))
    return layers


def _build_sc(h_in):
    """Sc[kh, r, h] = 1 iff 2h + kh == r + 1  (height scatter + p=1 row crop)."""
    kh = jnp.arange(4)[:, None, None]
    r = jnp.arange(2 * h_in)[None, :, None]
    h = jnp.arange(h_in)[None, None, :]
    return (2 * h + kh == r + 1).astype(jnp.float32)            # (4, 2H, H)


def _build_g(w, scale, w_in, off, in_j, ci, in_width, blk):
    """Deconv weight with BN scale + width-direction scatter folded in.

    Rows: (j, ci) for column-position j in [0, in_j) (true pixel w = j - off;
    out-of-range j get zero rows -> implements the p=1 column crop of the
    previous layer).  Columns: (kh, jout, co), each kh block padded to `blk`
    (multiple of 128) so in-kernel slices are lane-aligned.
    """
    co = w.shape[1]
    owf = 2 * w_in + 2
    ws = w * scale[None, :, None, None]                          # (Ci, Co, kh, kw)
    j = jnp.arange(in_j)
    wpos = j - off
    valid = ((wpos >= 0) & (wpos < w_in)).astype(jnp.float32)    # (in_j,)
    jout = 2 * wpos[:, None] + jnp.arange(4)[None, :]            # (in_j, kw)
    m = jax.nn.one_hot(jout, owf, dtype=jnp.float32) * valid[:, None, None]
    # g[j, ci, kh, jout, co] = sum_kw m[j, kw, jout] * ws[ci, co, kh, kw]
    g = jnp.einsum('jqo,cdhq->jchod', m, ws)                     # (in_j, Ci, 4, owf, Co)
    g = g.reshape(in_j * ci, 4, owf * co)
    g = jnp.pad(g, ((0, in_width - in_j * ci), (0, 0), (0, blk - owf * co)))
    return g.reshape(in_width, 4 * blk)


def prepare_kernel_params(layers, nz, compute_dtype=jnp.bfloat16):
    """Build the kernel-ready (lane-dense, 128-aligned, bf16) parameter set."""
    w1_raw, s1, sh1 = layers[0]['w'], layers[0]['scale'], layers[0]['shift']
    c1 = w1_raw.shape[1]
    # W1big[(h, ci), (w, c)] = scale[c] * Wt1[ci, c, h, w]
    w1 = jnp.transpose(w1_raw * s1[None, :, None, None],
                       (2, 0, 3, 1)).reshape(4 * nz, 4 * c1)
    kp = {'w1': w1.astype(compute_dtype),
          'b1': jnp.tile(sh1, 4).reshape(1, 4 * c1)}

    spatial, in_j, off, in_width = 4, 4, 0, 4 * c1
    for li in range(1, 5):
        w, scale, shift = layers[li]['w'], layers[li]['scale'], layers[li]['shift']
        ci, co = w.shape[0], w.shape[1]
        owf = 2 * spatial + 2
        blk = _round_up(owf * co, 128)
        kp[f'g{li + 1}'] = _build_g(w, scale, spatial, off, in_j, ci,
                                    in_width, blk).astype(compute_dtype)
        kp[f'sc{li + 1}'] = _build_sc(spatial)                   # per-image (4, 2H, H)
        if li < 4:
            kp[f'b{li + 1}'] = jnp.pad(jnp.tile(shift, owf),
                                       (0, blk - owf * co)).reshape(1, blk)
        spatial, in_j, off, in_width = 2 * spatial, owf, 1, blk
    return kp


# ---------------------------------------------------------------------------
# Forward pass (single fused pallas_call + tiny XLA glue).
# ---------------------------------------------------------------------------
def _full_spec(a):
    nd = a.ndim
    return pl.BlockSpec(a.shape, lambda i, nd=nd: (0,) * nd)


def generator_forward(kp, x_nchw, *, nc, images_per_step=None):
    N = x_nchw.shape[0]
    nz = kp['w1'].shape[0] // 4
    nb = N if images_per_step is None else images_per_step
    assert N % nb == 0, (N, nb)
    steps = N // nb

    # Block-structured layer-1 input, batch-stacked along the matmul M dim:
    # row (n, h) holds image n's latent in column block h, so each weight tile
    # is pushed into the MXU once per grid step and every image streams
    # through it (weight-push was the dominant matmul cost at these sizes).
    x2 = x_nchw.reshape(N, nz).astype(jnp.float32)
    x1blk = (x2[:, None, None, :] *
             jnp.eye(4, dtype=jnp.float32)[None, :, :, None]).reshape(N * 4, 4 * nz)

    blk5 = kp['g5'].shape[1] // 4
    ohw = 2 * kp['sc5'].shape[2]                       # 64 = final spatial size

    # Block-diagonal height-scatter matrices so the batch-stacked scatter is
    # still one small matmul per kernel row (rows/cols ordered (image, pos)).
    eye_nb = jnp.eye(nb, dtype=jnp.float32)

    def bdiag(sc):
        k, r2, h = sc.shape
        return jnp.einsum('ab,krh->karbh', eye_nb, sc).reshape(k, nb * r2, nb * h)

    weights = [kp['w1'], kp['b1'],
               kp['g2'], bdiag(kp['sc2']), kp['b2'],
               kp['g3'], bdiag(kp['sc3']), kp['b3'],
               kp['g4'], bdiag(kp['sc4']), kp['b4'],
               kp['g5'], bdiag(kp['sc5'])]

    in_specs = [pl.BlockSpec((nb * 4, 4 * nz), lambda i: (i, 0))]
    in_specs += [_full_spec(a) for a in weights]

    out = pl.pallas_call(
        _generator_kernel,
        out_shape=jax.ShapeDtypeStruct((N * ohw, blk5), jnp.float32),
        grid_spec=pltpu.PrefetchScalarGridSpec(
            num_scalar_prefetch=0,
            grid=(steps,),                              # NB images per grid step
            in_specs=in_specs,
            out_specs=pl.BlockSpec((nb * ohw, blk5), lambda i: (i, 0)),
        ),
        compiler_params=pltpu.CompilerParams(
            dimension_semantics=("parallel",)),          # batch chunks independent
    )(x1blk, *weights)

    # Undo the deferred (padding=1) column crop and restore PyTorch NCHW.
    out = out.reshape(N, ohw, blk5)[:, :, nc:(ohw + 1) * nc]     # (N, 64, 64*nc)
    out = out.reshape(N, ohw, ohw, nc)
    return jnp.transpose(out, (0, 3, 1, 2))


# ---------------------------------------------------------------------------
# Pure-XLA reference (same numerics: folded eval-mode BN, bf16 operands).
# ---------------------------------------------------------------------------
def reference_forward(layers, x_nchw, compute_dtype=jnp.bfloat16):
    x = jnp.transpose(x_nchw, (0, 2, 3, 1)).astype(jnp.float32)   # NHWC
    cfgs = [(1, 0), (2, 1), (2, 1), (2, 1), (2, 1)]
    for li, (stride, pad) in enumerate(cfgs):
        lyr = layers[li]
        w = lyr['w'] * lyr['scale'][None, :, None, None]
        w = w.astype(compute_dtype).astype(jnp.float32)
        xq = x.astype(compute_dtype).astype(jnp.float32)
        k = w.shape[2]
        w_conv = jnp.transpose(w[:, :, ::-1, ::-1], (2, 3, 0, 1))  # HWIO
        p = k - 1 - pad
        y = jax.lax.conv_general_dilated(
            xq, w_conv, window_strides=(1, 1), padding=[(p, p), (p, p)],
            lhs_dilation=(stride, stride),
            dimension_numbers=('NHWC', 'HWIO', 'NHWC'),
            preferred_element_type=jnp.float32)
        if li < 4:
            x = jnp.maximum(y + lyr['shift'][None, None, None, :], 0.0)
        else:
            x = jnp.tanh(y)
    return jnp.transpose(x, (0, 3, 1, 2))


if __name__ == "__main__":
    nz, ngf, nc, batch = 8, 8, 3, 2

    key = jax.random.PRNGKey(0)
    kparam, kx = jax.random.split(key)
    layers = make_generator_params(kparam, nz, ngf, nc)
    kp = prepare_kernel_params(layers, nz)

    x = jax.random.normal(kx, (batch, nz, 1, 1), jnp.float32)   # NCHW latent

    fwd = jax.jit(partial(generator_forward, nc=nc))
    out = jax.block_until_ready(fwd(kp, x))

    assert out.shape == (batch, nc, 64, 64), out.shape
    assert bool(jnp.all(jnp.isfinite(out)))
    assert bool(jnp.all(jnp.abs(out) <= 1.0 + 1e-6))            # tanh range

    ref = jax.block_until_ready(jax.jit(reference_forward)(layers, x))
    np.testing.assert_allclose(np.asarray(out), np.asarray(ref),
                               atol=2e-2, rtol=2e-2)

    print("KERNEL_OK")
</pallas_src>

<mosaic_0001>
module attributes {stable_mosaic.version = 11 : i64} {
  func.func @_generator_kernel(%arg0: i32, %arg1: memref<8x32xf32, #tpu.memory_space<vmem>>, %arg2: memref<32x256xbf16, #tpu.memory_space<vmem>>, %arg3: memref<1x256xf32, #tpu.memory_space<vmem>>, %arg4: memref<256x1536xbf16, #tpu.memory_space<vmem>>, %arg5: memref<4x16x8xf32, #tpu.memory_space<vmem>>, %arg6: memref<1x384xf32, #tpu.memory_space<vmem>>, %arg7: memref<384x1536xbf16, #tpu.memory_space<vmem>>, %arg8: memref<4x32x16xf32, #tpu.memory_space<vmem>>, %arg9: memref<1x384xf32, #tpu.memory_space<vmem>>, %arg10: memref<384x1536xbf16, #tpu.memory_space<vmem>>, %arg11: memref<4x64x32xf32, #tpu.memory_space<vmem>>, %arg12: memref<1x384xf32, #tpu.memory_space<vmem>>, %arg13: memref<384x1024xbf16, #tpu.memory_space<vmem>>, %arg14: memref<4x128x64xf32, #tpu.memory_space<vmem>>, %arg15: memref<128x256xf32, #tpu.memory_space<vmem>>) attributes {dimension_semantics = [#tpu.dimension_semantics<parallel>], iteration_bounds = array<i64: 1>, scalar_prefetch = 0 : i64, scratch_operands = 0 : i64, tpu.core_type = #tpu.core_type<tc>, window_params = [{transform_indices = @transform_0, window_bounds = array<i64: 8, 32>}, {pipeline_mode = #tpu.pipeline_mode<synchronous>, transform_indices = @transform_1, window_bounds = array<i64: 32, 256>}, {pipeline_mode = #tpu.pipeline_mode<synchronous>, transform_indices = @transform_2, window_bounds = array<i64: 1, 256>}, {pipeline_mode = #tpu.pipeline_mode<synchronous>, transform_indices = @transform_3, window_bounds = array<i64: 256, 1536>}, {pipeline_mode = #tpu.pipeline_mode<synchronous>, transform_indices = @transform_4, window_bounds = array<i64: 4, 16, 8>}, {pipeline_mode = #tpu.pipeline_mode<synchronous>, transform_indices = @transform_5, window_bounds = array<i64: 1, 384>}, {pipeline_mode = #tpu.pipeline_mode<synchronous>, transform_indices = @transform_6, window_bounds = array<i64: 384, 1536>}, {pipeline_mode = #tpu.pipeline_mode<synchronous>, transform_indices = @transform_7, window_bounds = array<i64: 4, 32, 16>}, {pipeline_mode = #tpu.pipeline_mode<synchronous>, transform_indices = @transform_8, window_bounds = array<i64: 1, 384>}, {pipeline_mode = #tpu.pipeline_mode<synchronous>, transform_indices = @transform_9, window_bounds = array<i64: 384, 1536>}, {pipeline_mode = #tpu.pipeline_mode<synchronous>, transform_indices = @transform_10, window_bounds = array<i64: 4, 64, 32>}, {pipeline_mode = #tpu.pipeline_mode<synchronous>, transform_indices = @transform_11, window_bounds = array<i64: 1, 384>}, {pipeline_mode = #tpu.pipeline_mode<synchronous>, transform_indices = @transform_12, window_bounds = array<i64: 384, 1024>}, {pipeline_mode = #tpu.pipeline_mode<synchronous>, transform_indices = @transform_13, window_bounds = array<i64: 4, 128, 64>}, {transform_indices = @transform_14, window_bounds = array<i64: 128, 256>}]} {
    %c0 = arith.constant 0 : index
    %c0_0 = arith.constant 0 : index
    %0 = vector.load %arg1[%c0, %c0_0] : memref<8x32xf32, #tpu.memory_space<vmem>>, vector<8x32xf32>
    %1 = arith.truncf %0 : vector<8x32xf32> to vector<8x32xbf16>
    %c0_1 = arith.constant 0 : index
    %c0_2 = arith.constant 0 : index
    %2 = vector.load %arg2[%c0_1, %c0_2] : memref<32x256xbf16, #tpu.memory_space<vmem>>, vector<32x256xbf16>
    %cst = arith.constant dense<0.000000e+00> : vector<8x256xf32>
    %3 = tpu.matmul %1, %2, %cst {dimension_numbers = #tpu.dot_dimension_numbers<[1], [0], [0], [1], [0, 0, 1, 1], [], []>} : vector<8x32xbf16>, vector<32x256xbf16>, vector<8x256xf32> -> vector<8x256xf32>
    %c0_3 = arith.constant 0 : index
    %c0_4 = arith.constant 0 : index
    %4 = vector.load %arg3[%c0_3, %c0_4] : memref<1x256xf32, #tpu.memory_space<vmem>>, vector<1x256xf32>
    %5 = vector.broadcast %4 : vector<1x256xf32> to vector<8x256xf32>
    %6 = arith.addf %3, %5 : vector<8x256xf32>
    %cst_5 = arith.constant 0.000000e+00 : f32
    %7 = vector.broadcast %cst_5 : f32 to vector<8x256xf32>
    %8 = arith.maximumf %6, %7 : vector<8x256xf32>
    %9 = arith.truncf %8 : vector<8x256xf32> to vector<8x256xbf16>
    %c0_6 = arith.constant 0 : index
    %c0_7 = arith.constant 0 : index
    %10 = vector.load %arg4[%c0_6, %c0_7] : memref<256x1536xbf16, #tpu.memory_space<vmem>>, vector<256x384xbf16>
    %cst_8 = arith.constant dense<0.000000e+00> : vector<8x384xf32>
    %11 = tpu.matmul %9, %10, %cst_8 {dimension_numbers = #tpu.dot_dimension_numbers<[1], [0], [0], [1], [0, 0, 1, 1], [], []>} : vector<8x256xbf16>, vector<256x384xbf16>, vector<8x384xf32> -> vector<8x384xf32>
    %c0_9 = arith.constant 0 : index
    %c0_10 = arith.constant 0 : index
    %c0_11 = arith.constant 0 : index
    %12 = vector.load %arg5[%c0_9, %c0_10, %c0_11] : memref<4x16x8xf32, #tpu.memory_space<vmem>>, vector<1x16x8xf32>
    %13 = vector.shape_cast %12 : vector<1x16x8xf32> to vector<16x8xf32>
    %cst_12 = arith.constant dense<0.000000e+00> : vector<16x384xf32>
    %14 = tpu.matmul %13, %11, %cst_12 {dimension_numbers = #tpu.dot_dimension_numbers<[1], [0], [0], [1], [0, 0, 1, 1], [], []>} : vector<16x8xf32>, vector<8x384xf32>, vector<16x384xf32> -> vector<16x384xf32>
    %c0_13 = arith.constant 0 : index
    %c384 = arith.constant 384 : index
    %15 = vector.load %arg4[%c0_13, %c384] : memref<256x1536xbf16, #tpu.memory_space<vmem>>, vector<256x384xbf16>
    %cst_14 = arith.constant dense<0.000000e+00> : vector<8x384xf32>
    %16 = tpu.matmul %9, %15, %cst_14 {dimension_numbers = #tpu.dot_dimension_numbers<[1], [0], [0], [1], [0, 0, 1, 1], [], []>} : vector<8x256xbf16>, vector<256x384xbf16>, vector<8x384xf32> -> vector<8x384xf32>
    %c1 = arith.constant 1 : index
    %c0_15 = arith.constant 0 : index
    %c0_16 = arith.constant 0 : index
    %17 = vector.load %arg5[%c1, %c0_15, %c0_16] : memref<4x16x8xf32, #tpu.memory_space<vmem>>, vector<1x16x8xf32>
    %18 = vector.shape_cast %17 : vector<1x16x8xf32> to vector<16x8xf32>
    %cst_17 = arith.constant dense<0.000000e+00> : vector<16x384xf32>
    %19 = tpu.matmul %18, %16, %cst_17 {dimension_numbers = #tpu.dot_dimension_numbers<[1], [0], [0], [1], [0, 0, 1, 1], [], []>} : vector<16x8xf32>, vector<8x384xf32>, vector<16x384xf32> -> vector<16x384xf32>
    %20 = arith.addf %14, %19 : vector<16x384xf32>
    %c0_18 = arith.constant 0 : index
    %c768 = arith.constant 768 : index
    %21 = vector.load %arg4[%c0_18, %c768] : memref<256x1536xbf16, #tpu.memory_space<vmem>>, vector<256x384xbf16>
    %cst_19 = arith.constant dense<0.000000e+00> : vector<8x384xf32>
    %22 = tpu.matmul %9, %21, %cst_19 {dimension_numbers = #tpu.dot_dimension_numbers<[1], [0], [0], [1], [0, 0, 1, 1], [], []>} : vector<8x256xbf16>, vector<256x384xbf16>, vector<8x384xf32> -> vector<8x384xf32>
    %c2 = arith.constant 2 : index
    %c0_20 = arith.constant 0 : index
    %c0_21 = arith.constant 0 : index
    %23 = vector.load %arg5[%c2, %c0_20, %c0_21] : memref<4x16x8xf32, #tpu.memory_space<vmem>>, vector<1x16x8xf32>
    %24 = vector.shape_cast %23 : vector<1x16x8xf32> to vector<16x8xf32>
    %cst_22 = arith.constant dense<0.000000e+00> : vector<16x384xf32>
    %25 = tpu.matmul %24, %22, %cst_22 {dimension_numbers = #tpu.dot_dimension_numbers<[1], [0], [0], [1], [0, 0, 1, 1], [], []>} : vector<16x8xf32>, vector<8x384xf32>, vector<16x384xf32> -> vector<16x384xf32>
    %26 = arith.addf %20, %25 : vector<16x384xf32>
    %c0_23 = arith.constant 0 : index
    %c1152 = arith.constant 1152 : index
    %27 = vector.load %arg4[%c0_23, %c1152] : memref<256x1536xbf16, #tpu.memory_space<vmem>>, vector<256x384xbf16>
    %cst_24 = arith.constant dense<0.000000e+00> : vector<8x384xf32>
    %28 = tpu.matmul %9, %27, %cst_24 {dimension_numbers = #tpu.dot_dimension_numbers<[1], [0], [0], [1], [0, 0, 1, 1], [], []>} : vector<8x256xbf16>, vector<256x384xbf16>, vector<8x384xf32> -> vector<8x384xf32>
    %c3 = arith.constant 3 : index
    %c0_25 = arith.constant 0 : index
    %c0_26 = arith.constant 0 : index
    %29 = vector.load %arg5[%c3, %c0_25, %c0_26] : memref<4x16x8xf32, #tpu.memory_space<vmem>>, vector<1x16x8xf32>
    %30 = vector.shape_cast %29 : vector<1x16x8xf32> to vector<16x8xf32>
    %cst_27 = arith.constant dense<0.000000e+00> : vector<16x384xf32>
    %31 = tpu.matmul %30, %28, %cst_27 {dimension_numbers = #tpu.dot_dimension_numbers<[1], [0], [0], [1], [0, 0, 1, 1], [], []>} : vector<16x8xf32>, vector<8x384xf32>, vector<16x384xf32> -> vector<16x384xf32>
    %32 = arith.addf %26, %31 : vector<16x384xf32>
    %c0_28 = arith.constant 0 : index
    %c0_29 = arith.constant 0 : index
    %33 = vector.load %arg6[%c0_28, %c0_29] : memref<1x384xf32, #tpu.memory_space<vmem>>, vector<1x384xf32>
    %34 = vector.broadcast %33 : vector<1x384xf32> to vector<16x384xf32>
    %35 = arith.addf %32, %34 : vector<16x384xf32>
    %cst_30 = arith.constant 0.000000e+00 : f32
    %36 = vector.broadcast %cst_30 : f32 to vector<16x384xf32>
    %37 = arith.maximumf %35, %36 : vector<16x384xf32>
    %38 = arith.truncf %37 : vector<16x384xf32> to vector<16x384xbf16>
    %c0_31 = arith.constant 0 : index
    %c0_32 = arith.constant 0 : index
    %39 = vector.load %arg7[%c0_31, %c0_32] : memref<384x1536xbf16, #tpu.memory_space<vmem>>, vector<384x384xbf16>
    %cst_33 = arith.constant dense<0.000000e+00> : vector<16x384xf32>
    %40 = tpu.matmul %38, %39, %cst_33 {dimension_numbers = #tpu.dot_dimension_numbers<[1], [0], [0], [1], [0, 0, 1, 1], [], []>} : vector<16x384xbf16>, vector<384x384xbf16>, vector<16x384xf32> -> vector<16x384xf32>
    %c0_34 = arith.constant 0 : index
    %c0_35 = arith.constant 0 : index
    %c0_36 = arith.constant 0 : index
    %41 = vector.load %arg8[%c0_34, %c0_35, %c0_36] : memref<4x32x16xf32, #tpu.memory_space<vmem>>, vector<1x32x16xf32>
    %42 = vector.shape_cast %41 : vector<1x32x16xf32> to vector<32x16xf32>
    %cst_37 = arith.constant dense<0.000000e+00> : vector<32x384xf32>
    %43 = tpu.matmul %42, %40, %cst_37 {dimension_numbers = #tpu.dot_dimension_numbers<[1], [0], [0], [1], [0, 0, 1, 1], [], []>} : vector<32x16xf32>, vector<16x384xf32>, vector<32x384xf32> -> vector<32x384xf32>
    %c0_38 = arith.constant 0 : index
    %c384_39 = arith.constant 384 : index
    %44 = vector.load %arg7[%c0_38, %c384_39] : memref<384x1536xbf16, #tpu.memory_space<vmem>>, vector<384x384xbf16>
    %cst_40 = arith.constant dense<0.000000e+00> : vector<16x384xf32>
    %45 = tpu.matmul %38, %44, %cst_40 {dimension_numbers = #tpu.dot_dimension_numbers<[1], [0], [0], [1], [0, 0, 1, 1], [], []>} : vector<16x384xbf16>, vector<384x384xbf16>, vector<16x384xf32> -> vector<16x384xf32>
    %c1_41 = arith.constant 1 : index
    %c0_42 = arith.constant 0 : index
    %c0_43 = arith.constant 0 : index
    %46 = vector.load %arg8[%c1_41, %c0_42, %c0_43] : memref<4x32x16xf32, #tpu.memory_space<vmem>>, vector<1x32x16xf32>
    %47 = vector.shape_cast %46 : vector<1x32x16xf32> to vector<32x16xf32>
    %cst_44 = arith.constant dense<0.000000e+00> : vector<32x384xf32>
    %48 = tpu.matmul %47, %45, %cst_44 {dimension_numbers = #tpu.dot_dimension_numbers<[1], [0], [0], [1], [0, 0, 1, 1], [], []>} : vector<32x16xf32>, vector<16x384xf32>, vector<32x384xf32> -> vector<32x384xf32>
    %49 = arith.addf %43, %48 : vector<32x384xf32>
    %c0_45 = arith.constant 0 : index
    %c768_46 = arith.constant 768 : index
    %50 = vector.load %arg7[%c0_45, %c768_46] : memref<384x1536xbf16, #tpu.memory_space<vmem>>, vector<384x384xbf16>
    %cst_47 = arith.constant dense<0.000000e+00> : vector<16x384xf32>
    %51 = tpu.matmul %38, %50, %cst_47 {dimension_numbers = #tpu.dot_dimension_numbers<[1], [0], [0], [1], [0, 0, 1, 1], [], []>} : vector<16x384xbf16>, vector<384x384xbf16>, vector<16x384xf32> -> vector<16x384xf32>
    %c2_48 = arith.constant 2 : index
    %c0_49 = arith.constant 0 : index
    %c0_50 = arith.constant 0 : index
    %52 = vector.load %arg8[%c2_48, %c0_49, %c0_50] : memref<4x32x16xf32, #tpu.memory_space<vmem>>, vector<1x32x16xf32>
    %53 = vector.shape_cast %52 : vector<1x32x16xf32> to vector<32x16xf32>
    %cst_51 = arith.constant dense<0.000000e+00> : vector<32x384xf32>
    %54 = tpu.matmul %53, %51, %cst_51 {dimension_numbers = #tpu.dot_dimension_numbers<[1], [0], [0], [1], [0, 0, 1, 1], [], []>} : vector<32x16xf32>, vector<16x384xf32>, vector<32x384xf32> -> vector<32x384xf32>
    %55 = arith.addf %49, %54 : vector<32x384xf32>
    %c0_52 = arith.constant 0 : index
    %c1152_53 = arith.constant 1152 : index
    %56 = vector.load %arg7[%c0_52, %c1152_53] : memref<384x1536xbf16, #tpu.memory_space<vmem>>, vector<384x384xbf16>
    %cst_54 = arith.constant dense<0.000000e+00> : vector<16x384xf32>
    %57 = tpu.matmul %38, %56, %cst_54 {dimension_numbers = #tpu.dot_dimension_numbers<[1], [0], [0], [1], [0, 0, 1, 1], [], []>} : vector<16x384xbf16>, vector<384x384xbf16>, vector<16x384xf32> -> vector<16x384xf32>
    %c3_55 = arith.constant 3 : index
    %c0_56 = arith.constant 0 : index
    %c0_57 = arith.constant 0 : index
    %58 = vector.load %arg8[%c3_55, %c0_56, %c0_57] : memref<4x32x16xf32, #tpu.memory_space<vmem>>, vector<1x32x16xf32>
    %59 = vector.shape_cast %58 : vector<1x32x16xf32> to vector<32x16xf32>
    %cst_58 = arith.constant dense<0.000000e+00> : vector<32x384xf32>
    %60 = tpu.matmul %59, %57, %cst_58 {dimension_numbers = #tpu.dot_dimension_numbers<[1], [0], [0], [1], [0, 0, 1, 1], [], []>} : vector<32x16xf32>, vector<16x384xf32>, vector<32x384xf32> -> vector<32x384xf32>
    %61 = arith.addf %55, %60 : vector<32x384xf32>
    %c0_59 = arith.constant 0 : index
    %c0_60 = arith.constant 0 : index
    %62 = vector.load %arg9[%c0_59, %c0_60] : memref<1x384xf32, #tpu.memory_space<vmem>>, vector<1x384xf32>
    %63 = vector.broadcast %62 : vector<1x384xf32> to vector<32x384xf32>
    %64 = arith.addf %61, %63 : vector<32x384xf32>
    %cst_61 = arith.constant 0.000000e+00 : f32
    %65 = vector.broadcast %cst_61 : f32 to vector<32x384xf32>
    %66 = arith.maximumf %64, %65 : vector<32x384xf32>
    %67 = arith.truncf %66 : vector<32x384xf32> to vector<32x384xbf16>
    %c0_62 = arith.constant 0 : index
    %c0_63 = arith.constant 0 : index
    %68 = vector.load %arg10[%c0_62, %c0_63] : memref<384x1536xbf16, #tpu.memory_space<vmem>>, vector<384x384xbf16>
    %cst_64 = arith.constant dense<0.000000e+00> : vector<32x384xf32>
    %69 = tpu.matmul %67, %68, %cst_64 {dimension_numbers = #tpu.dot_dimension_numbers<[1], [0], [0], [1], [0, 0, 1, 1], [], []>} : vector<32x384xbf16>, vector<384x384xbf16>, vector<32x384xf32> -> vector<32x384xf32>
    %c0_65 = arith.constant 0 : index
    %c0_66 = arith.constant 0 : index
    %c0_67 = arith.constant 0 : index
    %70 = vector.load %arg11[%c0_65, %c0_66, %c0_67] : memref<4x64x32xf32, #tpu.memory_space<vmem>>, vector<1x64x32xf32>
    %71 = vector.shape_cast %70 : vector<1x64x32xf32> to vector<64x32xf32>
    %cst_68 = arith.constant dense<0.000000e+00> : vector<64x384xf32>
    %72 = tpu.matmul %71, %69, %cst_68 {dimension_numbers = #tpu.dot_dimension_numbers<[1], [0], [0], [1], [0, 0, 1, 1], [], []>} : vector<64x32xf32>, vector<32x384xf32>, vector<64x384xf32> -> vector<64x384xf32>
    %c0_69 = arith.constant 0 : index
    %c384_70 = arith.constant 384 : index
    %73 = vector.load %arg10[%c0_69, %c384_70] : memref<384x1536xbf16, #tpu.memory_space<vmem>>, vector<384x384xbf16>
    %cst_71 = arith.constant dense<0.000000e+00> : vector<32x384xf32>
    %74 = tpu.matmul %67, %73, %cst_71 {dimension_numbers = #tpu.dot_dimension_numbers<[1], [0], [0], [1], [0, 0, 1, 1], [], []>} : vector<32x384xbf16>, vector<384x384xbf16>, vector<32x384xf32> -> vector<32x384xf32>
    %c1_72 = arith.constant 1 : index
    %c0_73 = arith.constant 0 : index
    %c0_74 = arith.constant 0 : index
    %75 = vector.load %arg11[%c1_72, %c0_73, %c0_74] : memref<4x64x32xf32, #tpu.memory_space<vmem>>, vector<1x64x32xf32>
    %76 = vector.shape_cast %75 : vector<1x64x32xf32> to vector<64x32xf32>
    %cst_75 = arith.constant dense<0.000000e+00> : vector<64x384xf32>
    %77 = tpu.matmul %76, %74, %cst_75 {dimension_numbers = #tpu.dot_dimension_numbers<[1], [0], [0], [1], [0, 0, 1, 1], [], []>} : vector<64x32xf32>, vector<32x384xf32>, vector<64x384xf32> -> vector<64x384xf32>
    %78 = arith.addf %72, %77 : vector<64x384xf32>
    %c0_76 = arith.constant 0 : index
    %c768_77 = arith.constant 768 : index
    %79 = vector.load %arg10[%c0_76, %c768_77] : memref<384x1536xbf16, #tpu.memory_space<vmem>>, vector<384x384xbf16>
    %cst_78 = arith.constant dense<0.000000e+00> : vector<32x384xf32>
    %80 = tpu.matmul %67, %79, %cst_78 {dimension_numbers = #tpu.dot_dimension_numbers<[1], [0], [0], [1], [0, 0, 1, 1], [], []>} : vector<32x384xbf16>, vector<384x384xbf16>, vector<32x384xf32> -> vector<32x384xf32>
    %c2_79 = arith.constant 2 : index
    %c0_80 = arith.constant 0 : index
    %c0_81 = arith.constant 0 : index
    %81 = vector.load %arg11[%c2_79, %c0_80, %c0_81] : memref<4x64x32xf32, #tpu.memory_space<vmem>>, vector<1x64x32xf32>
    %82 = vector.shape_cast %81 : vector<1x64x32xf32> to vector<64x32xf32>
    %cst_82 = arith.constant dense<0.000000e+00> : vector<64x384xf32>
    %83 = tpu.matmul %82, %80, %cst_82 {dimension_numbers = #tpu.dot_dimension_numbers<[1], [0], [0], [1], [0, 0, 1, 1], [], []>} : vector<64x32xf32>, vector<32x384xf32>, vector<64x384xf32> -> vector<64x384xf32>
    %84 = arith.addf %78, %83 : vector<64x384xf32>
    %c0_83 = arith.constant 0 : index
    %c1152_84 = arith.constant 1152 : index
    %85 = vector.load %arg10[%c0_83, %c1152_84] : memref<384x1536xbf16, #tpu.memory_space<vmem>>, vector<384x384xbf16>
    %cst_85 = arith.constant dense<0.000000e+00> : vector<32x384xf32>
    %86 = tpu.matmul %67, %85, %cst_85 {dimension_numbers = #tpu.dot_dimension_numbers<[1], [0], [0], [1], [0, 0, 1, 1], [], []>} : vector<32x384xbf16>, vector<384x384xbf16>, vector<32x384xf32> -> vector<32x384xf32>
    %c3_86 = arith.constant 3 : index
    %c0_87 = arith.constant 0 : index
    %c0_88 = arith.constant 0 : index
    %87 = vector.load %arg11[%c3_86, %c0_87, %c0_88] : memref<4x64x32xf32, #tpu.memory_space<vmem>>, vector<1x64x32xf32>
    %88 = vector.shape_cast %87 : vector<1x64x32xf32> to vector<64x32xf32>
    %cst_89 = arith.constant dense<0.000000e+00> : vector<64x384xf32>
    %89 = tpu.matmul %88, %86, %cst_89 {dimension_numbers = #tpu.dot_dimension_numbers<[1], [0], [0], [1], [0, 0, 1, 1], [], []>} : vector<64x32xf32>, vector<32x384xf32>, vector<64x384xf32> -> vector<64x384xf32>
    %90 = arith.addf %84, %89 : vector<64x384xf32>
    %c0_90 = arith.constant 0 : index
    %c0_91 = arith.constant 0 : index
    %91 = vector.load %arg12[%c0_90, %c0_91] : memref<1x384xf32, #tpu.memory_space<vmem>>, vector<1x384xf32>
    %92 = vector.broadcast %91 : vector<1x384xf32> to vector<64x384xf32>
    %93 = arith.addf %90, %92 : vector<64x384xf32>
    %cst_92 = arith.constant 0.000000e+00 : f32
    %94 = vector.broadcast %cst_92 : f32 to vector<64x384xf32>
    %95 = arith.maximumf %93, %94 : vector<64x384xf32>
    %96 = arith.truncf %95 : vector<64x384xf32> to vector<64x384xbf16>
    %c0_93 = arith.constant 0 : index
    %c0_94 = arith.constant 0 : index
    %97 = vector.load %arg13[%c0_93, %c0_94] : memref<384x1024xbf16, #tpu.memory_space<vmem>>, vector<384x256xbf16>
    %cst_95 = arith.constant dense<0.000000e+00> : vector<64x256xf32>
    %98 = tpu.matmul %96, %97, %cst_95 {dimension_numbers = #tpu.dot_dimension_numbers<[1], [0], [0], [1], [0, 0, 1, 1], [], []>} : vector<64x384xbf16>, vector<384x256xbf16>, vector<64x256xf32> -> vector<64x256xf32>
    %c0_96 = arith.constant 0 : index
    %c0_97 = arith.constant 0 : index
    %c0_98 = arith.constant 0 : index
    %99 = vector.load %arg14[%c0_96, %c0_97, %c0_98] : memref<4x128x64xf32, #tpu.memory_space<vmem>>, vector<1x128x64xf32>
    %100 = vector.shape_cast %99 : vector<1x128x64xf32> to vector<128x64xf32>
    %cst_99 = arith.constant dense<0.000000e+00> : vector<128x256xf32>
    %101 = tpu.matmul %100, %98, %cst_99 {dimension_numbers = #tpu.dot_dimension_numbers<[1], [0], [0], [1], [0, 0, 1, 1], [], []>} : vector<128x64xf32>, vector<64x256xf32>, vector<128x256xf32> -> vector<128x256xf32>
    %c0_100 = arith.constant 0 : index
    %c256 = arith.constant 256 : index
    %102 = vector.load %arg13[%c0_100, %c256] : memref<384x1024xbf16, #tpu.memory_space<vmem>>, vector<384x256xbf16>
    %cst_101 = arith.constant dense<0.000000e+00> : vector<64x256xf32>
    %103 = tpu.matmul %96, %102, %cst_101 {dimension_numbers = #tpu.dot_dimension_numbers<[1], [0], [0], [1], [0, 0, 1, 1], [], []>} : vector<64x384xbf16>, vector<384x256xbf16>, vector<64x256xf32> -> vector<64x256xf32>
    %c1_102 = arith.constant 1 : index
    %c0_103 = arith.constant 0 : index
    %c0_104 = arith.constant 0 : index
    %104 = vector.load %arg14[%c1_102, %c0_103, %c0_104] : memref<4x128x64xf32, #tpu.memory_space<vmem>>, vector<1x128x64xf32>
    %105 = vector.shape_cast %104 : vector<1x128x64xf32> to vector<128x64xf32>
    %cst_105 = arith.constant dense<0.000000e+00> : vector<128x256xf32>
    %106 = tpu.matmul %105, %103, %cst_105 {dimension_numbers = #tpu.dot_dimension_numbers<[1], [0], [0], [1], [0, 0, 1, 1], [], []>} : vector<128x64xf32>, vector<64x256xf32>, vector<128x256xf32> -> vector<128x256xf32>
    %107 = arith.addf %101, %106 : vector<128x256xf32>
    %c0_106 = arith.constant 0 : index
    %c512 = arith.constant 512 : index
    %108 = vector.load %arg13[%c0_106, %c512] : memref<384x1024xbf16, #tpu.memory_space<vmem>>, vector<384x256xbf16>
    %cst_107 = arith.constant dense<0.000000e+00> : vector<64x256xf32>
    %109 = tpu.matmul %96, %108, %cst_107 {dimension_numbers = #tpu.dot_dimension_numbers<[1], [0], [0], [1], [0, 0, 1, 1], [], []>} : vector<64x384xbf16>, vector<384x256xbf16>, vector<64x256xf32> -> vector<64x256xf32>
    %c2_108 = arith.constant 2 : index
    %c0_109 = arith.constant 0 : index
    %c0_110 = arith.constant 0 : index
    %110 = vector.load %arg14[%c2_108, %c0_109, %c0_110] : memref<4x128x64xf32, #tpu.memory_space<vmem>>, vector<1x128x64xf32>
    %111 = vector.shape_cast %110 : vector<1x128x64xf32> to vector<128x64xf32>
    %cst_111 = arith.constant dense<0.000000e+00> : vector<128x256xf32>
    %112 = tpu.matmul %111, %109, %cst_111 {dimension_numbers = #tpu.dot_dimension_numbers<[1], [0], [0], [1], [0, 0, 1, 1], [], []>} : vector<128x64xf32>, vector<64x256xf32>, vector<128x256xf32> -> vector<128x256xf32>
    %113 = arith.addf %107, %112 : vector<128x256xf32>
    %c0_112 = arith.constant 0 : index
    %c768_113 = arith.constant 768 : index
    %114 = vector.load %arg13[%c0_112, %c768_113] : memref<384x1024xbf16, #tpu.memory_space<vmem>>, vector<384x256xbf16>
    %cst_114 = arith.constant dense<0.000000e+00> : vector<64x256xf32>
    %115 = tpu.matmul %96, %114, %cst_114 {dimension_numbers = #tpu.dot_dimension_numbers<[1], [0], [0], [1], [0, 0, 1, 1], [], []>} : vector<64x384xbf16>, vector<384x256xbf16>, vector<64x256xf32> -> vector<64x256xf32>
    %c3_115 = arith.constant 3 : index
    %c0_116 = arith.constant 0 : index
    %c0_117 = arith.constant 0 : index
    %116 = vector.load %arg14[%c3_115, %c0_116, %c0_117] : memref<4x128x64xf32, #tpu.memory_space<vmem>>, vector<1x128x64xf32>
    %117 = vector.shape_cast %116 : vector<1x128x64xf32> to vector<128x64xf32>
    %cst_118 = arith.constant dense<0.000000e+00> : vector<128x256xf32>
    %118 = tpu.matmul %117, %115, %cst_118 {dimension_numbers = #tpu.dot_dimension_numbers<[1], [0], [0], [1], [0, 0, 1, 1], [], []>} : vector<128x64xf32>, vector<64x256xf32>, vector<128x256xf32> -> vector<128x256xf32>
    %119 = arith.addf %113, %118 : vector<128x256xf32>
    %120 = math.tanh %119 : vector<128x256xf32>
    %c0_119 = arith.constant 0 : index
    %c0_120 = arith.constant 0 : index
    %121 = vector.load %arg15[%c0_119, %c0_120] : memref<128x256xf32, #tpu.memory_space<vmem>>, vector<128x256xf32>
    tpu.vector_store %arg15[%c0_119, %c0_120], %120 {strides = array<i32>} : memref<128x256xf32, #tpu.memory_space<vmem>>, vector<128x256xf32>,
    return
  }
  func.func @transform_0(%arg0: i32) -> (i32, i32) {
    %c0_i32 = arith.constant 0 : i32
    %c0_i32_0 = arith.constant 0 : i32
    return %arg0, %c0_i32 : i32, i32
  }
  func.func @transform_1(%arg0: i32) -> (i32, i32) {
    %c0_i32 = arith.constant 0 : i32
    %c0_i32_0 = arith.constant 0 : i32
    %c0_i32_1 = arith.constant 0 : i32
    return %c0_i32, %c0_i32_0 : i32, i32
  }
  func.func @transform_2(%arg0: i32) -> (i32, i32) {
    %c0_i32 = arith.constant 0 : i32
    %c0_i32_0 = arith.constant 0 : i32
    %c0_i32_1 = arith.constant 0 : i32
    return %c0_i32, %c0_i32_0 : i32, i32
  }
  func.func @transform_3(%arg0: i32) -> (i32, i32) {
    %c0_i32 = arith.constant 0 : i32
    %c0_i32_0 = arith.constant 0 : i32
    %c0_i32_1 = arith.constant 0 : i32
    return %c0_i32, %c0_i32_0 : i32, i32
  }
  func.func @transform_4(%arg0: i32) -> (i32, i32, i32) {
    %c0_i32 = arith.constant 0 : i32
    %c0_i32_0 = arith.constant 0 : i32
    %c0_i32_1 = arith.constant 0 : i32
    %c0_i32_2 = arith.constant 0 : i32
    return %c0_i32, %c0_i32_0, %c0_i32_1 : i32, i32, i32
  }
  func.func @transform_5(%arg0: i32) -> (i32, i32) {
    %c0_i32 = arith.constant 0 : i32
    %c0_i32_0 = arith.constant 0 : i32
    %c0_i32_1 = arith.constant 0 : i32
    return %c0_i32, %c0_i32_0 : i32, i32
  }
  func.func @transform_6(%arg0: i32) -> (i32, i32) {
    %c0_i32 = arith.constant 0 : i32
    %c0_i32_0 = arith.constant 0 : i32
    %c0_i32_1 = arith.constant 0 : i32
    return %c0_i32, %c0_i32_0 : i32, i32
  }
  func.func @transform_7(%arg0: i32) -> (i32, i32, i32) {
    %c0_i32 = arith.constant 0 : i32
    %c0_i32_0 = arith.constant 0 : i32
    %c0_i32_1 = arith.constant 0 : i32
    %c0_i32_2 = arith.constant 0 : i32
    return %c0_i32, %c0_i32_0, %c0_i32_1 : i32, i32, i32
  }
  func.func @transform_8(%arg0: i32) -> (i32, i32) {
    %c0_i32 = arith.constant 0 : i32
    %c0_i32_0 = arith.constant 0 : i32
    %c0_i32_1 = arith.constant 0 : i32
    return %c0_i32, %c0_i32_0 : i32, i32
  }
  func.func @transform_9(%arg0: i32) -> (i32, i32) {
    %c0_i32 = arith.constant 0 : i32
    %c0_i32_0 = arith.constant 0 : i32
    %c0_i32_1 = arith.constant 0 : i32
    return %c0_i32, %c0_i32_0 : i32, i32
  }
  func.func @transform_10(%arg0: i32) -> (i32, i32, i32) {
    %c0_i32 = arith.constant 0 : i32
    %c0_i32_0 = arith.constant 0 : i32
    %c0_i32_1 = arith.constant 0 : i32
    %c0_i32_2 = arith.constant 0 : i32
    return %c0_i32, %c0_i32_0, %c0_i32_1 : i32, i32, i32
  }
  func.func @transform_11(%arg0: i32) -> (i32, i32) {
    %c0_i32 = arith.constant 0 : i32
    %c0_i32_0 = arith.constant 0 : i32
    %c0_i32_1 = arith.constant 0 : i32
    return %c0_i32, %c0_i32_0 : i32, i32
  }
  func.func @transform_12(%arg0: i32) -> (i32, i32) {
    %c0_i32 = arith.constant 0 : i32
    %c0_i32_0 = arith.constant 0 : i32
    %c0_i32_1 = arith.constant 0 : i32
    return %c0_i32, %c0_i32_0 : i32, i32
  }
  func.func @transform_13(%arg0: i32) -> (i32, i32, i32) {
    %c0_i32 = arith.constant 0 : i32
    %c0_i32_0 = arith.constant 0 : i32
    %c0_i32_1 = arith.constant 0 : i32
    %c0_i32_2 = arith.constant 0 : i32
    return %c0_i32, %c0_i32_0, %c0_i32_1 : i32, i32, i32
  }
  func.func @transform_14(%arg0: i32) -> (i32, i32) {
    %c0_i32 = arith.constant 0 : i32
    %c0_i32_0 = arith.constant 0 : i32
    return %arg0, %c0_i32 : i32, i32
  }
}

</mosaic_0001>

<llo_original>
// kernel: generator_forward.1
$region0: #{generator_forward.1}
  #allocation0 [shape = 'u32[]', space=smem, size = 0x4, offset = 0x4, fixed_abs, tag = 'smem constant byte address 0x4 - core index']
  #allocation1 [shape = 'u32[72,128]{1,0:T(1,128)}', space=vmem, size = 0x9000, scoped, tag = 'internal scratch']
  %s0 = inlined_call_operand.vmem [shape: f32[8,32], index: 0, kind: input, shape index: {}]
  %s1 = inlined_call_operand.vmem [shape: bf16[32,256], index: 1, kind: input, shape index: {}]
  %s2 = inlined_call_operand.vmem [shape: f32[1,256], index: 2, kind: input, shape index: {}]
  %s3 = inlined_call_operand.vmem [shape: bf16[256,1536], index: 3, kind: input, shape index: {}]
  %s4 = inlined_call_operand.vmem [shape: f32[4,16,8], index: 4, kind: input, shape index: {}]
  %s5 = inlined_call_operand.vmem [shape: f32[1,384], index: 5, kind: input, shape index: {}]
  %s6 = inlined_call_operand.vmem [shape: bf16[384,1536], index: 6, kind: input, shape index: {}]
  %s7 = inlined_call_operand.vmem [shape: f32[4,32,16], index: 7, kind: input, shape index: {}]
  %s8 = inlined_call_operand.vmem [shape: f32[1,384], index: 8, kind: input, shape index: {}]
  %s9 = inlined_call_operand.hbm [shape: bf16[384,1536], index: 9, kind: input, shape index: {}]
  %s10 = inlined_call_operand.vmem [shape: f32[4,64,32], index: 10, kind: input, shape index: {}]
  %s11 = inlined_call_operand.vmem [shape: f32[1,384], index: 11, kind: input, shape index: {}]
  %s12 = inlined_call_operand.hbm [shape: bf16[384,1024], index: 12, kind: input, shape index: {}]
  %s13 = inlined_call_operand.vmem [shape: f32[4,128,64], index: 13, kind: input, shape index: {}]
  %s14 = inlined_call_operand.vmem [shape: f32[128,256], index: 14, kind: output, shape index: {}]
  %s15 = sld [smem:[#allocation0]]
  $region74: #{generator_forward.1} parent=0
    _
  %s17 = ssub.s32 1, %s15
  %s18 = scalar_select 0, %s17, %s15
  $region1: #{generator_forward.1} parent=0
    #allocation2 [shape = 'u8[1179648]{0}', space=vmem, size = 0x120000, scoped, tag = 'input window, operand 9, single buffered']
    #allocation3 [shape = 's32[1]{0}', space=sflag, size = 0x4, scoped, tag = 'scoped memory for generator_forward.1']
    #allocation4 [shape = 'u8[786432]{0}', space=vmem, size = 0xc0000, scoped, tag = 'input window, operand 12, single buffered']
    #allocation5 [shape = 's32[1]{0}', space=sflag, size = 0x4, scoped, tag = 'scoped memory for generator_forward.1']
    %19 = vsyncpa [#allocation3], 0
    %20 = vsyncpa [#allocation5], 0
    // Predicated region
    $region2: #{generator_forward.1} parent=1 // pred_check
      _
    $region3: #{generator_forward.1} parent=1 // pred_check_branch
      %22 = sbr.rel (0) target = $region5
    $region4: #{generator_forward.1} parent=1 // pred_region
      _
    $region5: #{generator_forward.1} parent=1 // pred_fallthru
      _
    // Predicated region
    $region6: #{generator_forward.1} parent=1 // pred_check
      _
    $region7: #{generator_forward.1} parent=1 // pred_check_branch
      %24 = sbr.rel (0) target = $region9
    $region8: #{generator_forward.1} parent=1 // pred_region
      _
    $region9: #{generator_forward.1} parent=1 // pred_fallthru
      _
    // Predicated region
    $region10: #{generator_forward.1} parent=1 // pred_check
      _
    $region11: #{generator_forward.1} parent=1 // pred_check_branch
      %26 = sbr.rel (0) target = $region13
    $region12: #{generator_forward.1} parent=1 // pred_region
      _
    $region13: #{generator_forward.1} parent=1 // pred_fallthru
      _
    // Predicated region
    $region14: #{generator_forward.1} parent=1 // pred_check
      _
    $region15: #{generator_forward.1} parent=1 // pred_check_branch
      %28 = sbr.rel (0) target = $region17
    $region16: #{generator_forward.1} parent=1 // pred_region
      _
    $region17: #{generator_forward.1} parent=1 // pred_fallthru
      _
    // Predicated region
    $region18: #{generator_forward.1} parent=1 // pred_check
      _
    $region19: #{generator_forward.1} parent=1 // pred_check_branch
      %30 = sbr.rel (0) target = $region21
    $region20: #{generator_forward.1} parent=1 // pred_region
      _
    $region21: #{generator_forward.1} parent=1 // pred_fallthru
      _
    // Predicated region
    $region22: #{generator_forward.1} parent=1 // pred_check
      _
    $region23: #{generator_forward.1} parent=1 // pred_check_branch
      %32 = sbr.rel (0) target = $region25
    $region24: #{generator_forward.1} parent=1 // pred_region
      _
    $region25: #{generator_forward.1} parent=1 // pred_fallthru
      _
    // Predicated region
    $region26: #{generator_forward.1} parent=1 // pred_check
      _
    $region27: #{generator_forward.1} parent=1 // pred_check_branch
      %34 = sbr.rel (0) target = $region29
    $region28: #{generator_forward.1} parent=1 // pred_region
      _
    $region29: #{generator_forward.1} parent=1 // pred_fallthru
      _
    // Predicated region
    $region30: #{generator_forward.1} parent=1 // pred_check
      _
    $region31: #{generator_forward.1} parent=1 // pred_check_branch
      %36 = sbr.rel (0) target = $region33
    $region32: #{generator_forward.1} parent=1 // pred_region
      _
    $region33: #{generator_forward.1} parent=1 // pred_fallthru
      _
    // Predicated region
    $region34: #{generator_forward.1} parent=1 // pred_check
      _
    $region35: #{generator_forward.1} parent=1 // pred_check_branch
      %38 = sbr.rel (0) target = $region37
    $region36: #{generator_forward.1} parent=1 // pred_region
      _
    $region37: #{generator_forward.1} parent=1 // pred_fallthru
      _
    // Predicated region
    $region38: #{generator_forward.1} parent=1 // pred_check
      _
    $region39: #{generator_forward.1} parent=1 // pred_check_branch
      %40 = sbr.rel (0) target = $region41
    $region40: #{generator_forward.1} parent=1 // pred_region
      %42 = vsyncadd [#allocation3], 0
      %s43 = sshll.u32 %s9, 4
      %s44 = int_to_ptr.hbm [resolvable:$true] %s43
      %s45 = sshll.u32 [#allocation2], 4
      %s46 = int_to_ptr.vmem [resolvable:$true] %s45
      %51 = dma.hbm_to_vmem [thread:$0]  %s44, 36864, %s46, [#allocation3], 768, 768, 48
    $region41: #{generator_forward.1} parent=1 // pred_fallthru
      _
    // Predicated region
    $region42: #{generator_forward.1} parent=1 // pred_check
      _
    $region43: #{generator_forward.1} parent=1 // pred_check_branch
      %53 = sbr.rel (0) target = $region45
    $region44: #{generator_forward.1} parent=1 // pred_region
      _
    $region45: #{generator_forward.1} parent=1 // pred_fallthru
      _
    // Predicated region
    $region46: #{generator_forward.1} parent=1 // pred_check
      _
    $region47: #{generator_forward.1} parent=1 // pred_check_branch
      %55 = sbr.rel (0) target = $region49
    $region48: #{generator_forward.1} parent=1 // pred_region
      _
    $region49: #{generator_forward.1} parent=1 // pred_fallthru
      _
    // Predicated region
    $region50: #{generator_forward.1} parent=1 // pred_check
      _
    $region51: #{generator_forward.1} parent=1 // pred_check_branch
      %57 = sbr.rel (0) target = $region53
    $region52: #{generator_forward.1} parent=1 // pred_region
      %59 = vsyncadd [#allocation5], 0
      %s60 = sshll.u32 %s12, 4
      %s61 = int_to_ptr.hbm [resolvable:$true] %s60
      %s62 = sshll.u32 [#allocation4], 4
      %s63 = int_to_ptr.vmem [resolvable:$true] %s62
      %68 = dma.hbm_to_vmem [thread:$0]  %s61, 24576, %s63, [#allocation5], 512, 512, 32
    $region53: #{generator_forward.1} parent=1 // pred_fallthru
      _
    // Predicated region
    $region54: #{generator_forward.1} parent=1 // pred_check
      _
    $region55: #{generator_forward.1} parent=1 // pred_check_branch
      %70 = sbr.rel (0) target = $region57
    $region56: #{generator_forward.1} parent=1 // pred_region
      _
    $region57: #{generator_forward.1} parent=1 // pred_fallthru
      _
    // Predicated region
    $region58: #{generator_forward.1} parent=1 // pred_check
      _
    $region59: #{generator_forward.1} parent=1 // pred_check_branch
      %72 = sbr.rel (0) target = $region61
    $region60: #{generator_forward.1} parent=1 // pred_region
      %74 = dma.done [#allocation3], 36864
    $region61: #{generator_forward.1} parent=1 // pred_fallthru
      _
    // Predicated region
    $region62: #{generator_forward.1} parent=1 // pred_check
      _
    $region63: #{generator_forward.1} parent=1 // pred_check_branch
      %76 = sbr.rel (0) target = $region65
    $region64: #{generator_forward.1} parent=1 // pred_region
      %78 = dma.done [#allocation5], 24576
    $region65: #{generator_forward.1} parent=1 // pred_fallthru
      _
    %v80 = vld [vmem:[%s0] sm:$0xff]
    %v81 = vpack.c.bf16 %v80, %v80
    %v82 = vld [vmem:[%s1] sm:$0xff]
    %v83 = vld [vmem:[%s1 + $0x8] sm:$0xff]
    %v84 = vld [vmem:[%s1 + $0x10] sm:$0xff]
    %v85 = vld [vmem:[%s1 + $0x18] sm:$0xff]
    %v86 = vld [vmem:[%s2] sm:$0x3]
    %v88 = vperm.slane %v86, 0
    %v89 = vperm.slane %v86, 1
    %v96 = vunpack.c.l.b16 %v82
    %v97 = vunpack.c.h.b16 %v82
    %v98 = vunpack.c.l.b16 %v83
    %v99 = vunpack.c.h.b16 %v83
    %v100 = vunpack.c.l.b16 %v84
    %v101 = vunpack.c.h.b16 %v84
    %v102 = vunpack.c.l.b16 %v85
    %v103 = vunpack.c.h.b16 %v85
    %v104 = vpack.c.b16 %v98, %v96
    %v105 = vpack.c.b16 %v99, %v97
    %v106 = vpack.c.b16 %v102, %v100
    %v107 = vpack.c.b16 %v103, %v101
    %vm112 = vcmask 261120
    %v114 = vsel %vm112, %v81, 0
    %116 = vmatpush.bf16.msra.mxu0 0
    %117 = vmatpush.bf16.msra.mxu0 0
    %118 = vmatpush.bf16.msra.mxu0 0
    %119 = vmatpush.bf16.msra.mxu0 0
    %120 = vmatpush.bf16.msra.mxu0 0
    %121 = vmatpush.bf16.msra.mxu0 0
    %122 = vmatpush.bf16.msra.mxu0 %v106
    %123 = vmatpush.bf16.msra.mxu0 %v104
    %124 = vmatmul.bf16.gmra.mxu0 %v114
    %v125 = vpop.f32.mrf.mxu0
    %v126 = vadd.f32 %v88, %v125
    %v127 = vpop.f32.mrf.mxu0
    %128 = vdwg.mxu0
    %129 = vmatpush.bf16.msra.mxu0 0
    %130 = vmatpush.bf16.msra.mxu0 0
    %131 = vmatpush.bf16.msra.mxu0 0
    %132 = vmatpush.bf16.msra.mxu0 0
    %133 = vmatpush.bf16.msra.mxu0 0
    %134 = vmatpush.bf16.msra.mxu0 0
    %135 = vmatpush.bf16.msra.mxu0 %v107
    %136 = vmatpush.bf16.msra.mxu0 %v105
    %137 = vmatmul.bf16.gmra.mxu0 %v114
    %v138 = vpop.f32.mrf.mxu0
    %v139 = vadd.f32 %v89, %v138
    %v140 = vpop.f32.mrf.mxu0
    %141 = vdwg.mxu0
    %v142 = vmax.f32 %v126, 0.0
    %v143 = vmax.f32 %v139, 0.0
    %v144 = vpack.c.bf16 %v142, %v142
    %v145 = vpack.c.bf16 %v143, %v143
    %v146 = vld [vmem:[%s3] sm:$0xff]
    %v147 = vld [vmem:[%s3 + $0x8] sm:$0xf]
    %v148 = vld [vmem:[%s3 + $0x30] sm:$0xff]
    %v149 = vld [vmem:[%s3 + $0x38] sm:$0xf]
    %v150 = vld [vmem:[%s3 + $0x60] sm:$0xff]
    %v151 = vld [vmem:[%s3 + $0x68] sm:$0xf]
    %v152 = vld [vmem:[%s3 + $0x90] sm:$0xff]
    %v153 = vld [vmem:[%s3 + $0x98] sm:$0xf]
    %v154 = vld [vmem:[%s3 + $0xc0] sm:$0xff]
    %v155 = vld [vmem:[%s3 + $0xc8] sm:$0xf]
    %v156 = vld [vmem:[%s3 + $0xf0] sm:$0xff]
    %v157 = vld [vmem:[%s3 + $0xf8] sm:$0xf]
    %v158 = vld [vmem:[%s3 + $0x120] sm:$0xff]
    %v159 = vld [vmem:[%s3 + $0x128] sm:$0xf]
    %v160 = vld [vmem:[%s3 + $0x150] sm:$0xff]
    %v161 = vld [vmem:[%s3 + $0x158] sm:$0xf]
    %v162 = vld [vmem:[%s3 + $0x180] sm:$0xff]
    %v163 = vld [vmem:[%s3 + $0x188] sm:$0xf]
    %v164 = vld [vmem:[%s3 + $0x1b0] sm:$0xff]
    %v165 = vld [vmem:[%s3 + $0x1b8] sm:$0xf]
    %v166 = vld [vmem:[%s3 + $0x1e0] sm:$0xff]
    %v167 = vld [vmem:[%s3 + $0x1e8] sm:$0xf]
    %v168 = vld [vmem:[%s3 + $0x210] sm:$0xff]
    %v169 = vld [vmem:[%s3 + $0x218] sm:$0xf]
    %v170 = vld [vmem:[%s3 + $0x240] sm:$0xff]
    %v171 = vld [vmem:[%s3 + $0x248] sm:$0xf]
    %v172 = vld [vmem:[%s3 + $0x270] sm:$0xff]
    %v173 = vld [vmem:[%s3 + $0x278] sm:$0xf]
    %v174 = vld [vmem:[%s3 + $0x2a0] sm:$0xff]
    %v175 = vld [vmem:[%s3 + $0x2a8] sm:$0xf]
    %v176 = vld [vmem:[%s3 + $0x2d0] sm:$0xff]
    %v177 = vld [vmem:[%s3 + $0x2d8] sm:$0xf]
    %v178 = vld [vmem:[%s3 + $0x300] sm:$0xff]
    %v179 = vld [vmem:[%s3 + $0x308] sm:$0xf]
    %v180 = vld [vmem:[%s3 + $0x330] sm:$0xff]
    %v181 = vld [vmem:[%s3 + $0x338] sm:$0xf]
    %v182 = vld [vmem:[%s3 + $0x360] sm:$0xff]
    %v183 = vld [vmem:[%s3 + $0x368] sm:$0xf]
    %v184 = vld [vmem:[%s3 + $0x390] sm:$0xff]
    %v185 = vld [vmem:[%s3 + $0x398] sm:$0xf]
    %v186 = vld [vmem:[%s3 + $0x3c0] sm:$0xff]
    %v187 = vld [vmem:[%s3 + $0x3c8] sm:$0xf]
    %v188 = vld [vmem:[%s3 + $0x3f0] sm:$0xff]
    %v189 = vld [vmem:[%s3 + $0x3f8] sm:$0xf]
    %v190 = vld [vmem:[%s3 + $0x420] sm:$0xff]
    %v191 = vld [vmem:[%s3 + $0x428] sm:$0xf]
    %v192 = vld [vmem:[%s3 + $0x450] sm:$0xff]
    %v193 = vld [vmem:[%s3 + $0x458] sm:$0xf]
    %v194 = vld [vmem:[%s3 + $0x480] sm:$0xff]
    %v195 = vld [vmem:[%s3 + $0x488] sm:$0xf]
    %v196 = vld [vmem:[%s3 + $0x4b0] sm:$0xff]
    %v197 = vld [vmem:[%s3 + $0x4b8] sm:$0xf]
    %v198 = vld [vmem:[%s3 + $0x4e0] sm:$0xff]
    %v199 = vld [vmem:[%s3 + $0x4e8] sm:$0xf]
    %v200 = vld [vmem:[%s3 + $0x510] sm:$0xff]
    %v201 = vld [vmem:[%s3 + $0x518] sm:$0xf]
    %v202 = vld [vmem:[%s3 + $0x540] sm:$0xff]
    %v203 = vld [vmem:[%s3 + $0x548] sm:$0xf]
    %v204 = vld [vmem:[%s3 + $0x570] sm:$0xff]
    %v205 = vld [vmem:[%s3 + $0x578] sm:$0xf]
    %v206 = vld [vmem:[%s3 + $0x5a0] sm:$0xff]
    %v207 = vld [vmem:[%s3 + $0x5a8] sm:$0xf]
    %v208 = vld [vmem:[%s3 + $0x5d0] sm:$0xff]
    %v209 = vld [vmem:[%s3 + $0x5d8] sm:$0xf]
    %v274 = vunpack.c.l.b16 %v146
    %v275 = vunpack.c.h.b16 %v146
    %v276 = vunpack.c.l.b16 %v147
    %v277 = vunpack.c.l.b16 %v148
    %v278 = vunpack.c.h.b16 %v148
    %v279 = vunpack.c.l.b16 %v149
    %v280 = vunpack.c.l.b16 %v150
    %v281 = vunpack.c.h.b16 %v150
    %v282 = vunpack.c.l.b16 %v151
    %v283 = vunpack.c.l.b16 %v152
    %v284 = vunpack.c.h.b16 %v152
    %v285 = vunpack.c.l.b16 %v153
    %v286 = vunpack.c.l.b16 %v154
    %v287 = vunpack.c.h.b16 %v154
    %v288 = vunpack.c.l.b16 %v155
    %v289 = vunpack.c.l.b16 %v156
    %v290 = vunpack.c.h.b16 %v156
    %v291 = vunpack.c.l.b16 %v157
    %v292 = vunpack.c.l.b16 %v158
    %v293 = vunpack.c.h.b16 %v158
    %v294 = vunpack.c.l.b16 %v159
    %v295 = vunpack.c.l.b16 %v160
    %v296 = vunpack.c.h.b16 %v160
    %v297 = vunpack.c.l.b16 %v161
    %v298 = vunpack.c.l.b16 %v162
    %v299 = vunpack.c.h.b16 %v162
    %v300 = vunpack.c.l.b16 %v163
    %v301 = vunpack.c.l.b16 %v164
    %v302 = vunpack.c.h.b16 %v164
    %v303 = vunpack.c.l.b16 %v165
    %v304 = vunpack.c.l.b16 %v166
    %v305 = vunpack.c.h.b16 %v166
    %v306 = vunpack.c.l.b16 %v167
    %v307 = vunpack.c.l.b16 %v168
    %v308 = vunpack.c.h.b16 %v168
    %v309 = vunpack.c.l.b16 %v169
    %v310 = vunpack.c.l.b16 %v170
    %v311 = vunpack.c.h.b16 %v170
    %v312 = vunpack.c.l.b16 %v171
    %v313 = vunpack.c.l.b16 %v172
    %v314 = vunpack.c.h.b16 %v172
    %v315 = vunpack.c.l.b16 %v173
    %v316 = vunpack.c.l.b16 %v174
    %v317 = vunpack.c.h.b16 %v174
    %v318 = vunpack.c.l.b16 %v175
    %v319 = vunpack.c.l.b16 %v176
    %v320 = vunpack.c.h.b16 %v176
    %v321 = vunpack.c.l.b16 %v177
    %v322 = vunpack.c.l.b16 %v178
    %v323 = vunpack.c.h.b16 %v178
    %v324 = vunpack.c.l.b16 %v179
    %v325 = vunpack.c.l.b16 %v180
    %v326 = vunpack.c.h.b16 %v180
    %v327 = vunpack.c.l.b16 %v181
    %v328 = vunpack.c.l.b16 %v182
    %v329 = vunpack.c.h.b16 %v182
    %v330 = vunpack.c.l.b16 %v183
    %v331 = vunpack.c.l.b16 %v184
    %v332 = vunpack.c.h.b16 %v184
    %v333 = vunpack.c.l.b16 %v185
    %v334 = vunpack.c.l.b16 %v186
    %v335 = vunpack.c.h.b16 %v186
    %v336 = vunpack.c.l.b16 %v187
    %v337 = vunpack.c.l.b16 %v188
    %v338 = vunpack.c.h.b16 %v188
    %v339 = vunpack.c.l.b16 %v189
    %v340 = vunpack.c.l.b16 %v190
    %v341 = vunpack.c.h.b16 %v190
    %v342 = vunpack.c.l.b16 %v191
    %v343 = vunpack.c.l.b16 %v192
    %v344 = vunpack.c.h.b16 %v192
    %v345 = vunpack.c.l.b16 %v193
    %v346 = vunpack.c.l.b16 %v194
    %v347 = vunpack.c.h.b16 %v194
    %v348 = vunpack.c.l.b16 %v195
    %v349 = vunpack.c.l.b16 %v196
    %v350 = vunpack.c.h.b16 %v196
    %v351 = vunpack.c.l.b16 %v197
    %v352 = vunpack.c.l.b16 %v198
    %v353 = vunpack.c.h.b16 %v198
    %v354 = vunpack.c.l.b16 %v199
    %v355 = vunpack.c.l.b16 %v200
    %v356 = vunpack.c.h.b16 %v200
    %v357 = vunpack.c.l.b16 %v201
    %v358 = vunpack.c.l.b16 %v202
    %v359 = vunpack.c.h.b16 %v202
    %v360 = vunpack.c.l.b16 %v203
    %v361 = vunpack.c.l.b16 %v204
    %v362 = vunpack.c.h.b16 %v204
    %v363 = vunpack.c.l.b16 %v205
    %v364 = vunpack.c.l.b16 %v206
    %v365 = vunpack.c.h.b16 %v206
    %v366 = vunpack.c.l.b16 %v207
    %v367 = vunpack.c.l.b16 %v208
    %v368 = vunpack.c.h.b16 %v208
    %v369 = vunpack.c.l.b16 %v209
    %v370 = vpack.c.b16 %v277, %v274
    %v371 = vpack.c.b16 %v278, %v275
    %v372 = vpack.c.b16 %v279, %v276
    %v373 = vpack.c.b16 %v283, %v280
    %v374 = vpack.c.b16 %v284, %v281
    %v375 = vpack.c.b16 %v285, %v282
    %v376 = vpack.c.b16 %v289, %v286
    %v377 = vpack.c.b16 %v290, %v287
    %v378 = vpack.c.b16 %v291, %v288
    %v379 = vpack.c.b16 %v295, %v292
    %v380 = vpack.c.b16 %v296, %v293
    %v381 = vpack.c.b16 %v297, %v294
    %v382 = vpack.c.b16 %v301, %v298
    %v383 = vpack.c.b16 %v302, %v299
    %v384 = vpack.c.b16 %v303, %v300
    %v385 = vpack.c.b16 %v307, %v304
    %v386 = vpack.c.b16 %v308, %v305
    %v387 = vpack.c.b16 %v309, %v306
    %v388 = vpack.c.b16 %v313, %v310
    %v389 = vpack.c.b16 %v314, %v311
    %v390 = vpack.c.b16 %v315, %v312
    %v391 = vpack.c.b16 %v319, %v316
    %v392 = vpack.c.b16 %v320, %v317
    %v393 = vpack.c.b16 %v321, %v318
    %v394 = vpack.c.b16 %v325, %v322
    %v395 = vpack.c.b16 %v326, %v323
    %v396 = vpack.c.b16 %v327, %v324
    %v397 = vpack.c.b16 %v331, %v328
    %v398 = vpack.c.b16 %v332, %v329
    %v399 = vpack.c.b16 %v333, %v330
    %v400 = vpack.c.b16 %v337, %v334
    %v401 = vpack.c.b16 %v338, %v335
    %v402 = vpack.c.b16 %v339, %v336
    %v403 = vpack.c.b16 %v343, %v340
    %v404 = vpack.c.b16 %v344, %v341
    %v405 = vpack.c.b16 %v345, %v342
    %v406 = vpack.c.b16 %v349, %v346
    %v407 = vpack.c.b16 %v350, %v347
    %v408 = vpack.c.b16 %v351, %v348
    %v409 = vpack.c.b16 %v355, %v352
    %v410 = vpack.c.b16 %v356, %v353
    %v411 = vpack.c.b16 %v357, %v354
    %v412 = vpack.c.b16 %v361, %v358
    %v413 = vpack.c.b16 %v362, %v359
    %v414 = vpack.c.b16 %v363, %v360
    %v415 = vpack.c.b16 %v367, %v364
    %v416 = vpack.c.b16 %v368, %v365
    %v417 = vpack.c.b16 %v369, %v366
    %466 = vmatpush.bf16.msra.mxu0 %v391
    %467 = vmatpush.bf16.msra.mxu0 %v388
    %468 = vmatpush.bf16.msra.mxu0 %v385
    %469 = vmatpush.bf16.msra.mxu0 %v382
    %470 = vmatpush.bf16.msra.mxu0 %v379
    %471 = vmatpush.bf16.msra.mxu0 %v376
    %472 = vmatpush.bf16.msra.mxu0 %v373
    %473 = vmatpush.bf16.msra.mxu0 %v370
    %474 = vmatmul.bf16.gmra.mxu0 %v144
    %v475 = vpop.f32.mrf.mxu0
    %v476 = vadd.f32 0.0, %v475
    %v477 = vpop.f32.mrf.mxu0
    %478 = vdwg.mxu0
    %479 = vmatpush.bf16.msra.mxu0 %v415
    %480 = vmatpush.bf16.msra.mxu0 %v412
    %481 = vmatpush.bf16.msra.mxu0 %v409
    %482 = vmatpush.bf16.msra.mxu0 %v406
    %483 = vmatpush.bf16.msra.mxu0 %v403
    %484 = vmatpush.bf16.msra.mxu0 %v400
    %485 = vmatpush.bf16.msra.mxu0 %v397
    %486 = vmatpush.bf16.msra.mxu0 %v394
    %487 = vmatmul.bf16.gmra.mxu0 %v145
    %v488 = vpop.f32.mrf.mxu0
    %v489 = vadd.f32 %v476, %v488
    %v490 = vpop.f32.mrf.mxu0
    %491 = vdwg.mxu0
    %492 = vmatpush.bf16.msra.mxu0 %v392
    %493 = vmatpush.bf16.msra.mxu0 %v389
    %494 = vmatpush.bf16.msra.mxu0 %v386
    %495 = vmatpush.bf16.msra.mxu0 %v383
    %496 = vmatpush.bf16.msra.mxu0 %v380
    %497 = vmatpush.bf16.msra.mxu0 %v377
    %498 = vmatpush.bf16.msra.mxu0 %v374
    %499 = vmatpush.bf16.msra.mxu0 %v371
    %500 = vmatmul.bf16.gmra.mxu0 %v144
    %v501 = vpop.f32.mrf.mxu0
    %v502 = vadd.f32 0.0, %v501
    %v503 = vpop.f32.mrf.mxu0
    %504 = vdwg.mxu0
    %505 = vmatpush.bf16.msra.mxu0 %v416
    %506 = vmatpush.bf16.msra.mxu0 %v413
    %507 = vmatpush.bf16.msra.mxu0 %v410
    %508 = vmatpush.bf16.msra.mxu0 %v407
    %509 = vmatpush.bf16.msra.mxu0 %v404
    %510 = vmatpush.bf16.msra.mxu0 %v401
    %511 = vmatpush.bf16.msra.mxu0 %v398
    %512 = vmatpush.bf16.msra.mxu0 %v395
    %513 = vmatmul.bf16.gmra.mxu0 %v145
    %v514 = vpop.f32.mrf.mxu0
    %v515 = vadd.f32 %v502, %v514
    %v516 = vpop.f32.mrf.mxu0
    %517 = vdwg.mxu0
    %518 = vmatpush.bf16.msra.mxu0 %v393
    %519 = vmatpush.bf16.msra.mxu0 %v390
    %520 = vmatpush.bf16.msra.mxu0 %v387
    %521 = vmatpush.bf16.msra.mxu0 %v384
    %522 = vmatpush.bf16.msra.mxu0 %v381
    %523 = vmatpush.bf16.msra.mxu0 %v378
    %524 = vmatpush.bf16.msra.mxu0 %v375
    %525 = vmatpush.bf16.msra.mxu0 %v372
    %526 = vmatmul.bf16.gmra.mxu0 %v144
    %v527 = vpop.f32.mrf.mxu0
    %v528 = vadd.f32 0.0, %v527
    %v529 = vpop.f32.mrf.mxu0
    %530 = vdwg.mxu0
    %531 = vmatpush.bf16.msra.mxu0 %v417
    %532 = vmatpush.bf16.msra.mxu0 %v414
    %533 = vmatpush.bf16.msra.mxu0 %v411
    %534 = vmatpush.bf16.msra.mxu0 %v408
    %535 = vmatpush.bf16.msra.mxu0 %v405
    %536 = vmatpush.bf16.msra.mxu0 %v402
    %537 = vmatpush.bf16.msra.mxu0 %v399
    %538 = vmatpush.bf16.msra.mxu0 %v396
    %539 = vmatmul.bf16.gmra.mxu0 %v145
    %v540 = vpop.f32.mrf.mxu0
    %v541 = vadd.f32 %v528, %v540
    %v542 = vpop.f32.mrf.mxu0
    %543 = vdwg.mxu0
    %v544 = vld [vmem:[%s4] sm:$0xff]
    %v545 = vld [vmem:[%s4 + $0x8] sm:$0xff]
    %v546 = vld [vmem:[%s3 + $0xc] sm:$0xff]
    %v547 = vld [vmem:[%s3 + $0x14] sm:$0xf]
    %v548 = vld [vmem:[%s3 + $0x3c] sm:$0xff]
    %v549 = vld [vmem:[%s3 + $0x44] sm:$0xf]
    %v550 = vld [vmem:[%s3 + $0x6c] sm:$0xff]
    %v551 = vld [vmem:[%s3 + $0x74] sm:$0xf]
    %v552 = vld [vmem:[%s3 + $0x9c] sm:$0xff]
    %v553 = vld [vmem:[%s3 + $0xa4] sm:$0xf]
    %v554 = vld [vmem:[%s3 + $0xcc] sm:$0xff]
    %v555 = vld [vmem:[%s3 + $0xd4] sm:$0xf]
    %v556 = vld [vmem:[%s3 + $0xfc] sm:$0xff]
    %v557 = vld [vmem:[%s3 + $0x104] sm:$0xf]
    %v558 = vld [vmem:[%s3 + $0x12c] sm:$0xff]
    %v559 = vld [vmem:[%s3 + $0x134] sm:$0xf]
    %v560 = vld [vmem:[%s3 + $0x15c] sm:$0xff]
    %v561 = vld [vmem:[%s3 + $0x164] sm:$0xf]
    %v562 = vld [vmem:[%s3 + $0x18c] sm:$0xff]
    %v563 = vld [vmem:[%s3 + $0x194] sm:$0xf]
    %v564 = vld [vmem:[%s3 + $0x1bc] sm:$0xff]
    %v565 = vld [vmem:[%s3 + $0x1c4] sm:$0xf]
    %v566 = vld [vmem:[%s3 + $0x1ec] sm:$0xff]
    %v567 = vld [vmem:[%s3 + $0x1f4] sm:$0xf]
    %v568 = vld [vmem:[%s3 + $0x21c] sm:$0xff]
    %v569 = vld [vmem:[%s3 + $0x224] sm:$0xf]
    %v570 = vld [vmem:[%s3 + $0x24c] sm:$0xff]
    %v571 = vld [vmem:[%s3 + $0x254] sm:$0xf]
    %v572 = vld [vmem:[%s3 + $0x27c] sm:$0xff]
    %v573 = vld [vmem:[%s3 + $0x284] sm:$0xf]
    %v574 = vld [vmem:[%s3 + $0x2ac] sm:$0xff]
    %v575 = vld [vmem:[%s3 + $0x2b4] sm:$0xf]
    %v576 = vld [vmem:[%s3 + $0x2dc] sm:$0xff]
    %v577 = vld [vmem:[%s3 + $0x2e4] sm:$0xf]
    %v578 = vld [vmem:[%s3 + $0x30c] sm:$0xff]
    %v579 = vld [vmem:[%s3 + $0x314] sm:$0xf]
    %v580 = vld [vmem:[%s3 + $0x33c] sm:$0xff]
    %v581 = vld [vmem:[%s3 + $0x344] sm:$0xf]
    %v582 = vld [vmem:[%s3 + $0x36c] sm:$0xff]
    %v583 = vld [vmem:[%s3 + $0x374] sm:$0xf]
    %v584 = vld [vmem:[%s3 + $0x39c] sm:$0xff]
    %v585 = vld [vmem:[%s3 + $0x3a4] sm:$0xf]
    %v586 = vld [vmem:[%s3 + $0x3cc] sm:$0xff]
    %v587 = vld [vmem:[%s3 + $0x3d4] sm:$0xf]
    %v588 = vld [vmem:[%s3 + $0x3fc] sm:$0xff]
    %v589 = vld [vmem:[%s3 + $0x404] sm:$0xf]
    %v590 = vld [vmem:[%s3 + $0x42c] sm:$0xff]
    %v591 = vld [vmem:[%s3 + $0x434] sm:$0xf]
    %v592 = vld [vmem:[%s3 + $0x45c] sm:$0xff]
    %v593 = vld [vmem:[%s3 + $0x464] sm:$0xf]
    %v594 = vld [vmem:[%s3 + $0x48c] sm:$0xff]
    %v595 = vld [vmem:[%s3 + $0x494] sm:$0xf]
    %v596 = vld [vmem:[%s3 + $0x4bc] sm:$0xff]
    %v597 = vld [vmem:[%s3 + $0x4c4] sm:$0xf]
    %v598 = vld [vmem:[%s3 + $0x4ec] sm:$0xff]
    %v599 = vld [vmem:[%s3 + $0x4f4] sm:$0xf]
    %v600 = vld [vmem:[%s3 + $0x51c] sm:$0xff]
    %v601 = vld [vmem:[%s3 + $0x524] sm:$0xf]
    %v602 = vld [vmem:[%s3 + $0x54c] sm:$0xff]
    %v603 = vld [vmem:[%s3 + $0x554] sm:$0xf]
    %v604 = vld [vmem:[%s3 + $0x57c] sm:$0xff]
    %v605 = vld [vmem:[%s3 + $0x584] sm:$0xf]
    %v606 = vld [vmem:[%s3 + $0x5ac] sm:$0xff]
    %v607 = vld [vmem:[%s3 + $0x5b4] sm:$0xf]
    %v608 = vld [vmem:[%s3 + $0x5dc] sm:$0xff]
    %v609 = vld [vmem:[%s3 + $0x5e4] sm:$0xf]
    %v674 = vunpack.c.l.b16 %v546
    %v675 = vunpack.c.h.b16 %v546
    %v676 = vunpack.c.l.b16 %v547
    %v677 = vunpack.c.l.b16 %v548
    %v678 = vunpack.c.h.b16 %v548
    %v679 = vunpack.c.l.b16 %v549
    %v680 = vunpack.c.l.b16 %v550
    %v681 = vunpack.c.h.b16 %v550
    %v682 = vunpack.c.l.b16 %v551
    %v683 = vunpack.c.l.b16 %v552
    %v684 = vunpack.c.h.b16 %v552
    %v685 = vunpack.c.l.b16 %v553
    %v686 = vunpack.c.l.b16 %v554
    %v687 = vunpack.c.h.b16 %v554
    %v688 = vunpack.c.l.b16 %v555
    %v689 = vunpack.c.l.b16 %v556
    %v690 = vunpack.c.h.b16 %v556
    %v691 = vunpack.c.l.b16 %v557
    %v692 = vunpack.c.l.b16 %v558
    %v693 = vunpack.c.h.b16 %v558
    %v694 = vunpack.c.l.b16 %v559
    %v695 = vunpack.c.l.b16 %v560
    %v696 = vunpack.c.h.b16 %v560
    %v697 = vunpack.c.l.b16 %v561
    %v698 = vunpack.c.l.b16 %v562
    %v699 = vunpack.c.h.b16 %v562
    %v700 = vunpack.c.l.b16 %v563
    %v701 = vunpack.c.l.b16 %v564
    %v702 = vunpack.c.h.b16 %v564
    %v703 = vunpack.c.l.b16 %v565
    %v704 = vunpack.c.l.b16 %v566
    %v705 = vunpack.c.h.b16 %v566
    %v706 = vunpack.c.l.b16 %v567
    %v707 = vunpack.c.l.b16 %v568
    %v708 = vunpack.c.h.b16 %v568
    %v709 = vunpack.c.l.b16 %v569
    %v710 = vunpack.c.l.b16 %v570
    %v711 = vunpack.c.h.b16 %v570
    %v712 = vunpack.c.l.b16 %v571
    %v713 = vunpack.c.l.b16 %v572
    %v714 = vunpack.c.h.b16 %v572
    %v715 = vunpack.c.l.b16 %v573
    %v716 = vunpack.c.l.b16 %v574
    %v717 = vunpack.c.h.b16 %v574
    %v718 = vunpack.c.l.b16 %v575
    %v719 = vunpack.c.l.b16 %v576
    %v720 = vunpack.c.h.b16 %v576
    %v721 = vunpack.c.l.b16 %v577
    %v722 = vunpack.c.l.b16 %v578
    %v723 = vunpack.c.h.b16 %v578
    %v724 = vunpack.c.l.b16 %v579
    %v725 = vunpack.c.l.b16 %v580
    %v726 = vunpack.c.h.b16 %v580
    %v727 = vunpack.c.l.b16 %v581
    %v728 = vunpack.c.l.b16 %v582
    %v729 = vunpack.c.h.b16 %v582
    %v730 = vunpack.c.l.b16 %v583
    %v731 = vunpack.c.l.b16 %v584
    %v732 = vunpack.c.h.b16 %v584
    %v733 = vunpack.c.l.b16 %v585
    %v734 = vunpack.c.l.b16 %v586
    %v735 = vunpack.c.h.b16 %v586
    %v736 = vunpack.c.l.b16 %v587
    %v737 = vunpack.c.l.b16 %v588
    %v738 = vunpack.c.h.b16 %v588
    %v739 = vunpack.c.l.b16 %v589
    %v740 = vunpack.c.l.b16 %v590
    %v741 = vunpack.c.h.b16 %v590
    %v742 = vunpack.c.l.b16 %v591
    %v743 = vunpack.c.l.b16 %v592
    %v744 = vunpack.c.h.b16 %v592
    %v745 = vunpack.c.l.b16 %v593
    %v746 = vunpack.c.l.b16 %v594
    %v747 = vunpack.c.h.b16 %v594
    %v748 = vunpack.c.l.b16 %v595
    %v749 = vunpack.c.l.b16 %v596
    %v750 = vunpack.c.h.b16 %v596
    %v751 = vunpack.c.l.b16 %v597
    %v752 = vunpack.c.l.b16 %v598
    %v753 = vunpack.c.h.b16 %v598
    %v754 = vunpack.c.l.b16 %v599
    %v755 = vunpack.c.l.b16 %v600
    %v756 = vunpack.c.h.b16 %v600
    %v757 = vunpack.c.l.b16 %v601
    %v758 = vunpack.c.l.b16 %v602
    %v759 = vunpack.c.h.b16 %v602
    %v760 = vunpack.c.l.b16 %v603
    %v761 = vunpack.c.l.b16 %v604
    %v762 = vunpack.c.h.b16 %v604
    %v763 = vunpack.c.l.b16 %v605
    %v764 = vunpack.c.l.b16 %v606
    %v765 = vunpack.c.h.b16 %v606
    %v766 = vunpack.c.l.b16 %v607
    %v767 = vunpack.c.l.b16 %v608
    %v768 = vunpack.c.h.b16 %v608
    %v769 = vunpack.c.l.b16 %v609
    %v770 = vpack.c.b16 %v677, %v674
    %v771 = vpack.c.b16 %v678, %v675
    %v772 = vpack.c.b16 %v679, %v676
    %v773 = vpack.c.b16 %v683, %v680
    %v774 = vpack.c.b16 %v684, %v681
    %v775 = vpack.c.b16 %v685, %v682
    %v776 = vpack.c.b16 %v689, %v686
    %v777 = vpack.c.b16 %v690, %v687
    %v778 = vpack.c.b16 %v691, %v688
    %v779 = vpack.c.b16 %v695, %v692
    %v780 = vpack.c.b16 %v696, %v693
    %v781 = vpack.c.b16 %v697, %v694
    %v782 = vpack.c.b16 %v701, %v698
    %v783 = vpack.c.b16 %v702, %v699
    %v784 = vpack.c.b16 %v703, %v700
    %v785 = vpack.c.b16 %v707, %v704
    %v786 = vpack.c.b16 %v708, %v705
    %v787 = vpack.c.b16 %v709, %v706
    %v788 = vpack.c.b16 %v713, %v710
    %v789 = vpack.c.b16 %v714, %v711
    %v790 = vpack.c.b16 %v715, %v712
    %v791 = vpack.c.b16 %v719, %v716
    %v792 = vpack.c.b16 %v720, %v717
    %v793 = vpack.c.b16 %v721, %v718
    %v794 = vpack.c.b16 %v725, %v722
    %v795 = vpack.c.b16 %v726, %v723
    %v796 = vpack.c.b16 %v727, %v724
    %v797 = vpack.c.b16 %v731, %v728
    %v798 = vpack.c.b16 %v732, %v729
    %v799 = vpack.c.b16 %v733, %v730
    %v800 = vpack.c.b16 %v737, %v734
    %v801 = vpack.c.b16 %v738, %v735
    %v802 = vpack.c.b16 %v739, %v736
    %v803 = vpack.c.b16 %v743, %v740
    %v804 = vpack.c.b16 %v744, %v741
    %v805 = vpack.c.b16 %v745, %v742
    %v806 = vpack.c.b16 %v749, %v746
    %v807 = vpack.c.b16 %v750, %v747
    %v808 = vpack.c.b16 %v751, %v748
    %v809 = vpack.c.b16 %v755, %v752
    %v810 = vpack.c.b16 %v756, %v753
    %v811 = vpack.c.b16 %v757, %v754
    %v812 = vpack.c.b16 %v761, %v758
    %v813 = vpack.c.b16 %v762, %v759
    %v814 = vpack.c.b16 %v763, %v760
    %v815 = vpack.c.b16 %v767, %v764
    %v816 = vpack.c.b16 %v768, %v765
    %v817 = vpack.c.b16 %v769, %v766
    %866 = vmatpush.bf16.msra.mxu0 %v791
    %867 = vmatpush.bf16.msra.mxu0 %v788
    %868 = vmatpush.bf16.msra.mxu0 %v785
    %869 = vmatpush.bf16.msra.mxu0 %v782
    %870 = vmatpush.bf16.msra.mxu0 %v779
    %871 = vmatpush.bf16.msra.mxu0 %v776
    %872 = vmatpush.bf16.msra.mxu0 %v773
    %873 = vmatpush.bf16.msra.mxu0 %v770
    %874 = vmatmul.bf16.gmra.mxu0 %v144
    %v875 = vpop.f32.mrf.mxu0
    %v876 = vadd.f32 0.0, %v875
    %v877 = vpop.f32.mrf.mxu0
    %878 = vdwg.mxu0
    %879 = vmatpush.bf16.msra.mxu0 %v815
    %880 = vmatpush.bf16.msra.mxu0 %v812
    %881 = vmatpush.bf16.msra.mxu0 %v809
    %882 = vmatpush.bf16.msra.mxu0 %v806
    %883 = vmatpush.bf16.msra.mxu0 %v803
    %884 = vmatpush.bf16.msra.mxu0 %v800
    %885 = vmatpush.bf16.msra.mxu0 %v797
    %886 = vmatpush.bf16.msra.mxu0 %v794
    %887 = vmatmul.bf16.gmra.mxu0 %v145
    %v888 = vpop.f32.mrf.mxu0
    %v889 = vadd.f32 %v876, %v888
    %v890 = vpop.f32.mrf.mxu0
    %891 = vdwg.mxu0
    %892 = vmatpush.bf16.msra.mxu0 %v792
    %893 = vmatpush.bf16.msra.mxu0 %v789
    %894 = vmatpush.bf16.msra.mxu0 %v786
    %895 = vmatpush.bf16.msra.mxu0 %v783
    %896 = vmatpush.bf16.msra.mxu0 %v780
    %897 = vmatpush.bf16.msra.mxu0 %v777
    %898 = vmatpush.bf16.msra.mxu0 %v774
    %899 = vmatpush.bf16.msra.mxu0 %v771
    %900 = vmatmul.bf16.gmra.mxu0 %v144
    %v901 = vpop.f32.mrf.mxu0
    %v902 = vadd.f32 0.0, %v901
    %v903 = vpop.f32.mrf.mxu0
    %904 = vdwg.mxu0
    %905 = vmatpush.bf16.msra.mxu0 %v816
    %906 = vmatpush.bf16.msra.mxu0 %v813
    %907 = vmatpush.bf16.msra.mxu0 %v810
    %908 = vmatpush.bf16.msra.mxu0 %v807
    %909 = vmatpush.bf16.msra.mxu0 %v804
    %910 = vmatpush.bf16.msra.mxu0 %v801
    %911 = vmatpush.bf16.msra.mxu0 %v798
    %912 = vmatpush.bf16.msra.mxu0 %v795
    %913 = vmatmul.bf16.gmra.mxu0 %v145
    %v914 = vpop.f32.mrf.mxu0
    %v915 = vadd.f32 %v902, %v914
    %v916 = vpop.f32.mrf.mxu0
    %917 = vdwg.mxu0
    %918 = vmatpush.bf16.msra.mxu0 %v793
    %919 = vmatpush.bf16.msra.mxu0 %v790
    %920 = vmatpush.bf16.msra.mxu0 %v787
    %921 = vmatpush.bf16.msra.mxu0 %v784
    %922 = vmatpush.bf16.msra.mxu0 %v781
    %923 = vmatpush.bf16.msra.mxu0 %v778
    %924 = vmatpush.bf16.msra.mxu0 %v775
    %925 = vmatpush.bf16.msra.mxu0 %v772
    %926 = vmatmul.bf16.gmra.mxu0 %v144
    %v927 = vpop.f32.mrf.mxu0
    %v928 = vadd.f32 0.0, %v927
    %v929 = vpop.f32.mrf.mxu0
    %930 = vdwg.mxu0
    %931 = vmatpush.bf16.msra.mxu0 %v817
    %932 = vmatpush.bf16.msra.mxu0 %v814
    %933 = vmatpush.bf16.msra.mxu0 %v811
    %934 = vmatpush.bf16.msra.mxu0 %v808
    %935 = vmatpush.bf16.msra.mxu0 %v805
    %936 = vmatpush.bf16.msra.mxu0 %v802
    %937 = vmatpush.bf16.msra.mxu0 %v799
    %938 = vmatpush.bf16.msra.mxu0 %v796
    %939 = vmatmul.bf16.gmra.mxu0 %v145
    %v940 = vpop.f32.mrf.mxu0
    %v941 = vadd.f32 %v928, %v940
    %v942 = vpop.f32.mrf.mxu0
    %943 = vdwg.mxu0
    %s944 = scalar_lea.vmem %s4, 16
    %v945 = vld [vmem:[%s944] sm:$0xff]
    %v946 = vld [vmem:[%s944 + $0x8] sm:$0xff]
    %vm947 = vcmask 64512
    %v949 = vsel %vm947, %v945, 0
    %v952 = vsel %vm947, %v946, 0
    %954 = vmatpush.msra.mxu0 0.0
    %955 = vmatpush.msra.mxu0 0.0
    %956 = vmatpush.msra.mxu0 0.0
    %957 = vmatpush.msra.mxu0 0.0
    %958 = vmatpush.msra.mxu0 0.0
    %959 = vmatpush.msra.mxu0 0.0
    %960 = vmatpush.msra.mxu0 0.0
    %961 = vmatpush.msra.mxu0 0.0
    %962 = vmatpush.msra.mxu0 0.0
    %963 = vmatpush.msra.mxu0 0.0
    %964 = vmatpush.msra.mxu0 0.0
    %965 = vmatpush.msra.mxu0 0.0
    %966 = vmatpush.msra.mxu0 0.0
    %967 = vmatpush.msra.mxu0 0.0
    %968 = vmatpush.msra.mxu0 0.0
    %969 = vmatpush.msra.mxu0 %v889
    %970 = vmatmul.f32.gmra.mxu0 %v949
    %v971 = vpop.f32.mrf.mxu0
    %v972 = vadd.f32 0.0, %v971
    %973 = vmatmul.f32.gmra.mxu0 %v952
    %v974 = vpop.f32.mrf.mxu0
    %v975 = vadd.f32 0.0, %v974
    %976 = vdwg.mxu0
    %977 = vmatpush.msra.mxu0 0.0
    %978 = vmatpush.msra.mxu0 0.0
    %979 = vmatpush.msra.mxu0 0.0
    %980 = vmatpush.msra.mxu0 0.0
    %981 = vmatpush.msra.mxu0 0.0
    %982 = vmatpush.msra.mxu0 0.0
    %983 = vmatpush.msra.mxu0 0.0
    %984 = vmatpush.msra.mxu0 0.0
    %985 = vmatpush.msra.mxu0 0.0
    %986 = vmatpush.msra.mxu0 0.0
    %987 = vmatpush.msra.mxu0 0.0
    %988 = vmatpush.msra.mxu0 0.0
    %989 = vmatpush.msra.mxu0 0.0
    %990 = vmatpush.msra.mxu0 0.0
    %991 = vmatpush.msra.mxu0 0.0
    %992 = vmatpush.msra.mxu0 %v915
    %993 = vmatmul.f32.gmra.mxu0 %v949
    %v994 = vpop.f32.mrf.mxu0
    %v995 = vadd.f32 0.0, %v994
    %996 = vmatmul.f32.gmra.mxu0 %v952
    %v997 = vpop.f32.mrf.mxu0
    %v998 = vadd.f32 0.0, %v997
    %999 = vdwg.mxu0
    %1000 = vmatpush.msra.mxu0 0.0
    %1001 = vmatpush.msra.mxu0 0.0
    %1002 = vmatpush.msra.mxu0 0.0
    %1003 = vmatpush.msra.mxu0 0.0
    %1004 = vmatpush.msra.mxu0 0.0
    %1005 = vmatpush.msra.mxu0 0.0
    %1006 = vmatpush.msra.mxu0 0.0
    %1007 = vmatpush.msra.mxu0 0.0
    %1008 = vmatpush.msra.mxu0 0.0
    %1009 = vmatpush.msra.mxu0 0.0
    %1010 = vmatpush.msra.mxu0 0.0
    %1011 = vmatpush.msra.mxu0 0.0
    %1012 = vmatpush.msra.mxu0 0.0
    %1013 = vmatpush.msra.mxu0 0.0
    %1014 = vmatpush.msra.mxu0 0.0
    %1015 = vmatpush.msra.mxu0 %v941
    %1016 = vmatmul.f32.gmra.mxu0 %v949
    %v1017 = vpop.f32.mrf.mxu0
    %v1018 = vadd.f32 0.0, %v1017
    %1019 = vmatmul.f32.gmra.mxu0 %v952
    %v1020 = vpop.f32.mrf.mxu0
    %v1021 = vadd.f32 0.0, %v1020
    %1022 = vdwg.mxu0
    %v1024 = vsel %vm947, %v544, 0
    %v1027 = vsel %vm947, %v545, 0
    %1029 = vmatpush.msra.mxu0 0.0
    %1030 = vmatpush.msra.mxu0 0.0
    %1031 = vmatpush.msra.mxu0 0.0
    %1032 = vmatpush.msra.mxu0 0.0
    %1033 = vmatpush.msra.mxu0 0.0
    %1034 = vmatpush.msra.mxu0 0.0
    %1035 = vmatpush.msra.mxu0 0.0
    %1036 = vmatpush.msra.mxu0 0.0
    %1037 = vmatpush.msra.mxu0 0.0
    %1038 = vmatpush.msra.mxu0 0.0
    %1039 = vmatpush.msra.mxu0 0.0
    %1040 = vmatpush.msra.mxu0 0.0
    %1041 = vmatpush.msra.mxu0 0.0
    %1042 = vmatpush.msra.mxu0 0.0
    %1043 = vmatpush.msra.mxu0 0.0
    %1044 = vmatpush.msra.mxu0 %v489
    %1045 = vmatmul.f32.gmra.mxu0 %v1024
    %v1046 = vpop.f32.mrf.mxu0
    %v1047 = vadd.f32 %v972, %v1046
    %1048 = vmatmul.f32.gmra.mxu0 %v1027
    %v1049 = vpop.f32.mrf.mxu0
    %v1050 = vadd.f32 %v975, %v1049
    %1051 = vdwg.mxu0
    %1052 = vmatpush.msra.mxu0 0.0
    %1053 = vmatpush.msra.mxu0 0.0
    %1054 = vmatpush.msra.mxu0 0.0
    %1055 = vmatpush.msra.mxu0 0.0
    %1056 = vmatpush.msra.mxu0 0.0
    %1057 = vmatpush.msra.mxu0 0.0
    %1058 = vmatpush.msra.mxu0 0.0
    %1059 = vmatpush.msra.mxu0 0.0
    %1060 = vmatpush.msra.mxu0 0.0
    %1061 = vmatpush.msra.mxu0 0.0
    %1062 = vmatpush.msra.mxu0 0.0
    %1063 = vmatpush.msra.mxu0 0.0
    %1064 = vmatpush.msra.mxu0 0.0
    %1065 = vmatpush.msra.mxu0 0.0
    %1066 = vmatpush.msra.mxu0 0.0
    %1067 = vmatpush.msra.mxu0 %v515
    %1068 = vmatmul.f32.gmra.mxu0 %v1024
    %v1069 = vpop.f32.mrf.mxu0
    %v1070 = vadd.f32 %v995, %v1069
    %1071 = vmatmul.f32.gmra.mxu0 %v1027
    %v1072 = vpop.f32.mrf.mxu0
    %v1073 = vadd.f32 %v998, %v1072
    %1074 = vdwg.mxu0
    %1075 = vmatpush.msra.mxu0 0.0
    %1076 = vmatpush.msra.mxu0 0.0
    %1077 = vmatpush.msra.mxu0 0.0
    %1078 = vmatpush.msra.mxu0 0.0
    %1079 = vmatpush.msra.mxu0 0.0
    %1080 = vmatpush.msra.mxu0 0.0
    %1081 = vmatpush.msra.mxu0 0.0
    %1082 = vmatpush.msra.mxu0 0.0
    %1083 = vmatpush.msra.mxu0 0.0
    %1084 = vmatpush.msra.mxu0 0.0
    %1085 = vmatpush.msra.mxu0 0.0
    %1086 = vmatpush.msra.mxu0 0.0
    %1087 = vmatpush.msra.mxu0 0.0
    %1088 = vmatpush.msra.mxu0 0.0
    %1089 = vmatpush.msra.mxu0 0.0
    %1090 = vmatpush.msra.mxu0 %v541
    %1091 = vmatmul.f32.gmra.mxu0 %v1024
    %v1092 = vpop.f32.mrf.mxu0
    %v1093 = vadd.f32 %v1018, %v1092
    %1094 = vmatmul.f32.gmra.mxu0 %v1027
    %v1095 = vpop.f32.mrf.mxu0
    %v1096 = vadd.f32 %v1021, %v1095
    %1097 = vdwg.mxu0
    %v1098 = vld [vmem:[%s3 + $0x18] sm:$0xff]
    %v1099 = vld [vmem:[%s3 + $0x20] sm:$0xf]
    %v1100 = vld [vmem:[%s3 + $0x48] sm:$0xff]
    %v1101 = vld [vmem:[%s3 + $0x50] sm:$0xf]
    %v1102 = vld [vmem:[%s3 + $0x78] sm:$0xff]
    %v1103 = vld [vmem:[%s3 + $0x80] sm:$0xf]
    %v1104 = vld [vmem:[%s3 + $0xa8] sm:$0xff]
    %v1105 = vld [vmem:[%s3 + $0xb0] sm:$0xf]
    %v1106 = vld [vmem:[%s3 + $0xd8] sm:$0xff]
    %v1107 = vld [vmem:[%s3 + $0xe0] sm:$0xf]
    %v1108 = vld [vmem:[%s3 + $0x108] sm:$0xff]
    %v1109 = vld [vmem:[%s3 + $0x110] sm:$0xf]
    %v1110 = vld [vmem:[%s3 + $0x138] sm:$0xff]
    %v1111 = vld [vmem:[%s3 + $0x140] sm:$0xf]
    %v1112 = vld [vmem:[%s3 + $0x168] sm:$0xff]
    %v1113 = vld [vmem:[%s3 + $0x170] sm:$0xf]
    %v1114 = vld [vmem:[%s3 + $0x198] sm:$0xff]
    %v1115 = vld [vmem:[%s3 + $0x1a0] sm:$0xf]
    %v1116 = vld [vmem:[%s3 + $0x1c8] sm:$0xff]
    %v1117 = vld [vmem:[%s3 + $0x1d0] sm:$0xf]
    %v1118 = vld [vmem:[%s3 + $0x1f8] sm:$0xff]
    %v1119 = vld [vmem:[%s3 + $0x200] sm:$0xf]
    %v1120 = vld [vmem:[%s3 + $0x228] sm:$0xff]
    %v1121 = vld [vmem:[%s3 + $0x230] sm:$0xf]
    %v1122 = vld [vmem:[%s3 + $0x258] sm:$0xff]
    %v1123 = vld [vmem:[%s3 + $0x260] sm:$0xf]
    %v1124 = vld [vmem:[%s3 + $0x288] sm:$0xff]
    %v1125 = vld [vmem:[%s3 + $0x290] sm:$0xf]
    %v1126 = vld [vmem:[%s3 + $0x2b8] sm:$0xff]
    %v1127 = vld [vmem:[%s3 + $0x2c0] sm:$0xf]
    %v1128 = vld [vmem:[%s3 + $0x2e8] sm:$0xff]
    %v1129 = vld [vmem:[%s3 + $0x2f0] sm:$0xf]
    %v1130 = vld [vmem:[%s3 + $0x318] sm:$0xff]
    %v1131 = vld [vmem:[%s3 + $0x320] sm:$0xf]
    %v1132 = vld [vmem:[%s3 + $0x348] sm:$0xff]
    %v1133 = vld [vmem:[%s3 + $0x350] sm:$0xf]
    %v1134 = vld [vmem:[%s3 + $0x378] sm:$0xff]
    %v1135 = vld [vmem:[%s3 + $0x380] sm:$0xf]
    %v1136 = vld [vmem:[%s3 + $0x3a8] sm:$0xff]
    %v1137 = vld [vmem:[%s3 + $0x3b0] sm:$0xf]
    %v1138 = vld [vmem:[%s3 + $0x3d8] sm:$0xff]
    %v1139 = vld [vmem:[%s3 + $0x3e0] sm:$0xf]
    %v1140 = vld [vmem:[%s3 + $0x408] sm:$0xff]
    %v1141 = vld [vmem:[%s3 + $0x410] sm:$0xf]
    %v1142 = vld [vmem:[%s3 + $0x438] sm:$0xff]
    %v1143 = vld [vmem:[%s3 + $0x440] sm:$0xf]
    %v1144 = vld [vmem:[%s3 + $0x468] sm:$0xff]
    %v1145 = vld [vmem:[%s3 + $0x470] sm:$0xf]
    %v1146 = vld [vmem:[%s3 + $0x498] sm:$0xff]
    %v1147 = vld [vmem:[%s3 + $0x4a0] sm:$0xf]
    %v1148 = vld [vmem:[%s3 + $0x4c8] sm:$0xff]
    %v1149 = vld [vmem:[%s3 + $0x4d0] sm:$0xf]
    %v1150 = vld [vmem:[%s3 + $0x4f8] sm:$0xff]
    %v1151 = vld [vmem:[%s3 + $0x500] sm:$0xf]
    %v1152 = vld [vmem:[%s3 + $0x528] sm:$0xff]
    %v1153 = vld [vmem:[%s3 + $0x530] sm:$0xf]
    %v1154 = vld [vmem:[%s3 + $0x558] sm:$0xff]
    %v1155 = vld [vmem:[%s3 + $0x560] sm:$0xf]
    %v1156 = vld [vmem:[%s3 + $0x588] sm:$0xff]
    %v1157 = vld [vmem:[%s3 + $0x590] sm:$0xf]
    %v1158 = vld [vmem:[%s3 + $0x5b8] sm:$0xff]
    %v1159 = vld [vmem:[%s3 + $0x5c0] sm:$0xf]
    %v1160 = vld [vmem:[%s3 + $0x5e8] sm:$0xff]
    %v1161 = vld [vmem:[%s3 + $0x5f0] sm:$0xf]
    %v1226 = vunpack.c.l.b16 %v1098
    %v1227 = vunpack.c.h.b16 %v1098
    %v1228 = vunpack.c.l.b16 %v1099
    %v1229 = vunpack.c.l.b16 %v1100
    %v1230 = vunpack.c.h.b16 %v1100
    %v1231 = vunpack.c.l.b16 %v1101
    %v1232 = vunpack.c.l.b16 %v1102
    %v1233 = vunpack.c.h.b16 %v1102
    %v1234 = vunpack.c.l.b16 %v1103
    %v1235 = vunpack.c.l.b16 %v1104
    %v1236 = vunpack.c.h.b16 %v1104
    %v1237 = vunpack.c.l.b16 %v1105
    %v1238 = vunpack.c.l.b16 %v1106
    %v1239 = vunpack.c.h.b16 %v1106
    %v1240 = vunpack.c.l.b16 %v1107
    %v1241 = vunpack.c.l.b16 %v1108
    %v1242 = vunpack.c.h.b16 %v1108
    %v1243 = vunpack.c.l.b16 %v1109
    %v1244 = vunpack.c.l.b16 %v1110
    %v1245 = vunpack.c.h.b16 %v1110
    %v1246 = vunpack.c.l.b16 %v1111
    %v1247 = vunpack.c.l.b16 %v1112
    %v1248 = vunpack.c.h.b16 %v1112
    %v1249 = vunpack.c.l.b16 %v1113
    %v1250 = vunpack.c.l.b16 %v1114
    %v1251 = vunpack.c.h.b16 %v1114
    %v1252 = vunpack.c.l.b16 %v1115
    %v1253 = vunpack.c.l.b16 %v1116
    %v1254 = vunpack.c.h.b16 %v1116
    %v1255 = vunpack.c.l.b16 %v1117
    %v1256 = vunpack.c.l.b16 %v1118
    %v1257 = vunpack.c.h.b16 %v1118
    %v1258 = vunpack.c.l.b16 %v1119
    %v1259 = vunpack.c.l.b16 %v1120
    %v1260 = vunpack.c.h.b16 %v1120
    %v1261 = vunpack.c.l.b16 %v1121
    %v1262 = vunpack.c.l.b16 %v1122
    %v1263 = vunpack.c.h.b16 %v1122
    %v1264 = vunpack.c.l.b16 %v1123
    %v1265 = vunpack.c.l.b16 %v1124
    %v1266 = vunpack.c.h.b16 %v1124
    %v1267 = vunpack.c.l.b16 %v1125
    %v1268 = vunpack.c.l.b16 %v1126
    %v1269 = vunpack.c.h.b16 %v1126
    %v1270 = vunpack.c.l.b16 %v1127
    %v1271 = vunpack.c.l.b16 %v1128
    %v1272 = vunpack.c.h.b16 %v1128
    %v1273 = vunpack.c.l.b16 %v1129
    %v1274 = vunpack.c.l.b16 %v1130
    %v1275 = vunpack.c.h.b16 %v1130
    %v1276 = vunpack.c.l.b16 %v1131
    %v1277 = vunpack.c.l.b16 %v1132
    %v1278 = vunpack.c.h.b16 %v1132
    %v1279 = vunpack.c.l.b16 %v1133
    %v1280 = vunpack.c.l.b16 %v1134
    %v1281 = vunpack.c.h.b16 %v1134
    %v1282 = vunpack.c.l.b16 %v1135
    %v1283 = vunpack.c.l.b16 %v1136
    %v1284 = vunpack.c.h.b16 %v1136
    %v1285 = vunpack.c.l.b16 %v1137
    %v1286 = vunpack.c.l.b16 %v1138
    %v1287 = vunpack.c.h.b16 %v1138
    %v1288 = vunpack.c.l.b16 %v1139
    %v1289 = vunpack.c.l.b16 %v1140
    %v1290 = vunpack.c.h.b16 %v1140
    %v1291 = vunpack.c.l.b16 %v1141
    %v1292 = vunpack.c.l.b16 %v1142
    %v1293 = vunpack.c.h.b16 %v1142
    %v1294 = vunpack.c.l.b16 %v1143
    %v1295 = vunpack.c.l.b16 %v1144
    %v1296 = vunpack.c.h.b16 %v1144
    %v1297 = vunpack.c.l.b16 %v1145
    %v1298 = vunpack.c.l.b16 %v1146
    %v1299 = vunpack.c.h.b16 %v1146
    %v1300 = vunpack.c.l.b16 %v1147
    %v1301 = vunpack.c.l.b16 %v1148
    %v1302 = vunpack.c.h.b16 %v1148
    %v1303 = vunpack.c.l.b16 %v1149
    %v1304 = vunpack.c.l.b16 %v1150
    %v1305 = vunpack.c.h.b16 %v1150
    %v1306 = vunpack.c.l.b16 %v1151
    %v1307 = vunpack.c.l.b16 %v1152
    %v1308 = vunpack.c.h.b16 %v1152
    %v1309 = vunpack.c.l.b16 %v1153
    %v1310 = vunpack.c.l.b16 %v1154
    %v1311 = vunpack.c.h.b16 %v1154
    %v1312 = vunpack.c.l.b16 %v1155
    %v1313 = vunpack.c.l.b16 %v1156
    %v1314 = vunpack.c.h.b16 %v1156
    %v1315 = vunpack.c.l.b16 %v1157
    %v1316 = vunpack.c.l.b16 %v1158
    %v1317 = vunpack.c.h.b16 %v1158
    %v1318 = vunpack.c.l.b16 %v1159
    %v1319 = vunpack.c.l.b16 %v1160
    %v1320 = vunpack.c.h.b16 %v1160
    %v1321 = vunpack.c.l.b16 %v1161
    %v1322 = vpack.c.b16 %v1229, %v1226
    %v1323 = vpack.c.b16 %v1230, %v1227
    %v1324 = vpack.c.b16 %v1231, %v1228
    %v1325 = vpack.c.b16 %v1235, %v1232
    %v1326 = vpack.c.b16 %v1236, %v1233
    %v1327 = vpack.c.b16 %v1237, %v1234
    %v1328 = vpack.c.b16 %v1241, %v1238
    %v1329 = vpack.c.b16 %v1242, %v1239
    %v1330 = vpack.c.b16 %v1243, %v1240
    %v1331 = vpack.c.b16 %v1247, %v1244
    %v1332 = vpack.c.b16 %v1248, %v1245
    %v1333 = vpack.c.b16 %v1249, %v1246
    %v1334 = vpack.c.b16 %v1253, %v1250
    %v1335 = vpack.c.b16 %v1254, %v1251
    %v1336 = vpack.c.b16 %v1255, %v1252
    %v1337 = vpack.c.b16 %v1259, %v1256
    %v1338 = vpack.c.b16 %v1260, %v1257
    %v1339 = vpack.c.b16 %v1261, %v1258
    %v1340 = vpack.c.b16 %v1265, %v1262
    %v1341 = vpack.c.b16 %v1266, %v1263
    %v1342 = vpack.c.b16 %v1267, %v1264
    %v1343 = vpack.c.b16 %v1271, %v1268
    %v1344 = vpack.c.b16 %v1272, %v1269
    %v1345 = vpack.c.b16 %v1273, %v1270
    %v1346 = vpack.c.b16 %v1277, %v1274
    %v1347 = vpack.c.b16 %v1278, %v1275
    %v1348 = vpack.c.b16 %v1279, %v1276
    %v1349 = vpack.c.b16 %v1283, %v1280
    %v1350 = vpack.c.b16 %v1284, %v1281
    %v1351 = vpack.c.b16 %v1285, %v1282
    %v1352 = vpack.c.b16 %v1289, %v1286
    %v1353 = vpack.c.b16 %v1290, %v1287
    %v1354 = vpack.c.b16 %v1291, %v1288
    %v1355 = vpack.c.b16 %v1295, %v1292
    %v1356 = vpack.c.b16 %v1296, %v1293
    %v1357 = vpack.c.b16 %v1297, %v1294
    %v1358 = vpack.c.b16 %v1301, %v1298
    %v1359 = vpack.c.b16 %v1302, %v1299
    %v1360 = vpack.c.b16 %v1303, %v1300
    %v1361 = vpack.c.b16 %v1307, %v1304
    %v1362 = vpack.c.b16 %v1308, %v1305
    %v1363 = vpack.c.b16 %v1309, %v1306
    %v1364 = vpack.c.b16 %v1313, %v1310
    %v1365 = vpack.c.b16 %v1314, %v1311
    %v1366 = vpack.c.b16 %v1315, %v1312
    %v1367 = vpack.c.b16 %v1319, %v1316
    %v1368 = vpack.c.b16 %v1320, %v1317
    %v1369 = vpack.c.b16 %v1321, %v1318
    %1418 = vmatpush.bf16.msra.mxu0 %v1343
    %1419 = vmatpush.bf16.msra.mxu0 %v1340
    %1420 = vmatpush.bf16.msra.mxu0 %v1337
    %1421 = vmatpush.bf16.msra.mxu0 %v1334
    %1422 = vmatpush.bf16.msra.mxu0 %v1331
    %1423 = vmatpush.bf16.msra.mxu0 %v1328
    %1424 = vmatpush.bf16.msra.mxu0 %v1325
    %1425 = vmatpush.bf16.msra.mxu0 %v1322
    %1426 = vmatmul.bf16.gmra.mxu0 %v144
    %v1427 = vpop.f32.mrf.mxu0
    %v1428 = vadd.f32 0.0, %v1427
    %v1429 = vpop.f32.mrf.mxu0
    %1430 = vdwg.mxu0
    %1431 = vmatpush.bf16.msra.mxu0 %v1367
    %1432 = vmatpush.bf16.msra.mxu0 %v1364
    %1433 = vmatpush.bf16.msra.mxu0 %v1361
    %1434 = vmatpush.bf16.msra.mxu0 %v1358
    %1435 = vmatpush.bf16.msra.mxu0 %v1355
    %1436 = vmatpush.bf16.msra.mxu0 %v1352
    %1437 = vmatpush.bf16.msra.mxu0 %v1349
    %1438 = vmatpush.bf16.msra.mxu0 %v1346
    %1439 = vmatmul.bf16.gmra.mxu0 %v145
    %v1440 = vpop.f32.mrf.mxu0
    %v1441 = vadd.f32 %v1428, %v1440
    %v1442 = vpop.f32.mrf.mxu0
    %1443 = vdwg.mxu0
    %1444 = vmatpush.bf16.msra.mxu0 %v1344
    %1445 = vmatpush.bf16.msra.mxu0 %v1341
    %1446 = vmatpush.bf16.msra.mxu0 %v1338
    %1447 = vmatpush.bf16.msra.mxu0 %v1335
    %1448 = vmatpush.bf16.msra.mxu0 %v1332
    %1449 = vmatpush.bf16.msra.mxu0 %v1329
    %1450 = vmatpush.bf16.msra.mxu0 %v1326
    %1451 = vmatpush.bf16.msra.mxu0 %v1323
    %1452 = vmatmul.bf16.gmra.mxu0 %v144
    %v1453 = vpop.f32.mrf.mxu0
    %v1454 = vadd.f32 0.0, %v1453
    %v1455 = vpop.f32.mrf.mxu0
    %1456 = vdwg.mxu0
    %1457 = vmatpush.bf16.msra.mxu0 %v1368
    %1458 = vmatpush.bf16.msra.mxu0 %v1365
    %1459 = vmatpush.bf16.msra.mxu0 %v1362
    %1460 = vmatpush.bf16.msra.mxu0 %v1359
    %1461 = vmatpush.bf16.msra.mxu0 %v1356
    %1462 = vmatpush.bf16.msra.mxu0 %v1353
    %1463 = vmatpush.bf16.msra.mxu0 %v1350
    %1464 = vmatpush.bf16.msra.mxu0 %v1347
    %1465 = vmatmul.bf16.gmra.mxu0 %v145
    %v1466 = vpop.f32.mrf.mxu0
    %v1467 = vadd.f32 %v1454, %v1466
    %v1468 = vpop.f32.mrf.mxu0
    %1469 = vdwg.mxu0
    %1470 = vmatpush.bf16.msra.mxu0 %v1345
    %1471 = vmatpush.bf16.msra.mxu0 %v1342
    %1472 = vmatpush.bf16.msra.mxu0 %v1339
    %1473 = vmatpush.bf16.msra.mxu0 %v1336
    %1474 = vmatpush.bf16.msra.mxu0 %v1333
    %1475 = vmatpush.bf16.msra.mxu0 %v1330
    %1476 = vmatpush.bf16.msra.mxu0 %v1327
    %1477 = vmatpush.bf16.msra.mxu0 %v1324
    %1478 = vmatmul.bf16.gmra.mxu0 %v144
    %v1479 = vpop.f32.mrf.mxu0
    %v1480 = vadd.f32 0.0, %v1479
    %v1481 = vpop.f32.mrf.mxu0
    %1482 = vdwg.mxu0
    %1483 = vmatpush.bf16.msra.mxu0 %v1369
    %1484 = vmatpush.bf16.msra.mxu0 %v1366
    %1485 = vmatpush.bf16.msra.mxu0 %v1363
    %1486 = vmatpush.bf16.msra.mxu0 %v1360
    %1487 = vmatpush.bf16.msra.mxu0 %v1357
    %1488 = vmatpush.bf16.msra.mxu0 %v1354
    %1489 = vmatpush.bf16.msra.mxu0 %v1351
    %1490 = vmatpush.bf16.msra.mxu0 %v1348
    %1491 = vmatmul.bf16.gmra.mxu0 %v145
    %v1492 = vpop.f32.mrf.mxu0
    %v1493 = vadd.f32 %v1480, %v1492
    %v1494 = vpop.f32.mrf.mxu0
    %1495 = vdwg.mxu0
    %s1496 = scalar_lea.vmem %s4, 32
    %v1497 = vld [vmem:[%s1496] sm:$0xff]
    %v1498 = vld [vmem:[%s1496 + $0x8] sm:$0xff]
    %v1500 = vsel %vm947, %v1497, 0
    %v1503 = vsel %vm947, %v1498, 0
    %1505 = vmatpush.msra.mxu0 0.0
    %1506 = vmatpush.msra.mxu0 0.0
    %1507 = vmatpush.msra.mxu0 0.0
    %1508 = vmatpush.msra.mxu0 0.0
    %1509 = vmatpush.msra.mxu0 0.0
    %1510 = vmatpush.msra.mxu0 0.0
    %1511 = vmatpush.msra.mxu0 0.0
    %1512 = vmatpush.msra.mxu0 0.0
    %1513 = vmatpush.msra.mxu0 0.0
    %1514 = vmatpush.msra.mxu0 0.0
    %1515 = vmatpush.msra.mxu0 0.0
    %1516 = vmatpush.msra.mxu0 0.0
    %1517 = vmatpush.msra.mxu0 0.0
    %1518 = vmatpush.msra.mxu0 0.0
    %1519 = vmatpush.msra.mxu0 0.0
    %1520 = vmatpush.msra.mxu0 %v1441
    %1521 = vmatmul.f32.gmra.mxu0 %v1500
    %v1522 = vpop.f32.mrf.mxu0
    %v1523 = vadd.f32 0.0, %v1522
    %1524 = vmatmul.f32.gmra.mxu0 %v1503
    %v1525 = vpop.f32.mrf.mxu0
    %v1526 = vadd.f32 0.0, %v1525
    %1527 = vdwg.mxu0
    %1528 = vmatpush.msra.mxu0 0.0
    %1529 = vmatpush.msra.mxu0 0.0
    %1530 = vmatpush.msra.mxu0 0.0
    %1531 = vmatpush.msra.mxu0 0.0
    %1532 = vmatpush.msra.mxu0 0.0
    %1533 = vmatpush.msra.mxu0 0.0
    %1534 = vmatpush.msra.mxu0 0.0
    %1535 = vmatpush.msra.mxu0 0.0
    %1536 = vmatpush.msra.mxu0 0.0
    %1537 = vmatpush.msra.mxu0 0.0
    %1538 = vmatpush.msra.mxu0 0.0
    %1539 = vmatpush.msra.mxu0 0.0
    %1540 = vmatpush.msra.mxu0 0.0
    %1541 = vmatpush.msra.mxu0 0.0
    %1542 = vmatpush.msra.mxu0 0.0
    %1543 = vmatpush.msra.mxu0 %v1467
    %1544 = vmatmul.f32.gmra.mxu0 %v1500
    %v1545 = vpop.f32.mrf.mxu0
    %v1546 = vadd.f32 0.0, %v1545
    %1547 = vmatmul.f32.gmra.mxu0 %v1503
    %v1548 = vpop.f32.mrf.mxu0
    %v1549 = vadd.f32 0.0, %v1548
    %1550 = vdwg.mxu0
    %1551 = vmatpush.msra.mxu0 0.0
    %1552 = vmatpush.msra.mxu0 0.0
    %1553 = vmatpush.msra.mxu0 0.0
    %1554 = vmatpush.msra.mxu0 0.0
    %1555 = vmatpush.msra.mxu0 0.0
    %1556 = vmatpush.msra.mxu0 0.0
    %1557 = vmatpush.msra.mxu0 0.0
    %1558 = vmatpush.msra.mxu0 0.0
    %1559 = vmatpush.msra.mxu0 0.0
    %1560 = vmatpush.msra.mxu0 0.0
    %1561 = vmatpush.msra.mxu0 0.0
    %1562 = vmatpush.msra.mxu0 0.0
    %1563 = vmatpush.msra.mxu0 0.0
    %1564 = vmatpush.msra.mxu0 0.0
    %1565 = vmatpush.msra.mxu0 0.0
    %1566 = vmatpush.msra.mxu0 %v1493
    %1567 = vmatmul.f32.gmra.mxu0 %v1500
    %v1568 = vpop.f32.mrf.mxu0
    %v1569 = vadd.f32 0.0, %v1568
    %1570 = vmatmul.f32.gmra.mxu0 %v1503
    %v1571 = vpop.f32.mrf.mxu0
    %v1572 = vadd.f32 0.0, %v1571
    %1573 = vdwg.mxu0
    %v1574 = vadd.f32 %v1047, %v1523
    %v1575 = vadd.f32 %v1070, %v1546
    %v1576 = vadd.f32 %v1093, %v1569
    %v1577 = vadd.f32 %v1050, %v1526
    %v1578 = vadd.f32 %v1073, %v1549
    %v1579 = vadd.f32 %v1096, %v1572
    %v1580 = vld [vmem:[%s3 + $0x24] sm:$0xff]
    %v1581 = vld [vmem:[%s3 + $0x2c] sm:$0xf]
    %v1582 = vld [vmem:[%s3 + $0x54] sm:$0xff]
    %v1583 = vld [vmem:[%s3 + $0x5c] sm:$0xf]
    %v1584 = vld [vmem:[%s3 + $0x84] sm:$0xff]
    %v1585 = vld [vmem:[%s3 + $0x8c] sm:$0xf]
    %v1586 = vld [vmem:[%s3 + $0xb4] sm:$0xff]
    %v1587 = vld [vmem:[%s3 + $0xbc] sm:$0xf]
    %v1588 = vld [vmem:[%s3 + $0xe4] sm:$0xff]
    %v1589 = vld [vmem:[%s3 + $0xec] sm:$0xf]
    %v1590 = vld [vmem:[%s3 + $0x114] sm:$0xff]
    %v1591 = vld [vmem:[%s3 + $0x11c] sm:$0xf]
    %v1592 = vld [vmem:[%s3 + $0x144] sm:$0xff]
    %v1593 = vld [vmem:[%s3 + $0x14c] sm:$0xf]
    %v1594 = vld [vmem:[%s3 + $0x174] sm:$0xff]
    %v1595 = vld [vmem:[%s3 + $0x17c] sm:$0xf]
    %v1596 = vld [vmem:[%s3 + $0x1a4] sm:$0xff]
    %v1597 = vld [vmem:[%s3 + $0x1ac] sm:$0xf]
    %v1598 = vld [vmem:[%s3 + $0x1d4] sm:$0xff]
    %v1599 = vld [vmem:[%s3 + $0x1dc] sm:$0xf]
    %v1600 = vld [vmem:[%s3 + $0x204] sm:$0xff]
    %v1601 = vld [vmem:[%s3 + $0x20c] sm:$0xf]
    %v1602 = vld [vmem:[%s3 + $0x234] sm:$0xff]
    %v1603 = vld [vmem:[%s3 + $0x23c] sm:$0xf]
    %v1604 = vld [vmem:[%s3 + $0x264] sm:$0xff]
    %v1605 = vld [vmem:[%s3 + $0x26c] sm:$0xf]
    %v1606 = vld [vmem:[%s3 + $0x294] sm:$0xff]
    %v1607 = vld [vmem:[%s3 + $0x29c] sm:$0xf]
    %v1608 = vld [vmem:[%s3 + $0x2c4] sm:$0xff]
    %v1609 = vld [vmem:[%s3 + $0x2cc] sm:$0xf]
    %v1610 = vld [vmem:[%s3 + $0x2f4] sm:$0xff]
    %v1611 = vld [vmem:[%s3 + $0x2fc] sm:$0xf]
    %v1612 = vld [vmem:[%s3 + $0x324] sm:$0xff]
    %v1613 = vld [vmem:[%s3 + $0x32c] sm:$0xf]
    %v1614 = vld [vmem:[%s3 + $0x354] sm:$0xff]
    %v1615 = vld [vmem:[%s3 + $0x35c] sm:$0xf]
    %v1616 = vld [vmem:[%s3 + $0x384] sm:$0xff]
    %v1617 = vld [vmem:[%s3 + $0x38c] sm:$0xf]
    %v1618 = vld [vmem:[%s3 + $0x3b4] sm:$0xff]
    %v1619 = vld [vmem:[%s3 + $0x3bc] sm:$0xf]
    %v1620 = vld [vmem:[%s3 + $0x3e4] sm:$0xff]
    %v1621 = vld [vmem:[%s3 + $0x3ec] sm:$0xf]
    %v1622 = vld [vmem:[%s3 + $0x414] sm:$0xff]
    %v1623 = vld [vmem:[%s3 + $0x41c] sm:$0xf]
    %v1624 = vld [vmem:[%s3 + $0x444] sm:$0xff]
    %v1625 = vld [vmem:[%s3 + $0x44c] sm:$0xf]
    %v1626 = vld [vmem:[%s3 + $0x474] sm:$0xff]
    %v1627 = vld [vmem:[%s3 + $0x47c] sm:$0xf]
    %v1628 = vld [vmem:[%s3 + $0x4a4] sm:$0xff]
    %v1629 = vld [vmem:[%s3 + $0x4ac] sm:$0xf]
    %v1630 = vld [vmem:[%s3 + $0x4d4] sm:$0xff]
    %v1631 = vld [vmem:[%s3 + $0x4dc] sm:$0xf]
    %v1632 = vld [vmem:[%s3 + $0x504] sm:$0xff]
    %v1633 = vld [vmem:[%s3 + $0x50c] sm:$0xf]
    %v1634 = vld [vmem:[%s3 + $0x534] sm:$0xff]
    %v1635 = vld [vmem:[%s3 + $0x53c] sm:$0xf]
    %v1636 = vld [vmem:[%s3 + $0x564] sm:$0xff]
    %v1637 = vld [vmem:[%s3 + $0x56c] sm:$0xf]
    %v1638 = vld [vmem:[%s3 + $0x594] sm:$0xff]
    %v1639 = vld [vmem:[%s3 + $0x59c] sm:$0xf]
    %v1640 = vld [vmem:[%s3 + $0x5c4] sm:$0xff]
    %v1641 = vld [vmem:[%s3 + $0x5cc] sm:$0xf]
    %v1642 = vld [vmem:[%s3 + $0x5f4] sm:$0xff]
    %v1643 = vld [vmem:[%s3 + $0x5fc] sm:$0xf]
    %v1708 = vunpack.c.l.b16 %v1580
    %v1709 = vunpack.c.h.b16 %v1580
    %v1710 = vunpack.c.l.b16 %v1581
    %v1711 = vunpack.c.l.b16 %v1582
    %v1712 = vunpack.c.h.b16 %v1582
    %v1713 = vunpack.c.l.b16 %v1583
    %v1714 = vunpack.c.l.b16 %v1584
    %v1715 = vunpack.c.h.b16 %v1584
    %v1716 = vunpack.c.l.b16 %v1585
    %v1717 = vunpack.c.l.b16 %v1586
    %v1718 = vunpack.c.h.b16 %v1586
    %v1719 = vunpack.c.l.b16 %v1587
    %v1720 = vunpack.c.l.b16 %v1588
    %v1721 = vunpack.c.h.b16 %v1588
    %v1722 = vunpack.c.l.b16 %v1589
    %v1723 = vunpack.c.l.b16 %v1590
    %v1724 = vunpack.c.h.b16 %v1590
    %v1725 = vunpack.c.l.b16 %v1591
    %v1726 = vunpack.c.l.b16 %v1592
    %v1727 = vunpack.c.h.b16 %v1592
    %v1728 = vunpack.c.l.b16 %v1593
    %v1729 = vunpack.c.l.b16 %v1594
    %v1730 = vunpack.c.h.b16 %v1594
    %v1731 = vunpack.c.l.b16 %v1595
    %v1732 = vunpack.c.l.b16 %v1596
    %v1733 = vunpack.c.h.b16 %v1596
    %v1734 = vunpack.c.l.b16 %v1597
    %v1735 = vunpack.c.l.b16 %v1598
    %v1736 = vunpack.c.h.b16 %v1598
    %v1737 = vunpack.c.l.b16 %v1599
    %v1738 = vunpack.c.l.b16 %v1600
    %v1739 = vunpack.c.h.b16 %v1600
    %v1740 = vunpack.c.l.b16 %v1601
    %v1741 = vunpack.c.l.b16 %v1602
    %v1742 = vunpack.c.h.b16 %v1602
    %v1743 = vunpack.c.l.b16 %v1603
    %v1744 = vunpack.c.l.b16 %v1604
    %v1745 = vunpack.c.h.b16 %v1604
    %v1746 = vunpack.c.l.b16 %v1605
    %v1747 = vunpack.c.l.b16 %v1606
    %v1748 = vunpack.c.h.b16 %v1606
    %v1749 = vunpack.c.l.b16 %v1607
    %v1750 = vunpack.c.l.b16 %v1608
    %v1751 = vunpack.c.h.b16 %v1608
    %v1752 = vunpack.c.l.b16 %v1609
    %v1753 = vunpack.c.l.b16 %v1610
    %v1754 = vunpack.c.h.b16 %v1610
    %v1755 = vunpack.c.l.b16 %v1611
    %v1756 = vunpack.c.l.b16 %v1612
    %v1757 = vunpack.c.h.b16 %v1612
    %v1758 = vunpack.c.l.b16 %v1613
    %v1759 = vunpack.c.l.b16 %v1614
    %v1760 = vunpack.c.h.b16 %v1614
    %v1761 = vunpack.c.l.b16 %v1615
    %v1762 = vunpack.c.l.b16 %v1616
    %v1763 = vunpack.c.h.b16 %v1616
    %v1764 = vunpack.c.l.b16 %v1617
    %v1765 = vunpack.c.l.b16 %v1618
    %v1766 = vunpack.c.h.b16 %v1618
    %v1767 = vunpack.c.l.b16 %v1619
    %v1768 = vunpack.c.l.b16 %v1620
    %v1769 = vunpack.c.h.b16 %v1620
    %v1770 = vunpack.c.l.b16 %v1621
    %v1771 = vunpack.c.l.b16 %v1622
    %v1772 = vunpack.c.h.b16 %v1622
    %v1773 = vunpack.c.l.b16 %v1623
    %v1774 = vunpack.c.l.b16 %v1624
    %v1775 = vunpack.c.h.b16 %v1624
    %v1776 = vunpack.c.l.b16 %v1625
    %v1777 = vunpack.c.l.b16 %v1626
    %v1778 = vunpack.c.h.b16 %v1626
    %v1779 = vunpack.c.l.b16 %v1627
    %v1780 = vunpack.c.l.b16 %v1628
    %v1781 = vunpack.c.h.b16 %v1628
    %v1782 = vunpack.c.l.b16 %v1629
    %v1783 = vunpack.c.l.b16 %v1630
    %v1784 = vunpack.c.h.b16 %v1630
    %v1785 = vunpack.c.l.b16 %v1631
    %v1786 = vunpack.c.l.b16 %v1632
    %v1787 = vunpack.c.h.b16 %v1632
    %v1788 = vunpack.c.l.b16 %v1633
    %v1789 = vunpack.c.l.b16 %v1634
    %v1790 = vunpack.c.h.b16 %v1634
    %v1791 = vunpack.c.l.b16 %v1635
    %v1792 = vunpack.c.l.b16 %v1636
    %v1793 = vunpack.c.h.b16 %v1636
    %v1794 = vunpack.c.l.b16 %v1637
    %v1795 = vunpack.c.l.b16 %v1638
    %v1796 = vunpack.c.h.b16 %v1638
    %v1797 = vunpack.c.l.b16 %v1639
    %v1798 = vunpack.c.l.b16 %v1640
    %v1799 = vunpack.c.h.b16 %v1640
    %v1800 = vunpack.c.l.b16 %v1641
    %v1801 = vunpack.c.l.b16 %v1642
    %v1802 = vunpack.c.h.b16 %v1642
    %v1803 = vunpack.c.l.b16 %v1643
    %v1804 = vpack.c.b16 %v1711, %v1708
    %v1805 = vpack.c.b16 %v1712, %v1709
    %v1806 = vpack.c.b16 %v1713, %v1710
    %v1807 = vpack.c.b16 %v1717, %v1714
    %v1808 = vpack.c.b16 %v1718, %v1715
    %v1809 = vpack.c.b16 %v1719, %v1716
    %v1810 = vpack.c.b16 %v1723, %v1720
    %v1811 = vpack.c.b16 %v1724, %v1721
    %v1812 = vpack.c.b16 %v1725, %v1722
    %v1813 = vpack.c.b16 %v1729, %v1726
    %v1814 = vpack.c.b16 %v1730, %v1727
    %v1815 = vpack.c.b16 %v1731, %v1728
    %v1816 = vpack.c.b16 %v1735, %v1732
    %v1817 = vpack.c.b16 %v1736, %v1733
    %v1818 = vpack.c.b16 %v1737, %v1734
    %v1819 = vpack.c.b16 %v1741, %v1738
    %v1820 = vpack.c.b16 %v1742, %v1739
    %v1821 = vpack.c.b16 %v1743, %v1740
    %v1822 = vpack.c.b16 %v1747, %v1744
    %v1823 = vpack.c.b16 %v1748, %v1745
    %v1824 = vpack.c.b16 %v1749, %v1746
    %v1825 = vpack.c.b16 %v1753, %v1750
    %v1826 = vpack.c.b16 %v1754, %v1751
    %v1827 = vpack.c.b16 %v1755, %v1752
    %v1828 = vpack.c.b16 %v1759, %v1756
    %v1829 = vpack.c.b16 %v1760, %v1757
    %v1830 = vpack.c.b16 %v1761, %v1758
    %v1831 = vpack.c.b16 %v1765, %v1762
    %v1832 = vpack.c.b16 %v1766, %v1763
    %v1833 = vpack.c.b16 %v1767, %v1764
    %v1834 = vpack.c.b16 %v1771, %v1768
    %v1835 = vpack.c.b16 %v1772, %v1769
    %v1836 = vpack.c.b16 %v1773, %v1770
    %v1837 = vpack.c.b16 %v1777, %v1774
    %v1838 = vpack.c.b16 %v1778, %v1775
    %v1839 = vpack.c.b16 %v1779, %v1776
    %v1840 = vpack.c.b16 %v1783, %v1780
    %v1841 = vpack.c.b16 %v1784, %v1781
    %v1842 = vpack.c.b16 %v1785, %v1782
    %v1843 = vpack.c.b16 %v1789, %v1786
    %v1844 = vpack.c.b16 %v1790, %v1787
    %v1845 = vpack.c.b16 %v1791, %v1788
    %v1846 = vpack.c.b16 %v1795, %v1792
    %v1847 = vpack.c.b16 %v1796, %v1793
    %v1848 = vpack.c.b16 %v1797, %v1794
    %v1849 = vpack.c.b16 %v1801, %v1798
    %v1850 = vpack.c.b16 %v1802, %v1799
    %v1851 = vpack.c.b16 %v1803, %v1800
    %1900 = vmatpush.bf16.msra.mxu0 %v1825
    %1901 = vmatpush.bf16.msra.mxu0 %v1822
    %1902 = vmatpush.bf16.msra.mxu0 %v1819
    %1903 = vmatpush.bf16.msra.mxu0 %v1816
    %1904 = vmatpush.bf16.msra.mxu0 %v1813
    %1905 = vmatpush.bf16.msra.mxu0 %v1810
    %1906 = vmatpush.bf16.msra.mxu0 %v1807
    %1907 = vmatpush.bf16.msra.mxu0 %v1804
    %1908 = vmatmul.bf16.gmra.mxu0 %v144
    %v1909 = vpop.f32.mrf.mxu0
    %v1910 = vadd.f32 0.0, %v1909
    %v1911 = vpop.f32.mrf.mxu0
    %1912 = vdwg.mxu0
    %1913 = vmatpush.bf16.msra.mxu0 %v1849
    %1914 = vmatpush.bf16.msra.mxu0 %v1846
    %1915 = vmatpush.bf16.msra.mxu0 %v1843
    %1916 = vmatpush.bf16.msra.mxu0 %v1840
    %1917 = vmatpush.bf16.msra.mxu0 %v1837
    %1918 = vmatpush.bf16.msra.mxu0 %v1834
    %1919 = vmatpush.bf16.msra.mxu0 %v1831
    %1920 = vmatpush.bf16.msra.mxu0 %v1828
    %1921 = vmatmul.bf16.gmra.mxu0 %v145
    %v1922 = vpop.f32.mrf.mxu0
    %v1923 = vadd.f32 %v1910, %v1922
    %v1924 = vpop.f32.mrf.mxu0
    %1925 = vdwg.mxu0
    %1926 = vmatpush.bf16.msra.mxu0 %v1826
    %1927 = vmatpush.bf16.msra.mxu0 %v1823
    %1928 = vmatpush.bf16.msra.mxu0 %v1820
    %1929 = vmatpush.bf16.msra.mxu0 %v1817
    %1930 = vmatpush.bf16.msra.mxu0 %v1814
    %1931 = vmatpush.bf16.msra.mxu0 %v1811
    %1932 = vmatpush.bf16.msra.mxu0 %v1808
    %1933 = vmatpush.bf16.msra.mxu0 %v1805
    %1934 = vmatmul.bf16.gmra.mxu0 %v144
    %v1935 = vpop.f32.mrf.mxu0
    %v1936 = vadd.f32 0.0, %v1935
    %v1937 = vpop.f32.mrf.mxu0
    %1938 = vdwg.mxu0
    %1939 = vmatpush.bf16.msra.mxu0 %v1850
    %1940 = vmatpush.bf16.msra.mxu0 %v1847
    %1941 = vmatpush.bf16.msra.mxu0 %v1844
    %1942 = vmatpush.bf16.msra.mxu0 %v1841
    %1943 = vmatpush.bf16.msra.mxu0 %v1838
    %1944 = vmatpush.bf16.msra.mxu0 %v1835
    %1945 = vmatpush.bf16.msra.mxu0 %v1832
    %1946 = vmatpush.bf16.msra.mxu0 %v1829
    %1947 = vmatmul.bf16.gmra.mxu0 %v145
    %v1948 = vpop.f32.mrf.mxu0
    %v1949 = vadd.f32 %v1936, %v1948
    %v1950 = vpop.f32.mrf.mxu0
    %1951 = vdwg.mxu0
    %1952 = vmatpush.bf16.msra.mxu0 %v1827
    %1953 = vmatpush.bf16.msra.mxu0 %v1824
    %1954 = vmatpush.bf16.msra.mxu0 %v1821
    %1955 = vmatpush.bf16.msra.mxu0 %v1818
    %1956 = vmatpush.bf16.msra.mxu0 %v1815
    %1957 = vmatpush.bf16.msra.mxu0 %v1812
    %1958 = vmatpush.bf16.msra.mxu0 %v1809
    %1959 = vmatpush.bf16.msra.mxu0 %v1806
    %1960 = vmatmul.bf16.gmra.mxu0 %v144
    %v1961 = vpop.f32.mrf.mxu0
    %v1962 = vadd.f32 0.0, %v1961
    %v1963 = vpop.f32.mrf.mxu0
    %1964 = vdwg.mxu0
    %1965 = vmatpush.bf16.msra.mxu0 %v1851
    %1966 = vmatpush.bf16.msra.mxu0 %v1848
    %1967 = vmatpush.bf16.msra.mxu0 %v1845
    %1968 = vmatpush.bf16.msra.mxu0 %v1842
    %1969 = vmatpush.bf16.msra.mxu0 %v1839
    %1970 = vmatpush.bf16.msra.mxu0 %v1836
    %1971 = vmatpush.bf16.msra.mxu0 %v1833
    %1972 = vmatpush.bf16.msra.mxu0 %v1830
    %1973 = vmatmul.bf16.gmra.mxu0 %v145
    %v1974 = vpop.f32.mrf.mxu0
    %v1975 = vadd.f32 %v1962, %v1974
    %v1976 = vpop.f32.mrf.mxu0
    %1977 = vdwg.mxu0
    %s1978 = scalar_lea.vmem %s4, 48
    %v1979 = vld [vmem:[%s1978] sm:$0xff]
    %v1980 = vld [vmem:[%s1978 + $0x8] sm:$0xff]
    %v1982 = vsel %vm947, %v1979, 0
    %v1985 = vsel %vm947, %v1980, 0
    %1987 = vmatpush.msra.mxu0 0.0
    %1988 = vmatpush.msra.mxu0 0.0
    %1989 = vmatpush.msra.mxu0 0.0
    %1990 = vmatpush.msra.mxu0 0.0
    %1991 = vmatpush.msra.mxu0 0.0
    %1992 = vmatpush.msra.mxu0 0.0
    %1993 = vmatpush.msra.mxu0 0.0
    %1994 = vmatpush.msra.mxu0 0.0
    %1995 = vmatpush.msra.mxu0 0.0
    %1996 = vmatpush.msra.mxu0 0.0
    %1997 = vmatpush.msra.mxu0 0.0
    %1998 = vmatpush.msra.mxu0 0.0
    %1999 = vmatpush.msra.mxu0 0.0
    %2000 = vmatpush.msra.mxu0 0.0
    %2001 = vmatpush.msra.mxu0 0.0
    %2002 = vmatpush.msra.mxu0 %v1923
    %2003 = vmatmul.f32.gmra.mxu0 %v1982
    %v2004 = vpop.f32.mrf.mxu0
    %v2005 = vadd.f32 0.0, %v2004
    %2006 = vmatmul.f32.gmra.mxu0 %v1985
    %v2007 = vpop.f32.mrf.mxu0
    %v2008 = vadd.f32 0.0, %v2007
    %2009 = vdwg.mxu0
    %2010 = vmatpush.msra.mxu0 0.0
    %2011 = vmatpush.msra.mxu0 0.0
    %2012 = vmatpush.msra.mxu0 0.0
    %2013 = vmatpush.msra.mxu0 0.0
    %2014 = vmatpush.msra.mxu0 0.0
    %2015 = vmatpush.msra.mxu0 0.0
    %2016 = vmatpush.msra.mxu0 0.0
    %2017 = vmatpush.msra.mxu0 0.0
    %2018 = vmatpush.msra.mxu0 0.0
    %2019 = vmatpush.msra.mxu0 0.0
    %2020 = vmatpush.msra.mxu0 0.0
    %2021 = vmatpush.msra.mxu0 0.0
    %2022 = vmatpush.msra.mxu0 0.0
    %2023 = vmatpush.msra.mxu0 0.0
    %2024 = vmatpush.msra.mxu0 0.0
    %2025 = vmatpush.msra.mxu0 %v1949
    %2026 = vmatmul.f32.gmra.mxu0 %v1982
    %v2027 = vpop.f32.mrf.mxu0
    %v2028 = vadd.f32 0.0, %v2027
    %2029 = vmatmul.f32.gmra.mxu0 %v1985
    %v2030 = vpop.f32.mrf.mxu0
    %v2031 = vadd.f32 0.0, %v2030
    %2032 = vdwg.mxu0
    %2033 = vmatpush.msra.mxu0 0.0
    %2034 = vmatpush.msra.mxu0 0.0
    %2035 = vmatpush.msra.mxu0 0.0
    %2036 = vmatpush.msra.mxu0 0.0
    %2037 = vmatpush.msra.mxu0 0.0
    %2038 = vmatpush.msra.mxu0 0.0
    %2039 = vmatpush.msra.mxu0 0.0
    %2040 = vmatpush.msra.mxu0 0.0
    %2041 = vmatpush.msra.mxu0 0.0
    %2042 = vmatpush.msra.mxu0 0.0
    %2043 = vmatpush.msra.mxu0 0.0
    %2044 = vmatpush.msra.mxu0 0.0
    %2045 = vmatpush.msra.mxu0 0.0
    %2046 = vmatpush.msra.mxu0 0.0
    %2047 = vmatpush.msra.mxu0 0.0
    %2048 = vmatpush.msra.mxu0 %v1975
    %2049 = vmatmul.f32.gmra.mxu0 %v1982
    %v2050 = vpop.f32.mrf.mxu0
    %v2051 = vadd.f32 0.0, %v2050
    %2052 = vmatmul.f32.gmra.mxu0 %v1985
    %v2053 = vpop.f32.mrf.mxu0
    %v2054 = vadd.f32 0.0, %v2053
    %2055 = vdwg.mxu0
    %v2056 = vadd.f32 %v1574, %v2005
    %v2057 = vadd.f32 %v1575, %v2028
    %v2058 = vadd.f32 %v1576, %v2051
    %v2059 = vadd.f32 %v1577, %v2008
    %v2060 = vadd.f32 %v1578, %v2031
    %v2061 = vadd.f32 %v1579, %v2054
    %v2062 = vld [vmem:[%s5] sm:$0x7]
    %v2064 = vperm.slane %v2062, 0
    %v2065 = vperm.slane %v2062, 1
    %v2066 = vperm.slane %v2062, 2
    %v2070 = vadd.f32 %v2056, %v2064
    %v2071 = vadd.f32 %v2057, %v2065
    %v2072 = vadd.f32 %v2058, %v2066
    %v2073 = vadd.f32 %v2059, %v2064
    %v2074 = vadd.f32 %v2060, %v2065
    %v2075 = vadd.f32 %v2061, %v2066
    %v2076 = vmax.f32 %v2070, 0.0
    %v2077 = vmax.f32 %v2071, 0.0
    %v2078 = vmax.f32 %v2072, 0.0
    %v2079 = vmax.f32 %v2073, 0.0
    %v2080 = vmax.f32 %v2074, 0.0
    %v2081 = vmax.f32 %v2075, 0.0
    %v2082 = vpack.c.bf16 %v2079, %v2076
    %v2083 = vpack.c.bf16 %v2080, %v2077
    %v2084 = vpack.c.bf16 %v2081, %v2078
    %v2085 = vld [vmem:[%s6] sm:$0xff]
    %v2086 = vld [vmem:[%s6 + $0x8] sm:$0xf]
    %v2087 = vld [vmem:[%s6 + $0x30] sm:$0xff]
    %v2088 = vld [vmem:[%s6 + $0x38] sm:$0xf]
    %v2089 = vld [vmem:[%s6 + $0x60] sm:$0xff]
    %v2090 = vld [vmem:[%s6 + $0x68] sm:$0xf]
    %v2091 = vld [vmem:[%s6 + $0x90] sm:$0xff]
    %v2092 = vld [vmem:[%s6 + $0x98] sm:$0xf]
    %v2093 = vld [vmem:[%s6 + $0xc0] sm:$0xff]
    %v2094 = vld [vmem:[%s6 + $0xc8] sm:$0xf]
    %v2095 = vld [vmem:[%s6 + $0xf0] sm:$0xff]
    %v2096 = vld [vmem:[%s6 + $0xf8] sm:$0xf]
    %v2097 = vld [vmem:[%s6 + $0x120] sm:$0xff]
    %v2098 = vld [vmem:[%s6 + $0x128] sm:$0xf]
    %v2099 = vld [vmem:[%s6 + $0x150] sm:$0xff]
    %v2100 = vld [vmem:[%s6 + $0x158] sm:$0xf]
    %v2101 = vld [vmem:[%s6 + $0x180] sm:$0xff]
    %v2102 = vld [vmem:[%s6 + $0x188] sm:$0xf]
    %v2103 = vld [vmem:[%s6 + $0x1b0] sm:$0xff]
    %v2104 = vld [vmem:[%s6 + $0x1b8] sm:$0xf]
    %v2105 = vld [vmem:[%s6 + $0x1e0] sm:$0xff]
    %v2106 = vld [vmem:[%s6 + $0x1e8] sm:$0xf]
    %v2107 = vld [vmem:[%s6 + $0x210] sm:$0xff]
    %v2108 = vld [vmem:[%s6 + $0x218] sm:$0xf]
    %v2109 = vld [vmem:[%s6 + $0x240] sm:$0xff]
    %v2110 = vld [vmem:[%s6 + $0x248] sm:$0xf]
    %v2111 = vld [vmem:[%s6 + $0x270] sm:$0xff]
    %v2112 = vld [vmem:[%s6 + $0x278] sm:$0xf]
    %v2113 = vld [vmem:[%s6 + $0x2a0] sm:$0xff]
    %v2114 = vld [vmem:[%s6 + $0x2a8] sm:$0xf]
    %v2115 = vld [vmem:[%s6 + $0x2d0] sm:$0xff]
    %v2116 = vld [vmem:[%s6 + $0x2d8] sm:$0xf]
    %v2117 = vld [vmem:[%s6 + $0x300] sm:$0xff]
    %v2118 = vld [vmem:[%s6 + $0x308] sm:$0xf]
    %v2119 = vld [vmem:[%s6 + $0x330] sm:$0xff]
    %v2120 = vld [vmem:[%s6 + $0x338] sm:$0xf]
    %v2121 = vld [vmem:[%s6 + $0x360] sm:$0xff]
    %v2122 = vld [vmem:[%s6 + $0x368] sm:$0xf]
    %v2123 = vld [vmem:[%s6 + $0x390] sm:$0xff]
    %v2124 = vld [vmem:[%s6 + $0x398] sm:$0xf]
    %v2125 = vld [vmem:[%s6 + $0x3c0] sm:$0xff]
    %v2126 = vld [vmem:[%s6 + $0x3c8] sm:$0xf]
    %v2127 = vld [vmem:[%s6 + $0x3f0] sm:$0xff]
    %v2128 = vld [vmem:[%s6 + $0x3f8] sm:$0xf]
    %v2129 = vld [vmem:[%s6 + $0x420] sm:$0xff]
    %v2130 = vld [vmem:[%s6 + $0x428] sm:$0xf]
    %v2131 = vld [vmem:[%s6 + $0x450] sm:$0xff]
    %v2132 = vld [vmem:[%s6 + $0x458] sm:$0xf]
    %v2133 = vld [vmem:[%s6 + $0x480] sm:$0xff]
    %v2134 = vld [vmem:[%s6 + $0x488] sm:$0xf]
    %v2135 = vld [vmem:[%s6 + $0x4b0] sm:$0xff]
    %v2136 = vld [vmem:[%s6 + $0x4b8] sm:$0xf]
    %v2137 = vld [vmem:[%s6 + $0x4e0] sm:$0xff]
    %v2138 = vld [vmem:[%s6 + $0x4e8] sm:$0xf]
    %v2139 = vld [vmem:[%s6 + $0x510] sm:$0xff]
    %v2140 = vld [vmem:[%s6 + $0x518] sm:$0xf]
    %v2141 = vld [vmem:[%s6 + $0x540] sm:$0xff]
    %v2142 = vld [vmem:[%s6 + $0x548] sm:$0xf]
    %v2143 = vld [vmem:[%s6 + $0x570] sm:$0xff]
    %v2144 = vld [vmem:[%s6 + $0x578] sm:$0xf]
    %v2145 = vld [vmem:[%s6 + $0x5a0] sm:$0xff]
    %v2146 = vld [vmem:[%s6 + $0x5a8] sm:$0xf]
    %v2147 = vld [vmem:[%s6 + $0x5d0] sm:$0xff]
    %v2148 = vld [vmem:[%s6 + $0x5d8] sm:$0xf]
    %v2149 = vld [vmem:[%s6 + $0x600] sm:$0xff]
    %v2150 = vld [vmem:[%s6 + $0x608] sm:$0xf]
    %v2151 = vld [vmem:[%s6 + $0x630] sm:$0xff]
    %v2152 = vld [vmem:[%s6 + $0x638] sm:$0xf]
    %v2153 = vld [vmem:[%s6 + $0x660] sm:$0xff]
    %v2154 = vld [vmem:[%s6 + $0x668] sm:$0xf]
    %v2155 = vld [vmem:[%s6 + $0x690] sm:$0xff]
    %v2156 = vld [vmem:[%s6 + $0x698] sm:$0xf]
    %v2157 = vld [vmem:[%s6 + $0x6c0] sm:$0xff]
    %v2158 = vld [vmem:[%s6 + $0x6c8] sm:$0xf]
    %v2159 = vld [vmem:[%s6 + $0x6f0] sm:$0xff]
    %v2160 = vld [vmem:[%s6 + $0x6f8] sm:$0xf]
    %v2161 = vld [vmem:[%s6 + $0x720] sm:$0xff]
    %v2162 = vld [vmem:[%s6 + $0x728] sm:$0xf]
    %v2163 = vld [vmem:[%s6 + $0x750] sm:$0xff]
    %v2164 = vld [vmem:[%s6 + $0x758] sm:$0xf]
    %v2165 = vld [vmem:[%s6 + $0x780] sm:$0xff]
    %v2166 = vld [vmem:[%s6 + $0x788] sm:$0xf]
    %v2167 = vld [vmem:[%s6 + $0x7b0] sm:$0xff]
    %v2168 = vld [vmem:[%s6 + $0x7b8] sm:$0xf]
    %v2169 = vld [vmem:[%s6 + $0x7e0] sm:$0xff]
    %v2170 = vld [vmem:[%s6 + $0x7e8] sm:$0xf]
    %v2171 = vld [vmem:[%s6 + $0x810] sm:$0xff]
    %v2172 = vld [vmem:[%s6 + $0x818] sm:$0xf]
    %v2173 = vld [vmem:[%s6 + $0x840] sm:$0xff]
    %v2174 = vld [vmem:[%s6 + $0x848] sm:$0xf]
    %v2175 = vld [vmem:[%s6 + $0x870] sm:$0xff]
    %v2176 = vld [vmem:[%s6 + $0x878] sm:$0xf]
    %v2177 = vld [vmem:[%s6 + $0x8a0] sm:$0xff]
    %v2178 = vld [vmem:[%s6 + $0x8a8] sm:$0xf]
    %v2179 = vld [vmem:[%s6 + $0x8d0] sm:$0xff]
    %v2180 = vld [vmem:[%s6 + $0x8d8] sm:$0xf]
    %v2277 = vunpack.c.l.b16 %v2085
    %v2278 = vunpack.c.h.b16 %v2085
    %v2279 = vunpack.c.l.b16 %v2086
    %v2280 = vunpack.c.l.b16 %v2087
    %v2281 = vunpack.c.h.b16 %v2087
    %v2282 = vunpack.c.l.b16 %v2088
    %v2283 = vunpack.c.l.b16 %v2089
    %v2284 = vunpack.c.h.b16 %v2089
    %v2285 = vunpack.c.l.b16 %v2090
    %v2286 = vunpack.c.l.b16 %v2091
    %v2287 = vunpack.c.h.b16 %v2091
    %v2288 = vunpack.c.l.b16 %v2092
    %v2289 = vunpack.c.l.b16 %v2093
    %v2290 = vunpack.c.h.b16 %v2093
    %v2291 = vunpack.c.l.b16 %v2094
    %v2292 = vunpack.c.l.b16 %v2095
    %v2293 = vunpack.c.h.b16 %v2095
    %v2294 = vunpack.c.l.b16 %v2096
    %v2295 = vunpack.c.l.b16 %v2097
    %v2296 = vunpack.c.h.b16 %v2097
    %v2297 = vunpack.c.l.b16 %v2098
    %v2298 = vunpack.c.l.b16 %v2099
    %v2299 = vunpack.c.h.b16 %v2099
    %v2300 = vunpack.c.l.b16 %v2100
    %v2301 = vunpack.c.l.b16 %v2101
    %v2302 = vunpack.c.h.b16 %v2101
    %v2303 = vunpack.c.l.b16 %v2102
    %v2304 = vunpack.c.l.b16 %v2103
    %v2305 = vunpack.c.h.b16 %v2103
    %v2306 = vunpack.c.l.b16 %v2104
    %v2307 = vunpack.c.l.b16 %v2105
    %v2308 = vunpack.c.h.b16 %v2105
    %v2309 = vunpack.c.l.b16 %v2106
    %v2310 = vunpack.c.l.b16 %v2107
    %v2311 = vunpack.c.h.b16 %v2107
    %v2312 = vunpack.c.l.b16 %v2108
    %v2313 = vunpack.c.l.b16 %v2109
    %v2314 = vunpack.c.h.b16 %v2109
    %v2315 = vunpack.c.l.b16 %v2110
    %v2316 = vunpack.c.l.b16 %v2111
    %v2317 = vunpack.c.h.b16 %v2111
    %v2318 = vunpack.c.l.b16 %v2112
    %v2319 = vunpack.c.l.b16 %v2113
    %v2320 = vunpack.c.h.b16 %v2113
    %v2321 = vunpack.c.l.b16 %v2114
    %v2322 = vunpack.c.l.b16 %v2115
    %v2323 = vunpack.c.h.b16 %v2115
    %v2324 = vunpack.c.l.b16 %v2116
    %v2325 = vunpack.c.l.b16 %v2117
    %v2326 = vunpack.c.h.b16 %v2117
    %v2327 = vunpack.c.l.b16 %v2118
    %v2328 = vunpack.c.l.b16 %v2119
    %v2329 = vunpack.c.h.b16 %v2119
    %v2330 = vunpack.c.l.b16 %v2120
    %v2331 = vunpack.c.l.b16 %v2121
    %v2332 = vunpack.c.h.b16 %v2121
    %v2333 = vunpack.c.l.b16 %v2122
    %v2334 = vunpack.c.l.b16 %v2123
    %v2335 = vunpack.c.h.b16 %v2123
    %v2336 = vunpack.c.l.b16 %v2124
    %v2337 = vunpack.c.l.b16 %v2125
    %v2338 = vunpack.c.h.b16 %v2125
    %v2339 = vunpack.c.l.b16 %v2126
    %v2340 = vunpack.c.l.b16 %v2127
    %v2341 = vunpack.c.h.b16 %v2127
    %v2342 = vunpack.c.l.b16 %v2128
    %v2343 = vunpack.c.l.b16 %v2129
    %v2344 = vunpack.c.h.b16 %v2129
    %v2345 = vunpack.c.l.b16 %v2130
    %v2346 = vunpack.c.l.b16 %v2131
    %v2347 = vunpack.c.h.b16 %v2131
    %v2348 = vunpack.c.l.b16 %v2132
    %v2349 = vunpack.c.l.b16 %v2133
    %v2350 = vunpack.c.h.b16 %v2133
    %v2351 = vunpack.c.l.b16 %v2134
    %v2352 = vunpack.c.l.b16 %v2135
    %v2353 = vunpack.c.h.b16 %v2135
    %v2354 = vunpack.c.l.b16 %v2136
    %v2355 = vunpack.c.l.b16 %v2137
    %v2356 = vunpack.c.h.b16 %v2137
    %v2357 = vunpack.c.l.b16 %v2138
    %v2358 = vunpack.c.l.b16 %v2139
    %v2359 = vunpack.c.h.b16 %v2139
    %v2360 = vunpack.c.l.b16 %v2140
    %v2361 = vunpack.c.l.b16 %v2141
    %v2362 = vunpack.c.h.b16 %v2141
    %v2363 = vunpack.c.l.b16 %v2142
    %v2364 = vunpack.c.l.b16 %v2143
    %v2365 = vunpack.c.h.b16 %v2143
    %v2366 = vunpack.c.l.b16 %v2144
    %v2367 = vunpack.c.l.b16 %v2145
    %v2368 = vunpack.c.h.b16 %v2145
    %v2369 = vunpack.c.l.b16 %v2146
    %v2370 = vunpack.c.l.b16 %v2147
    %v2371 = vunpack.c.h.b16 %v2147
    %v2372 = vunpack.c.l.b16 %v2148
    %v2373 = vunpack.c.l.b16 %v2149
    %v2374 = vunpack.c.h.b16 %v2149
    %v2375 = vunpack.c.l.b16 %v2150
    %v2376 = vunpack.c.l.b16 %v2151
    %v2377 = vunpack.c.h.b16 %v2151
    %v2378 = vunpack.c.l.b16 %v2152
    %v2379 = vunpack.c.l.b16 %v2153
    %v2380 = vunpack.c.h.b16 %v2153
    %v2381 = vunpack.c.l.b16 %v2154
    %v2382 = vunpack.c.l.b16 %v2155
    %v2383 = vunpack.c.h.b16 %v2155
    %v2384 = vunpack.c.l.b16 %v2156
    %v2385 = vunpack.c.l.b16 %v2157
    %v2386 = vunpack.c.h.b16 %v2157
    %v2387 = vunpack.c.l.b16 %v2158
    %v2388 = vunpack.c.l.b16 %v2159
    %v2389 = vunpack.c.h.b16 %v2159
    %v2390 = vunpack.c.l.b16 %v2160
    %v2391 = vunpack.c.l.b16 %v2161
    %v2392 = vunpack.c.h.b16 %v2161
    %v2393 = vunpack.c.l.b16 %v2162
    %v2394 = vunpack.c.l.b16 %v2163
    %v2395 = vunpack.c.h.b16 %v2163
    %v2396 = vunpack.c.l.b16 %v2164
    %v2397 = vunpack.c.l.b16 %v2165
    %v2398 = vunpack.c.h.b16 %v2165
    %v2399 = vunpack.c.l.b16 %v2166
    %v2400 = vunpack.c.l.b16 %v2167
    %v2401 = vunpack.c.h.b16 %v2167
    %v2402 = vunpack.c.l.b16 %v2168
    %v2403 = vunpack.c.l.b16 %v2169
    %v2404 = vunpack.c.h.b16 %v2169
    %v2405 = vunpack.c.l.b16 %v2170
    %v2406 = vunpack.c.l.b16 %v2171
    %v2407 = vunpack.c.h.b16 %v2171
    %v2408 = vunpack.c.l.b16 %v2172
    %v2409 = vunpack.c.l.b16 %v2173
    %v2410 = vunpack.c.h.b16 %v2173
    %v2411 = vunpack.c.l.b16 %v2174
    %v2412 = vunpack.c.l.b16 %v2175
    %v2413 = vunpack.c.h.b16 %v2175
    %v2414 = vunpack.c.l.b16 %v2176
    %v2415 = vunpack.c.l.b16 %v2177
    %v2416 = vunpack.c.h.b16 %v2177
    %v2417 = vunpack.c.l.b16 %v2178
    %v2418 = vunpack.c.l.b16 %v2179
    %v2419 = vunpack.c.h.b16 %v2179
    %v2420 = vunpack.c.l.b16 %v2180
    %v2421 = vpack.c.b16 %v2280, %v2277
    %v2422 = vpack.c.b16 %v2281, %v2278
    %v2423 = vpack.c.b16 %v2282, %v2279
    %v2424 = vpack.c.b16 %v2286, %v2283
    %v2425 = vpack.c.b16 %v2287, %v2284
    %v2426 = vpack.c.b16 %v2288, %v2285
    %v2427 = vpack.c.b16 %v2292, %v2289
    %v2428 = vpack.c.b16 %v2293, %v2290
    %v2429 = vpack.c.b16 %v2294, %v2291
    %v2430 = vpack.c.b16 %v2298, %v2295
    %v2431 = vpack.c.b16 %v2299, %v2296
    %v2432 = vpack.c.b16 %v2300, %v2297
    %v2433 = vpack.c.b16 %v2304, %v2301
    %v2434 = vpack.c.b16 %v2305, %v2302
    %v2435 = vpack.c.b16 %v2306, %v2303
    %v2436 = vpack.c.b16 %v2310, %v2307
    %v2437 = vpack.c.b16 %v2311, %v2308
    %v2438 = vpack.c.b16 %v2312, %v2309
    %v2439 = vpack.c.b16 %v2316, %v2313
    %v2440 = vpack.c.b16 %v2317, %v2314
    %v2441 = vpack.c.b16 %v2318, %v2315
    %v2442 = vpack.c.b16 %v2322, %v2319
    %v2443 = vpack.c.b16 %v2323, %v2320
    %v2444 = vpack.c.b16 %v2324, %v2321
    %v2445 = vpack.c.b16 %v2328, %v2325
    %v2446 = vpack.c.b16 %v2329, %v2326
    %v2447 = vpack.c.b16 %v2330, %v2327
    %v2448 = vpack.c.b16 %v2334, %v2331
    %v2449 = vpack.c.b16 %v2335, %v2332
    %v2450 = vpack.c.b16 %v2336, %v2333
    %v2451 = vpack.c.b16 %v2340, %v2337
    %v2452 = vpack.c.b16 %v2341, %v2338
    %v2453 = vpack.c.b16 %v2342, %v2339
    %v2454 = vpack.c.b16 %v2346, %v2343
    %v2455 = vpack.c.b16 %v2347, %v2344
    %v2456 = vpack.c.b16 %v2348, %v2345
    %v2457 = vpack.c.b16 %v2352, %v2349
    %v2458 = vpack.c.b16 %v2353, %v2350
    %v2459 = vpack.c.b16 %v2354, %v2351
    %v2460 = vpack.c.b16 %v2358, %v2355
    %v2461 = vpack.c.b16 %v2359, %v2356
    %v2462 = vpack.c.b16 %v2360, %v2357
    %v2463 = vpack.c.b16 %v2364, %v2361
    %v2464 = vpack.c.b16 %v2365, %v2362
    %v2465 = vpack.c.b16 %v2366, %v2363
    %v2466 = vpack.c.b16 %v2370, %v2367
    %v2467 = vpack.c.b16 %v2371, %v2368
    %v2468 = vpack.c.b16 %v2372, %v2369
    %v2469 = vpack.c.b16 %v2376, %v2373
    %v2470 = vpack.c.b16 %v2377, %v2374
    %v2471 = vpack.c.b16 %v2378, %v2375
    %v2472 = vpack.c.b16 %v2382, %v2379
    %v2473 = vpack.c.b16 %v2383, %v2380
    %v2474 = vpack.c.b16 %v2384, %v2381
    %v2475 = vpack.c.b16 %v2388, %v2385
    %v2476 = vpack.c.b16 %v2389, %v2386
    %v2477 = vpack.c.b16 %v2390, %v2387
    %v2478 = vpack.c.b16 %v2394, %v2391
    %v2479 = vpack.c.b16 %v2395, %v2392
    %v2480 = vpack.c.b16 %v2396, %v2393
    %v2481 = vpack.c.b16 %v2400, %v2397
    %v2482 = vpack.c.b16 %v2401, %v2398
    %v2483 = vpack.c.b16 %v2402, %v2399
    %v2484 = vpack.c.b16 %v2406, %v2403
    %v2485 = vpack.c.b16 %v2407, %v2404
    %v2486 = vpack.c.b16 %v2408, %v2405
    %v2487 = vpack.c.b16 %v2412, %v2409
    %v2488 = vpack.c.b16 %v2413, %v2410
    %v2489 = vpack.c.b16 %v2414, %v2411
    %v2490 = vpack.c.b16 %v2418, %v2415
    %v2491 = vpack.c.b16 %v2419, %v2416
    %v2492 = vpack.c.b16 %v2420, %v2417
    %2565 = vmatpush.bf16.msra.mxu0 %v2442
    %2566 = vmatpush.bf16.msra.mxu0 %v2439
    %2567 = vmatpush.bf16.msra.mxu0 %v2436
    %2568 = vmatpush.bf16.msra.mxu0 %v2433
    %2569 = vmatpush.bf16.msra.mxu0 %v2430
    %2570 = vmatpush.bf16.msra.mxu0 %v2427
    %2571 = vmatpush.bf16.msra.mxu0 %v2424
    %2572 = vmatpush.bf16.msra.mxu0 %v2421
    %2573 = vmatmul.bf16.gmra.mxu0 %v2082
    %v2574 = vpop.f32.mrf.mxu0
    %v2575 = vadd.f32 0.0, %v2574
    %v2576 = vpop.f32.mrf.mxu0
    %v2577 = vadd.f32 0.0, %v2576
    %2578 = vdwg.mxu0
    %2579 = vmatpush.bf16.msra.mxu0 %v2466
    %2580 = vmatpush.bf16.msra.mxu0 %v2463
    %2581 = vmatpush.bf16.msra.mxu0 %v2460
    %2582 = vmatpush.bf16.msra.mxu0 %v2457
    %2583 = vmatpush.bf16.msra.mxu0 %v2454
    %2584 = vmatpush.bf16.msra.mxu0 %v2451
    %2585 = vmatpush.bf16.msra.mxu0 %v2448
    %2586 = vmatpush.bf16.msra.mxu0 %v2445
    %2587 = vmatmul.bf16.gmra.mxu0 %v2083
    %v2588 = vpop.f32.mrf.mxu0
    %v2589 = vadd.f32 %v2575, %v2588
    %v2590 = vpop.f32.mrf.mxu0
    %v2591 = vadd.f32 %v2577, %v2590
    %2592 = vdwg.mxu0
    %2593 = vmatpush.bf16.msra.mxu0 %v2490
    %2594 = vmatpush.bf16.msra.mxu0 %v2487
    %2595 = vmatpush.bf16.msra.mxu0 %v2484
    %2596 = vmatpush.bf16.msra.mxu0 %v2481
    %2597 = vmatpush.bf16.msra.mxu0 %v2478
    %2598 = vmatpush.bf16.msra.mxu0 %v2475
    %2599 = vmatpush.bf16.msra.mxu0 %v2472
    %2600 = vmatpush.bf16.msra.mxu0 %v2469
    %2601 = vmatmul.bf16.gmra.mxu0 %v2084
    %v2602 = vpop.f32.mrf.mxu0
    %v2603 = vadd.f32 %v2589, %v2602
    %v2604 = vpop.f32.mrf.mxu0
    %v2605 = vadd.f32 %v2591, %v2604
    %2606 = vdwg.mxu0
    %2607 = vmatpush.bf16.msra.mxu0 %v2443
    %2608 = vmatpush.bf16.msra.mxu0 %v2440
    %2609 = vmatpush.bf16.msra.mxu0 %v2437
    %2610 = vmatpush.bf16.msra.mxu0 %v2434
    %2611 = vmatpush.bf16.msra.mxu0 %v2431
    %2612 = vmatpush.bf16.msra.mxu0 %v2428
    %2613 = vmatpush.bf16.msra.mxu0 %v2425
    %2614 = vmatpush.bf16.msra.mxu0 %v2422
    %2615 = vmatmul.bf16.gmra.mxu0 %v2082
    %v2616 = vpop.f32.mrf.mxu0
    %v2617 = vadd.f32 0.0, %v2616
    %v2618 = vpop.f32.mrf.mxu0
    %v2619 = vadd.f32 0.0, %v2618
    %2620 = vdwg.mxu0
    %2621 = vmatpush.bf16.msra.mxu0 %v2467
    %2622 = vmatpush.bf16.msra.mxu0 %v2464
    %2623 = vmatpush.bf16.msra.mxu0 %v2461
    %2624 = vmatpush.bf16.msra.mxu0 %v2458
    %2625 = vmatpush.bf16.msra.mxu0 %v2455
    %2626 = vmatpush.bf16.msra.mxu0 %v2452
    %2627 = vmatpush.bf16.msra.mxu0 %v2449
    %2628 = vmatpush.bf16.msra.mxu0 %v2446
    %2629 = vmatmul.bf16.gmra.mxu0 %v2083
    %v2630 = vpop.f32.mrf.mxu0
    %v2631 = vadd.f32 %v2617, %v2630
    %v2632 = vpop.f32.mrf.mxu0
    %v2633 = vadd.f32 %v2619, %v2632
    %2634 = vdwg.mxu0
    %2635 = vmatpush.bf16.msra.mxu0 %v2491
    %2636 = vmatpush.bf16.msra.mxu0 %v2488
    %2637 = vmatpush.bf16.msra.mxu0 %v2485
    %2638 = vmatpush.bf16.msra.mxu0 %v2482
    %2639 = vmatpush.bf16.msra.mxu0 %v2479
    %2640 = vmatpush.bf16.msra.mxu0 %v2476
    %2641 = vmatpush.bf16.msra.mxu0 %v2473
    %2642 = vmatpush.bf16.msra.mxu0 %v2470
    %2643 = vmatmul.bf16.gmra.mxu0 %v2084
    %v2644 = vpop.f32.mrf.mxu0
    %v2645 = vadd.f32 %v2631, %v2644
    %v2646 = vpop.f32.mrf.mxu0
    %v2647 = vadd.f32 %v2633, %v2646
    %2648 = vdwg.mxu0
    %2649 = vmatpush.bf16.msra.mxu0 %v2444
    %2650 = vmatpush.bf16.msra.mxu0 %v2441
    %2651 = vmatpush.bf16.msra.mxu0 %v2438
    %2652 = vmatpush.bf16.msra.mxu0 %v2435
    %2653 = vmatpush.bf16.msra.mxu0 %v2432
    %2654 = vmatpush.bf16.msra.mxu0 %v2429
    %2655 = vmatpush.bf16.msra.mxu0 %v2426
    %2656 = vmatpush.bf16.msra.mxu0 %v2423
    %2657 = vmatmul.bf16.gmra.mxu0 %v2082
    %v2658 = vpop.f32.mrf.mxu0
    %v2659 = vadd.f32 0.0, %v2658
    %v2660 = vpop.f32.mrf.mxu0
    %v2661 = vadd.f32 0.0, %v2660
    %2662 = vdwg.mxu0
    %2663 = vmatpush.bf16.msra.mxu0 %v2468
    %2664 = vmatpush.bf16.msra.mxu0 %v2465
    %2665 = vmatpush.bf16.msra.mxu0 %v2462
    %2666 = vmatpush.bf16.msra.mxu0 %v2459
    %2667 = vmatpush.bf16.msra.mxu0 %v2456
    %2668 = vmatpush.bf16.msra.mxu0 %v2453
    %2669 = vmatpush.bf16.msra.mxu0 %v2450
    %2670 = vmatpush.bf16.msra.mxu0 %v2447
    %2671 = vmatmul.bf16.gmra.mxu0 %v2083
    %v2672 = vpop.f32.mrf.mxu0
    %v2673 = vadd.f32 %v2659, %v2672
    %v2674 = vpop.f32.mrf.mxu0
    %v2675 = vadd.f32 %v2661, %v2674
    %2676 = vdwg.mxu0
    %2677 = vmatpush.bf16.msra.mxu0 %v2492
    %2678 = vmatpush.bf16.msra.mxu0 %v2489
    %2679 = vmatpush.bf16.msra.mxu0 %v2486
    %2680 = vmatpush.bf16.msra.mxu0 %v2483
    %2681 = vmatpush.bf16.msra.mxu0 %v2480
    %2682 = vmatpush.bf16.msra.mxu0 %v2477
    %2683 = vmatpush.bf16.msra.mxu0 %v2474
    %2684 = vmatpush.bf16.msra.mxu0 %v2471
    %2685 = vmatmul.bf16.gmra.mxu0 %v2084
    %v2686 = vpop.f32.mrf.mxu0
    %v2687 = vadd.f32 %v2673, %v2686
    %v2688 = vpop.f32.mrf.mxu0
    %v2689 = vadd.f32 %v2675, %v2688
    %2690 = vdwg.mxu0
    %v2691 = vld [vmem:[%s7] sm:$0xff]
    %v2692 = vld [vmem:[%s7 + $0x8] sm:$0xff]
    %v2693 = vld [vmem:[%s7 + $0x10] sm:$0xff]
    %v2694 = vld [vmem:[%s7 + $0x18] sm:$0xff]
    %v2695 = vld [vmem:[%s6 + $0xc] sm:$0xff]
    %v2696 = vld [vmem:[%s6 + $0x14] sm:$0xf]
    %v2697 = vld [vmem:[%s6 + $0x3c] sm:$0xff]
    %v2698 = vld [vmem:[%s6 + $0x44] sm:$0xf]
    %v2699 = vld [vmem:[%s6 + $0x6c] sm:$0xff]
    %v2700 = vld [vmem:[%s6 + $0x74] sm:$0xf]
    %v2701 = vld [vmem:[%s6 + $0x9c] sm:$0xff]
    %v2702 = vld [vmem:[%s6 + $0xa4] sm:$0xf]
    %v2703 = vld [vmem:[%s6 + $0xcc] sm:$0xff]
    %v2704 = vld [vmem:[%s6 + $0xd4] sm:$0xf]
    %v2705 = vld [vmem:[%s6 + $0xfc] sm:$0xff]
    %v2706 = vld [vmem:[%s6 + $0x104] sm:$0xf]
    %v2707 = vld [vmem:[%s6 + $0x12c] sm:$0xff]
    %v2708 = vld [vmem:[%s6 + $0x134] sm:$0xf]
    %v2709 = vld [vmem:[%s6 + $0x15c] sm:$0xff]
    %v2710 = vld [vmem:[%s6 + $0x164] sm:$0xf]
    %v2711 = vld [vmem:[%s6 + $0x18c] sm:$0xff]
    %v2712 = vld [vmem:[%s6 + $0x194] sm:$0xf]
    %v2713 = vld [vmem:[%s6 + $0x1bc] sm:$0xff]
    %v2714 = vld [vmem:[%s6 + $0x1c4] sm:$0xf]
    %v2715 = vld [vmem:[%s6 + $0x1ec] sm:$0xff]
    %v2716 = vld [vmem:[%s6 + $0x1f4] sm:$0xf]
    %v2717 = vld [vmem:[%s6 + $0x21c] sm:$0xff]
    %v2718 = vld [vmem:[%s6 + $0x224] sm:$0xf]
    %v2719 = vld [vmem:[%s6 + $0x24c] sm:$0xff]
    %v2720 = vld [vmem:[%s6 + $0x254] sm:$0xf]
    %v2721 = vld [vmem:[%s6 + $0x27c] sm:$0xff]
    %v2722 = vld [vmem:[%s6 + $0x284] sm:$0xf]
    %v2723 = vld [vmem:[%s6 + $0x2ac] sm:$0xff]
    %v2724 = vld [vmem:[%s6 + $0x2b4] sm:$0xf]
    %v2725 = vld [vmem:[%s6 + $0x2dc] sm:$0xff]
    %v2726 = vld [vmem:[%s6 + $0x2e4] sm:$0xf]
    %v2727 = vld [vmem:[%s6 + $0x30c] sm:$0xff]
    %v2728 = vld [vmem:[%s6 + $0x314] sm:$0xf]
    %v2729 = vld [vmem:[%s6 + $0x33c] sm:$0xff]
    %v2730 = vld [vmem:[%s6 + $0x344] sm:$0xf]
    %v2731 = vld [vmem:[%s6 + $0x36c] sm:$0xff]
    %v2732 = vld [vmem:[%s6 + $0x374] sm:$0xf]
    %v2733 = vld [vmem:[%s6 + $0x39c] sm:$0xff]
    %v2734 = vld [vmem:[%s6 + $0x3a4] sm:$0xf]
    %v2735 = vld [vmem:[%s6 + $0x3cc] sm:$0xff]
    %v2736 = vld [vmem:[%s6 + $0x3d4] sm:$0xf]
    %v2737 = vld [vmem:[%s6 + $0x3fc] sm:$0xff]
    %v2738 = vld [vmem:[%s6 + $0x404] sm:$0xf]
    %v2739 = vld [vmem:[%s6 + $0x42c] sm:$0xff]
    %v2740 = vld [vmem:[%s6 + $0x434] sm:$0xf]
    %v2741 = vld [vmem:[%s6 + $0x45c] sm:$0xff]
    %v2742 = vld [vmem:[%s6 + $0x464] sm:$0xf]
    %v2743 = vld [vmem:[%s6 + $0x48c] sm:$0xff]
    %v2744 = vld [vmem:[%s6 + $0x494] sm:$0xf]
    %v2745 = vld [vmem:[%s6 + $0x4bc] sm:$0xff]
    %v2746 = vld [vmem:[%s6 + $0x4c4] sm:$0xf]
    %v2747 = vld [vmem:[%s6 + $0x4ec] sm:$0xff]
    %v2748 = vld [vmem:[%s6 + $0x4f4] sm:$0xf]
    %v2749 = vld [vmem:[%s6 + $0x51c] sm:$0xff]
    %v2750 = vld [vmem:[%s6 + $0x524] sm:$0xf]
    %v2751 = vld [vmem:[%s6 + $0x54c] sm:$0xff]
    %v2752 = vld [vmem:[%s6 + $0x554] sm:$0xf]
    %v2753 = vld [vmem:[%s6 + $0x57c] sm:$0xff]
    %v2754 = vld [vmem:[%s6 + $0x584] sm:$0xf]
    %v2755 = vld [vmem:[%s6 + $0x5ac] sm:$0xff]
    %v2756 = vld [vmem:[%s6 + $0x5b4] sm:$0xf]
    %v2757 = vld [vmem:[%s6 + $0x5dc] sm:$0xff]
    %v2758 = vld [vmem:[%s6 + $0x5e4] sm:$0xf]
    %v2759 = vld [vmem:[%s6 + $0x60c] sm:$0xff]
    %v2760 = vld [vmem:[%s6 + $0x614] sm:$0xf]
    %v2761 = vld [vmem:[%s6 + $0x63c] sm:$0xff]
    %v2762 = vld [vmem:[%s6 + $0x644] sm:$0xf]
    %v2763 = vld [vmem:[%s6 + $0x66c] sm:$0xff]
    %v2764 = vld [vmem:[%s6 + $0x674] sm:$0xf]
    %v2765 = vld [vmem:[%s6 + $0x69c] sm:$0xff]
    %v2766 = vld [vmem:[%s6 + $0x6a4] sm:$0xf]
    %v2767 = vld [vmem:[%s6 + $0x6cc] sm:$0xff]
    %v2768 = vld [vmem:[%s6 + $0x6d4] sm:$0xf]
    %v2769 = vld [vmem:[%s6 + $0x6fc] sm:$0xff]
    %v2770 = vld [vmem:[%s6 + $0x704] sm:$0xf]
    %v2771 = vld [vmem:[%s6 + $0x72c] sm:$0xff]
    %v2772 = vld [vmem:[%s6 + $0x734] sm:$0xf]
    %v2773 = vld [vmem:[%s6 + $0x75c] sm:$0xff]
    %v2774 = vld [vmem:[%s6 + $0x764] sm:$0xf]
    %v2775 = vld [vmem:[%s6 + $0x78c] sm:$0xff]
    %v2776 = vld [vmem:[%s6 + $0x794] sm:$0xf]
    %v2777 = vld [vmem:[%s6 + $0x7bc] sm:$0xff]
    %v2778 = vld [vmem:[%s6 + $0x7c4] sm:$0xf]
    %v2779 = vld [vmem:[%s6 + $0x7ec] sm:$0xff]
    %v2780 = vld [vmem:[%s6 + $0x7f4] sm:$0xf]
    %v2781 = vld [vmem:[%s6 + $0x81c] sm:$0xff]
    %v2782 = vld [vmem:[%s6 + $0x824] sm:$0xf]
    %v2783 = vld [vmem:[%s6 + $0x84c] sm:$0xff]
    %v2784 = vld [vmem:[%s6 + $0x854] sm:$0xf]
    %v2785 = vld [vmem:[%s6 + $0x87c] sm:$0xff]
    %v2786 = vld [vmem:[%s6 + $0x884] sm:$0xf]
    %v2787 = vld [vmem:[%s6 + $0x8ac] sm:$0xff]
    %v2788 = vld [vmem:[%s6 + $0x8b4] sm:$0xf]
    %v2789 = vld [vmem:[%s6 + $0x8dc] sm:$0xff]
    %v2790 = vld [vmem:[%s6 + $0x8e4] sm:$0xf]
    %v2887 = vunpack.c.l.b16 %v2695
    %v2888 = vunpack.c.h.b16 %v2695
    %v2889 = vunpack.c.l.b16 %v2696
    %v2890 = vunpack.c.l.b16 %v2697
    %v2891 = vunpack.c.h.b16 %v2697
    %v2892 = vunpack.c.l.b16 %v2698
    %v2893 = vunpack.c.l.b16 %v2699
    %v2894 = vunpack.c.h.b16 %v2699
    %v2895 = vunpack.c.l.b16 %v2700
    %v2896 = vunpack.c.l.b16 %v2701
    %v2897 = vunpack.c.h.b16 %v2701
    %v2898 = vunpack.c.l.b16 %v2702
    %v2899 = vunpack.c.l.b16 %v2703
    %v2900 = vunpack.c.h.b16 %v2703
    %v2901 = vunpack.c.l.b16 %v2704
    %v2902 = vunpack.c.l.b16 %v2705
    %v2903 = vunpack.c.h.b16 %v2705
    %v2904 = vunpack.c.l.b16 %v2706
    %v2905 = vunpack.c.l.b16 %v2707
    %v2906 = vunpack.c.h.b16 %v2707
    %v2907 = vunpack.c.l.b16 %v2708
    %v2908 = vunpack.c.l.b16 %v2709
    %v2909 = vunpack.c.h.b16 %v2709
    %v2910 = vunpack.c.l.b16 %v2710
    %v2911 = vunpack.c.l.b16 %v2711
    %v2912 = vunpack.c.h.b16 %v2711
    %v2913 = vunpack.c.l.b16 %v2712
    %v2914 = vunpack.c.l.b16 %v2713
    %v2915 = vunpack.c.h.b16 %v2713
    %v2916 = vunpack.c.l.b16 %v2714
    %v2917 = vunpack.c.l.b16 %v2715
    %v2918 = vunpack.c.h.b16 %v2715
    %v2919 = vunpack.c.l.b16 %v2716
    %v2920 = vunpack.c.l.b16 %v2717
    %v2921 = vunpack.c.h.b16 %v2717
    %v2922 = vunpack.c.l.b16 %v2718
    %v2923 = vunpack.c.l.b16 %v2719
    %v2924 = vunpack.c.h.b16 %v2719
    %v2925 = vunpack.c.l.b16 %v2720
    %v2926 = vunpack.c.l.b16 %v2721
    %v2927 = vunpack.c.h.b16 %v2721
    %v2928 = vunpack.c.l.b16 %v2722
    %v2929 = vunpack.c.l.b16 %v2723
    %v2930 = vunpack.c.h.b16 %v2723
    %v2931 = vunpack.c.l.b16 %v2724
    %v2932 = vunpack.c.l.b16 %v2725
    %v2933 = vunpack.c.h.b16 %v2725
    %v2934 = vunpack.c.l.b16 %v2726
    %v2935 = vunpack.c.l.b16 %v2727
    %v2936 = vunpack.c.h.b16 %v2727
    %v2937 = vunpack.c.l.b16 %v2728
    %v2938 = vunpack.c.l.b16 %v2729
    %v2939 = vunpack.c.h.b16 %v2729
    %v2940 = vunpack.c.l.b16 %v2730
    %v2941 = vunpack.c.l.b16 %v2731
    %v2942 = vunpack.c.h.b16 %v2731
    %v2943 = vunpack.c.l.b16 %v2732
    %v2944 = vunpack.c.l.b16 %v2733
    %v2945 = vunpack.c.h.b16 %v2733
    %v2946 = vunpack.c.l.b16 %v2734
    %v2947 = vunpack.c.l.b16 %v2735
    %v2948 = vunpack.c.h.b16 %v2735
    %v2949 = vunpack.c.l.b16 %v2736
    %v2950 = vunpack.c.l.b16 %v2737
    %v2951 = vunpack.c.h.b16 %v2737
    %v2952 = vunpack.c.l.b16 %v2738
    %v2953 = vunpack.c.l.b16 %v2739
    %v2954 = vunpack.c.h.b16 %v2739
    %v2955 = vunpack.c.l.b16 %v2740
    %v2956 = vunpack.c.l.b16 %v2741
    %v2957 = vunpack.c.h.b16 %v2741
    %v2958 = vunpack.c.l.b16 %v2742
    %v2959 = vunpack.c.l.b16 %v2743
    %v2960 = vunpack.c.h.b16 %v2743
    %v2961 = vunpack.c.l.b16 %v2744
    %v2962 = vunpack.c.l.b16 %v2745
    %v2963 = vunpack.c.h.b16 %v2745
    %v2964 = vunpack.c.l.b16 %v2746
    %v2965 = vunpack.c.l.b16 %v2747
    %v2966 = vunpack.c.h.b16 %v2747
    %v2967 = vunpack.c.l.b16 %v2748
    %v2968 = vunpack.c.l.b16 %v2749
    %v2969 = vunpack.c.h.b16 %v2749
    %v2970 = vunpack.c.l.b16 %v2750
    %v2971 = vunpack.c.l.b16 %v2751
    %v2972 = vunpack.c.h.b16 %v2751
    %v2973 = vunpack.c.l.b16 %v2752
    %v2974 = vunpack.c.l.b16 %v2753
    %v2975 = vunpack.c.h.b16 %v2753
    %v2976 = vunpack.c.l.b16 %v2754
    %v2977 = vunpack.c.l.b16 %v2755
    %v2978 = vunpack.c.h.b16 %v2755
    %v2979 = vunpack.c.l.b16 %v2756
    %v2980 = vunpack.c.l.b16 %v2757
    %v2981 = vunpack.c.h.b16 %v2757
    %v2982 = vunpack.c.l.b16 %v2758
    %v2983 = vunpack.c.l.b16 %v2759
    %v2984 = vunpack.c.h.b16 %v2759
    %v2985 = vunpack.c.l.b16 %v2760
    %v2986 = vunpack.c.l.b16 %v2761
    %v2987 = vunpack.c.h.b16 %v2761
    %v2988 = vunpack.c.l.b16 %v2762
    %v2989 = vunpack.c.l.b16 %v2763
    %v2990 = vunpack.c.h.b16 %v2763
    %v2991 = vunpack.c.l.b16 %v2764
    %v2992 = vunpack.c.l.b16 %v2765
    %v2993 = vunpack.c.h.b16 %v2765
    %v2994 = vunpack.c.l.b16 %v2766
    %v2995 = vunpack.c.l.b16 %v2767
    %v2996 = vunpack.c.h.b16 %v2767
    %v2997 = vunpack.c.l.b16 %v2768
    %v2998 = vunpack.c.l.b16 %v2769
    %v2999 = vunpack.c.h.b16 %v2769
    %v3000 = vunpack.c.l.b16 %v2770
    %v3001 = vunpack.c.l.b16 %v2771
    %v3002 = vunpack.c.h.b16 %v2771
    %v3003 = vunpack.c.l.b16 %v2772
    %v3004 = vunpack.c.l.b16 %v2773
    %v3005 = vunpack.c.h.b16 %v2773
    %v3006 = vunpack.c.l.b16 %v2774
    %v3007 = vunpack.c.l.b16 %v2775
    %v3008 = vunpack.c.h.b16 %v2775
    %v3009 = vunpack.c.l.b16 %v2776
    %v3010 = vunpack.c.l.b16 %v2777
    %v3011 = vunpack.c.h.b16 %v2777
    %v3012 = vunpack.c.l.b16 %v2778
    %v3013 = vunpack.c.l.b16 %v2779
    %v3014 = vunpack.c.h.b16 %v2779
    %v3015 = vunpack.c.l.b16 %v2780
    %v3016 = vunpack.c.l.b16 %v2781
    %v3017 = vunpack.c.h.b16 %v2781
    %v3018 = vunpack.c.l.b16 %v2782
    %v3019 = vunpack.c.l.b16 %v2783
    %v3020 = vunpack.c.h.b16 %v2783
    %v3021 = vunpack.c.l.b16 %v2784
    %v3022 = vunpack.c.l.b16 %v2785
    %v3023 = vunpack.c.h.b16 %v2785
    %v3024 = vunpack.c.l.b16 %v2786
    %v3025 = vunpack.c.l.b16 %v2787
    %v3026 = vunpack.c.h.b16 %v2787
    %v3027 = vunpack.c.l.b16 %v2788
    %v3028 = vunpack.c.l.b16 %v2789
    %v3029 = vunpack.c.h.b16 %v2789
    %v3030 = vunpack.c.l.b16 %v2790
    %v3031 = vpack.c.b16 %v2890, %v2887
    %v3032 = vpack.c.b16 %v2891, %v2888
    %v3033 = vpack.c.b16 %v2892, %v2889
    %v3034 = vpack.c.b16 %v2896, %v2893
    %v3035 = vpack.c.b16 %v2897, %v2894
    %v3036 = vpack.c.b16 %v2898, %v2895
    %v3037 = vpack.c.b16 %v2902, %v2899
    %v3038 = vpack.c.b16 %v2903, %v2900
    %v3039 = vpack.c.b16 %v2904, %v2901
    %v3040 = vpack.c.b16 %v2908, %v2905
    %v3041 = vpack.c.b16 %v2909, %v2906
    %v3042 = vpack.c.b16 %v2910, %v2907
    %v3043 = vpack.c.b16 %v2914, %v2911
    %v3044 = vpack.c.b16 %v2915, %v2912
    %v3045 = vpack.c.b16 %v2916, %v2913
    %v3046 = vpack.c.b16 %v2920, %v2917
    %v3047 = vpack.c.b16 %v2921, %v2918
    %v3048 = vpack.c.b16 %v2922, %v2919
    %v3049 = vpack.c.b16 %v2926, %v2923
    %v3050 = vpack.c.b16 %v2927, %v2924
    %v3051 = vpack.c.b16 %v2928, %v2925
    %v3052 = vpack.c.b16 %v2932, %v2929
    %v3053 = vpack.c.b16 %v2933, %v2930
    %v3054 = vpack.c.b16 %v2934, %v2931
    %v3055 = vpack.c.b16 %v2938, %v2935
    %v3056 = vpack.c.b16 %v2939, %v2936
    %v3057 = vpack.c.b16 %v2940, %v2937
    %v3058 = vpack.c.b16 %v2944, %v2941
    %v3059 = vpack.c.b16 %v2945, %v2942
    %v3060 = vpack.c.b16 %v2946, %v2943
    %v3061 = vpack.c.b16 %v2950, %v2947
    %v3062 = vpack.c.b16 %v2951, %v2948
    %v3063 = vpack.c.b16 %v2952, %v2949
    %v3064 = vpack.c.b16 %v2956, %v2953
    %v3065 = vpack.c.b16 %v2957, %v2954
    %v3066 = vpack.c.b16 %v2958, %v2955
    %v3067 = vpack.c.b16 %v2962, %v2959
    %v3068 = vpack.c.b16 %v2963, %v2960
    %v3069 = vpack.c.b16 %v2964, %v2961
    %v3070 = vpack.c.b16 %v2968, %v2965
    %v3071 = vpack.c.b16 %v2969, %v2966
    %v3072 = vpack.c.b16 %v2970, %v2967
    %v3073 = vpack.c.b16 %v2974, %v2971
    %v3074 = vpack.c.b16 %v2975, %v2972
    %v3075 = vpack.c.b16 %v2976, %v2973
    %v3076 = vpack.c.b16 %v2980, %v2977
    %v3077 = vpack.c.b16 %v2981, %v2978
    %v3078 = vpack.c.b16 %v2982, %v2979
    %v3079 = vpack.c.b16 %v2986, %v2983
    %v3080 = vpack.c.b16 %v2987, %v2984
    %v3081 = vpack.c.b16 %v2988, %v2985
    %v3082 = vpack.c.b16 %v2992, %v2989
    %v3083 = vpack.c.b16 %v2993, %v2990
    %v3084 = vpack.c.b16 %v2994, %v2991
    %v3085 = vpack.c.b16 %v2998, %v2995
    %v3086 = vpack.c.b16 %v2999, %v2996
    %v3087 = vpack.c.b16 %v3000, %v2997
    %v3088 = vpack.c.b16 %v3004, %v3001
    %v3089 = vpack.c.b16 %v3005, %v3002
    %v3090 = vpack.c.b16 %v3006, %v3003
    %v3091 = vpack.c.b16 %v3010, %v3007
    %v3092 = vpack.c.b16 %v3011, %v3008
    %v3093 = vpack.c.b16 %v3012, %v3009
    %v3094 = vpack.c.b16 %v3016, %v3013
    %v3095 = vpack.c.b16 %v3017, %v3014
    %v3096 = vpack.c.b16 %v3018, %v3015
    %v3097 = vpack.c.b16 %v3022, %v3019
    %v3098 = vpack.c.b16 %v3023, %v3020
    %v3099 = vpack.c.b16 %v3024, %v3021
    %v3100 = vpack.c.b16 %v3028, %v3025
    %v3101 = vpack.c.b16 %v3029, %v3026
    %v3102 = vpack.c.b16 %v3030, %v3027
    %3175 = vmatpush.bf16.msra.mxu0 %v3052
    %3176 = vmatpush.bf16.msra.mxu0 %v3049
    %3177 = vmatpush.bf16.msra.mxu0 %v3046
    %3178 = vmatpush.bf16.msra.mxu0 %v3043
    %3179 = vmatpush.bf16.msra.mxu0 %v3040
    %3180 = vmatpush.bf16.msra.mxu0 %v3037
    %3181 = vmatpush.bf16.msra.mxu0 %v3034
    %3182 = vmatpush.bf16.msra.mxu0 %v3031
    %3183 = vmatmul.bf16.gmra.mxu0 %v2082
    %v3184 = vpop.f32.mrf.mxu0
    %v3185 = vadd.f32 0.0, %v3184
    %v3186 = vpop.f32.mrf.mxu0
    %v3187 = vadd.f32 0.0, %v3186
    %3188 = vdwg.mxu0
    %3189 = vmatpush.bf16.msra.mxu0 %v3076
    %3190 = vmatpush.bf16.msra.mxu0 %v3073
    %3191 = vmatpush.bf16.msra.mxu0 %v3070
    %3192 = vmatpush.bf16.msra.mxu0 %v3067
    %3193 = vmatpush.bf16.msra.mxu0 %v3064
    %3194 = vmatpush.bf16.msra.mxu0 %v3061
    %3195 = vmatpush.bf16.msra.mxu0 %v3058
    %3196 = vmatpush.bf16.msra.mxu0 %v3055
    %3197 = vmatmul.bf16.gmra.mxu0 %v2083
    %v3198 = vpop.f32.mrf.mxu0
    %v3199 = vadd.f32 %v3185, %v3198
    %v3200 = vpop.f32.mrf.mxu0
    %v3201 = vadd.f32 %v3187, %v3200
    %3202 = vdwg.mxu0
    %3203 = vmatpush.bf16.msra.mxu0 %v3100
    %3204 = vmatpush.bf16.msra.mxu0 %v3097
    %3205 = vmatpush.bf16.msra.mxu0 %v3094
    %3206 = vmatpush.bf16.msra.mxu0 %v3091
    %3207 = vmatpush.bf16.msra.mxu0 %v3088
    %3208 = vmatpush.bf16.msra.mxu0 %v3085
    %3209 = vmatpush.bf16.msra.mxu0 %v3082
    %3210 = vmatpush.bf16.msra.mxu0 %v3079
    %3211 = vmatmul.bf16.gmra.mxu0 %v2084
    %v3212 = vpop.f32.mrf.mxu0
    %v3213 = vadd.f32 %v3199, %v3212
    %v3214 = vpop.f32.mrf.mxu0
    %v3215 = vadd.f32 %v3201, %v3214
    %3216 = vdwg.mxu0
    %3217 = vmatpush.bf16.msra.mxu0 %v3053
    %3218 = vmatpush.bf16.msra.mxu0 %v3050
    %3219 = vmatpush.bf16.msra.mxu0 %v3047
    %3220 = vmatpush.bf16.msra.mxu0 %v3044
    %3221 = vmatpush.bf16.msra.mxu0 %v3041
    %3222 = vmatpush.bf16.msra.mxu0 %v3038
    %3223 = vmatpush.bf16.msra.mxu0 %v3035
    %3224 = vmatpush.bf16.msra.mxu0 %v3032
    %3225 = vmatmul.bf16.gmra.mxu0 %v2082
    %v3226 = vpop.f32.mrf.mxu0
    %v3227 = vadd.f32 0.0, %v3226
    %v3228 = vpop.f32.mrf.mxu0
    %v3229 = vadd.f32 0.0, %v3228
    %3230 = vdwg.mxu0
    %3231 = vmatpush.bf16.msra.mxu0 %v3077
    %3232 = vmatpush.bf16.msra.mxu0 %v3074
    %3233 = vmatpush.bf16.msra.mxu0 %v3071
    %3234 = vmatpush.bf16.msra.mxu0 %v3068
    %3235 = vmatpush.bf16.msra.mxu0 %v3065
    %3236 = vmatpush.bf16.msra.mxu0 %v3062
    %3237 = vmatpush.bf16.msra.mxu0 %v3059
    %3238 = vmatpush.bf16.msra.mxu0 %v3056
    %3239 = vmatmul.bf16.gmra.mxu0 %v2083
    %v3240 = vpop.f32.mrf.mxu0
    %v3241 = vadd.f32 %v3227, %v3240
    %v3242 = vpop.f32.mrf.mxu0
    %v3243 = vadd.f32 %v3229, %v3242
    %3244 = vdwg.mxu0
    %3245 = vmatpush.bf16.msra.mxu0 %v3101
    %3246 = vmatpush.bf16.msra.mxu0 %v3098
    %3247 = vmatpush.bf16.msra.mxu0 %v3095
    %3248 = vmatpush.bf16.msra.mxu0 %v3092
    %3249 = vmatpush.bf16.msra.mxu0 %v3089
    %3250 = vmatpush.bf16.msra.mxu0 %v3086
    %3251 = vmatpush.bf16.msra.mxu0 %v3083
    %3252 = vmatpush.bf16.msra.mxu0 %v3080
    %3253 = vmatmul.bf16.gmra.mxu0 %v2084
    %v3254 = vpop.f32.mrf.mxu0
    %v3255 = vadd.f32 %v3241, %v3254
    %v3256 = vpop.f32.mrf.mxu0
    %v3257 = vadd.f32 %v3243, %v3256
    %3258 = vdwg.mxu0
    %3259 = vmatpush.bf16.msra.mxu0 %v3054
    %3260 = vmatpush.bf16.msra.mxu0 %v3051
    %3261 = vmatpush.bf16.msra.mxu0 %v3048
    %3262 = vmatpush.bf16.msra.mxu0 %v3045
    %3263 = vmatpush.bf16.msra.mxu0 %v3042
    %3264 = vmatpush.bf16.msra.mxu0 %v3039
    %3265 = vmatpush.bf16.msra.mxu0 %v3036
    %3266 = vmatpush.bf16.msra.mxu0 %v3033
    %3267 = vmatmul.bf16.gmra.mxu0 %v2082
    %v3268 = vpop.f32.mrf.mxu0
    %v3269 = vadd.f32 0.0, %v3268
    %v3270 = vpop.f32.mrf.mxu0
    %v3271 = vadd.f32 0.0, %v3270
    %3272 = vdwg.mxu0
    %3273 = vmatpush.bf16.msra.mxu0 %v3078
    %3274 = vmatpush.bf16.msra.mxu0 %v3075
    %3275 = vmatpush.bf16.msra.mxu0 %v3072
    %3276 = vmatpush.bf16.msra.mxu0 %v3069
    %3277 = vmatpush.bf16.msra.mxu0 %v3066
    %3278 = vmatpush.bf16.msra.mxu0 %v3063
    %3279 = vmatpush.bf16.msra.mxu0 %v3060
    %3280 = vmatpush.bf16.msra.mxu0 %v3057
    %3281 = vmatmul.bf16.gmra.mxu0 %v2083
    %v3282 = vpop.f32.mrf.mxu0
    %v3283 = vadd.f32 %v3269, %v3282
    %v3284 = vpop.f32.mrf.mxu0
    %v3285 = vadd.f32 %v3271, %v3284
    %3286 = vdwg.mxu0
    %3287 = vmatpush.bf16.msra.mxu0 %v3102
    %3288 = vmatpush.bf16.msra.mxu0 %v3099
    %3289 = vmatpush.bf16.msra.mxu0 %v3096
    %3290 = vmatpush.bf16.msra.mxu0 %v3093
    %3291 = vmatpush.bf16.msra.mxu0 %v3090
    %3292 = vmatpush.bf16.msra.mxu0 %v3087
    %3293 = vmatpush.bf16.msra.mxu0 %v3084
    %3294 = vmatpush.bf16.msra.mxu0 %v3081
    %3295 = vmatmul.bf16.gmra.mxu0 %v2084
    %v3296 = vpop.f32.mrf.mxu0
    %v3297 = vadd.f32 %v3283, %v3296
    %v3298 = vpop.f32.mrf.mxu0
    %v3299 = vadd.f32 %v3285, %v3298
    %3300 = vdwg.mxu0
    %s3301 = scalar_lea.vmem %s7, 32
    %v3302 = vld [vmem:[%s3301] sm:$0xff]
    %v3303 = vld [vmem:[%s3301 + $0x8] sm:$0xff]
    %v3304 = vld [vmem:[%s3301 + $0x10] sm:$0xff]
    %v3305 = vld [vmem:[%s3301 + $0x18] sm:$0xff]
    %vm3306 = vcmask 130048
    %v3308 = vsel %vm3306, %v3302, 0
    %v3311 = vsel %vm3306, %v3303, 0
    %v3314 = vsel %vm3306, %v3304, 0
    %v3317 = vsel %vm3306, %v3305, 0
    %3319 = vmatpush.msra.mxu0 0.0
    %3320 = vmatpush.msra.mxu0 0.0
    %3321 = vmatpush.msra.mxu0 0.0
    %3322 = vmatpush.msra.mxu0 0.0
    %3323 = vmatpush.msra.mxu0 0.0
    %3324 = vmatpush.msra.mxu0 0.0
    %3325 = vmatpush.msra.mxu0 0.0
    %3326 = vmatpush.msra.mxu0 0.0
    %3327 = vmatpush.msra.mxu0 0.0
    %3328 = vmatpush.msra.mxu0 0.0
    %3329 = vmatpush.msra.mxu0 0.0
    %3330 = vmatpush.msra.mxu0 0.0
    %3331 = vmatpush.msra.mxu0 0.0
    %3332 = vmatpush.msra.mxu0 0.0
    %3333 = vmatpush.msra.mxu0 %v3215
    %3334 = vmatpush.msra.mxu0 %v3213
    %3335 = vmatmul.f32.gmra.mxu0 %v3308
    %v3336 = vpop.f32.mrf.mxu0
    %v3337 = vadd.f32 0.0, %v3336
    %3338 = vmatmul.f32.gmra.mxu0 %v3311
    %v3339 = vpop.f32.mrf.mxu0
    %v3340 = vadd.f32 0.0, %v3339
    %3341 = vmatmul.f32.gmra.mxu0 %v3314
    %v3342 = vpop.f32.mrf.mxu0
    %v3343 = vadd.f32 0.0, %v3342
    %3344 = vmatmul.f32.gmra.mxu0 %v3317
    %v3345 = vpop.f32.mrf.mxu0
    %v3346 = vadd.f32 0.0, %v3345
    %3347 = vdwg.mxu0
    %3348 = vmatpush.msra.mxu0 0.0
    %3349 = vmatpush.msra.mxu0 0.0
    %3350 = vmatpush.msra.mxu0 0.0
    %3351 = vmatpush.msra.mxu0 0.0
    %3352 = vmatpush.msra.mxu0 0.0
    %3353 = vmatpush.msra.mxu0 0.0
    %3354 = vmatpush.msra.mxu0 0.0
    %3355 = vmatpush.msra.mxu0 0.0
    %3356 = vmatpush.msra.mxu0 0.0
    %3357 = vmatpush.msra.mxu0 0.0
    %3358 = vmatpush.msra.mxu0 0.0
    %3359 = vmatpush.msra.mxu0 0.0
    %3360 = vmatpush.msra.mxu0 0.0
    %3361 = vmatpush.msra.mxu0 0.0
    %3362 = vmatpush.msra.mxu0 %v3257
    %3363 = vmatpush.msra.mxu0 %v3255
    %3364 = vmatmul.f32.gmra.mxu0 %v3308
    %v3365 = vpop.f32.mrf.mxu0
    %v3366 = vadd.f32 0.0, %v3365
    %3367 = vmatmul.f32.gmra.mxu0 %v3311
    %v3368 = vpop.f32.mrf.mxu0
    %v3369 = vadd.f32 0.0, %v3368
    %3370 = vmatmul.f32.gmra.mxu0 %v3314
    %v3371 = vpop.f32.mrf.mxu0
    %v3372 = vadd.f32 0.0, %v3371
    %3373 = vmatmul.f32.gmra.mxu0 %v3317
    %v3374 = vpop.f32.mrf.mxu0
    %v3375 = vadd.f32 0.0, %v3374
    %3376 = vdwg.mxu0
    %3377 = vmatpush.msra.mxu0 0.0
    %3378 = vmatpush.msra.mxu0 0.0
    %3379 = vmatpush.msra.mxu0 0.0
    %3380 = vmatpush.msra.mxu0 0.0
    %3381 = vmatpush.msra.mxu0 0.0
    %3382 = vmatpush.msra.mxu0 0.0
    %3383 = vmatpush.msra.mxu0 0.0
    %3384 = vmatpush.msra.mxu0 0.0
    %3385 = vmatpush.msra.mxu0 0.0
    %3386 = vmatpush.msra.mxu0 0.0
    %3387 = vmatpush.msra.mxu0 0.0
    %3388 = vmatpush.msra.mxu0 0.0
    %3389 = vmatpush.msra.mxu0 0.0
    %3390 = vmatpush.msra.mxu0 0.0
    %3391 = vmatpush.msra.mxu0 %v3299
    %3392 = vmatpush.msra.mxu0 %v3297
    %3393 = vmatmul.f32.gmra.mxu0 %v3308
    %v3394 = vpop.f32.mrf.mxu0
    %v3395 = vadd.f32 0.0, %v3394
    %3396 = vmatmul.f32.gmra.mxu0 %v3311
    %v3397 = vpop.f32.mrf.mxu0
    %v3398 = vadd.f32 0.0, %v3397
    %3399 = vmatmul.f32.gmra.mxu0 %v3314
    %v3400 = vpop.f32.mrf.mxu0
    %v3401 = vadd.f32 0.0, %v3400
    %3402 = vmatmul.f32.gmra.mxu0 %v3317
    %v3403 = vpop.f32.mrf.mxu0
    %v3404 = vadd.f32 0.0, %v3403
    %3405 = vdwg.mxu0
    %v3407 = vsel %vm3306, %v2691, 0
    %v3410 = vsel %vm3306, %v2692, 0
    %v3413 = vsel %vm3306, %v2693, 0
    %v3416 = vsel %vm3306, %v2694, 0
    %3418 = vmatpush.msra.mxu0 0.0
    %3419 = vmatpush.msra.mxu0 0.0
    %3420 = vmatpush.msra.mxu0 0.0
    %3421 = vmatpush.msra.mxu0 0.0
    %3422 = vmatpush.msra.mxu0 0.0
    %3423 = vmatpush.msra.mxu0 0.0
    %3424 = vmatpush.msra.mxu0 0.0
    %3425 = vmatpush.msra.mxu0 0.0
    %3426 = vmatpush.msra.mxu0 0.0
    %3427 = vmatpush.msra.mxu0 0.0
    %3428 = vmatpush.msra.mxu0 0.0
    %3429 = vmatpush.msra.mxu0 0.0
    %3430 = vmatpush.msra.mxu0 0.0
    %3431 = vmatpush.msra.mxu0 0.0
    %3432 = vmatpush.msra.mxu0 %v2605
    %3433 = vmatpush.msra.mxu0 %v2603
    %3434 = vmatmul.f32.gmra.mxu0 %v3407
    %v3435 = vpop.f32.mrf.mxu0
    %v3436 = vadd.f32 %v3337, %v3435
    %3437 = vmatmul.f32.gmra.mxu0 %v3410
    %v3438 = vpop.f32.mrf.mxu0
    %v3439 = vadd.f32 %v3340, %v3438
    %3440 = vmatmul.f32.gmra.mxu0 %v3413
    %v3441 = vpop.f32.mrf.mxu0
    %v3442 = vadd.f32 %v3343, %v3441
    %3443 = vmatmul.f32.gmra.mxu0 %v3416
    %v3444 = vpop.f32.mrf.mxu0
    %v3445 = vadd.f32 %v3346, %v3444
    %3446 = vdwg.mxu0
    %3447 = vmatpush.msra.mxu0 0.0
    %3448 = vmatpush.msra.mxu0 0.0
    %3449 = vmatpush.msra.mxu0 0.0
    %3450 = vmatpush.msra.mxu0 0.0
    %3451 = vmatpush.msra.mxu0 0.0
    %3452 = vmatpush.msra.mxu0 0.0
    %3453 = vmatpush.msra.mxu0 0.0
    %3454 = vmatpush.msra.mxu0 0.0
    %3455 = vmatpush.msra.mxu0 0.0
    %3456 = vmatpush.msra.mxu0 0.0
    %3457 = vmatpush.msra.mxu0 0.0
    %3458 = vmatpush.msra.mxu0 0.0
    %3459 = vmatpush.msra.mxu0 0.0
    %3460 = vmatpush.msra.mxu0 0.0
    %3461 = vmatpush.msra.mxu0 %v2647
    %3462 = vmatpush.msra.mxu0 %v2645
    %3463 = vmatmul.f32.gmra.mxu0 %v3407
    %v3464 = vpop.f32.mrf.mxu0
    %v3465 = vadd.f32 %v3366, %v3464
    %3466 = vmatmul.f32.gmra.mxu0 %v3410
    %v3467 = vpop.f32.mrf.mxu0
    %v3468 = vadd.f32 %v3369, %v3467
    %3469 = vmatmul.f32.gmra.mxu0 %v3413
    %v3470 = vpop.f32.mrf.mxu0
    %v3471 = vadd.f32 %v3372, %v3470
    %3472 = vmatmul.f32.gmra.mxu0 %v3416
    %v3473 = vpop.f32.mrf.mxu0
    %v3474 = vadd.f32 %v3375, %v3473
    %3475 = vdwg.mxu0
    %3476 = vmatpush.msra.mxu0 0.0
    %3477 = vmatpush.msra.mxu0 0.0
    %3478 = vmatpush.msra.mxu0 0.0
    %3479 = vmatpush.msra.mxu0 0.0
    %3480 = vmatpush.msra.mxu0 0.0
    %3481 = vmatpush.msra.mxu0 0.0
    %3482 = vmatpush.msra.mxu0 0.0
    %3483 = vmatpush.msra.mxu0 0.0
    %3484 = vmatpush.msra.mxu0 0.0
    %3485 = vmatpush.msra.mxu0 0.0
    %3486 = vmatpush.msra.mxu0 0.0
    %3487 = vmatpush.msra.mxu0 0.0
    %3488 = vmatpush.msra.mxu0 0.0
    %3489 = vmatpush.msra.mxu0 0.0
    %3490 = vmatpush.msra.mxu0 %v2689
    %3491 = vmatpush.msra.mxu0 %v2687
    %3492 = vmatmul.f32.gmra.mxu0 %v3407
    %v3493 = vpop.f32.mrf.mxu0
    %v3494 = vadd.f32 %v3395, %v3493
    %3495 = vmatmul.f32.gmra.mxu0 %v3410
    %v3496 = vpop.f32.mrf.mxu0
    %v3497 = vadd.f32 %v3398, %v3496
    %3498 = vmatmul.f32.gmra.mxu0 %v3413
    %v3499 = vpop.f32.mrf.mxu0
    %v3500 = vadd.f32 %v3401, %v3499
    %3501 = vmatmul.f32.gmra.mxu0 %v3416
    %v3502 = vpop.f32.mrf.mxu0
    %v3503 = vadd.f32 %v3404, %v3502
    %3504 = vdwg.mxu0
    %v3505 = vld [vmem:[%s6 + $0x18] sm:$0xff]
    %v3506 = vld [vmem:[%s6 + $0x20] sm:$0xf]
    %v3507 = vld [vmem:[%s6 + $0x48] sm:$0xff]
    %v3508 = vld [vmem:[%s6 + $0x50] sm:$0xf]
    %v3509 = vld [vmem:[%s6 + $0x78] sm:$0xff]
    %v3510 = vld [vmem:[%s6 + $0x80] sm:$0xf]
    %v3511 = vld [vmem:[%s6 + $0xa8] sm:$0xff]
    %v3512 = vld [vmem:[%s6 + $0xb0] sm:$0xf]
    %v3513 = vld [vmem:[%s6 + $0xd8] sm:$0xff]
    %v3514 = vld [vmem:[%s6 + $0xe0] sm:$0xf]
    %v3515 = vld [vmem:[%s6 + $0x108] sm:$0xff]
    %v3516 = vld [vmem:[%s6 + $0x110] sm:$0xf]
    %v3517 = vld [vmem:[%s6 + $0x138] sm:$0xff]
    %v3518 = vld [vmem:[%s6 + $0x140] sm:$0xf]
    %v3519 = vld [vmem:[%s6 + $0x168] sm:$0xff]
    %v3520 = vld [vmem:[%s6 + $0x170] sm:$0xf]
    %v3521 = vld [vmem:[%s6 + $0x198] sm:$0xff]
    %v3522 = vld [vmem:[%s6 + $0x1a0] sm:$0xf]
    %v3523 = vld [vmem:[%s6 + $0x1c8] sm:$0xff]
    %v3524 = vld [vmem:[%s6 + $0x1d0] sm:$0xf]
    %v3525 = vld [vmem:[%s6 + $0x1f8] sm:$0xff]
    %v3526 = vld [vmem:[%s6 + $0x200] sm:$0xf]
    %v3527 = vld [vmem:[%s6 + $0x228] sm:$0xff]
    %v3528 = vld [vmem:[%s6 + $0x230] sm:$0xf]
    %v3529 = vld [vmem:[%s6 + $0x258] sm:$0xff]
    %v3530 = vld [vmem:[%s6 + $0x260] sm:$0xf]
    %v3531 = vld [vmem:[%s6 + $0x288] sm:$0xff]
    %v3532 = vld [vmem:[%s6 + $0x290] sm:$0xf]
    %v3533 = vld [vmem:[%s6 + $0x2b8] sm:$0xff]
    %v3534 = vld [vmem:[%s6 + $0x2c0] sm:$0xf]
    %v3535 = vld [vmem:[%s6 + $0x2e8] sm:$0xff]
    %v3536 = vld [vmem:[%s6 + $0x2f0] sm:$0xf]
    %v3537 = vld [vmem:[%s6 + $0x318] sm:$0xff]
    %v3538 = vld [vmem:[%s6 + $0x320] sm:$0xf]
    %v3539 = vld [vmem:[%s6 + $0x348] sm:$0xff]
    %v3540 = vld [vmem:[%s6 + $0x350] sm:$0xf]
    %v3541 = vld [vmem:[%s6 + $0x378] sm:$0xff]
    %v3542 = vld [vmem:[%s6 + $0x380] sm:$0xf]
    %v3543 = vld [vmem:[%s6 + $0x3a8] sm:$0xff]
    %v3544 = vld [vmem:[%s6 + $0x3b0] sm:$0xf]
    %v3545 = vld [vmem:[%s6 + $0x3d8] sm:$0xff]
    %v3546 = vld [vmem:[%s6 + $0x3e0] sm:$0xf]
    %v3547 = vld [vmem:[%s6 + $0x408] sm:$0xff]
    %v3548 = vld [vmem:[%s6 + $0x410] sm:$0xf]
    %v3549 = vld [vmem:[%s6 + $0x438] sm:$0xff]
    %v3550 = vld [vmem:[%s6 + $0x440] sm:$0xf]
    %v3551 = vld [vmem:[%s6 + $0x468] sm:$0xff]
    %v3552 = vld [vmem:[%s6 + $0x470] sm:$0xf]
    %v3553 = vld [vmem:[%s6 + $0x498] sm:$0xff]
    %v3554 = vld [vmem:[%s6 + $0x4a0] sm:$0xf]
    %v3555 = vld [vmem:[%s6 + $0x4c8] sm:$0xff]
    %v3556 = vld [vmem:[%s6 + $0x4d0] sm:$0xf]
    %v3557 = vld [vmem:[%s6 + $0x4f8] sm:$0xff]
    %v3558 = vld [vmem:[%s6 + $0x500] sm:$0xf]
    %v3559 = vld [vmem:[%s6 + $0x528] sm:$0xff]
    %v3560 = vld [vmem:[%s6 + $0x530] sm:$0xf]
    %v3561 = vld [vmem:[%s6 + $0x558] sm:$0xff]
    %v3562 = vld [vmem:[%s6 + $0x560] sm:$0xf]
    %v3563 = vld [vmem:[%s6 + $0x588] sm:$0xff]
    %v3564 = vld [vmem:[%s6 + $0x590] sm:$0xf]
    %v3565 = vld [vmem:[%s6 + $0x5b8] sm:$0xff]
    %v3566 = vld [vmem:[%s6 + $0x5c0] sm:$0xf]
    %v3567 = vld [vmem:[%s6 + $0x5e8] sm:$0xff]
    %v3568 = vld [vmem:[%s6 + $0x5f0] sm:$0xf]
    %v3569 = vld [vmem:[%s6 + $0x618] sm:$0xff]
    %v3570 = vld [vmem:[%s6 + $0x620] sm:$0xf]
    %v3571 = vld [vmem:[%s6 + $0x648] sm:$0xff]
    %v3572 = vld [vmem:[%s6 + $0x650] sm:$0xf]
    %v3573 = vld [vmem:[%s6 + $0x678] sm:$0xff]
    %v3574 = vld [vmem:[%s6 + $0x680] sm:$0xf]
    %v3575 = vld [vmem:[%s6 + $0x6a8] sm:$0xff]
    %v3576 = vld [vmem:[%s6 + $0x6b0] sm:$0xf]
    %v3577 = vld [vmem:[%s6 + $0x6d8] sm:$0xff]
    %v3578 = vld [vmem:[%s6 + $0x6e0] sm:$0xf]
    %v3579 = vld [vmem:[%s6 + $0x708] sm:$0xff]
    %v3580 = vld [vmem:[%s6 + $0x710] sm:$0xf]
    %v3581 = vld [vmem:[%s6 + $0x738] sm:$0xff]
    %v3582 = vld [vmem:[%s6 + $0x740] sm:$0xf]
    %v3583 = vld [vmem:[%s6 + $0x768] sm:$0xff]
    %v3584 = vld [vmem:[%s6 + $0x770] sm:$0xf]
    %v3585 = vld [vmem:[%s6 + $0x798] sm:$0xff]
    %v3586 = vld [vmem:[%s6 + $0x7a0] sm:$0xf]
    %v3587 = vld [vmem:[%s6 + $0x7c8] sm:$0xff]
    %v3588 = vld [vmem:[%s6 + $0x7d0] sm:$0xf]
    %v3589 = vld [vmem:[%s6 + $0x7f8] sm:$0xff]
    %v3590 = vld [vmem:[%s6 + $0x800] sm:$0xf]
    %v3591 = vld [vmem:[%s6 + $0x828] sm:$0xff]
    %v3592 = vld [vmem:[%s6 + $0x830] sm:$0xf]
    %v3593 = vld [vmem:[%s6 + $0x858] sm:$0xff]
    %v3594 = vld [vmem:[%s6 + $0x860] sm:$0xf]
    %v3595 = vld [vmem:[%s6 + $0x888] sm:$0xff]
    %v3596 = vld [vmem:[%s6 + $0x890] sm:$0xf]
    %v3597 = vld [vmem:[%s6 + $0x8b8] sm:$0xff]
    %v3598 = vld [vmem:[%s6 + $0x8c0] sm:$0xf]
    %v3599 = vld [vmem:[%s6 + $0x8e8] sm:$0xff]
    %v3600 = vld [vmem:[%s6 + $0x8f0] sm:$0xf]
    %v3697 = vunpack.c.l.b16 %v3505
    %v3698 = vunpack.c.h.b16 %v3505
    %v3699 = vunpack.c.l.b16 %v3506
    %v3700 = vunpack.c.l.b16 %v3507
    %v3701 = vunpack.c.h.b16 %v3507
    %v3702 = vunpack.c.l.b16 %v3508
    %v3703 = vunpack.c.l.b16 %v3509
    %v3704 = vunpack.c.h.b16 %v3509
    %v3705 = vunpack.c.l.b16 %v3510
    %v3706 = vunpack.c.l.b16 %v3511
    %v3707 = vunpack.c.h.b16 %v3511
    %v3708 = vunpack.c.l.b16 %v3512
    %v3709 = vunpack.c.l.b16 %v3513
    %v3710 = vunpack.c.h.b16 %v3513
    %v3711 = vunpack.c.l.b16 %v3514
    %v3712 = vunpack.c.l.b16 %v3515
    %v3713 = vunpack.c.h.b16 %v3515
    %v3714 = vunpack.c.l.b16 %v3516
    %v3715 = vunpack.c.l.b16 %v3517
    %v3716 = vunpack.c.h.b16 %v3517
    %v3717 = vunpack.c.l.b16 %v3518
    %v3718 = vunpack.c.l.b16 %v3519
    %v3719 = vunpack.c.h.b16 %v3519
    %v3720 = vunpack.c.l.b16 %v3520
    %v3721 = vunpack.c.l.b16 %v3521
    %v3722 = vunpack.c.h.b16 %v3521
    %v3723 = vunpack.c.l.b16 %v3522
    %v3724 = vunpack.c.l.b16 %v3523
    %v3725 = vunpack.c.h.b16 %v3523
    %v3726 = vunpack.c.l.b16 %v3524
    %v3727 = vunpack.c.l.b16 %v3525
    %v3728 = vunpack.c.h.b16 %v3525
    %v3729 = vunpack.c.l.b16 %v3526
    %v3730 = vunpack.c.l.b16 %v3527
    %v3731 = vunpack.c.h.b16 %v3527
    %v3732 = vunpack.c.l.b16 %v3528
    %v3733 = vunpack.c.l.b16 %v3529
    %v3734 = vunpack.c.h.b16 %v3529
    %v3735 = vunpack.c.l.b16 %v3530
    %v3736 = vunpack.c.l.b16 %v3531
    %v3737 = vunpack.c.h.b16 %v3531
    %v3738 = vunpack.c.l.b16 %v3532
    %v3739 = vunpack.c.l.b16 %v3533
    %v3740 = vunpack.c.h.b16 %v3533
    %v3741 = vunpack.c.l.b16 %v3534
    %v3742 = vunpack.c.l.b16 %v3535
    %v3743 = vunpack.c.h.b16 %v3535
    %v3744 = vunpack.c.l.b16 %v3536
    %v3745 = vunpack.c.l.b16 %v3537
    %v3746 = vunpack.c.h.b16 %v3537
    %v3747 = vunpack.c.l.b16 %v3538
    %v3748 = vunpack.c.l.b16 %v3539
    %v3749 = vunpack.c.h.b16 %v3539
    %v3750 = vunpack.c.l.b16 %v3540
    %v3751 = vunpack.c.l.b16 %v3541
    %v3752 = vunpack.c.h.b16 %v3541
    %v3753 = vunpack.c.l.b16 %v3542
    %v3754 = vunpack.c.l.b16 %v3543
    %v3755 = vunpack.c.h.b16 %v3543
    %v3756 = vunpack.c.l.b16 %v3544
    %v3757 = vunpack.c.l.b16 %v3545
    %v3758 = vunpack.c.h.b16 %v3545
    %v3759 = vunpack.c.l.b16 %v3546
    %v3760 = vunpack.c.l.b16 %v3547
    %v3761 = vunpack.c.h.b16 %v3547
    %v3762 = vunpack.c.l.b16 %v3548
    %v3763 = vunpack.c.l.b16 %v3549
    %v3764 = vunpack.c.h.b16 %v3549
    %v3765 = vunpack.c.l.b16 %v3550
    %v3766 = vunpack.c.l.b16 %v3551
    %v3767 = vunpack.c.h.b16 %v3551
    %v3768 = vunpack.c.l.b16 %v3552
    %v3769 = vunpack.c.l.b16 %v3553
    %v3770 = vunpack.c.h.b16 %v3553
    %v3771 = vunpack.c.l.b16 %v3554
    %v3772 = vunpack.c.l.b16 %v3555
    %v3773 = vunpack.c.h.b16 %v3555
    %v3774 = vunpack.c.l.b16 %v3556
    %v3775 = vunpack.c.l.b16 %v3557
    %v3776 = vunpack.c.h.b16 %v3557
    %v3777 = vunpack.c.l.b16 %v3558
    %v3778 = vunpack.c.l.b16 %v3559
    %v3779 = vunpack.c.h.b16 %v3559
    %v3780 = vunpack.c.l.b16 %v3560
    %v3781 = vunpack.c.l.b16 %v3561
    %v3782 = vunpack.c.h.b16 %v3561
    %v3783 = vunpack.c.l.b16 %v3562
    %v3784 = vunpack.c.l.b16 %v3563
    %v3785 = vunpack.c.h.b16 %v3563
    %v3786 = vunpack.c.l.b16 %v3564
    %v3787 = vunpack.c.l.b16 %v3565
    %v3788 = vunpack.c.h.b16 %v3565
    %v3789 = vunpack.c.l.b16 %v3566
    %v3790 = vunpack.c.l.b16 %v3567
    %v3791 = vunpack.c.h.b16 %v3567
    %v3792 = vunpack.c.l.b16 %v3568
    %v3793 = vunpack.c.l.b16 %v3569
    %v3794 = vunpack.c.h.b16 %v3569
    %v3795 = vunpack.c.l.b16 %v3570
    %v3796 = vunpack.c.l.b16 %v3571
    %v3797 = vunpack.c.h.b16 %v3571
    %v3798 = vunpack.c.l.b16 %v3572
    %v3799 = vunpack.c.l.b16 %v3573
    %v3800 = vunpack.c.h.b16 %v3573
    %v3801 = vunpack.c.l.b16 %v3574
    %v3802 = vunpack.c.l.b16 %v3575
    %v3803 = vunpack.c.h.b16 %v3575
    %v3804 = vunpack.c.l.b16 %v3576
    %v3805 = vunpack.c.l.b16 %v3577
    %v3806 = vunpack.c.h.b16 %v3577
    %v3807 = vunpack.c.l.b16 %v3578
    %v3808 = vunpack.c.l.b16 %v3579
    %v3809 = vunpack.c.h.b16 %v3579
    %v3810 = vunpack.c.l.b16 %v3580
    %v3811 = vunpack.c.l.b16 %v3581
    %v3812 = vunpack.c.h.b16 %v3581
    %v3813 = vunpack.c.l.b16 %v3582
    %v3814 = vunpack.c.l.b16 %v3583
    %v3815 = vunpack.c.h.b16 %v3583
    %v3816 = vunpack.c.l.b16 %v3584
    %v3817 = vunpack.c.l.b16 %v3585
    %v3818 = vunpack.c.h.b16 %v3585
    %v3819 = vunpack.c.l.b16 %v3586
    %v3820 = vunpack.c.l.b16 %v3587
    %v3821 = vunpack.c.h.b16 %v3587
    %v3822 = vunpack.c.l.b16 %v3588
    %v3823 = vunpack.c.l.b16 %v3589
    %v3824 = vunpack.c.h.b16 %v3589
    %v3825 = vunpack.c.l.b16 %v3590
    %v3826 = vunpack.c.l.b16 %v3591
    %v3827 = vunpack.c.h.b16 %v3591
    %v3828 = vunpack.c.l.b16 %v3592
    %v3829 = vunpack.c.l.b16 %v3593
    %v3830 = vunpack.c.h.b16 %v3593
    %v3831 = vunpack.c.l.b16 %v3594
    %v3832 = vunpack.c.l.b16 %v3595
    %v3833 = vunpack.c.h.b16 %v3595
    %v3834 = vunpack.c.l.b16 %v3596
    %v3835 = vunpack.c.l.b16 %v3597
    %v3836 = vunpack.c.h.b16 %v3597
    %v3837 = vunpack.c.l.b16 %v3598
    %v3838 = vunpack.c.l.b16 %v3599
    %v3839 = vunpack.c.h.b16 %v3599
    %v3840 = vunpack.c.l.b16 %v3600
    %v3841 = vpack.c.b16 %v3700, %v3697
    %v3842 = vpack.c.b16 %v3701, %v3698
    %v3843 = vpack.c.b16 %v3702, %v3699
    %v3844 = vpack.c.b16 %v3706, %v3703
    %v3845 = vpack.c.b16 %v3707, %v3704
    %v3846 = vpack.c.b16 %v3708, %v3705
    %v3847 = vpack.c.b16 %v3712, %v3709
    %v3848 = vpack.c.b16 %v3713, %v3710
    %v3849 = vpack.c.b16 %v3714, %v3711
    %v3850 = vpack.c.b16 %v3718, %v3715
    %v3851 = vpack.c.b16 %v3719, %v3716
    %v3852 = vpack.c.b16 %v3720, %v3717
    %v3853 = vpack.c.b16 %v3724, %v3721
    %v3854 = vpack.c.b16 %v3725, %v3722
    %v3855 = vpack.c.b16 %v3726, %v3723
    %v3856 = vpack.c.b16 %v3730, %v3727
    %v3857 = vpack.c.b16 %v3731, %v3728
    %v3858 = vpack.c.b16 %v3732, %v3729
    %v3859 = vpack.c.b16 %v3736, %v3733
    %v3860 = vpack.c.b16 %v3737, %v3734
    %v3861 = vpack.c.b16 %v3738, %v3735
    %v3862 = vpack.c.b16 %v3742, %v3739
    %v3863 = vpack.c.b16 %v3743, %v3740
    %v3864 = vpack.c.b16 %v3744, %v3741
    %v3865 = vpack.c.b16 %v3748, %v3745
    %v3866 = vpack.c.b16 %v3749, %v3746
    %v3867 = vpack.c.b16 %v3750, %v3747
    %v3868 = vpack.c.b16 %v3754, %v3751
    %v3869 = vpack.c.b16 %v3755, %v3752
    %v3870 = vpack.c.b16 %v3756, %v3753
    %v3871 = vpack.c.b16 %v3760, %v3757
    %v3872 = vpack.c.b16 %v3761, %v3758
    %v3873 = vpack.c.b16 %v3762, %v3759
    %v3874 = vpack.c.b16 %v3766, %v3763
    %v3875 = vpack.c.b16 %v3767, %v3764
    %v3876 = vpack.c.b16 %v3768, %v3765
    %v3877 = vpack.c.b16 %v3772, %v3769
    %v3878 = vpack.c.b16 %v3773, %v3770
    %v3879 = vpack.c.b16 %v3774, %v3771
    %v3880 = vpack.c.b16 %v3778, %v3775
    %v3881 = vpack.c.b16 %v3779, %v3776
    %v3882 = vpack.c.b16 %v3780, %v3777
    %v3883 = vpack.c.b16 %v3784, %v3781
    %v3884 = vpack.c.b16 %v3785, %v3782
    %v3885 = vpack.c.b16 %v3786, %v3783
    %v3886 = vpack.c.b16 %v3790, %v3787
    %v3887 = vpack.c.b16 %v3791, %v3788
    %v3888 = vpack.c.b16 %v3792, %v3789
    %v3889 = vpack.c.b16 %v3796, %v3793
    %v3890 = vpack.c.b16 %v3797, %v3794
    %v3891 = vpack.c.b16 %v3798, %v3795
    %v3892 = vpack.c.b16 %v3802, %v3799
    %v3893 = vpack.c.b16 %v3803, %v3800
    %v3894 = vpack.c.b16 %v3804, %v3801
    %v3895 = vpack.c.b16 %v3808, %v3805
    %v3896 = vpack.c.b16 %v3809, %v3806
    %v3897 = vpack.c.b16 %v3810, %v3807
    %v3898 = vpack.c.b16 %v3814, %v3811
    %v3899 = vpack.c.b16 %v3815, %v3812
    %v3900 = vpack.c.b16 %v3816, %v3813
    %v3901 = vpack.c.b16 %v3820, %v3817
    %v3902 = vpack.c.b16 %v3821, %v3818
    %v3903 = vpack.c.b16 %v3822, %v3819
    %v3904 = vpack.c.b16 %v3826, %v3823
    %v3905 = vpack.c.b16 %v3827, %v3824
    %v3906 = vpack.c.b16 %v3828, %v3825
    %v3907 = vpack.c.b16 %v3832, %v3829
    %v3908 = vpack.c.b16 %v3833, %v3830
    %v3909 = vpack.c.b16 %v3834, %v3831
    %v3910 = vpack.c.b16 %v3838, %v3835
    %v3911 = vpack.c.b16 %v3839, %v3836
    %v3912 = vpack.c.b16 %v3840, %v3837
    %3985 = vmatpush.bf16.msra.mxu0 %v3862
    %3986 = vmatpush.bf16.msra.mxu0 %v3859
    %3987 = vmatpush.bf16.msra.mxu0 %v3856
    %3988 = vmatpush.bf16.msra.mxu0 %v3853
    %3989 = vmatpush.bf16.msra.mxu0 %v3850
    %3990 = vmatpush.bf16.msra.mxu0 %v3847
    %3991 = vmatpush.bf16.msra.mxu0 %v3844
    %3992 = vmatpush.bf16.msra.mxu0 %v3841
    %3993 = vmatmul.bf16.gmra.mxu0 %v2082
    %v3994 = vpop.f32.mrf.mxu0
    %v3995 = vadd.f32 0.0, %v3994
    %v3996 = vpop.f32.mrf.mxu0
    %v3997 = vadd.f32 0.0, %v3996
    %3998 = vdwg.mxu0
    %3999 = vmatpush.bf16.msra.mxu0 %v3886
    %4000 = vmatpush.bf16.msra.mxu0 %v3883
    %4001 = vmatpush.bf16.msra.mxu0 %v3880
    %4002 = vmatpush.bf16.msra.mxu0 %v3877
    %4003 = vmatpush.bf16.msra.mxu0 %v3874
    %4004 = vmatpush.bf16.msra.mxu0 %v3871
    %4005 = vmatpush.bf16.msra.mxu0 %v3868
    %4006 = vmatpush.bf16.msra.mxu0 %v3865
    %4007 = vmatmul.bf16.gmra.mxu0 %v2083
    %v4008 = vpop.f32.mrf.mxu0
    %v4009 = vadd.f32 %v3995, %v4008
    %v4010 = vpop.f32.mrf.mxu0
    %v4011 = vadd.f32 %v3997, %v4010
    %4012 = vdwg.mxu0
    %4013 = vmatpush.bf16.msra.mxu0 %v3910
    %4014 = vmatpush.bf16.msra.mxu0 %v3907
    %4015 = vmatpush.bf16.msra.mxu0 %v3904
    %4016 = vmatpush.bf16.msra.mxu0 %v3901
    %4017 = vmatpush.bf16.msra.mxu0 %v3898
    %4018 = vmatpush.bf16.msra.mxu0 %v3895
    %4019 = vmatpush.bf16.msra.mxu0 %v3892
    %4020 = vmatpush.bf16.msra.mxu0 %v3889
    %4021 = vmatmul.bf16.gmra.mxu0 %v2084
    %v4022 = vpop.f32.mrf.mxu0
    %v4023 = vadd.f32 %v4009, %v4022
    %v4024 = vpop.f32.mrf.mxu0
    %v4025 = vadd.f32 %v4011, %v4024
    %4026 = vdwg.mxu0
    %4027 = vmatpush.bf16.msra.mxu0 %v3863
    %4028 = vmatpush.bf16.msra.mxu0 %v3860
    %4029 = vmatpush.bf16.msra.mxu0 %v3857
    %4030 = vmatpush.bf16.msra.mxu0 %v3854
    %4031 = vmatpush.bf16.msra.mxu0 %v3851
    %4032 = vmatpush.bf16.msra.mxu0 %v3848
    %4033 = vmatpush.bf16.msra.mxu0 %v3845
    %4034 = vmatpush.bf16.msra.mxu0 %v3842
    %4035 = vmatmul.bf16.gmra.mxu0 %v2082
    %v4036 = vpop.f32.mrf.mxu0
    %v4037 = vadd.f32 0.0, %v4036
    %v4038 = vpop.f32.mrf.mxu0
    %v4039 = vadd.f32 0.0, %v4038
    %4040 = vdwg.mxu0
    %4041 = vmatpush.bf16.msra.mxu0 %v3887
    %4042 = vmatpush.bf16.msra.mxu0 %v3884
    %4043 = vmatpush.bf16.msra.mxu0 %v3881
    %4044 = vmatpush.bf16.msra.mxu0 %v3878
    %4045 = vmatpush.bf16.msra.mxu0 %v3875
    %4046 = vmatpush.bf16.msra.mxu0 %v3872
    %4047 = vmatpush.bf16.msra.mxu0 %v3869
    %4048 = vmatpush.bf16.msra.mxu0 %v3866
    %4049 = vmatmul.bf16.gmra.mxu0 %v2083
    %v4050 = vpop.f32.mrf.mxu0
    %v4051 = vadd.f32 %v4037, %v4050
    %v4052 = vpop.f32.mrf.mxu0
    %v4053 = vadd.f32 %v4039, %v4052
    %4054 = vdwg.mxu0
    %4055 = vmatpush.bf16.msra.mxu0 %v3911
    %4056 = vmatpush.bf16.msra.mxu0 %v3908
    %4057 = vmatpush.bf16.msra.mxu0 %v3905
    %4058 = vmatpush.bf16.msra.mxu0 %v3902
    %4059 = vmatpush.bf16.msra.mxu0 %v3899
    %4060 = vmatpush.bf16.msra.mxu0 %v3896
    %4061 = vmatpush.bf16.msra.mxu0 %v3893
    %4062 = vmatpush.bf16.msra.mxu0 %v3890
    %4063 = vmatmul.bf16.gmra.mxu0 %v2084
    %v4064 = vpop.f32.mrf.mxu0
    %v4065 = vadd.f32 %v4051, %v4064
    %v4066 = vpop.f32.mrf.mxu0
    %v4067 = vadd.f32 %v4053, %v4066
    %4068 = vdwg.mxu0
    %4069 = vmatpush.bf16.msra.mxu0 %v3864
    %4070 = vmatpush.bf16.msra.mxu0 %v3861
    %4071 = vmatpush.bf16.msra.mxu0 %v3858
    %4072 = vmatpush.bf16.msra.mxu0 %v3855
    %4073 = vmatpush.bf16.msra.mxu0 %v3852
    %4074 = vmatpush.bf16.msra.mxu0 %v3849
    %4075 = vmatpush.bf16.msra.mxu0 %v3846
    %4076 = vmatpush.bf16.msra.mxu0 %v3843
    %4077 = vmatmul.bf16.gmra.mxu0 %v2082
    %v4078 = vpop.f32.mrf.mxu0
    %v4079 = vadd.f32 0.0, %v4078
    %v4080 = vpop.f32.mrf.mxu0
    %v4081 = vadd.f32 0.0, %v4080
    %4082 = vdwg.mxu0
    %4083 = vmatpush.bf16.msra.mxu0 %v3888
    %4084 = vmatpush.bf16.msra.mxu0 %v3885
    %4085 = vmatpush.bf16.msra.mxu0 %v3882
    %4086 = vmatpush.bf16.msra.mxu0 %v3879
    %4087 = vmatpush.bf16.msra.mxu0 %v3876
    %4088 = vmatpush.bf16.msra.mxu0 %v3873
    %4089 = vmatpush.bf16.msra.mxu0 %v3870
    %4090 = vmatpush.bf16.msra.mxu0 %v3867
    %4091 = vmatmul.bf16.gmra.mxu0 %v2083
    %v4092 = vpop.f32.mrf.mxu0
    %v4093 = vadd.f32 %v4079, %v4092
    %v4094 = vpop.f32.mrf.mxu0
    %v4095 = vadd.f32 %v4081, %v4094
    %4096 = vdwg.mxu0
    %4097 = vmatpush.bf16.msra.mxu0 %v3912
    %4098 = vmatpush.bf16.msra.mxu0 %v3909
    %4099 = vmatpush.bf16.msra.mxu0 %v3906
    %4100 = vmatpush.bf16.msra.mxu0 %v3903
    %4101 = vmatpush.bf16.msra.mxu0 %v3900
    %4102 = vmatpush.bf16.msra.mxu0 %v3897
    %4103 = vmatpush.bf16.msra.mxu0 %v3894
    %4104 = vmatpush.bf16.msra.mxu0 %v3891
    %4105 = vmatmul.bf16.gmra.mxu0 %v2084
    %v4106 = vpop.f32.mrf.mxu0
    %v4107 = vadd.f32 %v4093, %v4106
    %v4108 = vpop.f32.mrf.mxu0
    %v4109 = vadd.f32 %v4095, %v4108
    %4110 = vdwg.mxu0
    %s4111 = scalar_lea.vmem %s7, 64
    %v4112 = vld [vmem:[%s4111] sm:$0xff]
    %v4113 = vld [vmem:[%s4111 + $0x8] sm:$0xff]
    %v4114 = vld [vmem:[%s4111 + $0x10] sm:$0xff]
    %v4115 = vld [vmem:[%s4111 + $0x18] sm:$0xff]
    %v4117 = vsel %vm3306, %v4112, 0
    %v4120 = vsel %vm3306, %v4113, 0
    %v4123 = vsel %vm3306, %v4114, 0
    %v4126 = vsel %vm3306, %v4115, 0
    %4128 = vmatpush.msra.mxu0 0.0
    %4129 = vmatpush.msra.mxu0 0.0
    %4130 = vmatpush.msra.mxu0 0.0
    %4131 = vmatpush.msra.mxu0 0.0
    %4132 = vmatpush.msra.mxu0 0.0
    %4133 = vmatpush.msra.mxu0 0.0
    %4134 = vmatpush.msra.mxu0 0.0
    %4135 = vmatpush.msra.mxu0 0.0
    %4136 = vmatpush.msra.mxu0 0.0
    %4137 = vmatpush.msra.mxu0 0.0
    %4138 = vmatpush.msra.mxu0 0.0
    %4139 = vmatpush.msra.mxu0 0.0
    %4140 = vmatpush.msra.mxu0 0.0
    %4141 = vmatpush.msra.mxu0 0.0
    %4142 = vmatpush.msra.mxu0 %v4025
    %4143 = vmatpush.msra.mxu0 %v4023
    %4144 = vmatmul.f32.gmra.mxu0 %v4117
    %v4145 = vpop.f32.mrf.mxu0
    %v4146 = vadd.f32 0.0, %v4145
    %4147 = vmatmul.f32.gmra.mxu0 %v4120
    %v4148 = vpop.f32.mrf.mxu0
    %v4149 = vadd.f32 0.0, %v4148
    %4150 = vmatmul.f32.gmra.mxu0 %v4123
    %v4151 = vpop.f32.mrf.mxu0
    %v4152 = vadd.f32 0.0, %v4151
    %4153 = vmatmul.f32.gmra.mxu0 %v4126
    %v4154 = vpop.f32.mrf.mxu0
    %v4155 = vadd.f32 0.0, %v4154
    %4156 = vdwg.mxu0
    %4157 = vmatpush.msra.mxu0 0.0
    %4158 = vmatpush.msra.mxu0 0.0
    %4159 = vmatpush.msra.mxu0 0.0
    %4160 = vmatpush.msra.mxu0 0.0
    %4161 = vmatpush.msra.mxu0 0.0
    %4162 = vmatpush.msra.mxu0 0.0
    %4163 = vmatpush.msra.mxu0 0.0
    %4164 = vmatpush.msra.mxu0 0.0
    %4165 = vmatpush.msra.mxu0 0.0
    %4166 = vmatpush.msra.mxu0 0.0
    %4167 = vmatpush.msra.mxu0 0.0
    %4168 = vmatpush.msra.mxu0 0.0
    %4169 = vmatpush.msra.mxu0 0.0
    %4170 = vmatpush.msra.mxu0 0.0
    %4171 = vmatpush.msra.mxu0 %v4067
    %4172 = vmatpush.msra.mxu0 %v4065
    %4173 = vmatmul.f32.gmra.mxu0 %v4117
    %v4174 = vpop.f32.mrf.mxu0
    %v4175 = vadd.f32 0.0, %v4174
    %4176 = vmatmul.f32.gmra.mxu0 %v4120
    %v4177 = vpop.f32.mrf.mxu0
    %v4178 = vadd.f32 0.0, %v4177
    %4179 = vmatmul.f32.gmra.mxu0 %v4123
    %v4180 = vpop.f32.mrf.mxu0
    %v4181 = vadd.f32 0.0, %v4180
    %4182 = vmatmul.f32.gmra.mxu0 %v4126
    %v4183 = vpop.f32.mrf.mxu0
    %v4184 = vadd.f32 0.0, %v4183
    %4185 = vdwg.mxu0
    %4186 = vmatpush.msra.mxu0 0.0
    %4187 = vmatpush.msra.mxu0 0.0
    %4188 = vmatpush.msra.mxu0 0.0
    %4189 = vmatpush.msra.mxu0 0.0
    %4190 = vmatpush.msra.mxu0 0.0
    %4191 = vmatpush.msra.mxu0 0.0
    %4192 = vmatpush.msra.mxu0 0.0
    %4193 = vmatpush.msra.mxu0 0.0
    %4194 = vmatpush.msra.mxu0 0.0
    %4195 = vmatpush.msra.mxu0 0.0
    %4196 = vmatpush.msra.mxu0 0.0
    %4197 = vmatpush.msra.mxu0 0.0
    %4198 = vmatpush.msra.mxu0 0.0
    %4199 = vmatpush.msra.mxu0 0.0
    %4200 = vmatpush.msra.mxu0 %v4109
    %4201 = vmatpush.msra.mxu0 %v4107
    %4202 = vmatmul.f32.gmra.mxu0 %v4117
    %v4203 = vpop.f32.mrf.mxu0
    %v4204 = vadd.f32 0.0, %v4203
    %4205 = vmatmul.f32.gmra.mxu0 %v4120
    %v4206 = vpop.f32.mrf.mxu0
    %v4207 = vadd.f32 0.0, %v4206
    %4208 = vmatmul.f32.gmra.mxu0 %v4123
    %v4209 = vpop.f32.mrf.mxu0
    %v4210 = vadd.f32 0.0, %v4209
    %4211 = vmatmul.f32.gmra.mxu0 %v4126
    %v4212 = vpop.f32.mrf.mxu0
    %v4213 = vadd.f32 0.0, %v4212
    %4214 = vdwg.mxu0
    %v4215 = vadd.f32 %v3436, %v4146
    %v4216 = vadd.f32 %v3465, %v4175
    %v4217 = vadd.f32 %v3494, %v4204
    %v4218 = vadd.f32 %v3439, %v4149
    %v4219 = vadd.f32 %v3468, %v4178
    %v4220 = vadd.f32 %v3497, %v4207
    %v4221 = vadd.f32 %v3442, %v4152
    %v4222 = vadd.f32 %v3471, %v4181
    %v4223 = vadd.f32 %v3500, %v4210
    %v4224 = vadd.f32 %v3445, %v4155
    %v4225 = vadd.f32 %v3474, %v4184
    %v4226 = vadd.f32 %v3503, %v4213
    %v4227 = vld [vmem:[%s6 + $0x24] sm:$0xff]
    %v4228 = vld [vmem:[%s6 + $0x2c] sm:$0xf]
    %v4229 = vld [vmem:[%s6 + $0x54] sm:$0xff]
    %v4230 = vld [vmem:[%s6 + $0x5c] sm:$0xf]
    %v4231 = vld [vmem:[%s6 + $0x84] sm:$0xff]
    %v4232 = vld [vmem:[%s6 + $0x8c] sm:$0xf]
    %v4233 = vld [vmem:[%s6 + $0xb4] sm:$0xff]
    %v4234 = vld [vmem:[%s6 + $0xbc] sm:$0xf]
    %v4235 = vld [vmem:[%s6 + $0xe4] sm:$0xff]
    %v4236 = vld [vmem:[%s6 + $0xec] sm:$0xf]
    %v4237 = vld [vmem:[%s6 + $0x114] sm:$0xff]
    %v4238 = vld [vmem:[%s6 + $0x11c] sm:$0xf]
    %v4239 = vld [vmem:[%s6 + $0x144] sm:$0xff]
    %v4240 = vld [vmem:[%s6 + $0x14c] sm:$0xf]
    %v4241 = vld [vmem:[%s6 + $0x174] sm:$0xff]
    %v4242 = vld [vmem:[%s6 + $0x17c] sm:$0xf]
    %v4243 = vld [vmem:[%s6 + $0x1a4] sm:$0xff]
    %v4244 = vld [vmem:[%s6 + $0x1ac] sm:$0xf]
    %v4245 = vld [vmem:[%s6 + $0x1d4] sm:$0xff]
    %v4246 = vld [vmem:[%s6 + $0x1dc] sm:$0xf]
    %v4247 = vld [vmem:[%s6 + $0x204] sm:$0xff]
    %v4248 = vld [vmem:[%s6 + $0x20c] sm:$0xf]
    %v4249 = vld [vmem:[%s6 + $0x234] sm:$0xff]
    %v4250 = vld [vmem:[%s6 + $0x23c] sm:$0xf]
    %v4251 = vld [vmem:[%s6 + $0x264] sm:$0xff]
    %v4252 = vld [vmem:[%s6 + $0x26c] sm:$0xf]
    %v4253 = vld [vmem:[%s6 + $0x294] sm:$0xff]
    %v4254 = vld [vmem:[%s6 + $0x29c] sm:$0xf]
    %v4255 = vld [vmem:[%s6 + $0x2c4] sm:$0xff]
    %v4256 = vld [vmem:[%s6 + $0x2cc] sm:$0xf]
    %v4257 = vld [vmem:[%s6 + $0x2f4] sm:$0xff]
    %v4258 = vld [vmem:[%s6 + $0x2fc] sm:$0xf]
    %v4259 = vld [vmem:[%s6 + $0x324] sm:$0xff]
    %v4260 = vld [vmem:[%s6 + $0x32c] sm:$0xf]
    %v4261 = vld [vmem:[%s6 + $0x354] sm:$0xff]
    %v4262 = vld [vmem:[%s6 + $0x35c] sm:$0xf]
    %v4263 = vld [vmem:[%s6 + $0x384] sm:$0xff]
    %v4264 = vld [vmem:[%s6 + $0x38c] sm:$0xf]
    %v4265 = vld [vmem:[%s6 + $0x3b4] sm:$0xff]
    %v4266 = vld [vmem:[%s6 + $0x3bc] sm:$0xf]
    %v4267 = vld [vmem:[%s6 + $0x3e4] sm:$0xff]
    %v4268 = vld [vmem:[%s6 + $0x3ec] sm:$0xf]
    %v4269 = vld [vmem:[%s6 + $0x414] sm:$0xff]
    %v4270 = vld [vmem:[%s6 + $0x41c] sm:$0xf]
    %v4271 = vld [vmem:[%s6 + $0x444] sm:$0xff]
    %v4272 = vld [vmem:[%s6 + $0x44c] sm:$0xf]
    %v4273 = vld [vmem:[%s6 + $0x474] sm:$0xff]
    %v4274 = vld [vmem:[%s6 + $0x47c] sm:$0xf]
    %v4275 = vld [vmem:[%s6 + $0x4a4] sm:$0xff]
    %v4276 = vld [vmem:[%s6 + $0x4ac] sm:$0xf]
    %v4277 = vld [vmem:[%s6 + $0x4d4] sm:$0xff]
    %v4278 = vld [vmem:[%s6 + $0x4dc] sm:$0xf]
    %v4279 = vld [vmem:[%s6 + $0x504] sm:$0xff]
    %v4280 = vld [vmem:[%s6 + $0x50c] sm:$0xf]
    %v4281 = vld [vmem:[%s6 + $0x534] sm:$0xff]
    %v4282 = vld [vmem:[%s6 + $0x53c] sm:$0xf]
    %v4283 = vld [vmem:[%s6 + $0x564] sm:$0xff]
    %v4284 = vld [vmem:[%s6 + $0x56c] sm:$0xf]
    %v4285 = vld [vmem:[%s6 + $0x594] sm:$0xff]
    %v4286 = vld [vmem:[%s6 + $0x59c] sm:$0xf]
    %v4287 = vld [vmem:[%s6 + $0x5c4] sm:$0xff]
    %v4288 = vld [vmem:[%s6 + $0x5cc] sm:$0xf]
    %v4289 = vld [vmem:[%s6 + $0x5f4] sm:$0xff]
    %v4290 = vld [vmem:[%s6 + $0x5fc] sm:$0xf]
    %v4291 = vld [vmem:[%s6 + $0x624] sm:$0xff]
    %v4292 = vld [vmem:[%s6 + $0x62c] sm:$0xf]
    %v4293 = vld [vmem:[%s6 + $0x654] sm:$0xff]
    %v4294 = vld [vmem:[%s6 + $0x65c] sm:$0xf]
    %v4295 = vld [vmem:[%s6 + $0x684] sm:$0xff]
    %v4296 = vld [vmem:[%s6 + $0x68c] sm:$0xf]
    %v4297 = vld [vmem:[%s6 + $0x6b4] sm:$0xff]
    %v4298 = vld [vmem:[%s6 + $0x6bc] sm:$0xf]
    %v4299 = vld [vmem:[%s6 + $0x6e4] sm:$0xff]
    %v4300 = vld [vmem:[%s6 + $0x6ec] sm:$0xf]
    %v4301 = vld [vmem:[%s6 + $0x714] sm:$0xff]
    %v4302 = vld [vmem:[%s6 + $0x71c] sm:$0xf]
    %v4303 = vld [vmem:[%s6 + $0x744] sm:$0xff]
    %v4304 = vld [vmem:[%s6 + $0x74c] sm:$0xf]
    %v4305 = vld [vmem:[%s6 + $0x774] sm:$0xff]
    %v4306 = vld [vmem:[%s6 + $0x77c] sm:$0xf]
    %v4307 = vld [vmem:[%s6 + $0x7a4] sm:$0xff]
    %v4308 = vld [vmem:[%s6 + $0x7ac] sm:$0xf]
    %v4309 = vld [vmem:[%s6 + $0x7d4] sm:$0xff]
    %v4310 = vld [vmem:[%s6 + $0x7dc] sm:$0xf]
    %v4311 = vld [vmem:[%s6 + $0x804] sm:$0xff]
    %v4312 = vld [vmem:[%s6 + $0x80c] sm:$0xf]
    %v4313 = vld [vmem:[%s6 + $0x834] sm:$0xff]
    %v4314 = vld [vmem:[%s6 + $0x83c] sm:$0xf]
    %v4315 = vld [vmem:[%s6 + $0x864] sm:$0xff]
    %v4316 = vld [vmem:[%s6 + $0x86c] sm:$0xf]
    %v4317 = vld [vmem:[%s6 + $0x894] sm:$0xff]
    %v4318 = vld [vmem:[%s6 + $0x89c] sm:$0xf]
    %v4319 = vld [vmem:[%s6 + $0x8c4] sm:$0xff]
    %v4320 = vld [vmem:[%s6 + $0x8cc] sm:$0xf]
    %v4321 = vld [vmem:[%s6 + $0x8f4] sm:$0xff]
    %v4322 = vld [vmem:[%s6 + $0x8fc] sm:$0xf]
    %v4419 = vunpack.c.l.b16 %v4227
    %v4420 = vunpack.c.h.b16 %v4227
    %v4421 = vunpack.c.l.b16 %v4228
    %v4422 = vunpack.c.l.b16 %v4229
    %v4423 = vunpack.c.h.b16 %v4229
    %v4424 = vunpack.c.l.b16 %v4230
    %v4425 = vunpack.c.l.b16 %v4231
    %v4426 = vunpack.c.h.b16 %v4231
    %v4427 = vunpack.c.l.b16 %v4232
    %v4428 = vunpack.c.l.b16 %v4233
    %v4429 = vunpack.c.h.b16 %v4233
    %v4430 = vunpack.c.l.b16 %v4234
    %v4431 = vunpack.c.l.b16 %v4235
    %v4432 = vunpack.c.h.b16 %v4235
    %v4433 = vunpack.c.l.b16 %v4236
    %v4434 = vunpack.c.l.b16 %v4237
    %v4435 = vunpack.c.h.b16 %v4237
    %v4436 = vunpack.c.l.b16 %v4238
    %v4437 = vunpack.c.l.b16 %v4239
    %v4438 = vunpack.c.h.b16 %v4239
    %v4439 = vunpack.c.l.b16 %v4240
    %v4440 = vunpack.c.l.b16 %v4241
    %v4441 = vunpack.c.h.b16 %v4241
    %v4442 = vunpack.c.l.b16 %v4242
    %v4443 = vunpack.c.l.b16 %v4243
    %v4444 = vunpack.c.h.b16 %v4243
    %v4445 = vunpack.c.l.b16 %v4244
    %v4446 = vunpack.c.l.b16 %v4245
    %v4447 = vunpack.c.h.b16 %v4245
    %v4448 = vunpack.c.l.b16 %v4246
    %v4449 = vunpack.c.l.b16 %v4247
    %v4450 = vunpack.c.h.b16 %v4247
    %v4451 = vunpack.c.l.b16 %v4248
    %v4452 = vunpack.c.l.b16 %v4249
    %v4453 = vunpack.c.h.b16 %v4249
    %v4454 = vunpack.c.l.b16 %v4250
    %v4455 = vunpack.c.l.b16 %v4251
    %v4456 = vunpack.c.h.b16 %v4251
    %v4457 = vunpack.c.l.b16 %v4252
    %v4458 = vunpack.c.l.b16 %v4253
    %v4459 = vunpack.c.h.b16 %v4253
    %v4460 = vunpack.c.l.b16 %v4254
    %v4461 = vunpack.c.l.b16 %v4255
    %v4462 = vunpack.c.h.b16 %v4255
    %v4463 = vunpack.c.l.b16 %v4256
    %v4464 = vunpack.c.l.b16 %v4257
    %v4465 = vunpack.c.h.b16 %v4257
    %v4466 = vunpack.c.l.b16 %v4258
    %v4467 = vunpack.c.l.b16 %v4259
    %v4468 = vunpack.c.h.b16 %v4259
    %v4469 = vunpack.c.l.b16 %v4260
    %v4470 = vunpack.c.l.b16 %v4261
    %v4471 = vunpack.c.h.b16 %v4261
    %v4472 = vunpack.c.l.b16 %v4262
    %v4473 = vunpack.c.l.b16 %v4263
    %v4474 = vunpack.c.h.b16 %v4263
    %v4475 = vunpack.c.l.b16 %v4264
    %v4476 = vunpack.c.l.b16 %v4265
    %v4477 = vunpack.c.h.b16 %v4265
    %v4478 = vunpack.c.l.b16 %v4266
    %v4479 = vunpack.c.l.b16 %v4267
    %v4480 = vunpack.c.h.b16 %v4267
    %v4481 = vunpack.c.l.b16 %v4268
    %v4482 = vunpack.c.l.b16 %v4269
    %v4483 = vunpack.c.h.b16 %v4269
    %v4484 = vunpack.c.l.b16 %v4270
    %v4485 = vunpack.c.l.b16 %v4271
    %v4486 = vunpack.c.h.b16 %v4271
    %v4487 = vunpack.c.l.b16 %v4272
    %v4488 = vunpack.c.l.b16 %v4273
    %v4489 = vunpack.c.h.b16 %v4273
    %v4490 = vunpack.c.l.b16 %v4274
    %v4491 = vunpack.c.l.b16 %v4275
    %v4492 = vunpack.c.h.b16 %v4275
    %v4493 = vunpack.c.l.b16 %v4276
    %v4494 = vunpack.c.l.b16 %v4277
    %v4495 = vunpack.c.h.b16 %v4277
    %v4496 = vunpack.c.l.b16 %v4278
    %v4497 = vunpack.c.l.b16 %v4279
    %v4498 = vunpack.c.h.b16 %v4279
    %v4499 = vunpack.c.l.b16 %v4280
    %v4500 = vunpack.c.l.b16 %v4281
    %v4501 = vunpack.c.h.b16 %v4281
    %v4502 = vunpack.c.l.b16 %v4282
    %v4503 = vunpack.c.l.b16 %v4283
    %v4504 = vunpack.c.h.b16 %v4283
    %v4505 = vunpack.c.l.b16 %v4284
    %v4506 = vunpack.c.l.b16 %v4285
    %v4507 = vunpack.c.h.b16 %v4285
    %v4508 = vunpack.c.l.b16 %v4286
    %v4509 = vunpack.c.l.b16 %v4287
    %v4510 = vunpack.c.h.b16 %v4287
    %v4511 = vunpack.c.l.b16 %v4288
    %v4512 = vunpack.c.l.b16 %v4289
    %v4513 = vunpack.c.h.b16 %v4289
    %v4514 = vunpack.c.l.b16 %v4290
    %v4515 = vunpack.c.l.b16 %v4291
    %v4516 = vunpack.c.h.b16 %v4291
    %v4517 = vunpack.c.l.b16 %v4292
    %v4518 = vunpack.c.l.b16 %v4293
    %v4519 = vunpack.c.h.b16 %v4293
    %v4520 = vunpack.c.l.b16 %v4294
    %v4521 = vunpack.c.l.b16 %v4295
    %v4522 = vunpack.c.h.b16 %v4295
    %v4523 = vunpack.c.l.b16 %v4296
    %v4524 = vunpack.c.l.b16 %v4297
    %v4525 = vunpack.c.h.b16 %v4297
    %v4526 = vunpack.c.l.b16 %v4298
    %v4527 = vunpack.c.l.b16 %v4299
    %v4528 = vunpack.c.h.b16 %v4299
    %v4529 = vunpack.c.l.b16 %v4300
    %v4530 = vunpack.c.l.b16 %v4301
    %v4531 = vunpack.c.h.b16 %v4301
    %v4532 = vunpack.c.l.b16 %v4302
    %v4533 = vunpack.c.l.b16 %v4303
    %v4534 = vunpack.c.h.b16 %v4303
    %v4535 = vunpack.c.l.b16 %v4304
    %v4536 = vunpack.c.l.b16 %v4305
    %v4537 = vunpack.c.h.b16 %v4305
    %v4538 = vunpack.c.l.b16 %v4306
    %v4539 = vunpack.c.l.b16 %v4307
    %v4540 = vunpack.c.h.b16 %v4307
    %v4541 = vunpack.c.l.b16 %v4308
    %v4542 = vunpack.c.l.b16 %v4309
    %v4543 = vunpack.c.h.b16 %v4309
    %v4544 = vunpack.c.l.b16 %v4310
    %v4545 = vunpack.c.l.b16 %v4311
    %v4546 = vunpack.c.h.b16 %v4311
    %v4547 = vunpack.c.l.b16 %v4312
    %v4548 = vunpack.c.l.b16 %v4313
    %v4549 = vunpack.c.h.b16 %v4313
    %v4550 = vunpack.c.l.b16 %v4314
    %v4551 = vunpack.c.l.b16 %v4315
    %v4552 = vunpack.c.h.b16 %v4315
    %v4553 = vunpack.c.l.b16 %v4316
    %v4554 = vunpack.c.l.b16 %v4317
    %v4555 = vunpack.c.h.b16 %v4317
    %v4556 = vunpack.c.l.b16 %v4318
    %v4557 = vunpack.c.l.b16 %v4319
    %v4558 = vunpack.c.h.b16 %v4319
    %v4559 = vunpack.c.l.b16 %v4320
    %v4560 = vunpack.c.l.b16 %v4321
    %v4561 = vunpack.c.h.b16 %v4321
    %v4562 = vunpack.c.l.b16 %v4322
    %v4563 = vpack.c.b16 %v4422, %v4419
    %v4564 = vpack.c.b16 %v4423, %v4420
    %v4565 = vpack.c.b16 %v4424, %v4421
    %v4566 = vpack.c.b16 %v4428, %v4425
    %v4567 = vpack.c.b16 %v4429, %v4426
    %v4568 = vpack.c.b16 %v4430, %v4427
    %v4569 = vpack.c.b16 %v4434, %v4431
    %v4570 = vpack.c.b16 %v4435, %v4432
    %v4571 = vpack.c.b16 %v4436, %v4433
    %v4572 = vpack.c.b16 %v4440, %v4437
    %v4573 = vpack.c.b16 %v4441, %v4438
    %v4574 = vpack.c.b16 %v4442, %v4439
    %v4575 = vpack.c.b16 %v4446, %v4443
    %v4576 = vpack.c.b16 %v4447, %v4444
    %v4577 = vpack.c.b16 %v4448, %v4445
    %v4578 = vpack.c.b16 %v4452, %v4449
    %v4579 = vpack.c.b16 %v4453, %v4450
    %v4580 = vpack.c.b16 %v4454, %v4451
    %v4581 = vpack.c.b16 %v4458, %v4455
    %v4582 = vpack.c.b16 %v4459, %v4456
    %v4583 = vpack.c.b16 %v4460, %v4457
    %v4584 = vpack.c.b16 %v4464, %v4461
    %v4585 = vpack.c.b16 %v4465, %v4462
    %v4586 = vpack.c.b16 %v4466, %v4463
    %v4587 = vpack.c.b16 %v4470, %v4467
    %v4588 = vpack.c.b16 %v4471, %v4468
    %v4589 = vpack.c.b16 %v4472, %v4469
    %v4590 = vpack.c.b16 %v4476, %v4473
    %v4591 = vpack.c.b16 %v4477, %v4474
    %v4592 = vpack.c.b16 %v4478, %v4475
    %v4593 = vpack.c.b16 %v4482, %v4479
    %v4594 = vpack.c.b16 %v4483, %v4480
    %v4595 = vpack.c.b16 %v4484, %v4481
    %v4596 = vpack.c.b16 %v4488, %v4485
    %v4597 = vpack.c.b16 %v4489, %v4486
    %v4598 = vpack.c.b16 %v4490, %v4487
    %v4599 = vpack.c.b16 %v4494, %v4491
    %v4600 = vpack.c.b16 %v4495, %v4492
    %v4601 = vpack.c.b16 %v4496, %v4493
    %v4602 = vpack.c.b16 %v4500, %v4497
    %v4603 = vpack.c.b16 %v4501, %v4498
    %v4604 = vpack.c.b16 %v4502, %v4499
    %v4605 = vpack.c.b16 %v4506, %v4503
    %v4606 = vpack.c.b16 %v4507, %v4504
    %v4607 = vpack.c.b16 %v4508, %v4505
    %v4608 = vpack.c.b16 %v4512, %v4509
    %v4609 = vpack.c.b16 %v4513, %v4510
    %v4610 = vpack.c.b16 %v4514, %v4511
    %v4611 = vpack.c.b16 %v4518, %v4515
    %v4612 = vpack.c.b16 %v4519, %v4516
    %v4613 = vpack.c.b16 %v4520, %v4517
    %v4614 = vpack.c.b16 %v4524, %v4521
    %v4615 = vpack.c.b16 %v4525, %v4522
    %v4616 = vpack.c.b16 %v4526, %v4523
    %v4617 = vpack.c.b16 %v4530, %v4527
    %v4618 = vpack.c.b16 %v4531, %v4528
    %v4619 = vpack.c.b16 %v4532, %v4529
    %v4620 = vpack.c.b16 %v4536, %v4533
    %v4621 = vpack.c.b16 %v4537, %v4534
    %v4622 = vpack.c.b16 %v4538, %v4535
    %v4623 = vpack.c.b16 %v4542, %v4539
    %v4624 = vpack.c.b16 %v4543, %v4540
    %v4625 = vpack.c.b16 %v4544, %v4541
    %v4626 = vpack.c.b16 %v4548, %v4545
    %v4627 = vpack.c.b16 %v4549, %v4546
    %v4628 = vpack.c.b16 %v4550, %v4547
    %v4629 = vpack.c.b16 %v4554, %v4551
    %v4630 = vpack.c.b16 %v4555, %v4552
    %v4631 = vpack.c.b16 %v4556, %v4553
    %v4632 = vpack.c.b16 %v4560, %v4557
    %v4633 = vpack.c.b16 %v4561, %v4558
    %v4634 = vpack.c.b16 %v4562, %v4559
    %4707 = vmatpush.bf16.msra.mxu0 %v4584
    %4708 = vmatpush.bf16.msra.mxu0 %v4581
    %4709 = vmatpush.bf16.msra.mxu0 %v4578
    %4710 = vmatpush.bf16.msra.mxu0 %v4575
    %4711 = vmatpush.bf16.msra.mxu0 %v4572
    %4712 = vmatpush.bf16.msra.mxu0 %v4569
    %4713 = vmatpush.bf16.msra.mxu0 %v4566
    %4714 = vmatpush.bf16.msra.mxu0 %v4563
    %4715 = vmatmul.bf16.gmra.mxu0 %v2082
    %v4716 = vpop.f32.mrf.mxu0
    %v4717 = vadd.f32 0.0, %v4716
    %v4718 = vpop.f32.mrf.mxu0
    %v4719 = vadd.f32 0.0, %v4718
    %4720 = vdwg.mxu0
    %4721 = vmatpush.bf16.msra.mxu0 %v4608
    %4722 = vmatpush.bf16.msra.mxu0 %v4605
    %4723 = vmatpush.bf16.msra.mxu0 %v4602
    %4724 = vmatpush.bf16.msra.mxu0 %v4599
    %4725 = vmatpush.bf16.msra.mxu0 %v4596
    %4726 = vmatpush.bf16.msra.mxu0 %v4593
    %4727 = vmatpush.bf16.msra.mxu0 %v4590
    %4728 = vmatpush.bf16.msra.mxu0 %v4587
    %4729 = vmatmul.bf16.gmra.mxu0 %v2083
    %v4730 = vpop.f32.mrf.mxu0
    %v4731 = vadd.f32 %v4717, %v4730
    %v4732 = vpop.f32.mrf.mxu0
    %v4733 = vadd.f32 %v4719, %v4732
    %4734 = vdwg.mxu0
    %4735 = vmatpush.bf16.msra.mxu0 %v4632
    %4736 = vmatpush.bf16.msra.mxu0 %v4629
    %4737 = vmatpush.bf16.msra.mxu0 %v4626
    %4738 = vmatpush.bf16.msra.mxu0 %v4623
    %4739 = vmatpush.bf16.msra.mxu0 %v4620
    %4740 = vmatpush.bf16.msra.mxu0 %v4617
    %4741 = vmatpush.bf16.msra.mxu0 %v4614
    %4742 = vmatpush.bf16.msra.mxu0 %v4611
    %4743 = vmatmul.bf16.gmra.mxu0 %v2084
    %v4744 = vpop.f32.mrf.mxu0
    %v4745 = vadd.f32 %v4731, %v4744
    %v4746 = vpop.f32.mrf.mxu0
    %v4747 = vadd.f32 %v4733, %v4746
    %4748 = vdwg.mxu0
    %4749 = vmatpush.bf16.msra.mxu0 %v4585
    %4750 = vmatpush.bf16.msra.mxu0 %v4582
    %4751 = vmatpush.bf16.msra.mxu0 %v4579
    %4752 = vmatpush.bf16.msra.mxu0 %v4576
    %4753 = vmatpush.bf16.msra.mxu0 %v4573
    %4754 = vmatpush.bf16.msra.mxu0 %v4570
    %4755 = vmatpush.bf16.msra.mxu0 %v4567
    %4756 = vmatpush.bf16.msra.mxu0 %v4564
    %4757 = vmatmul.bf16.gmra.mxu0 %v2082
    %v4758 = vpop.f32.mrf.mxu0
    %v4759 = vadd.f32 0.0, %v4758
    %v4760 = vpop.f32.mrf.mxu0
    %v4761 = vadd.f32 0.0, %v4760
    %4762 = vdwg.mxu0
    %4763 = vmatpush.bf16.msra.mxu0 %v4609
    %4764 = vmatpush.bf16.msra.mxu0 %v4606
    %4765 = vmatpush.bf16.msra.mxu0 %v4603
    %4766 = vmatpush.bf16.msra.mxu0 %v4600
    %4767 = vmatpush.bf16.msra.mxu0 %v4597
    %4768 = vmatpush.bf16.msra.mxu0 %v4594
    %4769 = vmatpush.bf16.msra.mxu0 %v4591
    %4770 = vmatpush.bf16.msra.mxu0 %v4588
    %4771 = vmatmul.bf16.gmra.mxu0 %v2083
    %v4772 = vpop.f32.mrf.mxu0
    %v4773 = vadd.f32 %v4759, %v4772
    %v4774 = vpop.f32.mrf.mxu0
    %v4775 = vadd.f32 %v4761, %v4774
    %4776 = vdwg.mxu0
    %4777 = vmatpush.bf16.msra.mxu0 %v4633
    %4778 = vmatpush.bf16.msra.mxu0 %v4630
    %4779 = vmatpush.bf16.msra.mxu0 %v4627
    %4780 = vmatpush.bf16.msra.mxu0 %v4624
    %4781 = vmatpush.bf16.msra.mxu0 %v4621
    %4782 = vmatpush.bf16.msra.mxu0 %v4618
    %4783 = vmatpush.bf16.msra.mxu0 %v4615
    %4784 = vmatpush.bf16.msra.mxu0 %v4612
    %4785 = vmatmul.bf16.gmra.mxu0 %v2084
    %v4786 = vpop.f32.mrf.mxu0
    %v4787 = vadd.f32 %v4773, %v4786
    %v4788 = vpop.f32.mrf.mxu0
    %v4789 = vadd.f32 %v4775, %v4788
    %4790 = vdwg.mxu0
    %4791 = vmatpush.bf16.msra.mxu0 %v4586
    %4792 = vmatpush.bf16.msra.mxu0 %v4583
    %4793 = vmatpush.bf16.msra.mxu0 %v4580
    %4794 = vmatpush.bf16.msra.mxu0 %v4577
    %4795 = vmatpush.bf16.msra.mxu0 %v4574
    %4796 = vmatpush.bf16.msra.mxu0 %v4571
    %4797 = vmatpush.bf16.msra.mxu0 %v4568
    %4798 = vmatpush.bf16.msra.mxu0 %v4565
    %4799 = vmatmul.bf16.gmra.mxu0 %v2082
    %v4800 = vpop.f32.mrf.mxu0
    %v4801 = vadd.f32 0.0, %v4800
    %v4802 = vpop.f32.mrf.mxu0
    %v4803 = vadd.f32 0.0, %v4802
    %4804 = vdwg.mxu0
    %4805 = vmatpush.bf16.msra.mxu0 %v4610
    %4806 = vmatpush.bf16.msra.mxu0 %v4607
    %4807 = vmatpush.bf16.msra.mxu0 %v4604
    %4808 = vmatpush.bf16.msra.mxu0 %v4601
    %4809 = vmatpush.bf16.msra.mxu0 %v4598
    %4810 = vmatpush.bf16.msra.mxu0 %v4595
    %4811 = vmatpush.bf16.msra.mxu0 %v4592
    %4812 = vmatpush.bf16.msra.mxu0 %v4589
    %4813 = vmatmul.bf16.gmra.mxu0 %v2083
    %v4814 = vpop.f32.mrf.mxu0
    %v4815 = vadd.f32 %v4801, %v4814
    %v4816 = vpop.f32.mrf.mxu0
    %v4817 = vadd.f32 %v4803, %v4816
    %4818 = vdwg.mxu0
    %4819 = vmatpush.bf16.msra.mxu0 %v4634
    %4820 = vmatpush.bf16.msra.mxu0 %v4631
    %4821 = vmatpush.bf16.msra.mxu0 %v4628
    %4822 = vmatpush.bf16.msra.mxu0 %v4625
    %4823 = vmatpush.bf16.msra.mxu0 %v4622
    %4824 = vmatpush.bf16.msra.mxu0 %v4619
    %4825 = vmatpush.bf16.msra.mxu0 %v4616
    %4826 = vmatpush.bf16.msra.mxu0 %v4613
    %4827 = vmatmul.bf16.gmra.mxu0 %v2084
    %v4828 = vpop.f32.mrf.mxu0
    %v4829 = vadd.f32 %v4815, %v4828
    %v4830 = vpop.f32.mrf.mxu0
    %v4831 = vadd.f32 %v4817, %v4830
    %4832 = vdwg.mxu0
    %s4833 = scalar_lea.vmem %s7, 96
    %v4834 = vld [vmem:[%s4833] sm:$0xff]
    %v4835 = vld [vmem:[%s4833 + $0x8] sm:$0xff]
    %v4836 = vld [vmem:[%s4833 + $0x10] sm:$0xff]
    %v4837 = vld [vmem:[%s4833 + $0x18] sm:$0xff]
    %v4839 = vsel %vm3306, %v4834, 0
    %v4842 = vsel %vm3306, %v4835, 0
    %v4845 = vsel %vm3306, %v4836, 0
    %v4848 = vsel %vm3306, %v4837, 0
    %4850 = vmatpush.msra.mxu0 0.0
    %4851 = vmatpush.msra.mxu0 0.0
    %4852 = vmatpush.msra.mxu0 0.0
    %4853 = vmatpush.msra.mxu0 0.0
    %4854 = vmatpush.msra.mxu0 0.0
    %4855 = vmatpush.msra.mxu0 0.0
    %4856 = vmatpush.msra.mxu0 0.0
    %4857 = vmatpush.msra.mxu0 0.0
    %4858 = vmatpush.msra.mxu0 0.0
    %4859 = vmatpush.msra.mxu0 0.0
    %4860 = vmatpush.msra.mxu0 0.0
    %4861 = vmatpush.msra.mxu0 0.0
    %4862 = vmatpush.msra.mxu0 0.0
    %4863 = vmatpush.msra.mxu0 0.0
    %4864 = vmatpush.msra.mxu0 %v4747
    %4865 = vmatpush.msra.mxu0 %v4745
    %4866 = vmatmul.f32.gmra.mxu0 %v4839
    %v4867 = vpop.f32.mrf.mxu0
    %v4868 = vadd.f32 0.0, %v4867
    %4869 = vmatmul.f32.gmra.mxu0 %v4842
    %v4870 = vpop.f32.mrf.mxu0
    %v4871 = vadd.f32 0.0, %v4870
    %4872 = vmatmul.f32.gmra.mxu0 %v4845
    %v4873 = vpop.f32.mrf.mxu0
    %v4874 = vadd.f32 0.0, %v4873
    %4875 = vmatmul.f32.gmra.mxu0 %v4848
    %v4876 = vpop.f32.mrf.mxu0
    %v4877 = vadd.f32 0.0, %v4876
    %4878 = vdwg.mxu0
    %4879 = vmatpush.msra.mxu0 0.0
    %4880 = vmatpush.msra.mxu0 0.0
    %4881 = vmatpush.msra.mxu0 0.0
    %4882 = vmatpush.msra.mxu0 0.0
    %4883 = vmatpush.msra.mxu0 0.0
    %4884 = vmatpush.msra.mxu0 0.0
    %4885 = vmatpush.msra.mxu0 0.0
    %4886 = vmatpush.msra.mxu0 0.0
    %4887 = vmatpush.msra.mxu0 0.0
    %4888 = vmatpush.msra.mxu0 0.0
    %4889 = vmatpush.msra.mxu0 0.0
    %4890 = vmatpush.msra.mxu0 0.0
    %4891 = vmatpush.msra.mxu0 0.0
    %4892 = vmatpush.msra.mxu0 0.0
    %4893 = vmatpush.msra.mxu0 %v4789
    %4894 = vmatpush.msra.mxu0 %v4787
    %4895 = vmatmul.f32.gmra.mxu0 %v4839
    %v4896 = vpop.f32.mrf.mxu0
    %v4897 = vadd.f32 0.0, %v4896
    %4898 = vmatmul.f32.gmra.mxu0 %v4842
    %v4899 = vpop.f32.mrf.mxu0
    %v4900 = vadd.f32 0.0, %v4899
    %4901 = vmatmul.f32.gmra.mxu0 %v4845
    %v4902 = vpop.f32.mrf.mxu0
    %v4903 = vadd.f32 0.0, %v4902
    %4904 = vmatmul.f32.gmra.mxu0 %v4848
    %v4905 = vpop.f32.mrf.mxu0
    %v4906 = vadd.f32 0.0, %v4905
    %4907 = vdwg.mxu0
    %4908 = vmatpush.msra.mxu0 0.0
    %4909 = vmatpush.msra.mxu0 0.0
    %4910 = vmatpush.msra.mxu0 0.0
    %4911 = vmatpush.msra.mxu0 0.0
    %4912 = vmatpush.msra.mxu0 0.0
    %4913 = vmatpush.msra.mxu0 0.0
    %4914 = vmatpush.msra.mxu0 0.0
    %4915 = vmatpush.msra.mxu0 0.0
    %4916 = vmatpush.msra.mxu0 0.0
    %4917 = vmatpush.msra.mxu0 0.0
    %4918 = vmatpush.msra.mxu0 0.0
    %4919 = vmatpush.msra.mxu0 0.0
    %4920 = vmatpush.msra.mxu0 0.0
    %4921 = vmatpush.msra.mxu0 0.0
    %4922 = vmatpush.msra.mxu0 %v4831
    %4923 = vmatpush.msra.mxu0 %v4829
    %4924 = vmatmul.f32.gmra.mxu0 %v4839
    %v4925 = vpop.f32.mrf.mxu0
    %v4926 = vadd.f32 0.0, %v4925
    %4927 = vmatmul.f32.gmra.mxu0 %v4842
    %v4928 = vpop.f32.mrf.mxu0
    %v4929 = vadd.f32 0.0, %v4928
    %4930 = vmatmul.f32.gmra.mxu0 %v4845
    %v4931 = vpop.f32.mrf.mxu0
    %v4932 = vadd.f32 0.0, %v4931
    %4933 = vmatmul.f32.gmra.mxu0 %v4848
    %v4934 = vpop.f32.mrf.mxu0
    %v4935 = vadd.f32 0.0, %v4934
    %4936 = vdwg.mxu0
    %v4937 = vadd.f32 %v4215, %v4868
    %v4938 = vadd.f32 %v4216, %v4897
    %v4939 = vadd.f32 %v4217, %v4926
    %v4940 = vadd.f32 %v4218, %v4871
    %v4941 = vadd.f32 %v4219, %v4900
    %v4942 = vadd.f32 %v4220, %v4929
    %v4943 = vadd.f32 %v4221, %v4874
    %v4944 = vadd.f32 %v4222, %v4903
    %v4945 = vadd.f32 %v4223, %v4932
    %v4946 = vadd.f32 %v4224, %v4877
    %v4947 = vadd.f32 %v4225, %v4906
    %v4948 = vadd.f32 %v4226, %v4935
    %v4949 = vld [vmem:[%s8] sm:$0x7]
    %v4951 = vperm.slane %v4949, 0
    %v4952 = vperm.slane %v4949, 1
    %v4953 = vperm.slane %v4949, 2
    %v4957 = vadd.f32 %v4937, %v4951
    %v4958 = vadd.f32 %v4938, %v4952
    %v4959 = vadd.f32 %v4939, %v4953
    %v4960 = vadd.f32 %v4940, %v4951
    %v4961 = vadd.f32 %v4941, %v4952
    %v4962 = vadd.f32 %v4942, %v4953
    %v4963 = vadd.f32 %v4943, %v4951
    %v4964 = vadd.f32 %v4944, %v4952
    %v4965 = vadd.f32 %v4945, %v4953
    %v4966 = vadd.f32 %v4946, %v4951
    %v4967 = vadd.f32 %v4947, %v4952
    %v4968 = vadd.f32 %v4948, %v4953
    %v4969 = vmax.f32 %v4957, 0.0
    %v4970 = vmax.f32 %v4958, 0.0
    %v4971 = vmax.f32 %v4959, 0.0
    %v4972 = vmax.f32 %v4960, 0.0
    %v4973 = vmax.f32 %v4961, 0.0
    %v4974 = vmax.f32 %v4962, 0.0
    %v4975 = vmax.f32 %v4963, 0.0
    %v4976 = vmax.f32 %v4964, 0.0
    %v4977 = vmax.f32 %v4965, 0.0
    %v4978 = vmax.f32 %v4966, 0.0
    %v4979 = vmax.f32 %v4967, 0.0
    %v4980 = vmax.f32 %v4968, 0.0
    %v4981 = vpack.c.bf16 %v4972, %v4969
    %v4982 = vpack.c.bf16 %v4973, %v4970
    %v4983 = vpack.c.bf16 %v4974, %v4971
    %v4984 = vpack.c.bf16 %v4978, %v4975
    %v4985 = vpack.c.bf16 %v4979, %v4976
    %v4986 = vpack.c.bf16 %v4980, %v4977
    %v4987 = vld [vmem:[#allocation2] sm:$0xff]
    %v4988 = vld [vmem:[#allocation2 + $0x8] sm:$0xf]
    %v4989 = vld [vmem:[#allocation2 + $0x30] sm:$0xff]
    %v4990 = vld [vmem:[#allocation2 + $0x38] sm:$0xf]
    %v4991 = vld [vmem:[#allocation2 + $0x60] sm:$0xff]
    %v4992 = vld [vmem:[#allocation2 + $0x68] sm:$0xf]
    %v4993 = vld [vmem:[#allocation2 + $0x90] sm:$0xff]
    %v4994 = vld [vmem:[#allocation2 + $0x98] sm:$0xf]
    %v4995 = vld [vmem:[#allocation2 + $0xc0] sm:$0xff]
    %v4996 = vld [vmem:[#allocation2 + $0xc8] sm:$0xf]
    %v4997 = vld [vmem:[#allocation2 + $0xf0] sm:$0xff]
    %v4998 = vld [vmem:[#allocation2 + $0xf8] sm:$0xf]
    %v4999 = vld [vmem:[#allocation2 + $0x120] sm:$0xff]
    %v5000 = vld [vmem:[#allocation2 + $0x128] sm:$0xf]
    %v5001 = vld [vmem:[#allocation2 + $0x150] sm:$0xff]
    %v5002 = vld [vmem:[#allocation2 + $0x158] sm:$0xf]
    %v5003 = vld [vmem:[#allocation2 + $0x180] sm:$0xff]
    %v5004 = vld [vmem:[#allocation2 + $0x188] sm:$0xf]
    %v5005 = vld [vmem:[#allocation2 + $0x1b0] sm:$0xff]
    %v5006 = vld [vmem:[#allocation2 + $0x1b8] sm:$0xf]
    %v5007 = vld [vmem:[#allocation2 + $0x1e0] sm:$0xff]
    %v5008 = vld [vmem:[#allocation2 + $0x1e8] sm:$0xf]
    %v5009 = vld [vmem:[#allocation2 + $0x210] sm:$0xff]
    %v5010 = vld [vmem:[#allocation2 + $0x218] sm:$0xf]
    %v5011 = vld [vmem:[#allocation2 + $0x240] sm:$0xff]
    %v5012 = vld [vmem:[#allocation2 + $0x248] sm:$0xf]
    %v5013 = vld [vmem:[#allocation2 + $0x270] sm:$0xff]
    %v5014 = vld [vmem:[#allocation2 + $0x278] sm:$0xf]
    %v5015 = vld [vmem:[#allocation2 + $0x2a0] sm:$0xff]
    %v5016 = vld [vmem:[#allocation2 + $0x2a8] sm:$0xf]
    %v5017 = vld [vmem:[#allocation2 + $0x2d0] sm:$0xff]
    %v5018 = vld [vmem:[#allocation2 + $0x2d8] sm:$0xf]
    %v5019 = vld [vmem:[#allocation2 + $0x300] sm:$0xff]
    %v5020 = vld [vmem:[#allocation2 + $0x308] sm:$0xf]
    %v5021 = vld [vmem:[#allocation2 + $0x330] sm:$0xff]
    %v5022 = vld [vmem:[#allocation2 + $0x338] sm:$0xf]
    %v5023 = vld [vmem:[#allocation2 + $0x360] sm:$0xff]
    %v5024 = vld [vmem:[#allocation2 + $0x368] sm:$0xf]
    %v5025 = vld [vmem:[#allocation2 + $0x390] sm:$0xff]
    %v5026 = vld [vmem:[#allocation2 + $0x398] sm:$0xf]
    %v5027 = vld [vmem:[#allocation2 + $0x3c0] sm:$0xff]
    %v5028 = vld [vmem:[#allocation2 + $0x3c8] sm:$0xf]
    %v5029 = vld [vmem:[#allocation2 + $0x3f0] sm:$0xff]
    %v5030 = vld [vmem:[#allocation2 + $0x3f8] sm:$0xf]
    %v5031 = vld [vmem:[#allocation2 + $0x420] sm:$0xff]
    %v5032 = vld [vmem:[#allocation2 + $0x428] sm:$0xf]
    %v5033 = vld [vmem:[#allocation2 + $0x450] sm:$0xff]
    %v5034 = vld [vmem:[#allocation2 + $0x458] sm:$0xf]
    %v5035 = vld [vmem:[#allocation2 + $0x480] sm:$0xff]
    %v5036 = vld [vmem:[#allocation2 + $0x488] sm:$0xf]
    %v5037 = vld [vmem:[#allocation2 + $0x4b0] sm:$0xff]
    %v5038 = vld [vmem:[#allocation2 + $0x4b8] sm:$0xf]
    %v5039 = vld [vmem:[#allocation2 + $0x4e0] sm:$0xff]
    %v5040 = vld [vmem:[#allocation2 + $0x4e8] sm:$0xf]
    %v5041 = vld [vmem:[#allocation2 + $0x510] sm:$0xff]
    %v5042 = vld [vmem:[#allocation2 + $0x518] sm:$0xf]
    %v5043 = vld [vmem:[#allocation2 + $0x540] sm:$0xff]
    %v5044 = vld [vmem:[#allocation2 + $0x548] sm:$0xf]
    %v5045 = vld [vmem:[#allocation2 + $0x570] sm:$0xff]
    %v5046 = vld [vmem:[#allocation2 + $0x578] sm:$0xf]
    %v5047 = vld [vmem:[#allocation2 + $0x5a0] sm:$0xff]
    %v5048 = vld [vmem:[#allocation2 + $0x5a8] sm:$0xf]
    %v5049 = vld [vmem:[#allocation2 + $0x5d0] sm:$0xff]
    %v5050 = vld [vmem:[#allocation2 + $0x5d8] sm:$0xf]
    %v5051 = vld [vmem:[#allocation2 + $0x600] sm:$0xff]
    %v5052 = vld [vmem:[#allocation2 + $0x608] sm:$0xf]
    %v5053 = vld [vmem:[#allocation2 + $0x630] sm:$0xff]
    %v5054 = vld [vmem:[#allocation2 + $0x638] sm:$0xf]
    %v5055 = vld [vmem:[#allocation2 + $0x660] sm:$0xff]
    %v5056 = vld [vmem:[#allocation2 + $0x668] sm:$0xf]
    %v5057 = vld [vmem:[#allocation2 + $0x690] sm:$0xff]
    %v5058 = vld [vmem:[#allocation2 + $0x698] sm:$0xf]
    %v5059 = vld [vmem:[#allocation2 + $0x6c0] sm:$0xff]
    %v5060 = vld [vmem:[#allocation2 + $0x6c8] sm:$0xf]
    %v5061 = vld [vmem:[#allocation2 + $0x6f0] sm:$0xff]
    %v5062 = vld [vmem:[#allocation2 + $0x6f8] sm:$0xf]
    %v5063 = vld [vmem:[#allocation2 + $0x720] sm:$0xff]
    %v5064 = vld [vmem:[#allocation2 + $0x728] sm:$0xf]
    %v5065 = vld [vmem:[#allocation2 + $0x750] sm:$0xff]
    %v5066 = vld [vmem:[#allocation2 + $0x758] sm:$0xf]
    %v5067 = vld [vmem:[#allocation2 + $0x780] sm:$0xff]
    %v5068 = vld [vmem:[#allocation2 + $0x788] sm:$0xf]
    %v5069 = vld [vmem:[#allocation2 + $0x7b0] sm:$0xff]
    %v5070 = vld [vmem:[#allocation2 + $0x7b8] sm:$0xf]
    %v5071 = vld [vmem:[#allocation2 + $0x7e0] sm:$0xff]
    %v5072 = vld [vmem:[#allocation2 + $0x7e8] sm:$0xf]
    %v5073 = vld [vmem:[#allocation2 + $0x810] sm:$0xff]
    %v5074 = vld [vmem:[#allocation2 + $0x818] sm:$0xf]
    %v5075 = vld [vmem:[#allocation2 + $0x840] sm:$0xff]
    %v5076 = vld [vmem:[#allocation2 + $0x848] sm:$0xf]
    %v5077 = vld [vmem:[#allocation2 + $0x870] sm:$0xff]
    %v5078 = vld [vmem:[#allocation2 + $0x878] sm:$0xf]
    %v5079 = vld [vmem:[#allocation2 + $0x8a0] sm:$0xff]
    %v5080 = vld [vmem:[#allocation2 + $0x8a8] sm:$0xf]
    %v5081 = vld [vmem:[#allocation2 + $0x8d0] sm:$0xff]
    %v5082 = vld [vmem:[#allocation2 + $0x8d8] sm:$0xf]
    %v5179 = vunpack.c.l.b16 %v4987
    %v5180 = vunpack.c.h.b16 %v4987
    %v5181 = vunpack.c.l.b16 %v4988
    %v5182 = vunpack.c.l.b16 %v4989
    %v5183 = vunpack.c.h.b16 %v4989
    %v5184 = vunpack.c.l.b16 %v4990
    %v5185 = vunpack.c.l.b16 %v4991
    %v5186 = vunpack.c.h.b16 %v4991
    %v5187 = vunpack.c.l.b16 %v4992
    %v5188 = vunpack.c.l.b16 %v4993
    %v5189 = vunpack.c.h.b16 %v4993
    %v5190 = vunpack.c.l.b16 %v4994
    %v5191 = vunpack.c.l.b16 %v4995
    %v5192 = vunpack.c.h.b16 %v4995
    %v5193 = vunpack.c.l.b16 %v4996
    %v5194 = vunpack.c.l.b16 %v4997
    %v5195 = vunpack.c.h.b16 %v4997
    %v5196 = vunpack.c.l.b16 %v4998
    %v5197 = vunpack.c.l.b16 %v4999
    %v5198 = vunpack.c.h.b16 %v4999
    %v5199 = vunpack.c.l.b16 %v5000
    %v5200 = vunpack.c.l.b16 %v5001
    %v5201 = vunpack.c.h.b16 %v5001
    %v5202 = vunpack.c.l.b16 %v5002
    %v5203 = vunpack.c.l.b16 %v5003
    %v5204 = vunpack.c.h.b16 %v5003
    %v5205 = vunpack.c.l.b16 %v5004
    %v5206 = vunpack.c.l.b16 %v5005
    %v5207 = vunpack.c.h.b16 %v5005
    %v5208 = vunpack.c.l.b16 %v5006
    %v5209 = vunpack.c.l.b16 %v5007
    %v5210 = vunpack.c.h.b16 %v5007
    %v5211 = vunpack.c.l.b16 %v5008
    %v5212 = vunpack.c.l.b16 %v5009
    %v5213 = vunpack.c.h.b16 %v5009
    %v5214 = vunpack.c.l.b16 %v5010
    %v5215 = vunpack.c.l.b16 %v5011
    %v5216 = vunpack.c.h.b16 %v5011
    %v5217 = vunpack.c.l.b16 %v5012
    %v5218 = vunpack.c.l.b16 %v5013
    %v5219 = vunpack.c.h.b16 %v5013
    %v5220 = vunpack.c.l.b16 %v5014
    %v5221 = vunpack.c.l.b16 %v5015
    %v5222 = vunpack.c.h.b16 %v5015
    %v5223 = vunpack.c.l.b16 %v5016
    %v5224 = vunpack.c.l.b16 %v5017
    %v5225 = vunpack.c.h.b16 %v5017
    %v5226 = vunpack.c.l.b16 %v5018
    %v5227 = vunpack.c.l.b16 %v5019
    %v5228 = vunpack.c.h.b16 %v5019
    %v5229 = vunpack.c.l.b16 %v5020
    %v5230 = vunpack.c.l.b16 %v5021
    %v5231 = vunpack.c.h.b16 %v5021
    %v5232 = vunpack.c.l.b16 %v5022
    %v5233 = vunpack.c.l.b16 %v5023
    %v5234 = vunpack.c.h.b16 %v5023
    %v5235 = vunpack.c.l.b16 %v5024
    %v5236 = vunpack.c.l.b16 %v5025
    %v5237 = vunpack.c.h.b16 %v5025
    %v5238 = vunpack.c.l.b16 %v5026
    %v5239 = vunpack.c.l.b16 %v5027
    %v5240 = vunpack.c.h.b16 %v5027
    %v5241 = vunpack.c.l.b16 %v5028
    %v5242 = vunpack.c.l.b16 %v5029
    %v5243 = vunpack.c.h.b16 %v5029
    %v5244 = vunpack.c.l.b16 %v5030
    %v5245 = vunpack.c.l.b16 %v5031
    %v5246 = vunpack.c.h.b16 %v5031
    %v5247 = vunpack.c.l.b16 %v5032
    %v5248 = vunpack.c.l.b16 %v5033
    %v5249 = vunpack.c.h.b16 %v5033
    %v5250 = vunpack.c.l.b16 %v5034
    %v5251 = vunpack.c.l.b16 %v5035
    %v5252 = vunpack.c.h.b16 %v5035
    %v5253 = vunpack.c.l.b16 %v5036
    %v5254 = vunpack.c.l.b16 %v5037
    %v5255 = vunpack.c.h.b16 %v5037
    %v5256 = vunpack.c.l.b16 %v5038
    %v5257 = vunpack.c.l.b16 %v5039
    %v5258 = vunpack.c.h.b16 %v5039
    %v5259 = vunpack.c.l.b16 %v5040
    %v5260 = vunpack.c.l.b16 %v5041
    %v5261 = vunpack.c.h.b16 %v5041
    %v5262 = vunpack.c.l.b16 %v5042
    %v5263 = vunpack.c.l.b16 %v5043
    %v5264 = vunpack.c.h.b16 %v5043
    %v5265 = vunpack.c.l.b16 %v5044
    %v5266 = vunpack.c.l.b16 %v5045
    %v5267 = vunpack.c.h.b16 %v5045
    %v5268 = vunpack.c.l.b16 %v5046
    %v5269 = vunpack.c.l.b16 %v5047
    %v5270 = vunpack.c.h.b16 %v5047
    %v5271 = vunpack.c.l.b16 %v5048
    %v5272 = vunpack.c.l.b16 %v5049
    %v5273 = vunpack.c.h.b16 %v5049
    %v5274 = vunpack.c.l.b16 %v5050
    %v5275 = vunpack.c.l.b16 %v5051
    %v5276 = vunpack.c.h.b16 %v5051
    %v5277 = vunpack.c.l.b16 %v5052
    %v5278 = vunpack.c.l.b16 %v5053
    %v5279 = vunpack.c.h.b16 %v5053
    %v5280 = vunpack.c.l.b16 %v5054
    %v5281 = vunpack.c.l.b16 %v5055
    %v5282 = vunpack.c.h.b16 %v5055
    %v5283 = vunpack.c.l.b16 %v5056
    %v5284 = vunpack.c.l.b16 %v5057
    %v5285 = vunpack.c.h.b16 %v5057
    %v5286 = vunpack.c.l.b16 %v5058
    %v5287 = vunpack.c.l.b16 %v5059
    %v5288 = vunpack.c.h.b16 %v5059
    %v5289 = vunpack.c.l.b16 %v5060
    %v5290 = vunpack.c.l.b16 %v5061
    %v5291 = vunpack.c.h.b16 %v5061
    %v5292 = vunpack.c.l.b16 %v5062
    %v5293 = vunpack.c.l.b16 %v5063
    %v5294 = vunpack.c.h.b16 %v5063
    %v5295 = vunpack.c.l.b16 %v5064
    %v5296 = vunpack.c.l.b16 %v5065
    %v5297 = vunpack.c.h.b16 %v5065
    %v5298 = vunpack.c.l.b16 %v5066
    %v5299 = vunpack.c.l.b16 %v5067
    %v5300 = vunpack.c.h.b16 %v5067
    %v5301 = vunpack.c.l.b16 %v5068
    %v5302 = vunpack.c.l.b16 %v5069
    %v5303 = vunpack.c.h.b16 %v5069
    %v5304 = vunpack.c.l.b16 %v5070
    %v5305 = vunpack.c.l.b16 %v5071
    %v5306 = vunpack.c.h.b16 %v5071
    %v5307 = vunpack.c.l.b16 %v5072
    %v5308 = vunpack.c.l.b16 %v5073
    %v5309 = vunpack.c.h.b16 %v5073
    %v5310 = vunpack.c.l.b16 %v5074
    %v5311 = vunpack.c.l.b16 %v5075
    %v5312 = vunpack.c.h.b16 %v5075
    %v5313 = vunpack.c.l.b16 %v5076
    %v5314 = vunpack.c.l.b16 %v5077
    %v5315 = vunpack.c.h.b16 %v5077
    %v5316 = vunpack.c.l.b16 %v5078
    %v5317 = vunpack.c.l.b16 %v5079
    %v5318 = vunpack.c.h.b16 %v5079
    %v5319 = vunpack.c.l.b16 %v5080
    %v5320 = vunpack.c.l.b16 %v5081
    %v5321 = vunpack.c.h.b16 %v5081
    %v5322 = vunpack.c.l.b16 %v5082
    %v5323 = vpack.c.b16 %v5182, %v5179
    %v5324 = vpack.c.b16 %v5183, %v5180
    %v5325 = vpack.c.b16 %v5184, %v5181
    %v5326 = vpack.c.b16 %v5188, %v5185
    %v5327 = vpack.c.b16 %v5189, %v5186
    %v5328 = vpack.c.b16 %v5190, %v5187
    %v5329 = vpack.c.b16 %v5194, %v5191
    %v5330 = vpack.c.b16 %v5195, %v5192
    %v5331 = vpack.c.b16 %v5196, %v5193
    %v5332 = vpack.c.b16 %v5200, %v5197
    %v5333 = vpack.c.b16 %v5201, %v5198
    %v5334 = vpack.c.b16 %v5202, %v5199
    %v5335 = vpack.c.b16 %v5206, %v5203
    %v5336 = vpack.c.b16 %v5207, %v5204
    %v5337 = vpack.c.b16 %v5208, %v5205
    %v5338 = vpack.c.b16 %v5212, %v5209
    %v5339 = vpack.c.b16 %v5213, %v5210
    %v5340 = vpack.c.b16 %v5214, %v5211
    %v5341 = vpack.c.b16 %v5218, %v5215
    %v5342 = vpack.c.b16 %v5219, %v5216
    %v5343 = vpack.c.b16 %v5220, %v5217
    %v5344 = vpack.c.b16 %v5224, %v5221
    %v5345 = vpack.c.b16 %v5225, %v5222
    %v5346 = vpack.c.b16 %v5226, %v5223
    %v5347 = vpack.c.b16 %v5230, %v5227
    %v5348 = vpack.c.b16 %v5231, %v5228
    %v5349 = vpack.c.b16 %v5232, %v5229
    %v5350 = vpack.c.b16 %v5236, %v5233
    %v5351 = vpack.c.b16 %v5237, %v5234
    %v5352 = vpack.c.b16 %v5238, %v5235
    %v5353 = vpack.c.b16 %v5242, %v5239
    %v5354 = vpack.c.b16 %v5243, %v5240
    %v5355 = vpack.c.b16 %v5244, %v5241
    %v5356 = vpack.c.b16 %v5248, %v5245
    %v5357 = vpack.c.b16 %v5249, %v5246
    %v5358 = vpack.c.b16 %v5250, %v5247
    %v5359 = vpack.c.b16 %v5254, %v5251
    %v5360 = vpack.c.b16 %v5255, %v5252
    %v5361 = vpack.c.b16 %v5256, %v5253
    %v5362 = vpack.c.b16 %v5260, %v5257
    %v5363 = vpack.c.b16 %v5261, %v5258
    %v5364 = vpack.c.b16 %v5262, %v5259
    %v5365 = vpack.c.b16 %v5266, %v5263
    %v5366 = vpack.c.b16 %v5267, %v5264
    %v5367 = vpack.c.b16 %v5268, %v5265
    %v5368 = vpack.c.b16 %v5272, %v5269
    %v5369 = vpack.c.b16 %v5273, %v5270
    %v5370 = vpack.c.b16 %v5274, %v5271
    %v5371 = vpack.c.b16 %v5278, %v5275
    %v5372 = vpack.c.b16 %v5279, %v5276
    %v5373 = vpack.c.b16 %v5280, %v5277
    %v5374 = vpack.c.b16 %v5284, %v5281
    %v5375 = vpack.c.b16 %v5285, %v5282
    %v5376 = vpack.c.b16 %v5286, %v5283
    %v5377 = vpack.c.b16 %v5290, %v5287
    %v5378 = vpack.c.b16 %v5291, %v5288
    %v5379 = vpack.c.b16 %v5292, %v5289
    %v5380 = vpack.c.b16 %v5296, %v5293
    %v5381 = vpack.c.b16 %v5297, %v5294
    %v5382 = vpack.c.b16 %v5298, %v5295
    %v5383 = vpack.c.b16 %v5302, %v5299
    %v5384 = vpack.c.b16 %v5303, %v5300
    %v5385 = vpack.c.b16 %v5304, %v5301
    %v5386 = vpack.c.b16 %v5308, %v5305
    %v5387 = vpack.c.b16 %v5309, %v5306
    %v5388 = vpack.c.b16 %v5310, %v5307
    %v5389 = vpack.c.b16 %v5314, %v5311
    %v5390 = vpack.c.b16 %v5315, %v5312
    %v5391 = vpack.c.b16 %v5316, %v5313
    %v5392 = vpack.c.b16 %v5320, %v5317
    %v5393 = vpack.c.b16 %v5321, %v5318
    %v5394 = vpack.c.b16 %v5322, %v5319
    %5467 = vmatpush.bf16.msra.mxu0 %v5344
    %5468 = vmatpush.bf16.msra.mxu0 %v5341
    %5469 = vmatpush.bf16.msra.mxu0 %v5338
    %5470 = vmatpush.bf16.msra.mxu0 %v5335
    %5471 = vmatpush.bf16.msra.mxu0 %v5332
    %5472 = vmatpush.bf16.msra.mxu0 %v5329
    %5473 = vmatpush.bf16.msra.mxu0 %v5326
    %5474 = vmatpush.bf16.msra.mxu0 %v5323
    %5475 = vmatmul.bf16.gmra.mxu0 %v4981
    %v5476 = vpop.f32.mrf.mxu0
    %v5477 = vadd.f32 0.0, %v5476
    %v5478 = vpop.f32.mrf.mxu0
    %v5479 = vadd.f32 0.0, %v5478
    %5480 = vmatmul.bf16.gmra.mxu0 %v4984
    %v5481 = vpop.f32.mrf.mxu0
    %v5482 = vadd.f32 0.0, %v5481
    %v5483 = vpop.f32.mrf.mxu0
    %v5484 = vadd.f32 0.0, %v5483
    %5485 = vdwg.mxu0
    %5486 = vmatpush.bf16.msra.mxu0 %v5368
    %5487 = vmatpush.bf16.msra.mxu0 %v5365
    %5488 = vmatpush.bf16.msra.mxu0 %v5362
    %5489 = vmatpush.bf16.msra.mxu0 %v5359
    %5490 = vmatpush.bf16.msra.mxu0 %v5356
    %5491 = vmatpush.bf16.msra.mxu0 %v5353
    %5492 = vmatpush.bf16.msra.mxu0 %v5350
    %5493 = vmatpush.bf16.msra.mxu0 %v5347
    %5494 = vmatmul.bf16.gmra.mxu0 %v4982
    %v5495 = vpop.f32.mrf.mxu0
    %v5496 = vadd.f32 %v5477, %v5495
    %v5497 = vpop.f32.mrf.mxu0
    %v5498 = vadd.f32 %v5479, %v5497
    %5499 = vmatmul.bf16.gmra.mxu0 %v4985
    %v5500 = vpop.f32.mrf.mxu0
    %v5501 = vadd.f32 %v5482, %v5500
    %v5502 = vpop.f32.mrf.mxu0
    %v5503 = vadd.f32 %v5484, %v5502
    %5504 = vdwg.mxu0
    %5505 = vmatpush.bf16.msra.mxu0 %v5392
    %5506 = vmatpush.bf16.msra.mxu0 %v5389
    %5507 = vmatpush.bf16.msra.mxu0 %v5386
    %5508 = vmatpush.bf16.msra.mxu0 %v5383
    %5509 = vmatpush.bf16.msra.mxu0 %v5380
    %5510 = vmatpush.bf16.msra.mxu0 %v5377
    %5511 = vmatpush.bf16.msra.mxu0 %v5374
    %5512 = vmatpush.bf16.msra.mxu0 %v5371
    %5513 = vmatmul.bf16.gmra.mxu0 %v4983
    %v5514 = vpop.f32.mrf.mxu0
    %v5515 = vadd.f32 %v5496, %v5514
    %v5516 = vpop.f32.mrf.mxu0
    %v5517 = vadd.f32 %v5498, %v5516
    %5518 = vmatmul.bf16.gmra.mxu0 %v4986
    %v5519 = vpop.f32.mrf.mxu0
    %v5520 = vadd.f32 %v5501, %v5519
    %v5521 = vpop.f32.mrf.mxu0
    %v5522 = vadd.f32 %v5503, %v5521
    %5523 = vdwg.mxu0
    %5524 = vmatpush.bf16.msra.mxu0 %v5345
    %5525 = vmatpush.bf16.msra.mxu0 %v5342
    %5526 = vmatpush.bf16.msra.mxu0 %v5339
    %5527 = vmatpush.bf16.msra.mxu0 %v5336
    %5528 = vmatpush.bf16.msra.mxu0 %v5333
    %5529 = vmatpush.bf16.msra.mxu0 %v5330
    %5530 = vmatpush.bf16.msra.mxu0 %v5327
    %5531 = vmatpush.bf16.msra.mxu0 %v5324
    %5532 = vmatmul.bf16.gmra.mxu0 %v4981
    %v5533 = vpop.f32.mrf.mxu0
    %v5534 = vadd.f32 0.0, %v5533
    %v5535 = vpop.f32.mrf.mxu0
    %v5536 = vadd.f32 0.0, %v5535
    %5537 = vmatmul.bf16.gmra.mxu0 %v4984
    %v5538 = vpop.f32.mrf.mxu0
    %v5539 = vadd.f32 0.0, %v5538
    %v5540 = vpop.f32.mrf.mxu0
    %v5541 = vadd.f32 0.0, %v5540
    %5542 = vdwg.mxu0
    %5543 = vmatpush.bf16.msra.mxu0 %v5369
    %5544 = vmatpush.bf16.msra.mxu0 %v5366
    %5545 = vmatpush.bf16.msra.mxu0 %v5363
    %5546 = vmatpush.bf16.msra.mxu0 %v5360
    %5547 = vmatpush.bf16.msra.mxu0 %v5357
    %5548 = vmatpush.bf16.msra.mxu0 %v5354
    %5549 = vmatpush.bf16.msra.mxu0 %v5351
    %5550 = vmatpush.bf16.msra.mxu0 %v5348
    %5551 = vmatmul.bf16.gmra.mxu0 %v4982
    %v5552 = vpop.f32.mrf.mxu0
    %v5553 = vadd.f32 %v5534, %v5552
    %v5554 = vpop.f32.mrf.mxu0
    %v5555 = vadd.f32 %v5536, %v5554
    %5556 = vmatmul.bf16.gmra.mxu0 %v4985
    %v5557 = vpop.f32.mrf.mxu0
    %v5558 = vadd.f32 %v5539, %v5557
    %v5559 = vpop.f32.mrf.mxu0
    %v5560 = vadd.f32 %v5541, %v5559
    %5561 = vdwg.mxu0
    %5562 = vmatpush.bf16.msra.mxu0 %v5393
    %5563 = vmatpush.bf16.msra.mxu0 %v5390
    %5564 = vmatpush.bf16.msra.mxu0 %v5387
    %5565 = vmatpush.bf16.msra.mxu0 %v5384
    %5566 = vmatpush.bf16.msra.mxu0 %v5381
    %5567 = vmatpush.bf16.msra.mxu0 %v5378
    %5568 = vmatpush.bf16.msra.mxu0 %v5375
    %5569 = vmatpush.bf16.msra.mxu0 %v5372
    %5570 = vmatmul.bf16.gmra.mxu0 %v4983
    %v5571 = vpop.f32.mrf.mxu0
    %v5572 = vadd.f32 %v5553, %v5571
    %v5573 = vpop.f32.mrf.mxu0
    %v5574 = vadd.f32 %v5555, %v5573
    %5575 = vmatmul.bf16.gmra.mxu0 %v4986
    %v5576 = vpop.f32.mrf.mxu0
    %v5577 = vadd.f32 %v5558, %v5576
    %v5578 = vpop.f32.mrf.mxu0
    %v5579 = vadd.f32 %v5560, %v5578
    %5580 = vdwg.mxu0
    %5581 = vmatpush.bf16.msra.mxu0 %v5346
    %5582 = vmatpush.bf16.msra.mxu0 %v5343
    %5583 = vmatpush.bf16.msra.mxu0 %v5340
    %5584 = vmatpush.bf16.msra.mxu0 %v5337
    %5585 = vmatpush.bf16.msra.mxu0 %v5334
    %5586 = vmatpush.bf16.msra.mxu0 %v5331
    %5587 = vmatpush.bf16.msra.mxu0 %v5328
    %5588 = vmatpush.bf16.msra.mxu0 %v5325
    %5589 = vmatmul.bf16.gmra.mxu0 %v4981
    %v5590 = vpop.f32.mrf.mxu0
    %v5591 = vadd.f32 0.0, %v5590
    %v5592 = vpop.f32.mrf.mxu0
    %v5593 = vadd.f32 0.0, %v5592
    %5594 = vmatmul.bf16.gmra.mxu0 %v4984
    %v5595 = vpop.f32.mrf.mxu0
    %v5596 = vadd.f32 0.0, %v5595
    %v5597 = vpop.f32.mrf.mxu0
    %v5598 = vadd.f32 0.0, %v5597
    %5599 = vdwg.mxu0
    %5600 = vmatpush.bf16.msra.mxu0 %v5370
    %5601 = vmatpush.bf16.msra.mxu0 %v5367
    %5602 = vmatpush.bf16.msra.mxu0 %v5364
    %5603 = vmatpush.bf16.msra.mxu0 %v5361
    %5604 = vmatpush.bf16.msra.mxu0 %v5358
    %5605 = vmatpush.bf16.msra.mxu0 %v5355
    %5606 = vmatpush.bf16.msra.mxu0 %v5352
    %5607 = vmatpush.bf16.msra.mxu0 %v5349
    %5608 = vmatmul.bf16.gmra.mxu0 %v4982
    %v5609 = vpop.f32.mrf.mxu0
    %v5610 = vadd.f32 %v5591, %v5609
    %v5611 = vpop.f32.mrf.mxu0
    %v5612 = vadd.f32 %v5593, %v5611
    %5613 = vmatmul.bf16.gmra.mxu0 %v4985
    %v5614 = vpop.f32.mrf.mxu0
    %v5615 = vadd.f32 %v5596, %v5614
    %v5616 = vpop.f32.mrf.mxu0
    %v5617 = vadd.f32 %v5598, %v5616
    %5618 = vdwg.mxu0
    %5619 = vmatpush.bf16.msra.mxu0 %v5394
    %5620 = vmatpush.bf16.msra.mxu0 %v5391
    %5621 = vmatpush.bf16.msra.mxu0 %v5388
    %5622 = vmatpush.bf16.msra.mxu0 %v5385
    %5623 = vmatpush.bf16.msra.mxu0 %v5382
    %5624 = vmatpush.bf16.msra.mxu0 %v5379
    %5625 = vmatpush.bf16.msra.mxu0 %v5376
    %5626 = vmatpush.bf16.msra.mxu0 %v5373
    %5627 = vmatmul.bf16.gmra.mxu0 %v4983
    %v5628 = vpop.f32.mrf.mxu0
    %v5629 = vadd.f32 %v5610, %v5628
    %v5630 = vpop.f32.mrf.mxu0
    %v5631 = vadd.f32 %v5612, %v5630
    %5632 = vmatmul.bf16.gmra.mxu0 %v4986
    %v5633 = vpop.f32.mrf.mxu0
    %v5634 = vadd.f32 %v5615, %v5633
    %v5635 = vpop.f32.mrf.mxu0
    %v5636 = vadd.f32 %v5617, %v5635
    %5637 = vdwg.mxu0
    %v5638 = vld [vmem:[%s10] sm:$0xff]
    %v5639 = vld [vmem:[%s10 + $0x8] sm:$0xff]
    %v5640 = vld [vmem:[%s10 + $0x10] sm:$0xff]
    %v5641 = vld [vmem:[%s10 + $0x18] sm:$0xff]
    %v5642 = vld [vmem:[%s10 + $0x20] sm:$0xff]
    %v5643 = vld [vmem:[%s10 + $0x28] sm:$0xff]
    %v5644 = vld [vmem:[%s10 + $0x30] sm:$0xff]
    %v5645 = vld [vmem:[%s10 + $0x38] sm:$0xff]
    %v5646 = vld [vmem:[#allocation2 + $0xc] sm:$0xff]
    %v5647 = vld [vmem:[#allocation2 + $0x14] sm:$0xf]
    %v5648 = vld [vmem:[#allocation2 + $0x3c] sm:$0xff]
    %v5649 = vld [vmem:[#allocation2 + $0x44] sm:$0xf]
    %v5650 = vld [vmem:[#allocation2 + $0x6c] sm:$0xff]
    %v5651 = vld [vmem:[#allocation2 + $0x74] sm:$0xf]
    %v5652 = vld [vmem:[#allocation2 + $0x9c] sm:$0xff]
    %v5653 = vld [vmem:[#allocation2 + $0xa4] sm:$0xf]
    %v5654 = vld [vmem:[#allocation2 + $0xcc] sm:$0xff]
    %v5655 = vld [vmem:[#allocation2 + $0xd4] sm:$0xf]
    %v5656 = vld [vmem:[#allocation2 + $0xfc] sm:$0xff]
    %v5657 = vld [vmem:[#allocation2 + $0x104] sm:$0xf]
    %v5658 = vld [vmem:[#allocation2 + $0x12c] sm:$0xff]
    %v5659 = vld [vmem:[#allocation2 + $0x134] sm:$0xf]
    %v5660 = vld [vmem:[#allocation2 + $0x15c] sm:$0xff]
    %v5661 = vld [vmem:[#allocation2 + $0x164] sm:$0xf]
    %v5662 = vld [vmem:[#allocation2 + $0x18c] sm:$0xff]
    %v5663 = vld [vmem:[#allocation2 + $0x194] sm:$0xf]
    %v5664 = vld [vmem:[#allocation2 + $0x1bc] sm:$0xff]
    %v5665 = vld [vmem:[#allocation2 + $0x1c4] sm:$0xf]
    %v5666 = vld [vmem:[#allocation2 + $0x1ec] sm:$0xff]
    %v5667 = vld [vmem:[#allocation2 + $0x1f4] sm:$0xf]
    %v5668 = vld [vmem:[#allocation2 + $0x21c] sm:$0xff]
    %v5669 = vld [vmem:[#allocation2 + $0x224] sm:$0xf]
    %v5670 = vld [vmem:[#allocation2 + $0x24c] sm:$0xff]
    %v5671 = vld [vmem:[#allocation2 + $0x254] sm:$0xf]
    %v5672 = vld [vmem:[#allocation2 + $0x27c] sm:$0xff]
    %v5673 = vld [vmem:[#allocation2 + $0x284] sm:$0xf]
    %v5674 = vld [vmem:[#allocation2 + $0x2ac] sm:$0xff]
    %v5675 = vld [vmem:[#allocation2 + $0x2b4] sm:$0xf]
    %v5676 = vld [vmem:[#allocation2 + $0x2dc] sm:$0xff]
    %v5677 = vld [vmem:[#allocation2 + $0x2e4] sm:$0xf]
    %v5678 = vld [vmem:[#allocation2 + $0x30c] sm:$0xff]
    %v5679 = vld [vmem:[#allocation2 + $0x314] sm:$0xf]
    %v5680 = vld [vmem:[#allocation2 + $0x33c] sm:$0xff]
    %v5681 = vld [vmem:[#allocation2 + $0x344] sm:$0xf]
    %v5682 = vld [vmem:[#allocation2 + $0x36c] sm:$0xff]
    %v5683 = vld [vmem:[#allocation2 + $0x374] sm:$0xf]
    %v5684 = vld [vmem:[#allocation2 + $0x39c] sm:$0xff]
    %v5685 = vld [vmem:[#allocation2 + $0x3a4] sm:$0xf]
    %v5686 = vld [vmem:[#allocation2 + $0x3cc] sm:$0xff]
    %v5687 = vld [vmem:[#allocation2 + $0x3d4] sm:$0xf]
    %v5688 = vld [vmem:[#allocation2 + $0x3fc] sm:$0xff]
    %v5689 = vld [vmem:[#allocation2 + $0x404] sm:$0xf]
    %v5690 = vld [vmem:[#allocation2 + $0x42c] sm:$0xff]
    %v5691 = vld [vmem:[#allocation2 + $0x434] sm:$0xf]
    %v5692 = vld [vmem:[#allocation2 + $0x45c] sm:$0xff]
    %v5693 = vld [vmem:[#allocation2 + $0x464] sm:$0xf]
    %v5694 = vld [vmem:[#allocation2 + $0x48c] sm:$0xff]
    %v5695 = vld [vmem:[#allocation2 + $0x494] sm:$0xf]
    %v5696 = vld [vmem:[#allocation2 + $0x4bc] sm:$0xff]
    %v5697 = vld [vmem:[#allocation2 + $0x4c4] sm:$0xf]
    %v5698 = vld [vmem:[#allocation2 + $0x4ec] sm:$0xff]
    %v5699 = vld [vmem:[#allocation2 + $0x4f4] sm:$0xf]
    %v5700 = vld [vmem:[#allocation2 + $0x51c] sm:$0xff]
    %v5701 = vld [vmem:[#allocation2 + $0x524] sm:$0xf]
    %v5702 = vld [vmem:[#allocation2 + $0x54c] sm:$0xff]
    %v5703 = vld [vmem:[#allocation2 + $0x554] sm:$0xf]
    %v5704 = vld [vmem:[#allocation2 + $0x57c] sm:$0xff]
    %v5705 = vld [vmem:[#allocation2 + $0x584] sm:$0xf]
    %v5706 = vld [vmem:[#allocation2 + $0x5ac] sm:$0xff]
    %v5707 = vld [vmem:[#allocation2 + $0x5b4] sm:$0xf]
    %v5708 = vld [vmem:[#allocation2 + $0x5dc] sm:$0xff]
    %v5709 = vld [vmem:[#allocation2 + $0x5e4] sm:$0xf]
    %v5710 = vld [vmem:[#allocation2 + $0x60c] sm:$0xff]
    %v5711 = vld [vmem:[#allocation2 + $0x614] sm:$0xf]
    %v5712 = vld [vmem:[#allocation2 + $0x63c] sm:$0xff]
    %v5713 = vld [vmem:[#allocation2 + $0x644] sm:$0xf]
    %v5714 = vld [vmem:[#allocation2 + $0x66c] sm:$0xff]
    %v5715 = vld [vmem:[#allocation2 + $0x674] sm:$0xf]
    %v5716 = vld [vmem:[#allocation2 + $0x69c] sm:$0xff]
    %v5717 = vld [vmem:[#allocation2 + $0x6a4] sm:$0xf]
    %v5718 = vld [vmem:[#allocation2 + $0x6cc] sm:$0xff]
    %v5719 = vld [vmem:[#allocation2 + $0x6d4] sm:$0xf]
    %v5720 = vld [vmem:[#allocation2 + $0x6fc] sm:$0xff]
    %v5721 = vld [vmem:[#allocation2 + $0x704] sm:$0xf]
    %v5722 = vld [vmem:[#allocation2 + $0x72c] sm:$0xff]
    %v5723 = vld [vmem:[#allocation2 + $0x734] sm:$0xf]
    %v5724 = vld [vmem:[#allocation2 + $0x75c] sm:$0xff]
    %v5725 = vld [vmem:[#allocation2 + $0x764] sm:$0xf]
    %v5726 = vld [vmem:[#allocation2 + $0x78c] sm:$0xff]
    %v5727 = vld [vmem:[#allocation2 + $0x794] sm:$0xf]
    %v5728 = vld [vmem:[#allocation2 + $0x7bc] sm:$0xff]
    %v5729 = vld [vmem:[#allocation2 + $0x7c4] sm:$0xf]
    %v5730 = vld [vmem:[#allocation2 + $0x7ec] sm:$0xff]
    %v5731 = vld [vmem:[#allocation2 + $0x7f4] sm:$0xf]
    %v5732 = vld [vmem:[#allocation2 + $0x81c] sm:$0xff]
    %v5733 = vld [vmem:[#allocation2 + $0x824] sm:$0xf]
    %v5734 = vld [vmem:[#allocation2 + $0x84c] sm:$0xff]
    %v5735 = vld [vmem:[#allocation2 + $0x854] sm:$0xf]
    %v5736 = vld [vmem:[#allocation2 + $0x87c] sm:$0xff]
    %v5737 = vld [vmem:[#allocation2 + $0x884] sm:$0xf]
    %v5738 = vld [vmem:[#allocation2 + $0x8ac] sm:$0xff]
    %v5739 = vld [vmem:[#allocation2 + $0x8b4] sm:$0xf]
    %v5740 = vld [vmem:[#allocation2 + $0x8dc] sm:$0xff]
    %v5741 = vld [vmem:[#allocation2 + $0x8e4] sm:$0xf]
    %v5838 = vunpack.c.l.b16 %v5646
    %v5839 = vunpack.c.h.b16 %v5646
    %v5840 = vunpack.c.l.b16 %v5647
    %v5841 = vunpack.c.l.b16 %v5648
    %v5842 = vunpack.c.h.b16 %v5648
    %v5843 = vunpack.c.l.b16 %v5649
    %v5844 = vunpack.c.l.b16 %v5650
    %v5845 = vunpack.c.h.b16 %v5650
    %v5846 = vunpack.c.l.b16 %v5651
    %v5847 = vunpack.c.l.b16 %v5652
    %v5848 = vunpack.c.h.b16 %v5652
    %v5849 = vunpack.c.l.b16 %v5653
    %v5850 = vunpack.c.l.b16 %v5654
    %v5851 = vunpack.c.h.b16 %v5654
    %v5852 = vunpack.c.l.b16 %v5655
    %v5853 = vunpack.c.l.b16 %v5656
    %v5854 = vunpack.c.h.b16 %v5656
    %v5855 = vunpack.c.l.b16 %v5657
    %v5856 = vunpack.c.l.b16 %v5658
    %v5857 = vunpack.c.h.b16 %v5658
    %v5858 = vunpack.c.l.b16 %v5659
    %v5859 = vunpack.c.l.b16 %v5660
    %v5860 = vunpack.c.h.b16 %v5660
    %v5861 = vunpack.c.l.b16 %v5661
    %v5862 = vunpack.c.l.b16 %v5662
    %v5863 = vunpack.c.h.b16 %v5662
    %v5864 = vunpack.c.l.b16 %v5663
    %v5865 = vunpack.c.l.b16 %v5664
    %v5866 = vunpack.c.h.b16 %v5664
    %v5867 = vunpack.c.l.b16 %v5665
    %v5868 = vunpack.c.l.b16 %v5666
    %v5869 = vunpack.c.h.b16 %v5666
    %v5870 = vunpack.c.l.b16 %v5667
    %v5871 = vunpack.c.l.b16 %v5668
    %v5872 = vunpack.c.h.b16 %v5668
    %v5873 = vunpack.c.l.b16 %v5669
    %v5874 = vunpack.c.l.b16 %v5670
    %v5875 = vunpack.c.h.b16 %v5670
    %v5876 = vunpack.c.l.b16 %v5671
    %v5877 = vunpack.c.l.b16 %v5672
    %v5878 = vunpack.c.h.b16 %v5672
    %v5879 = vunpack.c.l.b16 %v5673
    %v5880 = vunpack.c.l.b16 %v5674
    %v5881 = vunpack.c.h.b16 %v5674
    %v5882 = vunpack.c.l.b16 %v5675
    %v5883 = vunpack.c.l.b16 %v5676
    %v5884 = vunpack.c.h.b16 %v5676
    %v5885 = vunpack.c.l.b16 %v5677
    %v5886 = vunpack.c.l.b16 %v5678
    %v5887 = vunpack.c.h.b16 %v5678
    %v5888 = vunpack.c.l.b16 %v5679
    %v5889 = vunpack.c.l.b16 %v5680
    %v5890 = vunpack.c.h.b16 %v5680
    %v5891 = vunpack.c.l.b16 %v5681
    %v5892 = vunpack.c.l.b16 %v5682
    %v5893 = vunpack.c.h.b16 %v5682
    %v5894 = vunpack.c.l.b16 %v5683
    %v5895 = vunpack.c.l.b16 %v5684
    %v5896 = vunpack.c.h.b16 %v5684
    %v5897 = vunpack.c.l.b16 %v5685
    %v5898 = vunpack.c.l.b16 %v5686
    %v5899 = vunpack.c.h.b16 %v5686
    %v5900 = vunpack.c.l.b16 %v5687
    %v5901 = vunpack.c.l.b16 %v5688
    %v5902 = vunpack.c.h.b16 %v5688
    %v5903 = vunpack.c.l.b16 %v5689
    %v5904 = vunpack.c.l.b16 %v5690
    %v5905 = vunpack.c.h.b16 %v5690
    %v5906 = vunpack.c.l.b16 %v5691
    %v5907 = vunpack.c.l.b16 %v5692
    %v5908 = vunpack.c.h.b16 %v5692
    %v5909 = vunpack.c.l.b16 %v5693
    %v5910 = vunpack.c.l.b16 %v5694
    %v5911 = vunpack.c.h.b16 %v5694
    %v5912 = vunpack.c.l.b16 %v5695
    %v5913 = vunpack.c.l.b16 %v5696
    %v5914 = vunpack.c.h.b16 %v5696
    %v5915 = vunpack.c.l.b16 %v5697
    %v5916 = vunpack.c.l.b16 %v5698
    %v5917 = vunpack.c.h.b16 %v5698
    %v5918 = vunpack.c.l.b16 %v5699
    %v5919 = vunpack.c.l.b16 %v5700
    %v5920 = vunpack.c.h.b16 %v5700
    %v5921 = vunpack.c.l.b16 %v5701
    %v5922 = vunpack.c.l.b16 %v5702
    %v5923 = vunpack.c.h.b16 %v5702
    %v5924 = vunpack.c.l.b16 %v5703
    %v5925 = vunpack.c.l.b16 %v5704
    %v5926 = vunpack.c.h.b16 %v5704
    %v5927 = vunpack.c.l.b16 %v5705
    %v5928 = vunpack.c.l.b16 %v5706
    %v5929 = vunpack.c.h.b16 %v5706
    %v5930 = vunpack.c.l.b16 %v5707
    %v5931 = vunpack.c.l.b16 %v5708
    %v5932 = vunpack.c.h.b16 %v5708
    %v5933 = vunpack.c.l.b16 %v5709
    %v5934 = vunpack.c.l.b16 %v5710
    %v5935 = vunpack.c.h.b16 %v5710
    %v5936 = vunpack.c.l.b16 %v5711
    %v5937 = vunpack.c.l.b16 %v5712
    %v5938 = vunpack.c.h.b16 %v5712
    %v5939 = vunpack.c.l.b16 %v5713
    %v5940 = vunpack.c.l.b16 %v5714
    %v5941 = vunpack.c.h.b16 %v5714
    %v5942 = vunpack.c.l.b16 %v5715
    %v5943 = vunpack.c.l.b16 %v5716
    %v5944 = vunpack.c.h.b16 %v5716
    %v5945 = vunpack.c.l.b16 %v5717
    %v5946 = vunpack.c.l.b16 %v5718
    %v5947 = vunpack.c.h.b16 %v5718
    %v5948 = vunpack.c.l.b16 %v5719
    %v5949 = vunpack.c.l.b16 %v5720
    %v5950 = vunpack.c.h.b16 %v5720
    %v5951 = vunpack.c.l.b16 %v5721
    %v5952 = vunpack.c.l.b16 %v5722
    %v5953 = vunpack.c.h.b16 %v5722
    %v5954 = vunpack.c.l.b16 %v5723
    %v5955 = vunpack.c.l.b16 %v5724
    %v5956 = vunpack.c.h.b16 %v5724
    %v5957 = vunpack.c.l.b16 %v5725
    %v5958 = vunpack.c.l.b16 %v5726
    %v5959 = vunpack.c.h.b16 %v5726
    %v5960 = vunpack.c.l.b16 %v5727
    %v5961 = vunpack.c.l.b16 %v5728
    %v5962 = vunpack.c.h.b16 %v5728
    %v5963 = vunpack.c.l.b16 %v5729
    %v5964 = vunpack.c.l.b16 %v5730
    %v5965 = vunpack.c.h.b16 %v5730
    %v5966 = vunpack.c.l.b16 %v5731
    %v5967 = vunpack.c.l.b16 %v5732
    %v5968 = vunpack.c.h.b16 %v5732
    %v5969 = vunpack.c.l.b16 %v5733
    %v5970 = vunpack.c.l.b16 %v5734
    %v5971 = vunpack.c.h.b16 %v5734
    %v5972 = vunpack.c.l.b16 %v5735
    %v5973 = vunpack.c.l.b16 %v5736
    %v5974 = vunpack.c.h.b16 %v5736
    %v5975 = vunpack.c.l.b16 %v5737
    %v5976 = vunpack.c.l.b16 %v5738
    %v5977 = vunpack.c.h.b16 %v5738
    %v5978 = vunpack.c.l.b16 %v5739
    %v5979 = vunpack.c.l.b16 %v5740
    %v5980 = vunpack.c.h.b16 %v5740
    %v5981 = vunpack.c.l.b16 %v5741
    %v5982 = vpack.c.b16 %v5841, %v5838
    %v5983 = vpack.c.b16 %v5842, %v5839
    %v5984 = vpack.c.b16 %v5843, %v5840
    %v5985 = vpack.c.b16 %v5847, %v5844
    %v5986 = vpack.c.b16 %v5848, %v5845
    %v5987 = vpack.c.b16 %v5849, %v5846
    %v5988 = vpack.c.b16 %v5853, %v5850
    %v5989 = vpack.c.b16 %v5854, %v5851
    %v5990 = vpack.c.b16 %v5855, %v5852
    %v5991 = vpack.c.b16 %v5859, %v5856
    %v5992 = vpack.c.b16 %v5860, %v5857
    %v5993 = vpack.c.b16 %v5861, %v5858
    %v5994 = vpack.c.b16 %v5865, %v5862
    %v5995 = vpack.c.b16 %v5866, %v5863
    %v5996 = vpack.c.b16 %v5867, %v5864
    %v5997 = vpack.c.b16 %v5871, %v5868
    %v5998 = vpack.c.b16 %v5872, %v5869
    %v5999 = vpack.c.b16 %v5873, %v5870
    %v6000 = vpack.c.b16 %v5877, %v5874
    %v6001 = vpack.c.b16 %v5878, %v5875
    %v6002 = vpack.c.b16 %v5879, %v5876
    %v6003 = vpack.c.b16 %v5883, %v5880
    %v6004 = vpack.c.b16 %v5884, %v5881
    %v6005 = vpack.c.b16 %v5885, %v5882
    %v6006 = vpack.c.b16 %v5889, %v5886
    %v6007 = vpack.c.b16 %v5890, %v5887
    %v6008 = vpack.c.b16 %v5891, %v5888
    %v6009 = vpack.c.b16 %v5895, %v5892
    %v6010 = vpack.c.b16 %v5896, %v5893
    %v6011 = vpack.c.b16 %v5897, %v5894
    %v6012 = vpack.c.b16 %v5901, %v5898
    %v6013 = vpack.c.b16 %v5902, %v5899
    %v6014 = vpack.c.b16 %v5903, %v5900
    %v6015 = vpack.c.b16 %v5907, %v5904
    %v6016 = vpack.c.b16 %v5908, %v5905
    %v6017 = vpack.c.b16 %v5909, %v5906
    %v6018 = vpack.c.b16 %v5913, %v5910
    %v6019 = vpack.c.b16 %v5914, %v5911
    %v6020 = vpack.c.b16 %v5915, %v5912
    %v6021 = vpack.c.b16 %v5919, %v5916
    %v6022 = vpack.c.b16 %v5920, %v5917
    %v6023 = vpack.c.b16 %v5921, %v5918
    %v6024 = vpack.c.b16 %v5925, %v5922
    %v6025 = vpack.c.b16 %v5926, %v5923
    %v6026 = vpack.c.b16 %v5927, %v5924
    %v6027 = vpack.c.b16 %v5931, %v5928
    %v6028 = vpack.c.b16 %v5932, %v5929
    %v6029 = vpack.c.b16 %v5933, %v5930
    %v6030 = vpack.c.b16 %v5937, %v5934
    %v6031 = vpack.c.b16 %v5938, %v5935
    %v6032 = vpack.c.b16 %v5939, %v5936
    %v6033 = vpack.c.b16 %v5943, %v5940
    %v6034 = vpack.c.b16 %v5944, %v5941
    %v6035 = vpack.c.b16 %v5945, %v5942
    %v6036 = vpack.c.b16 %v5949, %v5946
    %v6037 = vpack.c.b16 %v5950, %v5947
    %v6038 = vpack.c.b16 %v5951, %v5948
    %v6039 = vpack.c.b16 %v5955, %v5952
    %v6040 = vpack.c.b16 %v5956, %v5953
    %v6041 = vpack.c.b16 %v5957, %v5954
    %v6042 = vpack.c.b16 %v5961, %v5958
    %v6043 = vpack.c.b16 %v5962, %v5959
    %v6044 = vpack.c.b16 %v5963, %v5960
    %v6045 = vpack.c.b16 %v5967, %v5964
    %v6046 = vpack.c.b16 %v5968, %v5965
    %v6047 = vpack.c.b16 %v5969, %v5966
    %v6048 = vpack.c.b16 %v5973, %v5970
    %v6049 = vpack.c.b16 %v5974, %v5971
    %v6050 = vpack.c.b16 %v5975, %v5972
    %v6051 = vpack.c.b16 %v5979, %v5976
    %v6052 = vpack.c.b16 %v5980, %v5977
    %v6053 = vpack.c.b16 %v5981, %v5978
    %6126 = vmatpush.bf16.msra.mxu0 %v6003
    %6127 = vmatpush.bf16.msra.mxu0 %v6000
    %6128 = vmatpush.bf16.msra.mxu0 %v5997
    %6129 = vmatpush.bf16.msra.mxu0 %v5994
    %6130 = vmatpush.bf16.msra.mxu0 %v5991
    %6131 = vmatpush.bf16.msra.mxu0 %v5988
    %6132 = vmatpush.bf16.msra.mxu0 %v5985
    %6133 = vmatpush.bf16.msra.mxu0 %v5982
    %6134 = vmatmul.bf16.gmra.mxu0 %v4981
    %v6135 = vpop.f32.mrf.mxu0
    %v6136 = vadd.f32 0.0, %v6135
    %v6137 = vpop.f32.mrf.mxu0
    %v6138 = vadd.f32 0.0, %v6137
    %6139 = vmatmul.bf16.gmra.mxu0 %v4984
    %v6140 = vpop.f32.mrf.mxu0
    %v6141 = vadd.f32 0.0, %v6140
    %v6142 = vpop.f32.mrf.mxu0
    %v6143 = vadd.f32 0.0, %v6142
    %6144 = vdwg.mxu0
    %6145 = vmatpush.bf16.msra.mxu0 %v6027
    %6146 = vmatpush.bf16.msra.mxu0 %v6024
    %6147 = vmatpush.bf16.msra.mxu0 %v6021
    %6148 = vmatpush.bf16.msra.mxu0 %v6018
    %6149 = vmatpush.bf16.msra.mxu0 %v6015
    %6150 = vmatpush.bf16.msra.mxu0 %v6012
    %6151 = vmatpush.bf16.msra.mxu0 %v6009
    %6152 = vmatpush.bf16.msra.mxu0 %v6006
    %6153 = vmatmul.bf16.gmra.mxu0 %v4982
    %v6154 = vpop.f32.mrf.mxu0
    %v6155 = vadd.f32 %v6136, %v6154
    %v6156 = vpop.f32.mrf.mxu0
    %v6157 = vadd.f32 %v6138, %v6156
    %6158 = vmatmul.bf16.gmra.mxu0 %v4985
    %v6159 = vpop.f32.mrf.mxu0
    %v6160 = vadd.f32 %v6141, %v6159
    %v6161 = vpop.f32.mrf.mxu0
    %v6162 = vadd.f32 %v6143, %v6161
    %6163 = vdwg.mxu0
    %6164 = vmatpush.bf16.msra.mxu0 %v6051
    %6165 = vmatpush.bf16.msra.mxu0 %v6048
    %6166 = vmatpush.bf16.msra.mxu0 %v6045
    %6167 = vmatpush.bf16.msra.mxu0 %v6042
    %6168 = vmatpush.bf16.msra.mxu0 %v6039
    %6169 = vmatpush.bf16.msra.mxu0 %v6036
    %6170 = vmatpush.bf16.msra.mxu0 %v6033
    %6171 = vmatpush.bf16.msra.mxu0 %v6030
    %6172 = vmatmul.bf16.gmra.mxu0 %v4983
    %v6173 = vpop.f32.mrf.mxu0
    %v6174 = vadd.f32 %v6155, %v6173
    %v6175 = vpop.f32.mrf.mxu0
    %v6176 = vadd.f32 %v6157, %v6175
    %6177 = vmatmul.bf16.gmra.mxu0 %v4986
    %v6178 = vpop.f32.mrf.mxu0
    %v6179 = vadd.f32 %v6160, %v6178
    %v6180 = vpop.f32.mrf.mxu0
    %v6181 = vadd.f32 %v6162, %v6180
    %6182 = vdwg.mxu0
    %6183 = vmatpush.bf16.msra.mxu0 %v6004
    %6184 = vmatpush.bf16.msra.mxu0 %v6001
    %6185 = vmatpush.bf16.msra.mxu0 %v5998
    %6186 = vmatpush.bf16.msra.mxu0 %v5995
    %6187 = vmatpush.bf16.msra.mxu0 %v5992
    %6188 = vmatpush.bf16.msra.mxu0 %v5989
    %6189 = vmatpush.bf16.msra.mxu0 %v5986
    %6190 = vmatpush.bf16.msra.mxu0 %v5983
    %6191 = vmatmul.bf16.gmra.mxu0 %v4981
    %v6192 = vpop.f32.mrf.mxu0
    %v6193 = vadd.f32 0.0, %v6192
    %v6194 = vpop.f32.mrf.mxu0
    %v6195 = vadd.f32 0.0, %v6194
    %6196 = vmatmul.bf16.gmra.mxu0 %v4984
    %v6197 = vpop.f32.mrf.mxu0
    %v6198 = vadd.f32 0.0, %v6197
    %v6199 = vpop.f32.mrf.mxu0
    %v6200 = vadd.f32 0.0, %v6199
    %6201 = vdwg.mxu0
    %6202 = vmatpush.bf16.msra.mxu0 %v6028
    %6203 = vmatpush.bf16.msra.mxu0 %v6025
    %6204 = vmatpush.bf16.msra.mxu0 %v6022
    %6205 = vmatpush.bf16.msra.mxu0 %v6019
    %6206 = vmatpush.bf16.msra.mxu0 %v6016
    %6207 = vmatpush.bf16.msra.mxu0 %v6013
    %6208 = vmatpush.bf16.msra.mxu0 %v6010
    %6209 = vmatpush.bf16.msra.mxu0 %v6007
    %6210 = vmatmul.bf16.gmra.mxu0 %v4982
    %v6211 = vpop.f32.mrf.mxu0
    %v6212 = vadd.f32 %v6193, %v6211
    %v6213 = vpop.f32.mrf.mxu0
    %v6214 = vadd.f32 %v6195, %v6213
    %6215 = vmatmul.bf16.gmra.mxu0 %v4985
    %v6216 = vpop.f32.mrf.mxu0
    %v6217 = vadd.f32 %v6198, %v6216
    %v6218 = vpop.f32.mrf.mxu0
    %v6219 = vadd.f32 %v6200, %v6218
    %6220 = vdwg.mxu0
    %6221 = vmatpush.bf16.msra.mxu0 %v6052
    %6222 = vmatpush.bf16.msra.mxu0 %v6049
    %6223 = vmatpush.bf16.msra.mxu0 %v6046
    %6224 = vmatpush.bf16.msra.mxu0 %v6043
    %6225 = vmatpush.bf16.msra.mxu0 %v6040
    %6226 = vmatpush.bf16.msra.mxu0 %v6037
    %6227 = vmatpush.bf16.msra.mxu0 %v6034
    %6228 = vmatpush.bf16.msra.mxu0 %v6031
    %6229 = vmatmul.bf16.gmra.mxu0 %v4983
    %v6230 = vpop.f32.mrf.mxu0
    %v6231 = vadd.f32 %v6212, %v6230
    %v6232 = vpop.f32.mrf.mxu0
    %v6233 = vadd.f32 %v6214, %v6232
    %6234 = vmatmul.bf16.gmra.mxu0 %v4986
    %v6235 = vpop.f32.mrf.mxu0
    %v6236 = vadd.f32 %v6217, %v6235
    %v6237 = vpop.f32.mrf.mxu0
    %v6238 = vadd.f32 %v6219, %v6237
    %6239 = vdwg.mxu0
    %6240 = vmatpush.bf16.msra.mxu0 %v6005
    %6241 = vmatpush.bf16.msra.mxu0 %v6002
    %6242 = vmatpush.bf16.msra.mxu0 %v5999
    %6243 = vmatpush.bf16.msra.mxu0 %v5996
    %6244 = vmatpush.bf16.msra.mxu0 %v5993
    %6245 = vmatpush.bf16.msra.mxu0 %v5990
    %6246 = vmatpush.bf16.msra.mxu0 %v5987
    %6247 = vmatpush.bf16.msra.mxu0 %v5984
    %6248 = vmatmul.bf16.gmra.mxu0 %v4981
    %v6249 = vpop.f32.mrf.mxu0
    %v6250 = vadd.f32 0.0, %v6249
    %v6251 = vpop.f32.mrf.mxu0
    %v6252 = vadd.f32 0.0, %v6251
    %6253 = vmatmul.bf16.gmra.mxu0 %v4984
    %v6254 = vpop.f32.mrf.mxu0
    %v6255 = vadd.f32 0.0, %v6254
    %v6256 = vpop.f32.mrf.mxu0
    %v6257 = vadd.f32 0.0, %v6256
    %6258 = vdwg.mxu0
    %6259 = vmatpush.bf16.msra.mxu0 %v6029
    %6260 = vmatpush.bf16.msra.mxu0 %v6026
    %6261 = vmatpush.bf16.msra.mxu0 %v6023
    %6262 = vmatpush.bf16.msra.mxu0 %v6020
    %6263 = vmatpush.bf16.msra.mxu0 %v6017
    %6264 = vmatpush.bf16.msra.mxu0 %v6014
    %6265 = vmatpush.bf16.msra.mxu0 %v6011
    %6266 = vmatpush.bf16.msra.mxu0 %v6008
    %6267 = vmatmul.bf16.gmra.mxu0 %v4982
    %v6268 = vpop.f32.mrf.mxu0
    %v6269 = vadd.f32 %v6250, %v6268
    %v6270 = vpop.f32.mrf.mxu0
    %v6271 = vadd.f32 %v6252, %v6270
    %6272 = vmatmul.bf16.gmra.mxu0 %v4985
    %v6273 = vpop.f32.mrf.mxu0
    %v6274 = vadd.f32 %v6255, %v6273
    %v6275 = vpop.f32.mrf.mxu0
    %v6276 = vadd.f32 %v6257, %v6275
    %6277 = vdwg.mxu0
    %6278 = vmatpush.bf16.msra.mxu0 %v6053
    %6279 = vmatpush.bf16.msra.mxu0 %v6050
    %6280 = vmatpush.bf16.msra.mxu0 %v6047
    %6281 = vmatpush.bf16.msra.mxu0 %v6044
    %6282 = vmatpush.bf16.msra.mxu0 %v6041
    %6283 = vmatpush.bf16.msra.mxu0 %v6038
    %6284 = vmatpush.bf16.msra.mxu0 %v6035
    %6285 = vmatpush.bf16.msra.mxu0 %v6032
    %6286 = vmatmul.bf16.gmra.mxu0 %v4983
    %v6287 = vpop.f32.mrf.mxu0
    %v6288 = vadd.f32 %v6269, %v6287
    %v6289 = vpop.f32.mrf.mxu0
    %v6290 = vadd.f32 %v6271, %v6289
    %6291 = vmatmul.bf16.gmra.mxu0 %v4986
    %v6292 = vpop.f32.mrf.mxu0
    %v6293 = vadd.f32 %v6274, %v6292
    %v6294 = vpop.f32.mrf.mxu0
    %v6295 = vadd.f32 %v6276, %v6294
    %6296 = vdwg.mxu0
    %s6297 = scalar_lea.vmem %s10, 64
    %v6298 = vld [vmem:[%s6297] sm:$0xff]
    %v6299 = vld [vmem:[%s6297 + $0x8] sm:$0xff]
    %v6300 = vld [vmem:[%s6297 + $0x10] sm:$0xff]
    %v6301 = vld [vmem:[%s6297 + $0x18] sm:$0xff]
    %v6302 = vld [vmem:[%s6297 + $0x20] sm:$0xff]
    %v6303 = vld [vmem:[%s6297 + $0x28] sm:$0xff]
    %v6304 = vld [vmem:[%s6297 + $0x30] sm:$0xff]
    %v6305 = vld [vmem:[%s6297 + $0x38] sm:$0xff]
    %v6307 = vsel %vm112, %v6298, 0
    %v6310 = vsel %vm112, %v6299, 0
    %v6313 = vsel %vm112, %v6300, 0
    %v6316 = vsel %vm112, %v6301, 0
    %v6319 = vsel %vm112, %v6302, 0
    %v6322 = vsel %vm112, %v6303, 0
    %v6325 = vsel %vm112, %v6304, 0
    %v6328 = vsel %vm112, %v6305, 0
    %6330 = vmatpush.msra.mxu0 0.0
    %6331 = vmatpush.msra.mxu0 0.0
    %6332 = vmatpush.msra.mxu0 0.0
    %6333 = vmatpush.msra.mxu0 0.0
    %6334 = vmatpush.msra.mxu0 0.0
    %6335 = vmatpush.msra.mxu0 0.0
    %6336 = vmatpush.msra.mxu0 0.0
    %6337 = vmatpush.msra.mxu0 0.0
    %6338 = vmatpush.msra.mxu0 0.0
    %6339 = vmatpush.msra.mxu0 0.0
    %6340 = vmatpush.msra.mxu0 0.0
    %6341 = vmatpush.msra.mxu0 0.0
    %6342 = vmatpush.msra.mxu0 %v6181
    %6343 = vmatpush.msra.mxu0 %v6179
    %6344 = vmatpush.msra.mxu0 %v6176
    %6345 = vmatpush.msra.mxu0 %v6174
    %6346 = vmatmul.f32.gmra.mxu0 %v6307
    %v6347 = vpop.f32.mrf.mxu0
    %v6348 = vadd.f32 0.0, %v6347
    %6349 = vmatmul.f32.gmra.mxu0 %v6310
    %v6350 = vpop.f32.mrf.mxu0
    %v6351 = vadd.f32 0.0, %v6350
    %6352 = vmatmul.f32.gmra.mxu0 %v6313
    %v6353 = vpop.f32.mrf.mxu0
    %v6354 = vadd.f32 0.0, %v6353
    %6355 = vmatmul.f32.gmra.mxu0 %v6316
    %v6356 = vpop.f32.mrf.mxu0
    %v6357 = vadd.f32 0.0, %v6356
    %6358 = vmatmul.f32.gmra.mxu0 %v6319
    %v6359 = vpop.f32.mrf.mxu0
    %v6360 = vadd.f32 0.0, %v6359
    %6361 = vmatmul.f32.gmra.mxu0 %v6322
    %v6362 = vpop.f32.mrf.mxu0
    %v6363 = vadd.f32 0.0, %v6362
    %6364 = vmatmul.f32.gmra.mxu0 %v6325
    %v6365 = vpop.f32.mrf.mxu0
    %v6366 = vadd.f32 0.0, %v6365
    %6367 = vmatmul.f32.gmra.mxu0 %v6328
    %v6368 = vpop.f32.mrf.mxu0
    %v6369 = vadd.f32 0.0, %v6368
    %6370 = vdwg.mxu0
    %6371 = vmatpush.msra.mxu0 0.0
    %6372 = vmatpush.msra.mxu0 0.0
    %6373 = vmatpush.msra.mxu0 0.0
    %6374 = vmatpush.msra.mxu0 0.0
    %6375 = vmatpush.msra.mxu0 0.0
    %6376 = vmatpush.msra.mxu0 0.0
    %6377 = vmatpush.msra.mxu0 0.0
    %6378 = vmatpush.msra.mxu0 0.0
    %6379 = vmatpush.msra.mxu0 0.0
    %6380 = vmatpush.msra.mxu0 0.0
    %6381 = vmatpush.msra.mxu0 0.0
    %6382 = vmatpush.msra.mxu0 0.0
    %6383 = vmatpush.msra.mxu0 %v6238
    %6384 = vmatpush.msra.mxu0 %v6236
    %6385 = vmatpush.msra.mxu0 %v6233
    %6386 = vmatpush.msra.mxu0 %v6231
    %6387 = vmatmul.f32.gmra.mxu0 %v6307
    %v6388 = vpop.f32.mrf.mxu0
    %v6389 = vadd.f32 0.0, %v6388
    %6390 = vmatmul.f32.gmra.mxu0 %v6310
    %v6391 = vpop.f32.mrf.mxu0
    %v6392 = vadd.f32 0.0, %v6391
    %6393 = vmatmul.f32.gmra.mxu0 %v6313
    %v6394 = vpop.f32.mrf.mxu0
    %v6395 = vadd.f32 0.0, %v6394
    %6396 = vmatmul.f32.gmra.mxu0 %v6316
    %v6397 = vpop.f32.mrf.mxu0
    %v6398 = vadd.f32 0.0, %v6397
    %6399 = vmatmul.f32.gmra.mxu0 %v6319
    %v6400 = vpop.f32.mrf.mxu0
    %v6401 = vadd.f32 0.0, %v6400
    %6402 = vmatmul.f32.gmra.mxu0 %v6322
    %v6403 = vpop.f32.mrf.mxu0
    %v6404 = vadd.f32 0.0, %v6403
    %6405 = vmatmul.f32.gmra.mxu0 %v6325
    %v6406 = vpop.f32.mrf.mxu0
    %v6407 = vadd.f32 0.0, %v6406
    %6408 = vmatmul.f32.gmra.mxu0 %v6328
    %v6409 = vpop.f32.mrf.mxu0
    %v6410 = vadd.f32 0.0, %v6409
    %6411 = vdwg.mxu0
    %6412 = vmatpush.msra.mxu0 0.0
    %6413 = vmatpush.msra.mxu0 0.0
    %6414 = vmatpush.msra.mxu0 0.0
    %6415 = vmatpush.msra.mxu0 0.0
    %6416 = vmatpush.msra.mxu0 0.0
    %6417 = vmatpush.msra.mxu0 0.0
    %6418 = vmatpush.msra.mxu0 0.0
    %6419 = vmatpush.msra.mxu0 0.0
    %6420 = vmatpush.msra.mxu0 0.0
    %6421 = vmatpush.msra.mxu0 0.0
    %6422 = vmatpush.msra.mxu0 0.0
    %6423 = vmatpush.msra.mxu0 0.0
    %6424 = vmatpush.msra.mxu0 %v6295
    %6425 = vmatpush.msra.mxu0 %v6293
    %6426 = vmatpush.msra.mxu0 %v6290
    %6427 = vmatpush.msra.mxu0 %v6288
    %6428 = vmatmul.f32.gmra.mxu0 %v6307
    %v6429 = vpop.f32.mrf.mxu0
    %v6430 = vadd.f32 0.0, %v6429
    %6431 = vmatmul.f32.gmra.mxu0 %v6310
    %v6432 = vpop.f32.mrf.mxu0
    %v6433 = vadd.f32 0.0, %v6432
    %6434 = vmatmul.f32.gmra.mxu0 %v6313
    %v6435 = vpop.f32.mrf.mxu0
    %v6436 = vadd.f32 0.0, %v6435
    %6437 = vmatmul.f32.gmra.mxu0 %v6316
    %v6438 = vpop.f32.mrf.mxu0
    %v6439 = vadd.f32 0.0, %v6438
    %6440 = vmatmul.f32.gmra.mxu0 %v6319
    %v6441 = vpop.f32.mrf.mxu0
    %v6442 = vadd.f32 0.0, %v6441
    %6443 = vmatmul.f32.gmra.mxu0 %v6322
    %v6444 = vpop.f32.mrf.mxu0
    %v6445 = vadd.f32 0.0, %v6444
    %6446 = vmatmul.f32.gmra.mxu0 %v6325
    %v6447 = vpop.f32.mrf.mxu0
    %v6448 = vadd.f32 0.0, %v6447
    %6449 = vmatmul.f32.gmra.mxu0 %v6328
    %v6450 = vpop.f32.mrf.mxu0
    %v6451 = vadd.f32 0.0, %v6450
    %6452 = vdwg.mxu0
    %v6454 = vsel %vm112, %v5638, 0
    %v6457 = vsel %vm112, %v5639, 0
    %v6460 = vsel %vm112, %v5640, 0
    %v6463 = vsel %vm112, %v5641, 0
    %v6466 = vsel %vm112, %v5642, 0
    %v6469 = vsel %vm112, %v5643, 0
    %v6472 = vsel %vm112, %v5644, 0
    %v6475 = vsel %vm112, %v5645, 0
    %6477 = vmatpush.msra.mxu0 0.0
    %6478 = vmatpush.msra.mxu0 0.0
    %6479 = vmatpush.msra.mxu0 0.0
    %6480 = vmatpush.msra.mxu0 0.0
    %6481 = vmatpush.msra.mxu0 0.0
    %6482 = vmatpush.msra.mxu0 0.0
    %6483 = vmatpush.msra.mxu0 0.0
    %6484 = vmatpush.msra.mxu0 0.0
    %6485 = vmatpush.msra.mxu0 0.0
    %6486 = vmatpush.msra.mxu0 0.0
    %6487 = vmatpush.msra.mxu0 0.0
    %6488 = vmatpush.msra.mxu0 0.0
    %6489 = vmatpush.msra.mxu0 %v5522
    %6490 = vmatpush.msra.mxu0 %v5520
    %6491 = vmatpush.msra.mxu0 %v5517
    %6492 = vmatpush.msra.mxu0 %v5515
    %6493 = vmatmul.f32.gmra.mxu0 %v6454
    %v6494 = vpop.f32.mrf.mxu0
    %v6495 = vadd.f32 %v6348, %v6494
    %6496 = vmatmul.f32.gmra.mxu0 %v6457
    %v6497 = vpop.f32.mrf.mxu0
    %v6498 = vadd.f32 %v6351, %v6497
    %6499 = vmatmul.f32.gmra.mxu0 %v6460
    %v6500 = vpop.f32.mrf.mxu0
    %v6501 = vadd.f32 %v6354, %v6500
    %6502 = vmatmul.f32.gmra.mxu0 %v6463
    %v6503 = vpop.f32.mrf.mxu0
    %v6504 = vadd.f32 %v6357, %v6503
    %6505 = vmatmul.f32.gmra.mxu0 %v6466
    %v6506 = vpop.f32.mrf.mxu0
    %v6507 = vadd.f32 %v6360, %v6506
    %6508 = vmatmul.f32.gmra.mxu0 %v6469
    %v6509 = vpop.f32.mrf.mxu0
    %v6510 = vadd.f32 %v6363, %v6509
    %6511 = vmatmul.f32.gmra.mxu0 %v6472
    %v6512 = vpop.f32.mrf.mxu0
    %v6513 = vadd.f32 %v6366, %v6512
    %6514 = vmatmul.f32.gmra.mxu0 %v6475
    %v6515 = vpop.f32.mrf.mxu0
    %v6516 = vadd.f32 %v6369, %v6515
    %6517 = vdwg.mxu0
    %6518 = vmatpush.msra.mxu0 0.0
    %6519 = vmatpush.msra.mxu0 0.0
    %6520 = vmatpush.msra.mxu0 0.0
    %6521 = vmatpush.msra.mxu0 0.0
    %6522 = vmatpush.msra.mxu0 0.0
    %6523 = vmatpush.msra.mxu0 0.0
    %6524 = vmatpush.msra.mxu0 0.0
    %6525 = vmatpush.msra.mxu0 0.0
    %6526 = vmatpush.msra.mxu0 0.0
    %6527 = vmatpush.msra.mxu0 0.0
    %6528 = vmatpush.msra.mxu0 0.0
    %6529 = vmatpush.msra.mxu0 0.0
    %6530 = vmatpush.msra.mxu0 %v5579
    %6531 = vmatpush.msra.mxu0 %v5577
    %6532 = vmatpush.msra.mxu0 %v5574
    %6533 = vmatpush.msra.mxu0 %v5572
    %6534 = vmatmul.f32.gmra.mxu0 %v6454
    %v6535 = vpop.f32.mrf.mxu0
    %v6536 = vadd.f32 %v6389, %v6535
    %6537 = vmatmul.f32.gmra.mxu0 %v6457
    %v6538 = vpop.f32.mrf.mxu0
    %v6539 = vadd.f32 %v6392, %v6538
    %6540 = vmatmul.f32.gmra.mxu0 %v6460
    %v6541 = vpop.f32.mrf.mxu0
    %v6542 = vadd.f32 %v6395, %v6541
    %6543 = vmatmul.f32.gmra.mxu0 %v6463
    %v6544 = vpop.f32.mrf.mxu0
    %v6545 = vadd.f32 %v6398, %v6544
    %6546 = vmatmul.f32.gmra.mxu0 %v6466
    %v6547 = vpop.f32.mrf.mxu0
    %v6548 = vadd.f32 %v6401, %v6547
    %6549 = vmatmul.f32.gmra.mxu0 %v6469
    %v6550 = vpop.f32.mrf.mxu0
    %v6551 = vadd.f32 %v6404, %v6550
    %6552 = vmatmul.f32.gmra.mxu0 %v6472
    %v6553 = vpop.f32.mrf.mxu0
    %v6554 = vadd.f32 %v6407, %v6553
    %6555 = vmatmul.f32.gmra.mxu0 %v6475
    %v6556 = vpop.f32.mrf.mxu0
    %v6557 = vadd.f32 %v6410, %v6556
    %6558 = vdwg.mxu0
    %6559 = vmatpush.msra.mxu0 0.0
    %6560 = vmatpush.msra.mxu0 0.0
    %6561 = vmatpush.msra.mxu0 0.0
    %6562 = vmatpush.msra.mxu0 0.0
    %6563 = vmatpush.msra.mxu0 0.0
    %6564 = vmatpush.msra.mxu0 0.0
    %6565 = vmatpush.msra.mxu0 0.0
    %6566 = vmatpush.msra.mxu0 0.0
    %6567 = vmatpush.msra.mxu0 0.0
    %6568 = vmatpush.msra.mxu0 0.0
    %6569 = vmatpush.msra.mxu0 0.0
    %6570 = vmatpush.msra.mxu0 0.0
    %6571 = vmatpush.msra.mxu0 %v5636
    %6572 = vmatpush.msra.mxu0 %v5634
    %6573 = vmatpush.msra.mxu0 %v5631
    %6574 = vmatpush.msra.mxu0 %v5629
    %6575 = vmatmul.f32.gmra.mxu0 %v6454
    %v6576 = vpop.f32.mrf.mxu0
    %v6577 = vadd.f32 %v6430, %v6576
    %6578 = vmatmul.f32.gmra.mxu0 %v6457
    %v6579 = vpop.f32.mrf.mxu0
    %v6580 = vadd.f32 %v6433, %v6579
    %6581 = vmatmul.f32.gmra.mxu0 %v6460
    %v6582 = vpop.f32.mrf.mxu0
    %v6583 = vadd.f32 %v6436, %v6582
    %6584 = vmatmul.f32.gmra.mxu0 %v6463
    %v6585 = vpop.f32.mrf.mxu0
    %v6586 = vadd.f32 %v6439, %v6585
    %6587 = vmatmul.f32.gmra.mxu0 %v6466
    %v6588 = vpop.f32.mrf.mxu0
    %v6589 = vadd.f32 %v6442, %v6588
    %6590 = vmatmul.f32.gmra.mxu0 %v6469
    %v6591 = vpop.f32.mrf.mxu0
    %v6592 = vadd.f32 %v6445, %v6591
    %6593 = vmatmul.f32.gmra.mxu0 %v6472
    %v6594 = vpop.f32.mrf.mxu0
    %v6595 = vadd.f32 %v6448, %v6594
    %6596 = vmatmul.f32.gmra.mxu0 %v6475
    %v6597 = vpop.f32.mrf.mxu0
    %v6598 = vadd.f32 %v6451, %v6597
    %6599 = vdwg.mxu0
    %v6600 = vld [vmem:[#allocation2 + $0x18] sm:$0xff]
    %v6601 = vld [vmem:[#allocation2 + $0x20] sm:$0xf]
    %v6602 = vld [vmem:[#allocation2 + $0x48] sm:$0xff]
    %v6603 = vld [vmem:[#allocation2 + $0x50] sm:$0xf]
    %v6604 = vld [vmem:[#allocation2 + $0x78] sm:$0xff]
    %v6605 = vld [vmem:[#allocation2 + $0x80] sm:$0xf]
    %v6606 = vld [vmem:[#allocation2 + $0xa8] sm:$0xff]
    %v6607 = vld [vmem:[#allocation2 + $0xb0] sm:$0xf]
    %v6608 = vld [vmem:[#allocation2 + $0xd8] sm:$0xff]
    %v6609 = vld [vmem:[#allocation2 + $0xe0] sm:$0xf]
    %v6610 = vld [vmem:[#allocation2 + $0x108] sm:$0xff]
    %v6611 = vld [vmem:[#allocation2 + $0x110] sm:$0xf]
    %v6612 = vld [vmem:[#allocation2 + $0x138] sm:$0xff]
    %v6613 = vld [vmem:[#allocation2 + $0x140] sm:$0xf]
    %v6614 = vld [vmem:[#allocation2 + $0x168] sm:$0xff]
    %v6615 = vld [vmem:[#allocation2 + $0x170] sm:$0xf]
    %v6616 = vld [vmem:[#allocation2 + $0x198] sm:$0xff]
    %v6617 = vld [vmem:[#allocation2 + $0x1a0] sm:$0xf]
    %v6618 = vld [vmem:[#allocation2 + $0x1c8] sm:$0xff]
    %v6619 = vld [vmem:[#allocation2 + $0x1d0] sm:$0xf]
    %v6620 = vld [vmem:[#allocation2 + $0x1f8] sm:$0xff]
    %v6621 = vld [vmem:[#allocation2 + $0x200] sm:$0xf]
    %v6622 = vld [vmem:[#allocation2 + $0x228] sm:$0xff]
    %v6623 = vld [vmem:[#allocation2 + $0x230] sm:$0xf]
    %v6624 = vld [vmem:[#allocation2 + $0x258] sm:$0xff]
    %v6625 = vld [vmem:[#allocation2 + $0x260] sm:$0xf]
    %v6626 = vld [vmem:[#allocation2 + $0x288] sm:$0xff]
    %v6627 = vld [vmem:[#allocation2 + $0x290] sm:$0xf]
    %v6628 = vld [vmem:[#allocation2 + $0x2b8] sm:$0xff]
    %v6629 = vld [vmem:[#allocation2 + $0x2c0] sm:$0xf]
    %v6630 = vld [vmem:[#allocation2 + $0x2e8] sm:$0xff]
    %v6631 = vld [vmem:[#allocation2 + $0x2f0] sm:$0xf]
    %v6632 = vld [vmem:[#allocation2 + $0x318] sm:$0xff]
    %v6633 = vld [vmem:[#allocation2 + $0x320] sm:$0xf]
    %v6634 = vld [vmem:[#allocation2 + $0x348] sm:$0xff]
    %v6635 = vld [vmem:[#allocation2 + $0x350] sm:$0xf]
    %v6636 = vld [vmem:[#allocation2 + $0x378] sm:$0xff]
    %v6637 = vld [vmem:[#allocation2 + $0x380] sm:$0xf]
    %v6638 = vld [vmem:[#allocation2 + $0x3a8] sm:$0xff]
    %v6639 = vld [vmem:[#allocation2 + $0x3b0] sm:$0xf]
    %v6640 = vld [vmem:[#allocation2 + $0x3d8] sm:$0xff]
    %v6641 = vld [vmem:[#allocation2 + $0x3e0] sm:$0xf]
    %v6642 = vld [vmem:[#allocation2 + $0x408] sm:$0xff]
    %v6643 = vld [vmem:[#allocation2 + $0x410] sm:$0xf]
    %v6644 = vld [vmem:[#allocation2 + $0x438] sm:$0xff]
    %v6645 = vld [vmem:[#allocation2 + $0x440] sm:$0xf]
    %v6646 = vld [vmem:[#allocation2 + $0x468] sm:$0xff]
    %v6647 = vld [vmem:[#allocation2 + $0x470] sm:$0xf]
    %v6648 = vld [vmem:[#allocation2 + $0x498] sm:$0xff]
    %v6649 = vld [vmem:[#allocation2 + $0x4a0] sm:$0xf]
    %v6650 = vld [vmem:[#allocation2 + $0x4c8] sm:$0xff]
    %v6651 = vld [vmem:[#allocation2 + $0x4d0] sm:$0xf]
    %v6652 = vld [vmem:[#allocation2 + $0x4f8] sm:$0xff]
    %v6653 = vld [vmem:[#allocation2 + $0x500] sm:$0xf]
    %v6654 = vld [vmem:[#allocation2 + $0x528] sm:$0xff]
    %v6655 = vld [vmem:[#allocation2 + $0x530] sm:$0xf]
    %v6656 = vld [vmem:[#allocation2 + $0x558] sm:$0xff]
    %v6657 = vld [vmem:[#allocation2 + $0x560] sm:$0xf]
    %v6658 = vld [vmem:[#allocation2 + $0x588] sm:$0xff]
    %v6659 = vld [vmem:[#allocation2 + $0x590] sm:$0xf]
    %v6660 = vld [vmem:[#allocation2 + $0x5b8] sm:$0xff]
    %v6661 = vld [vmem:[#allocation2 + $0x5c0] sm:$0xf]
    %v6662 = vld [vmem:[#allocation2 + $0x5e8] sm:$0xff]
    %v6663 = vld [vmem:[#allocation2 + $0x5f0] sm:$0xf]
    %v6664 = vld [vmem:[#allocation2 + $0x618] sm:$0xff]
    %v6665 = vld [vmem:[#allocation2 + $0x620] sm:$0xf]
    %v6666 = vld [vmem:[#allocation2 + $0x648] sm:$0xff]
    %v6667 = vld [vmem:[#allocation2 + $0x650] sm:$0xf]
    %v6668 = vld [vmem:[#allocation2 + $0x678] sm:$0xff]
    %v6669 = vld [vmem:[#allocation2 + $0x680] sm:$0xf]
    %v6670 = vld [vmem:[#allocation2 + $0x6a8] sm:$0xff]
    %v6671 = vld [vmem:[#allocation2 + $0x6b0] sm:$0xf]
    %v6672 = vld [vmem:[#allocation2 + $0x6d8] sm:$0xff]
    %v6673 = vld [vmem:[#allocation2 + $0x6e0] sm:$0xf]
    %v6674 = vld [vmem:[#allocation2 + $0x708] sm:$0xff]
    %v6675 = vld [vmem:[#allocation2 + $0x710] sm:$0xf]
    %v6676 = vld [vmem:[#allocation2 + $0x738] sm:$0xff]
    %v6677 = vld [vmem:[#allocation2 + $0x740] sm:$0xf]
    %v6678 = vld [vmem:[#allocation2 + $0x768] sm:$0xff]
    %v6679 = vld [vmem:[#allocation2 + $0x770] sm:$0xf]
    %v6680 = vld [vmem:[#allocation2 + $0x798] sm:$0xff]
    %v6681 = vld [vmem:[#allocation2 + $0x7a0] sm:$0xf]
    %v6682 = vld [vmem:[#allocation2 + $0x7c8] sm:$0xff]
    %v6683 = vld [vmem:[#allocation2 + $0x7d0] sm:$0xf]
    %v6684 = vld [vmem:[#allocation2 + $0x7f8] sm:$0xff]
    %v6685 = vld [vmem:[#allocation2 + $0x800] sm:$0xf]
    %v6686 = vld [vmem:[#allocation2 + $0x828] sm:$0xff]
    %v6687 = vld [vmem:[#allocation2 + $0x830] sm:$0xf]
    %v6688 = vld [vmem:[#allocation2 + $0x858] sm:$0xff]
    %v6689 = vld [vmem:[#allocation2 + $0x860] sm:$0xf]
    %v6690 = vld [vmem:[#allocation2 + $0x888] sm:$0xff]
    %v6691 = vld [vmem:[#allocation2 + $0x890] sm:$0xf]
    %v6692 = vld [vmem:[#allocation2 + $0x8b8] sm:$0xff]
    %v6693 = vld [vmem:[#allocation2 + $0x8c0] sm:$0xf]
    %v6694 = vld [vmem:[#allocation2 + $0x8e8] sm:$0xff]
    %v6695 = vld [vmem:[#allocation2 + $0x8f0] sm:$0xf]
    %v6792 = vunpack.c.l.b16 %v6600
    %v6793 = vunpack.c.h.b16 %v6600
    %v6794 = vunpack.c.l.b16 %v6601
    %v6795 = vunpack.c.l.b16 %v6602
    %v6796 = vunpack.c.h.b16 %v6602
    %v6797 = vunpack.c.l.b16 %v6603
    %v6798 = vunpack.c.l.b16 %v6604
    %v6799 = vunpack.c.h.b16 %v6604
    %v6800 = vunpack.c.l.b16 %v6605
    %v6801 = vunpack.c.l.b16 %v6606
    %v6802 = vunpack.c.h.b16 %v6606
    %v6803 = vunpack.c.l.b16 %v6607
    %v6804 = vunpack.c.l.b16 %v6608
    %v6805 = vunpack.c.h.b16 %v6608
    %v6806 = vunpack.c.l.b16 %v6609
    %v6807 = vunpack.c.l.b16 %v6610
    %v6808 = vunpack.c.h.b16 %v6610
    %v6809 = vunpack.c.l.b16 %v6611
    %v6810 = vunpack.c.l.b16 %v6612
    %v6811 = vunpack.c.h.b16 %v6612
    %v6812 = vunpack.c.l.b16 %v6613
    %v6813 = vunpack.c.l.b16 %v6614
    %v6814 = vunpack.c.h.b16 %v6614
    %v6815 = vunpack.c.l.b16 %v6615
    %v6816 = vunpack.c.l.b16 %v6616
    %v6817 = vunpack.c.h.b16 %v6616
    %v6818 = vunpack.c.l.b16 %v6617
    %v6819 = vunpack.c.l.b16 %v6618
    %v6820 = vunpack.c.h.b16 %v6618
    %v6821 = vunpack.c.l.b16 %v6619
    %v6822 = vunpack.c.l.b16 %v6620
    %v6823 = vunpack.c.h.b16 %v6620
    %v6824 = vunpack.c.l.b16 %v6621
    %v6825 = vunpack.c.l.b16 %v6622
    %v6826 = vunpack.c.h.b16 %v6622
    %v6827 = vunpack.c.l.b16 %v6623
    %v6828 = vunpack.c.l.b16 %v6624
    %v6829 = vunpack.c.h.b16 %v6624
    %v6830 = vunpack.c.l.b16 %v6625
    %v6831 = vunpack.c.l.b16 %v6626
    %v6832 = vunpack.c.h.b16 %v6626
    %v6833 = vunpack.c.l.b16 %v6627
    %v6834 = vunpack.c.l.b16 %v6628
    %v6835 = vunpack.c.h.b16 %v6628
    %v6836 = vunpack.c.l.b16 %v6629
    %v6837 = vunpack.c.l.b16 %v6630
    %v6838 = vunpack.c.h.b16 %v6630
    %v6839 = vunpack.c.l.b16 %v6631
    %v6840 = vunpack.c.l.b16 %v6632
    %v6841 = vunpack.c.h.b16 %v6632
    %v6842 = vunpack.c.l.b16 %v6633
    %v6843 = vunpack.c.l.b16 %v6634
    %v6844 = vunpack.c.h.b16 %v6634
    %v6845 = vunpack.c.l.b16 %v6635
    %v6846 = vunpack.c.l.b16 %v6636
    %v6847 = vunpack.c.h.b16 %v6636
    %v6848 = vunpack.c.l.b16 %v6637
    %v6849 = vunpack.c.l.b16 %v6638
    %v6850 = vunpack.c.h.b16 %v6638
    %v6851 = vunpack.c.l.b16 %v6639
    %v6852 = vunpack.c.l.b16 %v6640
    %v6853 = vunpack.c.h.b16 %v6640
    %v6854 = vunpack.c.l.b16 %v6641
    %v6855 = vunpack.c.l.b16 %v6642
    %v6856 = vunpack.c.h.b16 %v6642
    %v6857 = vunpack.c.l.b16 %v6643
    %v6858 = vunpack.c.l.b16 %v6644
    %v6859 = vunpack.c.h.b16 %v6644
    %v6860 = vunpack.c.l.b16 %v6645
    %v6861 = vunpack.c.l.b16 %v6646
    %v6862 = vunpack.c.h.b16 %v6646
    %v6863 = vunpack.c.l.b16 %v6647
    %v6864 = vunpack.c.l.b16 %v6648
    %v6865 = vunpack.c.h.b16 %v6648
    %v6866 = vunpack.c.l.b16 %v6649
    %v6867 = vunpack.c.l.b16 %v6650
    %v6868 = vunpack.c.h.b16 %v6650
    %v6869 = vunpack.c.l.b16 %v6651
    %v6870 = vunpack.c.l.b16 %v6652
    %v6871 = vunpack.c.h.b16 %v6652
    %v6872 = vunpack.c.l.b16 %v6653
    %v6873 = vunpack.c.l.b16 %v6654
    %v6874 = vunpack.c.h.b16 %v6654
    %v6875 = vunpack.c.l.b16 %v6655
    %v6876 = vunpack.c.l.b16 %v6656
    %v6877 = vunpack.c.h.b16 %v6656
    %v6878 = vunpack.c.l.b16 %v6657
    %v6879 = vunpack.c.l.b16 %v6658
    %v6880 = vunpack.c.h.b16 %v6658
    %v6881 = vunpack.c.l.b16 %v6659
    %v6882 = vunpack.c.l.b16 %v6660
    %v6883 = vunpack.c.h.b16 %v6660
    %v6884 = vunpack.c.l.b16 %v6661
    %v6885 = vunpack.c.l.b16 %v6662
    %v6886 = vunpack.c.h.b16 %v6662
    %v6887 = vunpack.c.l.b16 %v6663
    %v6888 = vunpack.c.l.b16 %v6664
    %v6889 = vunpack.c.h.b16 %v6664
    %v6890 = vunpack.c.l.b16 %v6665
    %v6891 = vunpack.c.l.b16 %v6666
    %v6892 = vunpack.c.h.b16 %v6666
    %v6893 = vunpack.c.l.b16 %v6667
    %v6894 = vunpack.c.l.b16 %v6668
    %v6895 = vunpack.c.h.b16 %v6668
    %v6896 = vunpack.c.l.b16 %v6669
    %v6897 = vunpack.c.l.b16 %v6670
    %v6898 = vunpack.c.h.b16 %v6670
    %v6899 = vunpack.c.l.b16 %v6671
    %v6900 = vunpack.c.l.b16 %v6672
    %v6901 = vunpack.c.h.b16 %v6672
    %v6902 = vunpack.c.l.b16 %v6673
    %v6903 = vunpack.c.l.b16 %v6674
    %v6904 = vunpack.c.h.b16 %v6674
    %v6905 = vunpack.c.l.b16 %v6675
    %v6906 = vunpack.c.l.b16 %v6676
    %v6907 = vunpack.c.h.b16 %v6676
    %v6908 = vunpack.c.l.b16 %v6677
    %v6909 = vunpack.c.l.b16 %v6678
    %v6910 = vunpack.c.h.b16 %v6678
    %v6911 = vunpack.c.l.b16 %v6679
    %v6912 = vunpack.c.l.b16 %v6680
    %v6913 = vunpack.c.h.b16 %v6680
    %v6914 = vunpack.c.l.b16 %v6681
    %v6915 = vunpack.c.l.b16 %v6682
    %v6916 = vunpack.c.h.b16 %v6682
    %v6917 = vunpack.c.l.b16 %v6683
    %v6918 = vunpack.c.l.b16 %v6684
    %v6919 = vunpack.c.h.b16 %v6684
    %v6920 = vunpack.c.l.b16 %v6685
    %v6921 = vunpack.c.l.b16 %v6686
    %v6922 = vunpack.c.h.b16 %v6686
    %v6923 = vunpack.c.l.b16 %v6687
    %v6924 = vunpack.c.l.b16 %v6688
    %v6925 = vunpack.c.h.b16 %v6688
    %v6926 = vunpack.c.l.b16 %v6689
    %v6927 = vunpack.c.l.b16 %v6690
    %v6928 = vunpack.c.h.b16 %v6690
    %v6929 = vunpack.c.l.b16 %v6691
    %v6930 = vunpack.c.l.b16 %v6692
    %v6931 = vunpack.c.h.b16 %v6692
    %v6932 = vunpack.c.l.b16 %v6693
    %v6933 = vunpack.c.l.b16 %v6694
    %v6934 = vunpack.c.h.b16 %v6694
    %v6935 = vunpack.c.l.b16 %v6695
    %v6936 = vpack.c.b16 %v6795, %v6792
    %v6937 = vpack.c.b16 %v6796, %v6793
    %v6938 = vpack.c.b16 %v6797, %v6794
    %v6939 = vpack.c.b16 %v6801, %v6798
    %v6940 = vpack.c.b16 %v6802, %v6799
    %v6941 = vpack.c.b16 %v6803, %v6800
    %v6942 = vpack.c.b16 %v6807, %v6804
    %v6943 = vpack.c.b16 %v6808, %v6805
    %v6944 = vpack.c.b16 %v6809, %v6806
    %v6945 = vpack.c.b16 %v6813, %v6810
    %v6946 = vpack.c.b16 %v6814, %v6811
    %v6947 = vpack.c.b16 %v6815, %v6812
    %v6948 = vpack.c.b16 %v6819, %v6816
    %v6949 = vpack.c.b16 %v6820, %v6817
    %v6950 = vpack.c.b16 %v6821, %v6818
    %v6951 = vpack.c.b16 %v6825, %v6822
    %v6952 = vpack.c.b16 %v6826, %v6823
    %v6953 = vpack.c.b16 %v6827, %v6824
    %v6954 = vpack.c.b16 %v6831, %v6828
    %v6955 = vpack.c.b16 %v6832, %v6829
    %v6956 = vpack.c.b16 %v6833, %v6830
    %v6957 = vpack.c.b16 %v6837, %v6834
    %v6958 = vpack.c.b16 %v6838, %v6835
    %v6959 = vpack.c.b16 %v6839, %v6836
    %v6960 = vpack.c.b16 %v6843, %v6840
    %v6961 = vpack.c.b16 %v6844, %v6841
    %v6962 = vpack.c.b16 %v6845, %v6842
    %v6963 = vpack.c.b16 %v6849, %v6846
    %v6964 = vpack.c.b16 %v6850, %v6847
    %v6965 = vpack.c.b16 %v6851, %v6848
    %v6966 = vpack.c.b16 %v6855, %v6852
    %v6967 = vpack.c.b16 %v6856, %v6853
    %v6968 = vpack.c.b16 %v6857, %v6854
    %v6969 = vpack.c.b16 %v6861, %v6858
    %v6970 = vpack.c.b16 %v6862, %v6859
    %v6971 = vpack.c.b16 %v6863, %v6860
    %v6972 = vpack.c.b16 %v6867, %v6864
    %v6973 = vpack.c.b16 %v6868, %v6865
    %v6974 = vpack.c.b16 %v6869, %v6866
    %v6975 = vpack.c.b16 %v6873, %v6870
    %v6976 = vpack.c.b16 %v6874, %v6871
    %v6977 = vpack.c.b16 %v6875, %v6872
    %v6978 = vpack.c.b16 %v6879, %v6876
    %v6979 = vpack.c.b16 %v6880, %v6877
    %v6980 = vpack.c.b16 %v6881, %v6878
    %v6981 = vpack.c.b16 %v6885, %v6882
    %v6982 = vpack.c.b16 %v6886, %v6883
    %v6983 = vpack.c.b16 %v6887, %v6884
    %v6984 = vpack.c.b16 %v6891, %v6888
    %v6985 = vpack.c.b16 %v6892, %v6889
    %v6986 = vpack.c.b16 %v6893, %v6890
    %v6987 = vpack.c.b16 %v6897, %v6894
    %v6988 = vpack.c.b16 %v6898, %v6895
    %v6989 = vpack.c.b16 %v6899, %v6896
    %v6990 = vpack.c.b16 %v6903, %v6900
    %v6991 = vpack.c.b16 %v6904, %v6901
    %v6992 = vpack.c.b16 %v6905, %v6902
    %v6993 = vpack.c.b16 %v6909, %v6906
    %v6994 = vpack.c.b16 %v6910, %v6907
    %v6995 = vpack.c.b16 %v6911, %v6908
    %v6996 = vpack.c.b16 %v6915, %v6912
    %v6997 = vpack.c.b16 %v6916, %v6913
    %v6998 = vpack.c.b16 %v6917, %v6914
    %v6999 = vpack.c.b16 %v6921, %v6918
    %v7000 = vpack.c.b16 %v6922, %v6919
    %v7001 = vpack.c.b16 %v6923, %v6920
    %v7002 = vpack.c.b16 %v6927, %v6924
    %v7003 = vpack.c.b16 %v6928, %v6925
    %v7004 = vpack.c.b16 %v6929, %v6926
    %v7005 = vpack.c.b16 %v6933, %v6930
    %v7006 = vpack.c.b16 %v6934, %v6931
    %v7007 = vpack.c.b16 %v6935, %v6932
    %7080 = vmatpush.bf16.msra.mxu0 %v6957
    %7081 = vmatpush.bf16.msra.mxu0 %v6954
    %7082 = vmatpush.bf16.msra.mxu0 %v6951
    %7083 = vmatpush.bf16.msra.mxu0 %v6948
    %7084 = vmatpush.bf16.msra.mxu0 %v6945
    %7085 = vmatpush.bf16.msra.mxu0 %v6942
    %7086 = vmatpush.bf16.msra.mxu0 %v6939
    %7087 = vmatpush.bf16.msra.mxu0 %v6936
    %7088 = vmatmul.bf16.gmra.mxu0 %v4981
    %v7089 = vpop.f32.mrf.mxu0
    %v7090 = vadd.f32 0.0, %v7089
    %v7091 = vpop.f32.mrf.mxu0
    %v7092 = vadd.f32 0.0, %v7091
    %7093 = vmatmul.bf16.gmra.mxu0 %v4984
    %v7094 = vpop.f32.mrf.mxu0
    %v7095 = vadd.f32 0.0, %v7094
    %v7096 = vpop.f32.mrf.mxu0
    %v7097 = vadd.f32 0.0, %v7096
    %7098 = vdwg.mxu0
    %7099 = vmatpush.bf16.msra.mxu0 %v6981
    %7100 = vmatpush.bf16.msra.mxu0 %v6978
    %7101 = vmatpush.bf16.msra.mxu0 %v6975
    %7102 = vmatpush.bf16.msra.mxu0 %v6972
    %7103 = vmatpush.bf16.msra.mxu0 %v6969
    %7104 = vmatpush.bf16.msra.mxu0 %v6966
    %7105 = vmatpush.bf16.msra.mxu0 %v6963
    %7106 = vmatpush.bf16.msra.mxu0 %v6960
    %7107 = vmatmul.bf16.gmra.mxu0 %v4982
    %v7108 = vpop.f32.mrf.mxu0
    %v7109 = vadd.f32 %v7090, %v7108
    %v7110 = vpop.f32.mrf.mxu0
    %v7111 = vadd.f32 %v7092, %v7110
    %7112 = vmatmul.bf16.gmra.mxu0 %v4985
    %v7113 = vpop.f32.mrf.mxu0
    %v7114 = vadd.f32 %v7095, %v7113
    %v7115 = vpop.f32.mrf.mxu0
    %v7116 = vadd.f32 %v7097, %v7115
    %7117 = vdwg.mxu0
    %7118 = vmatpush.bf16.msra.mxu0 %v7005
    %7119 = vmatpush.bf16.msra.mxu0 %v7002
    %7120 = vmatpush.bf16.msra.mxu0 %v6999
    %7121 = vmatpush.bf16.msra.mxu0 %v6996
    %7122 = vmatpush.bf16.msra.mxu0 %v6993
    %7123 = vmatpush.bf16.msra.mxu0 %v6990
    %7124 = vmatpush.bf16.msra.mxu0 %v6987
    %7125 = vmatpush.bf16.msra.mxu0 %v6984
    %7126 = vmatmul.bf16.gmra.mxu0 %v4983
    %v7127 = vpop.f32.mrf.mxu0
    %v7128 = vadd.f32 %v7109, %v7127
    %v7129 = vpop.f32.mrf.mxu0
    %v7130 = vadd.f32 %v7111, %v7129
    %7131 = vmatmul.bf16.gmra.mxu0 %v4986
    %v7132 = vpop.f32.mrf.mxu0
    %v7133 = vadd.f32 %v7114, %v7132
    %v7134 = vpop.f32.mrf.mxu0
    %v7135 = vadd.f32 %v7116, %v7134
    %7136 = vdwg.mxu0
    %7137 = vmatpush.bf16.msra.mxu0 %v6958
    %7138 = vmatpush.bf16.msra.mxu0 %v6955
    %7139 = vmatpush.bf16.msra.mxu0 %v6952
    %7140 = vmatpush.bf16.msra.mxu0 %v6949
    %7141 = vmatpush.bf16.msra.mxu0 %v6946
    %7142 = vmatpush.bf16.msra.mxu0 %v6943
    %7143 = vmatpush.bf16.msra.mxu0 %v6940
    %7144 = vmatpush.bf16.msra.mxu0 %v6937
    %7145 = vmatmul.bf16.gmra.mxu0 %v4981
    %v7146 = vpop.f32.mrf.mxu0
    %v7147 = vadd.f32 0.0, %v7146
    %v7148 = vpop.f32.mrf.mxu0
    %v7149 = vadd.f32 0.0, %v7148
    %7150 = vmatmul.bf16.gmra.mxu0 %v4984
    %v7151 = vpop.f32.mrf.mxu0
    %v7152 = vadd.f32 0.0, %v7151
    %v7153 = vpop.f32.mrf.mxu0
    %v7154 = vadd.f32 0.0, %v7153
    %7155 = vdwg.mxu0
    %7156 = vmatpush.bf16.msra.mxu0 %v6982
    %7157 = vmatpush.bf16.msra.mxu0 %v6979
    %7158 = vmatpush.bf16.msra.mxu0 %v6976
    %7159 = vmatpush.bf16.msra.mxu0 %v6973
    %7160 = vmatpush.bf16.msra.mxu0 %v6970
    %7161 = vmatpush.bf16.msra.mxu0 %v6967
    %7162 = vmatpush.bf16.msra.mxu0 %v6964
    %7163 = vmatpush.bf16.msra.mxu0 %v6961
    %7164 = vmatmul.bf16.gmra.mxu0 %v4982
    %v7165 = vpop.f32.mrf.mxu0
    %v7166 = vadd.f32 %v7147, %v7165
    %v7167 = vpop.f32.mrf.mxu0
    %v7168 = vadd.f32 %v7149, %v7167
    %7169 = vmatmul.bf16.gmra.mxu0 %v4985
    %v7170 = vpop.f32.mrf.mxu0
    %v7171 = vadd.f32 %v7152, %v7170
    %v7172 = vpop.f32.mrf.mxu0
    %v7173 = vadd.f32 %v7154, %v7172
    %7174 = vdwg.mxu0
    %7175 = vmatpush.bf16.msra.mxu0 %v7006
    %7176 = vmatpush.bf16.msra.mxu0 %v7003
    %7177 = vmatpush.bf16.msra.mxu0 %v7000
    %7178 = vmatpush.bf16.msra.mxu0 %v6997
    %7179 = vmatpush.bf16.msra.mxu0 %v6994
    %7180 = vmatpush.bf16.msra.mxu0 %v6991
    %7181 = vmatpush.bf16.msra.mxu0 %v6988
    %7182 = vmatpush.bf16.msra.mxu0 %v6985
    %7183 = vmatmul.bf16.gmra.mxu0 %v4983
    %v7184 = vpop.f32.mrf.mxu0
    %v7185 = vadd.f32 %v7166, %v7184
    %v7186 = vpop.f32.mrf.mxu0
    %v7187 = vadd.f32 %v7168, %v7186
    %7188 = vmatmul.bf16.gmra.mxu0 %v4986
    %v7189 = vpop.f32.mrf.mxu0
    %v7190 = vadd.f32 %v7171, %v7189
    %v7191 = vpop.f32.mrf.mxu0
    %v7192 = vadd.f32 %v7173, %v7191
    %7193 = vdwg.mxu0
    %7194 = vmatpush.bf16.msra.mxu0 %v6959
    %7195 = vmatpush.bf16.msra.mxu0 %v6956
    %7196 = vmatpush.bf16.msra.mxu0 %v6953
    %7197 = vmatpush.bf16.msra.mxu0 %v6950
    %7198 = vmatpush.bf16.msra.mxu0 %v6947
    %7199 = vmatpush.bf16.msra.mxu0 %v6944
    %7200 = vmatpush.bf16.msra.mxu0 %v6941
    %7201 = vmatpush.bf16.msra.mxu0 %v6938
    %7202 = vmatmul.bf16.gmra.mxu0 %v4981
    %v7203 = vpop.f32.mrf.mxu0
    %v7204 = vadd.f32 0.0, %v7203
    %v7205 = vpop.f32.mrf.mxu0
    %v7206 = vadd.f32 0.0, %v7205
    %7207 = vmatmul.bf16.gmra.mxu0 %v4984
    %v7208 = vpop.f32.mrf.mxu0
    %v7209 = vadd.f32 0.0, %v7208
    %v7210 = vpop.f32.mrf.mxu0
    %v7211 = vadd.f32 0.0, %v7210
    %7212 = vdwg.mxu0
    %7213 = vmatpush.bf16.msra.mxu0 %v6983
    %7214 = vmatpush.bf16.msra.mxu0 %v6980
    %7215 = vmatpush.bf16.msra.mxu0 %v6977
    %7216 = vmatpush.bf16.msra.mxu0 %v6974
    %7217 = vmatpush.bf16.msra.mxu0 %v6971
    %7218 = vmatpush.bf16.msra.mxu0 %v6968
    %7219 = vmatpush.bf16.msra.mxu0 %v6965
    %7220 = vmatpush.bf16.msra.mxu0 %v6962
    %7221 = vmatmul.bf16.gmra.mxu0 %v4982
    %v7222 = vpop.f32.mrf.mxu0
    %v7223 = vadd.f32 %v7204, %v7222
    %v7224 = vpop.f32.mrf.mxu0
    %v7225 = vadd.f32 %v7206, %v7224
    %7226 = vmatmul.bf16.gmra.mxu0 %v4985
    %v7227 = vpop.f32.mrf.mxu0
    %v7228 = vadd.f32 %v7209, %v7227
    %v7229 = vpop.f32.mrf.mxu0
    %v7230 = vadd.f32 %v7211, %v7229
    %7231 = vdwg.mxu0
    %7232 = vmatpush.bf16.msra.mxu0 %v7007
    %7233 = vmatpush.bf16.msra.mxu0 %v7004
    %7234 = vmatpush.bf16.msra.mxu0 %v7001
    %7235 = vmatpush.bf16.msra.mxu0 %v6998
    %7236 = vmatpush.bf16.msra.mxu0 %v6995
    %7237 = vmatpush.bf16.msra.mxu0 %v6992
    %7238 = vmatpush.bf16.msra.mxu0 %v6989
    %7239 = vmatpush.bf16.msra.mxu0 %v6986
    %7240 = vmatmul.bf16.gmra.mxu0 %v4983
    %v7241 = vpop.f32.mrf.mxu0
    %v7242 = vadd.f32 %v7223, %v7241
    %v7243 = vpop.f32.mrf.mxu0
    %v7244 = vadd.f32 %v7225, %v7243
    %7245 = vmatmul.bf16.gmra.mxu0 %v4986
    %v7246 = vpop.f32.mrf.mxu0
    %v7247 = vadd.f32 %v7228, %v7246
    %v7248 = vpop.f32.mrf.mxu0
    %v7249 = vadd.f32 %v7230, %v7248
    %7250 = vdwg.mxu0
    %s7251 = scalar_lea.vmem %s10, 128
    %v7252 = vld [vmem:[%s7251] sm:$0xff]
    %v7253 = vld [vmem:[%s7251 + $0x8] sm:$0xff]
    %v7254 = vld [vmem:[%s7251 + $0x10] sm:$0xff]
    %v7255 = vld [vmem:[%s7251 + $0x18] sm:$0xff]
    %v7256 = vld [vmem:[%s7251 + $0x20] sm:$0xff]
    %v7257 = vld [vmem:[%s7251 + $0x28] sm:$0xff]
    %v7258 = vld [vmem:[%s7251 + $0x30] sm:$0xff]
    %v7259 = vld [vmem:[%s7251 + $0x38] sm:$0xff]
    %v7261 = vsel %vm112, %v7252, 0
    %v7264 = vsel %vm112, %v7253, 0
    %v7267 = vsel %vm112, %v7254, 0
    %v7270 = vsel %vm112, %v7255, 0
    %v7273 = vsel %vm112, %v7256, 0
    %v7276 = vsel %vm112, %v7257, 0
    %v7279 = vsel %vm112, %v7258, 0
    %v7282 = vsel %vm112, %v7259, 0
    %7284 = vmatpush.msra.mxu0 0.0
    %7285 = vmatpush.msra.mxu0 0.0
    %7286 = vmatpush.msra.mxu0 0.0
    %7287 = vmatpush.msra.mxu0 0.0
    %7288 = vmatpush.msra.mxu0 0.0
    %7289 = vmatpush.msra.mxu0 0.0
    %7290 = vmatpush.msra.mxu0 0.0
    %7291 = vmatpush.msra.mxu0 0.0
    %7292 = vmatpush.msra.mxu0 0.0
    %7293 = vmatpush.msra.mxu0 0.0
    %7294 = vmatpush.msra.mxu0 0.0
    %7295 = vmatpush.msra.mxu0 0.0
    %7296 = vmatpush.msra.mxu0 %v7135
    %7297 = vmatpush.msra.mxu0 %v7133
    %7298 = vmatpush.msra.mxu0 %v7130
    %7299 = vmatpush.msra.mxu0 %v7128
    %7300 = vmatmul.f32.gmra.mxu0 %v7261
    %v7301 = vpop.f32.mrf.mxu0
    %v7302 = vadd.f32 0.0, %v7301
    %7303 = vmatmul.f32.gmra.mxu0 %v7264
    %v7304 = vpop.f32.mrf.mxu0
    %v7305 = vadd.f32 0.0, %v7304
    %7306 = vmatmul.f32.gmra.mxu0 %v7267
    %v7307 = vpop.f32.mrf.mxu0
    %v7308 = vadd.f32 0.0, %v7307
    %7309 = vmatmul.f32.gmra.mxu0 %v7270
    %v7310 = vpop.f32.mrf.mxu0
    %v7311 = vadd.f32 0.0, %v7310
    %7312 = vmatmul.f32.gmra.mxu0 %v7273
    %v7313 = vpop.f32.mrf.mxu0
    %v7314 = vadd.f32 0.0, %v7313
    %7315 = vmatmul.f32.gmra.mxu0 %v7276
    %v7316 = vpop.f32.mrf.mxu0
    %v7317 = vadd.f32 0.0, %v7316
    %7318 = vmatmul.f32.gmra.mxu0 %v7279
    %v7319 = vpop.f32.mrf.mxu0
    %v7320 = vadd.f32 0.0, %v7319
    %7321 = vmatmul.f32.gmra.mxu0 %v7282
    %v7322 = vpop.f32.mrf.mxu0
    %v7323 = vadd.f32 0.0, %v7322
    %7324 = vdwg.mxu0
    %7325 = vmatpush.msra.mxu0 0.0
    %7326 = vmatpush.msra.mxu0 0.0
    %7327 = vmatpush.msra.mxu0 0.0
    %7328 = vmatpush.msra.mxu0 0.0
    %7329 = vmatpush.msra.mxu0 0.0
    %7330 = vmatpush.msra.mxu0 0.0
    %7331 = vmatpush.msra.mxu0 0.0
    %7332 = vmatpush.msra.mxu0 0.0
    %7333 = vmatpush.msra.mxu0 0.0
    %7334 = vmatpush.msra.mxu0 0.0
    %7335 = vmatpush.msra.mxu0 0.0
    %7336 = vmatpush.msra.mxu0 0.0
    %7337 = vmatpush.msra.mxu0 %v7192
    %7338 = vmatpush.msra.mxu0 %v7190
    %7339 = vmatpush.msra.mxu0 %v7187
    %7340 = vmatpush.msra.mxu0 %v7185
    %7341 = vmatmul.f32.gmra.mxu0 %v7261
    %v7342 = vpop.f32.mrf.mxu0
    %v7343 = vadd.f32 0.0, %v7342
    %7344 = vmatmul.f32.gmra.mxu0 %v7264
    %v7345 = vpop.f32.mrf.mxu0
    %v7346 = vadd.f32 0.0, %v7345
    %7347 = vmatmul.f32.gmra.mxu0 %v7267
    %v7348 = vpop.f32.mrf.mxu0
    %v7349 = vadd.f32 0.0, %v7348
    %7350 = vmatmul.f32.gmra.mxu0 %v7270
    %v7351 = vpop.f32.mrf.mxu0
    %v7352 = vadd.f32 0.0, %v7351
    %7353 = vmatmul.f32.gmra.mxu0 %v7273
    %v7354 = vpop.f32.mrf.mxu0
    %v7355 = vadd.f32 0.0, %v7354
    %7356 = vmatmul.f32.gmra.mxu0 %v7276
    %v7357 = vpop.f32.mrf.mxu0
    %v7358 = vadd.f32 0.0, %v7357
    %7359 = vmatmul.f32.gmra.mxu0 %v7279
    %v7360 = vpop.f32.mrf.mxu0
    %v7361 = vadd.f32 0.0, %v7360
    %7362 = vmatmul.f32.gmra.mxu0 %v7282
    %v7363 = vpop.f32.mrf.mxu0
    %v7364 = vadd.f32 0.0, %v7363
    %7365 = vdwg.mxu0
    %7366 = vmatpush.msra.mxu0 0.0
    %7367 = vmatpush.msra.mxu0 0.0
    %7368 = vmatpush.msra.mxu0 0.0
    %7369 = vmatpush.msra.mxu0 0.0
    %7370 = vmatpush.msra.mxu0 0.0
    %7371 = vmatpush.msra.mxu0 0.0
    %7372 = vmatpush.msra.mxu0 0.0
    %7373 = vmatpush.msra.mxu0 0.0
    %7374 = vmatpush.msra.mxu0 0.0
    %7375 = vmatpush.msra.mxu0 0.0
    %7376 = vmatpush.msra.mxu0 0.0
    %7377 = vmatpush.msra.mxu0 0.0
    %7378 = vmatpush.msra.mxu0 %v7249
    %7379 = vmatpush.msra.mxu0 %v7247
    %7380 = vmatpush.msra.mxu0 %v7244
    %7381 = vmatpush.msra.mxu0 %v7242
    %7382 = vmatmul.f32.gmra.mxu0 %v7261
    %v7383 = vpop.f32.mrf.mxu0
    %v7384 = vadd.f32 0.0, %v7383
    %7385 = vmatmul.f32.gmra.mxu0 %v7264
    %v7386 = vpop.f32.mrf.mxu0
    %v7387 = vadd.f32 0.0, %v7386
    %7388 = vmatmul.f32.gmra.mxu0 %v7267
    %v7389 = vpop.f32.mrf.mxu0
    %v7390 = vadd.f32 0.0, %v7389
    %7391 = vmatmul.f32.gmra.mxu0 %v7270
    %v7392 = vpop.f32.mrf.mxu0
    %v7393 = vadd.f32 0.0, %v7392
    %7394 = vmatmul.f32.gmra.mxu0 %v7273
    %v7395 = vpop.f32.mrf.mxu0
    %v7396 = vadd.f32 0.0, %v7395
    %7397 = vmatmul.f32.gmra.mxu0 %v7276
    %v7398 = vpop.f32.mrf.mxu0
    %v7399 = vadd.f32 0.0, %v7398
    %7400 = vmatmul.f32.gmra.mxu0 %v7279
    %v7401 = vpop.f32.mrf.mxu0
    %v7402 = vadd.f32 0.0, %v7401
    %7403 = vmatmul.f32.gmra.mxu0 %v7282
    %v7404 = vpop.f32.mrf.mxu0
    %v7405 = vadd.f32 0.0, %v7404
    %7406 = vdwg.mxu0
    %v7407 = vadd.f32 %v6495, %v7302
    %v7408 = vadd.f32 %v6536, %v7343
    %v7409 = vadd.f32 %v6577, %v7384
    %v7410 = vadd.f32 %v6498, %v7305
    %v7411 = vadd.f32 %v6539, %v7346
    %v7412 = vadd.f32 %v6580, %v7387
    %v7413 = vadd.f32 %v6501, %v7308
    %v7414 = vadd.f32 %v6542, %v7349
    %v7415 = vadd.f32 %v6583, %v7390
    %v7416 = vadd.f32 %v6504, %v7311
    %v7417 = vadd.f32 %v6545, %v7352
    %v7418 = vadd.f32 %v6586, %v7393
    %v7419 = vadd.f32 %v6507, %v7314
    %v7420 = vadd.f32 %v6548, %v7355
    %v7421 = vadd.f32 %v6589, %v7396
    %v7422 = vadd.f32 %v6510, %v7317
    %v7423 = vadd.f32 %v6551, %v7358
    %v7424 = vadd.f32 %v6592, %v7399
    %v7425 = vadd.f32 %v6513, %v7320
    %v7426 = vadd.f32 %v6554, %v7361
    %v7427 = vadd.f32 %v6595, %v7402
    %v7428 = vadd.f32 %v6516, %v7323
    %v7429 = vadd.f32 %v6557, %v7364
    %v7430 = vadd.f32 %v6598, %v7405
    %v7431 = vld [vmem:[#allocation2 + $0x24] sm:$0xff]
    %v7432 = vld [vmem:[#allocation2 + $0x2c] sm:$0xf]
    %v7433 = vld [vmem:[#allocation2 + $0x54] sm:$0xff]
    %v7434 = vld [vmem:[#allocation2 + $0x5c] sm:$0xf]
    %v7435 = vld [vmem:[#allocation2 + $0x84] sm:$0xff]
    %v7436 = vld [vmem:[#allocation2 + $0x8c] sm:$0xf]
    %v7437 = vld [vmem:[#allocation2 + $0xb4] sm:$0xff]
    %v7438 = vld [vmem:[#allocation2 + $0xbc] sm:$0xf]
    %v7439 = vld [vmem:[#allocation2 + $0xe4] sm:$0xff]
    %v7440 = vld [vmem:[#allocation2 + $0xec] sm:$0xf]
    %v7441 = vld [vmem:[#allocation2 + $0x114] sm:$0xff]
    %v7442 = vld [vmem:[#allocation2 + $0x11c] sm:$0xf]
    %v7443 = vld [vmem:[#allocation2 + $0x144] sm:$0xff]
    %v7444 = vld [vmem:[#allocation2 + $0x14c] sm:$0xf]
    %v7445 = vld [vmem:[#allocation2 + $0x174] sm:$0xff]
    %v7446 = vld [vmem:[#allocation2 + $0x17c] sm:$0xf]
    %v7447 = vld [vmem:[#allocation2 + $0x1a4] sm:$0xff]
    %v7448 = vld [vmem:[#allocation2 + $0x1ac] sm:$0xf]
    %v7449 = vld [vmem:[#allocation2 + $0x1d4] sm:$0xff]
    %v7450 = vld [vmem:[#allocation2 + $0x1dc] sm:$0xf]
    %v7451 = vld [vmem:[#allocation2 + $0x204] sm:$0xff]
    %v7452 = vld [vmem:[#allocation2 + $0x20c] sm:$0xf]
    %v7453 = vld [vmem:[#allocation2 + $0x234] sm:$0xff]
    %v7454 = vld [vmem:[#allocation2 + $0x23c] sm:$0xf]
    %v7455 = vld [vmem:[#allocation2 + $0x264] sm:$0xff]
    %v7456 = vld [vmem:[#allocation2 + $0x26c] sm:$0xf]
    %v7457 = vld [vmem:[#allocation2 + $0x294] sm:$0xff]
    %v7458 = vld [vmem:[#allocation2 + $0x29c] sm:$0xf]
    %v7459 = vld [vmem:[#allocation2 + $0x2c4] sm:$0xff]
    %v7460 = vld [vmem:[#allocation2 + $0x2cc] sm:$0xf]
    %v7461 = vld [vmem:[#allocation2 + $0x2f4] sm:$0xff]
    %v7462 = vld [vmem:[#allocation2 + $0x2fc] sm:$0xf]
    %v7463 = vld [vmem:[#allocation2 + $0x324] sm:$0xff]
    %v7464 = vld [vmem:[#allocation2 + $0x32c] sm:$0xf]
    %v7465 = vld [vmem:[#allocation2 + $0x354] sm:$0xff]
    %v7466 = vld [vmem:[#allocation2 + $0x35c] sm:$0xf]
    %v7467 = vld [vmem:[#allocation2 + $0x384] sm:$0xff]
    %v7468 = vld [vmem:[#allocation2 + $0x38c] sm:$0xf]
    %v7469 = vld [vmem:[#allocation2 + $0x3b4] sm:$0xff]
    %v7470 = vld [vmem:[#allocation2 + $0x3bc] sm:$0xf]
    %v7471 = vld [vmem:[#allocation2 + $0x3e4] sm:$0xff]
    %v7472 = vld [vmem:[#allocation2 + $0x3ec] sm:$0xf]
    %v7473 = vld [vmem:[#allocation2 + $0x414] sm:$0xff]
    %v7474 = vld [vmem:[#allocation2 + $0x41c] sm:$0xf]
    %v7475 = vld [vmem:[#allocation2 + $0x444] sm:$0xff]
    %v7476 = vld [vmem:[#allocation2 + $0x44c] sm:$0xf]
    %v7477 = vld [vmem:[#allocation2 + $0x474] sm:$0xff]
    %v7478 = vld [vmem:[#allocation2 + $0x47c] sm:$0xf]
    %v7479 = vld [vmem:[#allocation2 + $0x4a4] sm:$0xff]
    %v7480 = vld [vmem:[#allocation2 + $0x4ac] sm:$0xf]
    %v7481 = vld [vmem:[#allocation2 + $0x4d4] sm:$0xff]
    %v7482 = vld [vmem:[#allocation2 + $0x4dc] sm:$0xf]
    %v7483 = vld [vmem:[#allocation2 + $0x504] sm:$0xff]
    %v7484 = vld [vmem:[#allocation2 + $0x50c] sm:$0xf]
    %v7485 = vld [vmem:[#allocation2 + $0x534] sm:$0xff]
    %v7486 = vld [vmem:[#allocation2 + $0x53c] sm:$0xf]
    %v7487 = vld [vmem:[#allocation2 + $0x564] sm:$0xff]
    %v7488 = vld [vmem:[#allocation2 + $0x56c] sm:$0xf]
    %v7489 = vld [vmem:[#allocation2 + $0x594] sm:$0xff]
    %v7490 = vld [vmem:[#allocation2 + $0x59c] sm:$0xf]
    %v7491 = vld [vmem:[#allocation2 + $0x5c4] sm:$0xff]
    %v7492 = vld [vmem:[#allocation2 + $0x5cc] sm:$0xf]
    %v7493 = vld [vmem:[#allocation2 + $0x5f4] sm:$0xff]
    %v7494 = vld [vmem:[#allocation2 + $0x5fc] sm:$0xf]
    %v7495 = vld [vmem:[#allocation2 + $0x624] sm:$0xff]
    %v7496 = vld [vmem:[#allocation2 + $0x62c] sm:$0xf]
    %v7497 = vld [vmem:[#allocation2 + $0x654] sm:$0xff]
    %v7498 = vld [vmem:[#allocation2 + $0x65c] sm:$0xf]
    %v7499 = vld [vmem:[#allocation2 + $0x684] sm:$0xff]
    %v7500 = vld [vmem:[#allocation2 + $0x68c] sm:$0xf]
    %v7501 = vld [vmem:[#allocation2 + $0x6b4] sm:$0xff]
    %v7502 = vld [vmem:[#allocation2 + $0x6bc] sm:$0xf]
    %v7503 = vld [vmem:[#allocation2 + $0x6e4] sm:$0xff]
    %v7504 = vld [vmem:[#allocation2 + $0x6ec] sm:$0xf]
    %v7505 = vld [vmem:[#allocation2 + $0x714] sm:$0xff]
    %v7506 = vld [vmem:[#allocation2 + $0x71c] sm:$0xf]
    %v7507 = vld [vmem:[#allocation2 + $0x744] sm:$0xff]
    %v7508 = vld [vmem:[#allocation2 + $0x74c] sm:$0xf]
    %v7509 = vld [vmem:[#allocation2 + $0x774] sm:$0xff]
    %v7510 = vld [vmem:[#allocation2 + $0x77c] sm:$0xf]
    %v7511 = vld [vmem:[#allocation2 + $0x7a4] sm:$0xff]
    %v7512 = vld [vmem:[#allocation2 + $0x7ac] sm:$0xf]
    %v7513 = vld [vmem:[#allocation2 + $0x7d4] sm:$0xff]
    %v7514 = vld [vmem:[#allocation2 + $0x7dc] sm:$0xf]
    %v7515 = vld [vmem:[#allocation2 + $0x804] sm:$0xff]
    %v7516 = vld [vmem:[#allocation2 + $0x80c] sm:$0xf]
    %v7517 = vld [vmem:[#allocation2 + $0x834] sm:$0xff]
    %v7518 = vld [vmem:[#allocation2 + $0x83c] sm:$0xf]
    %v7519 = vld [vmem:[#allocation2 + $0x864] sm:$0xff]
    %v7520 = vld [vmem:[#allocation2 + $0x86c] sm:$0xf]
    %v7521 = vld [vmem:[#allocation2 + $0x894] sm:$0xff]
    %v7522 = vld [vmem:[#allocation2 + $0x89c] sm:$0xf]
    %v7523 = vld [vmem:[#allocation2 + $0x8c4] sm:$0xff]
    %v7524 = vld [vmem:[#allocation2 + $0x8cc] sm:$0xf]
    %v7525 = vld [vmem:[#allocation2 + $0x8f4] sm:$0xff]
    %v7526 = vld [vmem:[#allocation2 + $0x8fc] sm:$0xf]
    %v7623 = vunpack.c.l.b16 %v7431
    %v7624 = vunpack.c.h.b16 %v7431
    %v7625 = vunpack.c.l.b16 %v7432
    %v7626 = vunpack.c.l.b16 %v7433
    %v7627 = vunpack.c.h.b16 %v7433
    %v7628 = vunpack.c.l.b16 %v7434
    %v7629 = vunpack.c.l.b16 %v7435
    %v7630 = vunpack.c.h.b16 %v7435
    %v7631 = vunpack.c.l.b16 %v7436
    %v7632 = vunpack.c.l.b16 %v7437
    %v7633 = vunpack.c.h.b16 %v7437
    %v7634 = vunpack.c.l.b16 %v7438
    %v7635 = vunpack.c.l.b16 %v7439
    %v7636 = vunpack.c.h.b16 %v7439
    %v7637 = vunpack.c.l.b16 %v7440
    %v7638 = vunpack.c.l.b16 %v7441
    %v7639 = vunpack.c.h.b16 %v7441
    %v7640 = vunpack.c.l.b16 %v7442
    %v7641 = vunpack.c.l.b16 %v7443
    %v7642 = vunpack.c.h.b16 %v7443
    %v7643 = vunpack.c.l.b16 %v7444
    %v7644 = vunpack.c.l.b16 %v7445
    %v7645 = vunpack.c.h.b16 %v7445
    %v7646 = vunpack.c.l.b16 %v7446
    %v7647 = vunpack.c.l.b16 %v7447
    %v7648 = vunpack.c.h.b16 %v7447
    %v7649 = vunpack.c.l.b16 %v7448
    %v7650 = vunpack.c.l.b16 %v7449
    %v7651 = vunpack.c.h.b16 %v7449
    %v7652 = vunpack.c.l.b16 %v7450
    %v7653 = vunpack.c.l.b16 %v7451
    %v7654 = vunpack.c.h.b16 %v7451
    %v7655 = vunpack.c.l.b16 %v7452
    %v7656 = vunpack.c.l.b16 %v7453
    %v7657 = vunpack.c.h.b16 %v7453
    %v7658 = vunpack.c.l.b16 %v7454
    %v7659 = vunpack.c.l.b16 %v7455
    %v7660 = vunpack.c.h.b16 %v7455
    %v7661 = vunpack.c.l.b16 %v7456
    %v7662 = vunpack.c.l.b16 %v7457
    %v7663 = vunpack.c.h.b16 %v7457
    %v7664 = vunpack.c.l.b16 %v7458
    %v7665 = vunpack.c.l.b16 %v7459
    %v7666 = vunpack.c.h.b16 %v7459
    %v7667 = vunpack.c.l.b16 %v7460
    %v7668 = vunpack.c.l.b16 %v7461
    %v7669 = vunpack.c.h.b16 %v7461
    %v7670 = vunpack.c.l.b16 %v7462
    %v7671 = vunpack.c.l.b16 %v7463
    %v7672 = vunpack.c.h.b16 %v7463
    %v7673 = vunpack.c.l.b16 %v7464
    %v7674 = vunpack.c.l.b16 %v7465
    %v7675 = vunpack.c.h.b16 %v7465
    %v7676 = vunpack.c.l.b16 %v7466
    %v7677 = vunpack.c.l.b16 %v7467
    %v7678 = vunpack.c.h.b16 %v7467
    %v7679 = vunpack.c.l.b16 %v7468
    %v7680 = vunpack.c.l.b16 %v7469
    %v7681 = vunpack.c.h.b16 %v7469
    %v7682 = vunpack.c.l.b16 %v7470
    %v7683 = vunpack.c.l.b16 %v7471
    %v7684 = vunpack.c.h.b16 %v7471
    %v7685 = vunpack.c.l.b16 %v7472
    %v7686 = vunpack.c.l.b16 %v7473
    %v7687 = vunpack.c.h.b16 %v7473
    %v7688 = vunpack.c.l.b16 %v7474
    %v7689 = vunpack.c.l.b16 %v7475
    %v7690 = vunpack.c.h.b16 %v7475
    %v7691 = vunpack.c.l.b16 %v7476
    %v7692 = vunpack.c.l.b16 %v7477
    %v7693 = vunpack.c.h.b16 %v7477
    %v7694 = vunpack.c.l.b16 %v7478
    %v7695 = vunpack.c.l.b16 %v7479
    %v7696 = vunpack.c.h.b16 %v7479
    %v7697 = vunpack.c.l.b16 %v7480
    %v7698 = vunpack.c.l.b16 %v7481
    %v7699 = vunpack.c.h.b16 %v7481
    %v7700 = vunpack.c.l.b16 %v7482
    %v7701 = vunpack.c.l.b16 %v7483
    %v7702 = vunpack.c.h.b16 %v7483
    %v7703 = vunpack.c.l.b16 %v7484
    %v7704 = vunpack.c.l.b16 %v7485
    %v7705 = vunpack.c.h.b16 %v7485
    %v7706 = vunpack.c.l.b16 %v7486
    %v7707 = vunpack.c.l.b16 %v7487
    %v7708 = vunpack.c.h.b16 %v7487
    %v7709 = vunpack.c.l.b16 %v7488
    %v7710 = vunpack.c.l.b16 %v7489
    %v7711 = vunpack.c.h.b16 %v7489
    %v7712 = vunpack.c.l.b16 %v7490
    %v7713 = vunpack.c.l.b16 %v7491
    %v7714 = vunpack.c.h.b16 %v7491
    %v7715 = vunpack.c.l.b16 %v7492
    %v7716 = vunpack.c.l.b16 %v7493
    %v7717 = vunpack.c.h.b16 %v7493
    %v7718 = vunpack.c.l.b16 %v7494
    %v7719 = vunpack.c.l.b16 %v7495
    %v7720 = vunpack.c.h.b16 %v7495
    %v7721 = vunpack.c.l.b16 %v7496
    %v7722 = vunpack.c.l.b16 %v7497
    %v7723 = vunpack.c.h.b16 %v7497
    %v7724 = vunpack.c.l.b16 %v7498
    %v7725 = vunpack.c.l.b16 %v7499
    %v7726 = vunpack.c.h.b16 %v7499
    %v7727 = vunpack.c.l.b16 %v7500
    %v7728 = vunpack.c.l.b16 %v7501
    %v7729 = vunpack.c.h.b16 %v7501
    %v7730 = vunpack.c.l.b16 %v7502
    %v7731 = vunpack.c.l.b16 %v7503
    %v7732 = vunpack.c.h.b16 %v7503
    %v7733 = vunpack.c.l.b16 %v7504
    %v7734 = vunpack.c.l.b16 %v7505
    %v7735 = vunpack.c.h.b16 %v7505
    %v7736 = vunpack.c.l.b16 %v7506
    %v7737 = vunpack.c.l.b16 %v7507
    %v7738 = vunpack.c.h.b16 %v7507
    %v7739 = vunpack.c.l.b16 %v7508
    %v7740 = vunpack.c.l.b16 %v7509
    %v7741 = vunpack.c.h.b16 %v7509
    %v7742 = vunpack.c.l.b16 %v7510
    %v7743 = vunpack.c.l.b16 %v7511
    %v7744 = vunpack.c.h.b16 %v7511
    %v7745 = vunpack.c.l.b16 %v7512
    %v7746 = vunpack.c.l.b16 %v7513
    %v7747 = vunpack.c.h.b16 %v7513
    %v7748 = vunpack.c.l.b16 %v7514
    %v7749 = vunpack.c.l.b16 %v7515
    %v7750 = vunpack.c.h.b16 %v7515
    %v7751 = vunpack.c.l.b16 %v7516
    %v7752 = vunpack.c.l.b16 %v7517
    %v7753 = vunpack.c.h.b16 %v7517
    %v7754 = vunpack.c.l.b16 %v7518
    %v7755 = vunpack.c.l.b16 %v7519
    %v7756 = vunpack.c.h.b16 %v7519
    %v7757 = vunpack.c.l.b16 %v7520
    %v7758 = vunpack.c.l.b16 %v7521
    %v7759 = vunpack.c.h.b16 %v7521
    %v7760 = vunpack.c.l.b16 %v7522
    %v7761 = vunpack.c.l.b16 %v7523
    %v7762 = vunpack.c.h.b16 %v7523
    %v7763 = vunpack.c.l.b16 %v7524
    %v7764 = vunpack.c.l.b16 %v7525
    %v7765 = vunpack.c.h.b16 %v7525
    %v7766 = vunpack.c.l.b16 %v7526
    %v7767 = vpack.c.b16 %v7626, %v7623
    %v7768 = vpack.c.b16 %v7627, %v7624
    %v7769 = vpack.c.b16 %v7628, %v7625
    %v7770 = vpack.c.b16 %v7632, %v7629
    %v7771 = vpack.c.b16 %v7633, %v7630
    %v7772 = vpack.c.b16 %v7634, %v7631
    %v7773 = vpack.c.b16 %v7638, %v7635
    %v7774 = vpack.c.b16 %v7639, %v7636
    %v7775 = vpack.c.b16 %v7640, %v7637
    %v7776 = vpack.c.b16 %v7644, %v7641
    %v7777 = vpack.c.b16 %v7645, %v7642
    %v7778 = vpack.c.b16 %v7646, %v7643
    %v7779 = vpack.c.b16 %v7650, %v7647
    %v7780 = vpack.c.b16 %v7651, %v7648
    %v7781 = vpack.c.b16 %v7652, %v7649
    %v7782 = vpack.c.b16 %v7656, %v7653
    %v7783 = vpack.c.b16 %v7657, %v7654
    %v7784 = vpack.c.b16 %v7658, %v7655
    %v7785 = vpack.c.b16 %v7662, %v7659
    %v7786 = vpack.c.b16 %v7663, %v7660
    %v7787 = vpack.c.b16 %v7664, %v7661
    %v7788 = vpack.c.b16 %v7668, %v7665
    %v7789 = vpack.c.b16 %v7669, %v7666
    %v7790 = vpack.c.b16 %v7670, %v7667
    %v7791 = vpack.c.b16 %v7674, %v7671
    %v7792 = vpack.c.b16 %v7675, %v7672
    %v7793 = vpack.c.b16 %v7676, %v7673
    %v7794 = vpack.c.b16 %v7680, %v7677
    %v7795 = vpack.c.b16 %v7681, %v7678
    %v7796 = vpack.c.b16 %v7682, %v7679
    %v7797 = vpack.c.b16 %v7686, %v7683
    %v7798 = vpack.c.b16 %v7687, %v7684
    %v7799 = vpack.c.b16 %v7688, %v7685
    %v7800 = vpack.c.b16 %v7692, %v7689
    %v7801 = vpack.c.b16 %v7693, %v7690
    %v7802 = vpack.c.b16 %v7694, %v7691
    %v7803 = vpack.c.b16 %v7698, %v7695
    %v7804 = vpack.c.b16 %v7699, %v7696
    %v7805 = vpack.c.b16 %v7700, %v7697
    %v7806 = vpack.c.b16 %v7704, %v7701
    %v7807 = vpack.c.b16 %v7705, %v7702
    %v7808 = vpack.c.b16 %v7706, %v7703
    %v7809 = vpack.c.b16 %v7710, %v7707
    %v7810 = vpack.c.b16 %v7711, %v7708
    %v7811 = vpack.c.b16 %v7712, %v7709
    %v7812 = vpack.c.b16 %v7716, %v7713
    %v7813 = vpack.c.b16 %v7717, %v7714
    %v7814 = vpack.c.b16 %v7718, %v7715
    %v7815 = vpack.c.b16 %v7722, %v7719
    %v7816 = vpack.c.b16 %v7723, %v7720
    %v7817 = vpack.c.b16 %v7724, %v7721
    %v7818 = vpack.c.b16 %v7728, %v7725
    %v7819 = vpack.c.b16 %v7729, %v7726
    %v7820 = vpack.c.b16 %v7730, %v7727
    %v7821 = vpack.c.b16 %v7734, %v7731
    %v7822 = vpack.c.b16 %v7735, %v7732
    %v7823 = vpack.c.b16 %v7736, %v7733
    %v7824 = vpack.c.b16 %v7740, %v7737
    %v7825 = vpack.c.b16 %v7741, %v7738
    %v7826 = vpack.c.b16 %v7742, %v7739
    %v7827 = vpack.c.b16 %v7746, %v7743
    %v7828 = vpack.c.b16 %v7747, %v7744
    %v7829 = vpack.c.b16 %v7748, %v7745
    %v7830 = vpack.c.b16 %v7752, %v7749
    %v7831 = vpack.c.b16 %v7753, %v7750
    %v7832 = vpack.c.b16 %v7754, %v7751
    %v7833 = vpack.c.b16 %v7758, %v7755
    %v7834 = vpack.c.b16 %v7759, %v7756
    %v7835 = vpack.c.b16 %v7760, %v7757
    %v7836 = vpack.c.b16 %v7764, %v7761
    %v7837 = vpack.c.b16 %v7765, %v7762
    %v7838 = vpack.c.b16 %v7766, %v7763
    %7911 = vmatpush.bf16.msra.mxu0 %v7788
    %7912 = vmatpush.bf16.msra.mxu0 %v7785
    %7913 = vmatpush.bf16.msra.mxu0 %v7782
    %7914 = vmatpush.bf16.msra.mxu0 %v7779
    %7915 = vmatpush.bf16.msra.mxu0 %v7776
    %7916 = vmatpush.bf16.msra.mxu0 %v7773
    %7917 = vmatpush.bf16.msra.mxu0 %v7770
    %7918 = vmatpush.bf16.msra.mxu0 %v7767
    %7919 = vmatmul.bf16.gmra.mxu0 %v4981
    %v7920 = vpop.f32.mrf.mxu0
    %v7921 = vadd.f32 0.0, %v7920
    %v7922 = vpop.f32.mrf.mxu0
    %v7923 = vadd.f32 0.0, %v7922
    %7924 = vmatmul.bf16.gmra.mxu0 %v4984
    %v7925 = vpop.f32.mrf.mxu0
    %v7926 = vadd.f32 0.0, %v7925
    %v7927 = vpop.f32.mrf.mxu0
    %v7928 = vadd.f32 0.0, %v7927
    %7929 = vdwg.mxu0
    %7930 = vmatpush.bf16.msra.mxu0 %v7812
    %7931 = vmatpush.bf16.msra.mxu0 %v7809
    %7932 = vmatpush.bf16.msra.mxu0 %v7806
    %7933 = vmatpush.bf16.msra.mxu0 %v7803
    %7934 = vmatpush.bf16.msra.mxu0 %v7800
    %7935 = vmatpush.bf16.msra.mxu0 %v7797
    %7936 = vmatpush.bf16.msra.mxu0 %v7794
    %7937 = vmatpush.bf16.msra.mxu0 %v7791
    %7938 = vmatmul.bf16.gmra.mxu0 %v4982
    %v7939 = vpop.f32.mrf.mxu0
    %v7940 = vadd.f32 %v7921, %v7939
    %v7941 = vpop.f32.mrf.mxu0
    %v7942 = vadd.f32 %v7923, %v7941
    %7943 = vmatmul.bf16.gmra.mxu0 %v4985
    %v7944 = vpop.f32.mrf.mxu0
    %v7945 = vadd.f32 %v7926, %v7944
    %v7946 = vpop.f32.mrf.mxu0
    %v7947 = vadd.f32 %v7928, %v7946
    %7948 = vdwg.mxu0
    %7949 = vmatpush.bf16.msra.mxu0 %v7836
    %7950 = vmatpush.bf16.msra.mxu0 %v7833
    %7951 = vmatpush.bf16.msra.mxu0 %v7830
    %7952 = vmatpush.bf16.msra.mxu0 %v7827
    %7953 = vmatpush.bf16.msra.mxu0 %v7824
    %7954 = vmatpush.bf16.msra.mxu0 %v7821
    %7955 = vmatpush.bf16.msra.mxu0 %v7818
    %7956 = vmatpush.bf16.msra.mxu0 %v7815
    %7957 = vmatmul.bf16.gmra.mxu0 %v4983
    %v7958 = vpop.f32.mrf.mxu0
    %v7959 = vadd.f32 %v7940, %v7958
    %v7960 = vpop.f32.mrf.mxu0
    %v7961 = vadd.f32 %v7942, %v7960
    %7962 = vmatmul.bf16.gmra.mxu0 %v4986
    %v7963 = vpop.f32.mrf.mxu0
    %v7964 = vadd.f32 %v7945, %v7963
    %v7965 = vpop.f32.mrf.mxu0
    %v7966 = vadd.f32 %v7947, %v7965
    %7967 = vdwg.mxu0
    %7968 = vmatpush.bf16.msra.mxu0 %v7789
    %7969 = vmatpush.bf16.msra.mxu0 %v7786
    %7970 = vmatpush.bf16.msra.mxu0 %v7783
    %7971 = vmatpush.bf16.msra.mxu0 %v7780
    %7972 = vmatpush.bf16.msra.mxu0 %v7777
    %7973 = vmatpush.bf16.msra.mxu0 %v7774
    %7974 = vmatpush.bf16.msra.mxu0 %v7771
    %7975 = vmatpush.bf16.msra.mxu0 %v7768
    %7976 = vmatmul.bf16.gmra.mxu0 %v4981
    %v7977 = vpop.f32.mrf.mxu0
    %v7978 = vadd.f32 0.0, %v7977
    %v7979 = vpop.f32.mrf.mxu0
    %v7980 = vadd.f32 0.0, %v7979
    %7981 = vmatmul.bf16.gmra.mxu0 %v4984
    %v7982 = vpop.f32.mrf.mxu0
    %v7983 = vadd.f32 0.0, %v7982
    %v7984 = vpop.f32.mrf.mxu0
    %v7985 = vadd.f32 0.0, %v7984
    %7986 = vdwg.mxu0
    %7987 = vmatpush.bf16.msra.mxu0 %v7813
    %7988 = vmatpush.bf16.msra.mxu0 %v7810
    %7989 = vmatpush.bf16.msra.mxu0 %v7807
    %7990 = vmatpush.bf16.msra.mxu0 %v7804
    %7991 = vmatpush.bf16.msra.mxu0 %v7801
    %7992 = vmatpush.bf16.msra.mxu0 %v7798
    %7993 = vmatpush.bf16.msra.mxu0 %v7795
    %7994 = vmatpush.bf16.msra.mxu0 %v7792
    %7995 = vmatmul.bf16.gmra.mxu0 %v4982
    %v7996 = vpop.f32.mrf.mxu0
    %v7997 = vadd.f32 %v7978, %v7996
    %v7998 = vpop.f32.mrf.mxu0
    %v7999 = vadd.f32 %v7980, %v7998
    %8000 = vmatmul.bf16.gmra.mxu0 %v4985
    %v8001 = vpop.f32.mrf.mxu0
    %v8002 = vadd.f32 %v7983, %v8001
    %v8003 = vpop.f32.mrf.mxu0
    %v8004 = vadd.f32 %v7985, %v8003
    %8005 = vdwg.mxu0
    %8006 = vmatpush.bf16.msra.mxu0 %v7837
    %8007 = vmatpush.bf16.msra.mxu0 %v7834
    %8008 = vmatpush.bf16.msra.mxu0 %v7831
    %8009 = vmatpush.bf16.msra.mxu0 %v7828
    %8010 = vmatpush.bf16.msra.mxu0 %v7825
    %8011 = vmatpush.bf16.msra.mxu0 %v7822
    %8012 = vmatpush.bf16.msra.mxu0 %v7819
    %8013 = vmatpush.bf16.msra.mxu0 %v7816
    %8014 = vmatmul.bf16.gmra.mxu0 %v4983
    %v8015 = vpop.f32.mrf.mxu0
    %v8016 = vadd.f32 %v7997, %v8015
    %v8017 = vpop.f32.mrf.mxu0
    %v8018 = vadd.f32 %v7999, %v8017
    %8019 = vmatmul.bf16.gmra.mxu0 %v4986
    %v8020 = vpop.f32.mrf.mxu0
    %v8021 = vadd.f32 %v8002, %v8020
    %v8022 = vpop.f32.mrf.mxu0
    %v8023 = vadd.f32 %v8004, %v8022
    %8024 = vdwg.mxu0
    %8025 = vmatpush.bf16.msra.mxu0 %v7790
    %8026 = vmatpush.bf16.msra.mxu0 %v7787
    %8027 = vmatpush.bf16.msra.mxu0 %v7784
    %8028 = vmatpush.bf16.msra.mxu0 %v7781
    %8029 = vmatpush.bf16.msra.mxu0 %v7778
    %8030 = vmatpush.bf16.msra.mxu0 %v7775
    %8031 = vmatpush.bf16.msra.mxu0 %v7772
    %8032 = vmatpush.bf16.msra.mxu0 %v7769
    %8033 = vmatmul.bf16.gmra.mxu0 %v4981
    %v8034 = vpop.f32.mrf.mxu0
    %v8035 = vadd.f32 0.0, %v8034
    %v8036 = vpop.f32.mrf.mxu0
    %v8037 = vadd.f32 0.0, %v8036
    %8038 = vmatmul.bf16.gmra.mxu0 %v4984
    %v8039 = vpop.f32.mrf.mxu0
    %v8040 = vadd.f32 0.0, %v8039
    %v8041 = vpop.f32.mrf.mxu0
    %v8042 = vadd.f32 0.0, %v8041
    %8043 = vdwg.mxu0
    %8044 = vmatpush.bf16.msra.mxu0 %v7814
    %8045 = vmatpush.bf16.msra.mxu0 %v7811
    %8046 = vmatpush.bf16.msra.mxu0 %v7808
    %8047 = vmatpush.bf16.msra.mxu0 %v7805
    %8048 = vmatpush.bf16.msra.mxu0 %v7802
    %8049 = vmatpush.bf16.msra.mxu0 %v7799
    %8050 = vmatpush.bf16.msra.mxu0 %v7796
    %8051 = vmatpush.bf16.msra.mxu0 %v7793
    %8052 = vmatmul.bf16.gmra.mxu0 %v4982
    %v8053 = vpop.f32.mrf.mxu0
    %v8054 = vadd.f32 %v8035, %v8053
    %v8055 = vpop.f32.mrf.mxu0
    %v8056 = vadd.f32 %v8037, %v8055
    %8057 = vmatmul.bf16.gmra.mxu0 %v4985
    %v8058 = vpop.f32.mrf.mxu0
    %v8059 = vadd.f32 %v8040, %v8058
    %v8060 = vpop.f32.mrf.mxu0
    %v8061 = vadd.f32 %v8042, %v8060
    %8062 = vdwg.mxu0
    %8063 = vmatpush.bf16.msra.mxu0 %v7838
    %8064 = vmatpush.bf16.msra.mxu0 %v7835
    %8065 = vmatpush.bf16.msra.mxu0 %v7832
    %8066 = vmatpush.bf16.msra.mxu0 %v7829
    %8067 = vmatpush.bf16.msra.mxu0 %v7826
    %8068 = vmatpush.bf16.msra.mxu0 %v7823
    %8069 = vmatpush.bf16.msra.mxu0 %v7820
    %8070 = vmatpush.bf16.msra.mxu0 %v7817
    %8071 = vmatmul.bf16.gmra.mxu0 %v4983
    %v8072 = vpop.f32.mrf.mxu0
    %v8073 = vadd.f32 %v8054, %v8072
    %v8074 = vpop.f32.mrf.mxu0
    %v8075 = vadd.f32 %v8056, %v8074
    %8076 = vmatmul.bf16.gmra.mxu0 %v4986
    %v8077 = vpop.f32.mrf.mxu0
    %v8078 = vadd.f32 %v8059, %v8077
    %v8079 = vpop.f32.mrf.mxu0
    %v8080 = vadd.f32 %v8061, %v8079
    %8081 = vdwg.mxu0
    %s8082 = scalar_lea.vmem %s10, 192
    %v8083 = vld [vmem:[%s8082] sm:$0xff]
    %v8084 = vld [vmem:[%s8082 + $0x8] sm:$0xff]
    %v8085 = vld [vmem:[%s8082 + $0x10] sm:$0xff]
    %v8086 = vld [vmem:[%s8082 + $0x18] sm:$0xff]
    %v8087 = vld [vmem:[%s8082 + $0x20] sm:$0xff]
    %v8088 = vld [vmem:[%s8082 + $0x28] sm:$0xff]
    %v8089 = vld [vmem:[%s8082 + $0x30] sm:$0xff]
    %v8090 = vld [vmem:[%s8082 + $0x38] sm:$0xff]
    %v8092 = vsel %vm112, %v8083, 0
    %v8095 = vsel %vm112, %v8084, 0
    %v8098 = vsel %vm112, %v8085, 0
    %v8101 = vsel %vm112, %v8086, 0
    %v8104 = vsel %vm112, %v8087, 0
    %v8107 = vsel %vm112, %v8088, 0
    %v8110 = vsel %vm112, %v8089, 0
    %v8113 = vsel %vm112, %v8090, 0
    %8115 = vmatpush.msra.mxu0 0.0
    %8116 = vmatpush.msra.mxu0 0.0
    %8117 = vmatpush.msra.mxu0 0.0
    %8118 = vmatpush.msra.mxu0 0.0
    %8119 = vmatpush.msra.mxu0 0.0
    %8120 = vmatpush.msra.mxu0 0.0
    %8121 = vmatpush.msra.mxu0 0.0
    %8122 = vmatpush.msra.mxu0 0.0
    %8123 = vmatpush.msra.mxu0 0.0
    %8124 = vmatpush.msra.mxu0 0.0
    %8125 = vmatpush.msra.mxu0 0.0
    %8126 = vmatpush.msra.mxu0 0.0
    %8127 = vmatpush.msra.mxu0 %v7966
    %8128 = vmatpush.msra.mxu0 %v7964
    %8129 = vmatpush.msra.mxu0 %v7961
    %8130 = vmatpush.msra.mxu0 %v7959
    %8131 = vmatmul.f32.gmra.mxu0 %v8092
    %v8132 = vpop.f32.mrf.mxu0
    %v8133 = vadd.f32 0.0, %v8132
    %8134 = vmatmul.f32.gmra.mxu0 %v8095
    %v8135 = vpop.f32.mrf.mxu0
    %v8136 = vadd.f32 0.0, %v8135
    %8137 = vmatmul.f32.gmra.mxu0 %v8098
    %v8138 = vpop.f32.mrf.mxu0
    %v8139 = vadd.f32 0.0, %v8138
    %8140 = vmatmul.f32.gmra.mxu0 %v8101
    %v8141 = vpop.f32.mrf.mxu0
    %v8142 = vadd.f32 0.0, %v8141
    %8143 = vmatmul.f32.gmra.mxu0 %v8104
    %v8144 = vpop.f32.mrf.mxu0
    %v8145 = vadd.f32 0.0, %v8144
    %8146 = vmatmul.f32.gmra.mxu0 %v8107
    %v8147 = vpop.f32.mrf.mxu0
    %v8148 = vadd.f32 0.0, %v8147
    %8149 = vmatmul.f32.gmra.mxu0 %v8110
    %v8150 = vpop.f32.mrf.mxu0
    %v8151 = vadd.f32 0.0, %v8150
    %8152 = vmatmul.f32.gmra.mxu0 %v8113
    %v8153 = vpop.f32.mrf.mxu0
    %v8154 = vadd.f32 0.0, %v8153
    %8155 = vdwg.mxu0
    %8156 = vmatpush.msra.mxu0 0.0
    %8157 = vmatpush.msra.mxu0 0.0
    %8158 = vmatpush.msra.mxu0 0.0
    %8159 = vmatpush.msra.mxu0 0.0
    %8160 = vmatpush.msra.mxu0 0.0
    %8161 = vmatpush.msra.mxu0 0.0
    %8162 = vmatpush.msra.mxu0 0.0
    %8163 = vmatpush.msra.mxu0 0.0
    %8164 = vmatpush.msra.mxu0 0.0
    %8165 = vmatpush.msra.mxu0 0.0
    %8166 = vmatpush.msra.mxu0 0.0
    %8167 = vmatpush.msra.mxu0 0.0
    %8168 = vmatpush.msra.mxu0 %v8023
    %8169 = vmatpush.msra.mxu0 %v8021
    %8170 = vmatpush.msra.mxu0 %v8018
    %8171 = vmatpush.msra.mxu0 %v8016
    %8172 = vmatmul.f32.gmra.mxu0 %v8092
    %v8173 = vpop.f32.mrf.mxu0
    %v8174 = vadd.f32 0.0, %v8173
    %8175 = vmatmul.f32.gmra.mxu0 %v8095
    %v8176 = vpop.f32.mrf.mxu0
    %v8177 = vadd.f32 0.0, %v8176
    %8178 = vmatmul.f32.gmra.mxu0 %v8098
    %v8179 = vpop.f32.mrf.mxu0
    %v8180 = vadd.f32 0.0, %v8179
    %8181 = vmatmul.f32.gmra.mxu0 %v8101
    %v8182 = vpop.f32.mrf.mxu0
    %v8183 = vadd.f32 0.0, %v8182
    %8184 = vmatmul.f32.gmra.mxu0 %v8104
    %v8185 = vpop.f32.mrf.mxu0
    %v8186 = vadd.f32 0.0, %v8185
    %8187 = vmatmul.f32.gmra.mxu0 %v8107
    %v8188 = vpop.f32.mrf.mxu0
    %v8189 = vadd.f32 0.0, %v8188
    %8190 = vmatmul.f32.gmra.mxu0 %v8110
    %v8191 = vpop.f32.mrf.mxu0
    %v8192 = vadd.f32 0.0, %v8191
    %8193 = vmatmul.f32.gmra.mxu0 %v8113
    %v8194 = vpop.f32.mrf.mxu0
    %v8195 = vadd.f32 0.0, %v8194
    %8196 = vdwg.mxu0
    %8197 = vmatpush.msra.mxu0 0.0
    %8198 = vmatpush.msra.mxu0 0.0
    %8199 = vmatpush.msra.mxu0 0.0
    %8200 = vmatpush.msra.mxu0 0.0
    %8201 = vmatpush.msra.mxu0 0.0
    %8202 = vmatpush.msra.mxu0 0.0
    %8203 = vmatpush.msra.mxu0 0.0
    %8204 = vmatpush.msra.mxu0 0.0
    %8205 = vmatpush.msra.mxu0 0.0
    %8206 = vmatpush.msra.mxu0 0.0
    %8207 = vmatpush.msra.mxu0 0.0
    %8208 = vmatpush.msra.mxu0 0.0
    %8209 = vmatpush.msra.mxu0 %v8080
    %8210 = vmatpush.msra.mxu0 %v8078
    %8211 = vmatpush.msra.mxu0 %v8075
    %8212 = vmatpush.msra.mxu0 %v8073
    %8213 = vmatmul.f32.gmra.mxu0 %v8092
    %v8214 = vpop.f32.mrf.mxu0
    %v8215 = vadd.f32 0.0, %v8214
    %8216 = vmatmul.f32.gmra.mxu0 %v8095
    %v8217 = vpop.f32.mrf.mxu0
    %v8218 = vadd.f32 0.0, %v8217
    %8219 = vmatmul.f32.gmra.mxu0 %v8098
    %v8220 = vpop.f32.mrf.mxu0
    %v8221 = vadd.f32 0.0, %v8220
    %8222 = vmatmul.f32.gmra.mxu0 %v8101
    %v8223 = vpop.f32.mrf.mxu0
    %v8224 = vadd.f32 0.0, %v8223
    %8225 = vmatmul.f32.gmra.mxu0 %v8104
    %v8226 = vpop.f32.mrf.mxu0
    %v8227 = vadd.f32 0.0, %v8226
    %8228 = vmatmul.f32.gmra.mxu0 %v8107
    %v8229 = vpop.f32.mrf.mxu0
    %v8230 = vadd.f32 0.0, %v8229
    %8231 = vmatmul.f32.gmra.mxu0 %v8110
    %v8232 = vpop.f32.mrf.mxu0
    %v8233 = vadd.f32 0.0, %v8232
    %8234 = vmatmul.f32.gmra.mxu0 %v8113
    %v8235 = vpop.f32.mrf.mxu0
    %v8236 = vadd.f32 0.0, %v8235
    %8237 = vdwg.mxu0
    %v8238 = vadd.f32 %v7407, %v8133
    %v8239 = vadd.f32 %v7408, %v8174
    %v8240 = vadd.f32 %v7409, %v8215
    %v8241 = vadd.f32 %v7410, %v8136
    %v8242 = vadd.f32 %v7411, %v8177
    %v8243 = vadd.f32 %v7412, %v8218
    %v8244 = vadd.f32 %v7413, %v8139
    %v8245 = vadd.f32 %v7414, %v8180
    %v8246 = vadd.f32 %v7415, %v8221
    %v8247 = vadd.f32 %v7416, %v8142
    %v8248 = vadd.f32 %v7417, %v8183
    %v8249 = vadd.f32 %v7418, %v8224
    %v8250 = vadd.f32 %v7419, %v8145
    %v8251 = vadd.f32 %v7420, %v8186
    %v8252 = vadd.f32 %v7421, %v8227
    %v8253 = vadd.f32 %v7422, %v8148
    %v8254 = vadd.f32 %v7423, %v8189
    %v8255 = vadd.f32 %v7424, %v8230
    %v8256 = vadd.f32 %v7425, %v8151
    %v8257 = vadd.f32 %v7426, %v8192
    %v8258 = vadd.f32 %v7427, %v8233
    %v8259 = vadd.f32 %v7428, %v8154
    %v8260 = vadd.f32 %v7429, %v8195
    %v8261 = vadd.f32 %v7430, %v8236
    %v8262 = vld [vmem:[%s11] sm:$0x7]
    %v8264 = vperm.slane %v8262, 0
    %v8265 = vperm.slane %v8262, 1
    %v8266 = vperm.slane %v8262, 2
    %v8270 = vadd.f32 %v8238, %v8264
    %v8271 = vadd.f32 %v8239, %v8265
    %v8272 = vadd.f32 %v8240, %v8266
    %v8273 = vadd.f32 %v8241, %v8264
    %v8274 = vadd.f32 %v8242, %v8265
    %v8275 = vadd.f32 %v8243, %v8266
    %v8276 = vadd.f32 %v8244, %v8264
    %v8277 = vadd.f32 %v8245, %v8265
    %v8278 = vadd.f32 %v8246, %v8266
    %v8279 = vadd.f32 %v8247, %v8264
    %v8280 = vadd.f32 %v8248, %v8265
    %v8281 = vadd.f32 %v8249, %v8266
    %v8282 = vadd.f32 %v8250, %v8264
    %v8283 = vadd.f32 %v8251, %v8265
    %v8284 = vadd.f32 %v8252, %v8266
    %v8285 = vadd.f32 %v8253, %v8264
    %v8286 = vadd.f32 %v8254, %v8265
    %v8287 = vadd.f32 %v8255, %v8266
    %v8288 = vadd.f32 %v8256, %v8264
    %v8289 = vadd.f32 %v8257, %v8265
    %v8290 = vadd.f32 %v8258, %v8266
    %v8291 = vadd.f32 %v8259, %v8264
    %v8292 = vadd.f32 %v8260, %v8265
    %v8293 = vadd.f32 %v8261, %v8266
    %v8294 = vmax.f32 %v8270, 0.0
    %v8295 = vmax.f32 %v8271, 0.0
    %v8296 = vmax.f32 %v8272, 0.0
    %v8297 = vmax.f32 %v8273, 0.0
    %v8298 = vmax.f32 %v8274, 0.0
    %v8299 = vmax.f32 %v8275, 0.0
    %v8300 = vmax.f32 %v8276, 0.0
    %v8301 = vmax.f32 %v8277, 0.0
    %v8302 = vmax.f32 %v8278, 0.0
    %v8303 = vmax.f32 %v8279, 0.0
    %v8304 = vmax.f32 %v8280, 0.0
    %v8305 = vmax.f32 %v8281, 0.0
    %v8306 = vmax.f32 %v8282, 0.0
    %v8307 = vmax.f32 %v8283, 0.0
    %v8308 = vmax.f32 %v8284, 0.0
    %v8309 = vmax.f32 %v8285, 0.0
    %v8310 = vmax.f32 %v8286, 0.0
    %v8311 = vmax.f32 %v8287, 0.0
    %v8312 = vmax.f32 %v8288, 0.0
    %v8313 = vmax.f32 %v8289, 0.0
    %v8314 = vmax.f32 %v8290, 0.0
    %v8315 = vmax.f32 %v8291, 0.0
    %v8316 = vmax.f32 %v8292, 0.0
    %v8317 = vmax.f32 %v8293, 0.0
    %v8318 = vpack.c.bf16 %v8297, %v8294
    %v8319 = vpack.c.bf16 %v8298, %v8295
    %v8320 = vpack.c.bf16 %v8299, %v8296
    %v8321 = vpack.c.bf16 %v8303, %v8300
    %v8322 = vpack.c.bf16 %v8304, %v8301
    %v8323 = vpack.c.bf16 %v8305, %v8302
    %v8324 = vpack.c.bf16 %v8309, %v8306
    %v8325 = vpack.c.bf16 %v8310, %v8307
    %v8326 = vpack.c.bf16 %v8311, %v8308
    %v8327 = vpack.c.bf16 %v8315, %v8312
    %v8328 = vpack.c.bf16 %v8316, %v8313
    %v8329 = vpack.c.bf16 %v8317, %v8314
    %v8330 = vld [vmem:[#allocation4] sm:$0xff]
    %v8331 = vld [vmem:[#allocation4 + $0x20] sm:$0xff]
    %v8332 = vld [vmem:[#allocation4 + $0x40] sm:$0xff]
    %v8333 = vld [vmem:[#allocation4 + $0x60] sm:$0xff]
    %v8334 = vld [vmem:[#allocation4 + $0x80] sm:$0xff]
    %v8335 = vld [vmem:[#allocation4 + $0xa0] sm:$0xff]
    %v8336 = vld [vmem:[#allocation4 + $0xc0] sm:$0xff]
    %v8337 = vld [vmem:[#allocation4 + $0xe0] sm:$0xff]
    %v8338 = vld [vmem:[#allocation4 + $0x100] sm:$0xff]
    %v8339 = vld [vmem:[#allocation4 + $0x120] sm:$0xff]
    %v8340 = vld [vmem:[#allocation4 + $0x140] sm:$0xff]
    %v8341 = vld [vmem:[#allocation4 + $0x160] sm:$0xff]
    %v8342 = vld [vmem:[#allocation4 + $0x180] sm:$0xff]
    %v8343 = vld [vmem:[#allocation4 + $0x1a0] sm:$0xff]
    %v8344 = vld [vmem:[#allocation4 + $0x1c0] sm:$0xff]
    %v8345 = vld [vmem:[#allocation4 + $0x1e0] sm:$0xff]
    %v8346 = vld [vmem:[#allocation4 + $0x200] sm:$0xff]
    %v8347 = vld [vmem:[#allocation4 + $0x220] sm:$0xff]
    %v8348 = vld [vmem:[#allocation4 + $0x240] sm:$0xff]
    %v8349 = vld [vmem:[#allocation4 + $0x260] sm:$0xff]
    %v8350 = vld [vmem:[#allocation4 + $0x280] sm:$0xff]
    %v8351 = vld [vmem:[#allocation4 + $0x2a0] sm:$0xff]
    %v8352 = vld [vmem:[#allocation4 + $0x2c0] sm:$0xff]
    %v8353 = vld [vmem:[#allocation4 + $0x2e0] sm:$0xff]
    %v8354 = vld [vmem:[#allocation4 + $0x300] sm:$0xff]
    %v8355 = vld [vmem:[#allocation4 + $0x320] sm:$0xff]
    %v8356 = vld [vmem:[#allocation4 + $0x340] sm:$0xff]
    %v8357 = vld [vmem:[#allocation4 + $0x360] sm:$0xff]
    %v8358 = vld [vmem:[#allocation4 + $0x380] sm:$0xff]
    %v8359 = vld [vmem:[#allocation4 + $0x3a0] sm:$0xff]
    %v8360 = vld [vmem:[#allocation4 + $0x3c0] sm:$0xff]
    %v8361 = vld [vmem:[#allocation4 + $0x3e0] sm:$0xff]
    %v8362 = vld [vmem:[#allocation4 + $0x400] sm:$0xff]
    %v8363 = vld [vmem:[#allocation4 + $0x420] sm:$0xff]
    %v8364 = vld [vmem:[#allocation4 + $0x440] sm:$0xff]
    %v8365 = vld [vmem:[#allocation4 + $0x460] sm:$0xff]
    %v8366 = vld [vmem:[#allocation4 + $0x480] sm:$0xff]
    %v8367 = vld [vmem:[#allocation4 + $0x4a0] sm:$0xff]
    %v8368 = vld [vmem:[#allocation4 + $0x4c0] sm:$0xff]
    %v8369 = vld [vmem:[#allocation4 + $0x4e0] sm:$0xff]
    %v8370 = vld [vmem:[#allocation4 + $0x500] sm:$0xff]
    %v8371 = vld [vmem:[#allocation4 + $0x520] sm:$0xff]
    %v8372 = vld [vmem:[#allocation4 + $0x540] sm:$0xff]
    %v8373 = vld [vmem:[#allocation4 + $0x560] sm:$0xff]
    %v8374 = vld [vmem:[#allocation4 + $0x580] sm:$0xff]
    %v8375 = vld [vmem:[#allocation4 + $0x5a0] sm:$0xff]
    %v8376 = vld [vmem:[#allocation4 + $0x5c0] sm:$0xff]
    %v8377 = vld [vmem:[#allocation4 + $0x5e0] sm:$0xff]
    %v8426 = vunpack.c.l.b16 %v8330
    %v8427 = vunpack.c.h.b16 %v8330
    %v8428 = vunpack.c.l.b16 %v8331
    %v8429 = vunpack.c.h.b16 %v8331
    %v8430 = vunpack.c.l.b16 %v8332
    %v8431 = vunpack.c.h.b16 %v8332
    %v8432 = vunpack.c.l.b16 %v8333
    %v8433 = vunpack.c.h.b16 %v8333
    %v8434 = vunpack.c.l.b16 %v8334
    %v8435 = vunpack.c.h.b16 %v8334
    %v8436 = vunpack.c.l.b16 %v8335
    %v8437 = vunpack.c.h.b16 %v8335
    %v8438 = vunpack.c.l.b16 %v8336
    %v8439 = vunpack.c.h.b16 %v8336
    %v8440 = vunpack.c.l.b16 %v8337
    %v8441 = vunpack.c.h.b16 %v8337
    %v8442 = vunpack.c.l.b16 %v8338
    %v8443 = vunpack.c.h.b16 %v8338
    %v8444 = vunpack.c.l.b16 %v8339
    %v8445 = vunpack.c.h.b16 %v8339
    %v8446 = vunpack.c.l.b16 %v8340
    %v8447 = vunpack.c.h.b16 %v8340
    %v8448 = vunpack.c.l.b16 %v8341
    %v8449 = vunpack.c.h.b16 %v8341
    %v8450 = vunpack.c.l.b16 %v8342
    %v8451 = vunpack.c.h.b16 %v8342
    %v8452 = vunpack.c.l.b16 %v8343
    %v8453 = vunpack.c.h.b16 %v8343
    %v8454 = vunpack.c.l.b16 %v8344
    %v8455 = vunpack.c.h.b16 %v8344
    %v8456 = vunpack.c.l.b16 %v8345
    %v8457 = vunpack.c.h.b16 %v8345
    %v8458 = vunpack.c.l.b16 %v8346
    %v8459 = vunpack.c.h.b16 %v8346
    %v8460 = vunpack.c.l.b16 %v8347
    %v8461 = vunpack.c.h.b16 %v8347
    %v8462 = vunpack.c.l.b16 %v8348
    %v8463 = vunpack.c.h.b16 %v8348
    %v8464 = vunpack.c.l.b16 %v8349
    %v8465 = vunpack.c.h.b16 %v8349
    %v8466 = vunpack.c.l.b16 %v8350
    %v8467 = vunpack.c.h.b16 %v8350
    %v8468 = vunpack.c.l.b16 %v8351
    %v8469 = vunpack.c.h.b16 %v8351
    %v8470 = vunpack.c.l.b16 %v8352
    %v8471 = vunpack.c.h.b16 %v8352
    %v8472 = vunpack.c.l.b16 %v8353
    %v8473 = vunpack.c.h.b16 %v8353
    %v8474 = vunpack.c.l.b16 %v8354
    %v8475 = vunpack.c.h.b16 %v8354
    %v8476 = vunpack.c.l.b16 %v8355
    %v8477 = vunpack.c.h.b16 %v8355
    %v8478 = vunpack.c.l.b16 %v8356
    %v8479 = vunpack.c.h.b16 %v8356
    %v8480 = vunpack.c.l.b16 %v8357
    %v8481 = vunpack.c.h.b16 %v8357
    %v8482 = vunpack.c.l.b16 %v8358
    %v8483 = vunpack.c.h.b16 %v8358
    %v8484 = vunpack.c.l.b16 %v8359
    %v8485 = vunpack.c.h.b16 %v8359
    %v8486 = vunpack.c.l.b16 %v8360
    %v8487 = vunpack.c.h.b16 %v8360
    %v8488 = vunpack.c.l.b16 %v8361
    %v8489 = vunpack.c.h.b16 %v8361
    %v8490 = vunpack.c.l.b16 %v8362
    %v8491 = vunpack.c.h.b16 %v8362
    %v8492 = vunpack.c.l.b16 %v8363
    %v8493 = vunpack.c.h.b16 %v8363
    %v8494 = vunpack.c.l.b16 %v8364
    %v8495 = vunpack.c.h.b16 %v8364
    %v8496 = vunpack.c.l.b16 %v8365
    %v8497 = vunpack.c.h.b16 %v8365
    %v8498 = vunpack.c.l.b16 %v8366
    %v8499 = vunpack.c.h.b16 %v8366
    %v8500 = vunpack.c.l.b16 %v8367
    %v8501 = vunpack.c.h.b16 %v8367
    %v8502 = vunpack.c.l.b16 %v8368
    %v8503 = vunpack.c.h.b16 %v8368
    %v8504 = vunpack.c.l.b16 %v8369
    %v8505 = vunpack.c.h.b16 %v8369
    %v8506 = vunpack.c.l.b16 %v8370
    %v8507 = vunpack.c.h.b16 %v8370
    %v8508 = vunpack.c.l.b16 %v8371
    %v8509 = vunpack.c.h.b16 %v8371
    %v8510 = vunpack.c.l.b16 %v8372
    %v8511 = vunpack.c.h.b16 %v8372
    %v8512 = vunpack.c.l.b16 %v8373
    %v8513 = vunpack.c.h.b16 %v8373
    %v8514 = vunpack.c.l.b16 %v8374
    %v8515 = vunpack.c.h.b16 %v8374
    %v8516 = vunpack.c.l.b16 %v8375
    %v8517 = vunpack.c.h.b16 %v8375
    %v8518 = vunpack.c.l.b16 %v8376
    %v8519 = vunpack.c.h.b16 %v8376
    %v8520 = vunpack.c.l.b16 %v8377
    %v8521 = vunpack.c.h.b16 %v8377
    %v8522 = vpack.c.b16 %v8428, %v8426
    %v8523 = vpack.c.b16 %v8429, %v8427
    %v8524 = vpack.c.b16 %v8432, %v8430
    %v8525 = vpack.c.b16 %v8433, %v8431
    %v8526 = vpack.c.b16 %v8436, %v8434
    %v8527 = vpack.c.b16 %v8437, %v8435
    %v8528 = vpack.c.b16 %v8440, %v8438
    %v8529 = vpack.c.b16 %v8441, %v8439
    %v8530 = vpack.c.b16 %v8444, %v8442
    %v8531 = vpack.c.b16 %v8445, %v8443
    %v8532 = vpack.c.b16 %v8448, %v8446
    %v8533 = vpack.c.b16 %v8449, %v8447
    %v8534 = vpack.c.b16 %v8452, %v8450
    %v8535 = vpack.c.b16 %v8453, %v8451
    %v8536 = vpack.c.b16 %v8456, %v8454
    %v8537 = vpack.c.b16 %v8457, %v8455
    %v8538 = vpack.c.b16 %v8460, %v8458
    %v8539 = vpack.c.b16 %v8461, %v8459
    %v8540 = vpack.c.b16 %v8464, %v8462
    %v8541 = vpack.c.b16 %v8465, %v8463
    %v8542 = vpack.c.b16 %v8468, %v8466
    %v8543 = vpack.c.b16 %v8469, %v8467
    %v8544 = vpack.c.b16 %v8472, %v8470
    %v8545 = vpack.c.b16 %v8473, %v8471
    %v8546 = vpack.c.b16 %v8476, %v8474
    %v8547 = vpack.c.b16 %v8477, %v8475
    %v8548 = vpack.c.b16 %v8480, %v8478
    %v8549 = vpack.c.b16 %v8481, %v8479
    %v8550 = vpack.c.b16 %v8484, %v8482
    %v8551 = vpack.c.b16 %v8485, %v8483
    %v8552 = vpack.c.b16 %v8488, %v8486
    %v8553 = vpack.c.b16 %v8489, %v8487
    %v8554 = vpack.c.b16 %v8492, %v8490
    %v8555 = vpack.c.b16 %v8493, %v8491
    %v8556 = vpack.c.b16 %v8496, %v8494
    %v8557 = vpack.c.b16 %v8497, %v8495
    %v8558 = vpack.c.b16 %v8500, %v8498
    %v8559 = vpack.c.b16 %v8501, %v8499
    %v8560 = vpack.c.b16 %v8504, %v8502
    %v8561 = vpack.c.b16 %v8505, %v8503
    %v8562 = vpack.c.b16 %v8508, %v8506
    %v8563 = vpack.c.b16 %v8509, %v8507
    %v8564 = vpack.c.b16 %v8512, %v8510
    %v8565 = vpack.c.b16 %v8513, %v8511
    %v8566 = vpack.c.b16 %v8516, %v8514
    %v8567 = vpack.c.b16 %v8517, %v8515
    %v8568 = vpack.c.b16 %v8520, %v8518
    %v8569 = vpack.c.b16 %v8521, %v8519
    %8618 = vmatpush.bf16.msra.mxu0 %v8536
    %8619 = vmatpush.bf16.msra.mxu0 %v8534
    %8620 = vmatpush.bf16.msra.mxu0 %v8532
    %8621 = vmatpush.bf16.msra.mxu0 %v8530
    %8622 = vmatpush.bf16.msra.mxu0 %v8528
    %8623 = vmatpush.bf16.msra.mxu0 %v8526
    %8624 = vmatpush.bf16.msra.mxu0 %v8524
    %8625 = vmatpush.bf16.msra.mxu0 %v8522
    %8626 = vmatmul.bf16.gmra.mxu0 %v8318
    %v8627 = vpop.f32.mrf.mxu0
    %v8628 = vadd.f32 0.0, %v8627
    %v8629 = vpop.f32.mrf.mxu0
    %v8630 = vadd.f32 0.0, %v8629
    %8631 = vmatmul.bf16.gmra.mxu0 %v8321
    %v8632 = vpop.f32.mrf.mxu0
    %v8633 = vadd.f32 0.0, %v8632
    %v8634 = vpop.f32.mrf.mxu0
    %v8635 = vadd.f32 0.0, %v8634
    %8636 = vmatmul.bf16.gmra.mxu0 %v8324
    %v8637 = vpop.f32.mrf.mxu0
    %v8638 = vadd.f32 0.0, %v8637
    %v8639 = vpop.f32.mrf.mxu0
    %v8640 = vadd.f32 0.0, %v8639
    %8641 = vmatmul.bf16.gmra.mxu0 %v8327
    %v8642 = vpop.f32.mrf.mxu0
    %v8643 = vadd.f32 0.0, %v8642
    %v8644 = vpop.f32.mrf.mxu0
    %v8645 = vadd.f32 0.0, %v8644
    %8646 = vdwg.mxu0
    %8647 = vmatpush.bf16.msra.mxu0 %v8552
    %8648 = vmatpush.bf16.msra.mxu0 %v8550
    %8649 = vmatpush.bf16.msra.mxu0 %v8548
    %8650 = vmatpush.bf16.msra.mxu0 %v8546
    %8651 = vmatpush.bf16.msra.mxu0 %v8544
    %8652 = vmatpush.bf16.msra.mxu0 %v8542
    %8653 = vmatpush.bf16.msra.mxu0 %v8540
    %8654 = vmatpush.bf16.msra.mxu0 %v8538
    %8655 = vmatmul.bf16.gmra.mxu0 %v8319
    %v8656 = vpop.f32.mrf.mxu0
    %v8657 = vadd.f32 %v8628, %v8656
    %v8658 = vpop.f32.mrf.mxu0
    %v8659 = vadd.f32 %v8630, %v8658
    %8660 = vmatmul.bf16.gmra.mxu0 %v8322
    %v8661 = vpop.f32.mrf.mxu0
    %v8662 = vadd.f32 %v8633, %v8661
    %v8663 = vpop.f32.mrf.mxu0
    %v8664 = vadd.f32 %v8635, %v8663
    %8665 = vmatmul.bf16.gmra.mxu0 %v8325
    %v8666 = vpop.f32.mrf.mxu0
    %v8667 = vadd.f32 %v8638, %v8666
    %v8668 = vpop.f32.mrf.mxu0
    %v8669 = vadd.f32 %v8640, %v8668
    %8670 = vmatmul.bf16.gmra.mxu0 %v8328
    %v8671 = vpop.f32.mrf.mxu0
    %v8672 = vadd.f32 %v8643, %v8671
    %v8673 = vpop.f32.mrf.mxu0
    %v8674 = vadd.f32 %v8645, %v8673
    %8675 = vdwg.mxu0
    %8676 = vmatpush.bf16.msra.mxu0 %v8568
    %8677 = vmatpush.bf16.msra.mxu0 %v8566
    %8678 = vmatpush.bf16.msra.mxu0 %v8564
    %8679 = vmatpush.bf16.msra.mxu0 %v8562
    %8680 = vmatpush.bf16.msra.mxu0 %v8560
    %8681 = vmatpush.bf16.msra.mxu0 %v8558
    %8682 = vmatpush.bf16.msra.mxu0 %v8556
    %8683 = vmatpush.bf16.msra.mxu0 %v8554
    %8684 = vmatmul.bf16.gmra.mxu0 %v8320
    %v8685 = vpop.f32.mrf.mxu0
    %v8686 = vadd.f32 %v8657, %v8685
    %v8687 = vpop.f32.mrf.mxu0
    %v8688 = vadd.f32 %v8659, %v8687
    %8689 = vmatmul.bf16.gmra.mxu0 %v8323
    %v8690 = vpop.f32.mrf.mxu0
    %v8691 = vadd.f32 %v8662, %v8690
    %v8692 = vpop.f32.mrf.mxu0
    %v8693 = vadd.f32 %v8664, %v8692
    %8694 = vmatmul.bf16.gmra.mxu0 %v8326
    %v8695 = vpop.f32.mrf.mxu0
    %v8696 = vadd.f32 %v8667, %v8695
    %v8697 = vpop.f32.mrf.mxu0
    %v8698 = vadd.f32 %v8669, %v8697
    %8699 = vmatmul.bf16.gmra.mxu0 %v8329
    %v8700 = vpop.f32.mrf.mxu0
    %v8701 = vadd.f32 %v8672, %v8700
    %v8702 = vpop.f32.mrf.mxu0
    %v8703 = vadd.f32 %v8674, %v8702
    %8704 = vdwg.mxu0
    %8705 = vmatpush.bf16.msra.mxu0 %v8537
    %8706 = vmatpush.bf16.msra.mxu0 %v8535
    %8707 = vmatpush.bf16.msra.mxu0 %v8533
    %8708 = vmatpush.bf16.msra.mxu0 %v8531
    %8709 = vmatpush.bf16.msra.mxu0 %v8529
    %8710 = vmatpush.bf16.msra.mxu0 %v8527
    %8711 = vmatpush.bf16.msra.mxu0 %v8525
    %8712 = vmatpush.bf16.msra.mxu0 %v8523
    %8713 = vmatmul.bf16.gmra.mxu0 %v8318
    %v8714 = vpop.f32.mrf.mxu0
    %v8715 = vadd.f32 0.0, %v8714
    %v8716 = vpop.f32.mrf.mxu0
    %v8717 = vadd.f32 0.0, %v8716
    %8718 = vmatmul.bf16.gmra.mxu0 %v8321
    %v8719 = vpop.f32.mrf.mxu0
    %v8720 = vadd.f32 0.0, %v8719
    %v8721 = vpop.f32.mrf.mxu0
    %v8722 = vadd.f32 0.0, %v8721
    %8723 = vmatmul.bf16.gmra.mxu0 %v8324
    %v8724 = vpop.f32.mrf.mxu0
    %v8725 = vadd.f32 0.0, %v8724
    %v8726 = vpop.f32.mrf.mxu0
    %v8727 = vadd.f32 0.0, %v8726
    %8728 = vmatmul.bf16.gmra.mxu0 %v8327
    %v8729 = vpop.f32.mrf.mxu0
    %v8730 = vadd.f32 0.0, %v8729
    %v8731 = vpop.f32.mrf.mxu0
    %v8732 = vadd.f32 0.0, %v8731
    %8733 = vdwg.mxu0
    %8734 = vmatpush.bf16.msra.mxu0 %v8553
    %8735 = vmatpush.bf16.msra.mxu0 %v8551
    %8736 = vmatpush.bf16.msra.mxu0 %v8549
    %8737 = vmatpush.bf16.msra.mxu0 %v8547
    %8738 = vmatpush.bf16.msra.mxu0 %v8545
    %8739 = vmatpush.bf16.msra.mxu0 %v8543
    %8740 = vmatpush.bf16.msra.mxu0 %v8541
    %8741 = vmatpush.bf16.msra.mxu0 %v8539
    %8742 = vmatmul.bf16.gmra.mxu0 %v8319
    %v8743 = vpop.f32.mrf.mxu0
    %v8744 = vadd.f32 %v8715, %v8743
    %v8745 = vpop.f32.mrf.mxu0
    %v8746 = vadd.f32 %v8717, %v8745
    %8747 = vmatmul.bf16.gmra.mxu0 %v8322
    %v8748 = vpop.f32.mrf.mxu0
    %v8749 = vadd.f32 %v8720, %v8748
    %v8750 = vpop.f32.mrf.mxu0
    %v8751 = vadd.f32 %v8722, %v8750
    %8752 = vmatmul.bf16.gmra.mxu0 %v8325
    %v8753 = vpop.f32.mrf.mxu0
    %v8754 = vadd.f32 %v8725, %v8753
    %v8755 = vpop.f32.mrf.mxu0
    %v8756 = vadd.f32 %v8727, %v8755
    %8757 = vmatmul.bf16.gmra.mxu0 %v8328
    %v8758 = vpop.f32.mrf.mxu0
    %v8759 = vadd.f32 %v8730, %v8758
    %v8760 = vpop.f32.mrf.mxu0
    %v8761 = vadd.f32 %v8732, %v8760
    %8762 = vdwg.mxu0
    %8763 = vmatpush.bf16.msra.mxu0 %v8569
    %8764 = vmatpush.bf16.msra.mxu0 %v8567
    %8765 = vmatpush.bf16.msra.mxu0 %v8565
    %8766 = vmatpush.bf16.msra.mxu0 %v8563
    %8767 = vmatpush.bf16.msra.mxu0 %v8561
    %8768 = vmatpush.bf16.msra.mxu0 %v8559
    %8769 = vmatpush.bf16.msra.mxu0 %v8557
    %8770 = vmatpush.bf16.msra.mxu0 %v8555
    %8771 = vmatmul.bf16.gmra.mxu0 %v8320
    %v8772 = vpop.f32.mrf.mxu0
    %v8773 = vadd.f32 %v8744, %v8772
    %v8774 = vpop.f32.mrf.mxu0
    %v8775 = vadd.f32 %v8746, %v8774
    %8776 = vmatmul.bf16.gmra.mxu0 %v8323
    %v8777 = vpop.f32.mrf.mxu0
    %v8778 = vadd.f32 %v8749, %v8777
    %v8779 = vpop.f32.mrf.mxu0
    %v8780 = vadd.f32 %v8751, %v8779
    %8781 = vmatmul.bf16.gmra.mxu0 %v8326
    %v8782 = vpop.f32.mrf.mxu0
    %v8783 = vadd.f32 %v8754, %v8782
    %v8784 = vpop.f32.mrf.mxu0
    %v8785 = vadd.f32 %v8756, %v8784
    %8786 = vmatmul.bf16.gmra.mxu0 %v8329
    %v8787 = vpop.f32.mrf.mxu0
    %v8788 = vadd.f32 %v8759, %v8787
    %v8789 = vpop.f32.mrf.mxu0
    %v8790 = vadd.f32 %v8761, %v8789
    %8791 = vdwg.mxu0
    %v8792 = vld [vmem:[%s13] sm:$0xff]
    %v8793 = vld [vmem:[%s13 + $0x8] sm:$0xff]
    %v8794 = vld [vmem:[%s13 + $0x10] sm:$0xff]
    %v8795 = vld [vmem:[%s13 + $0x18] sm:$0xff]
    %v8796 = vld [vmem:[%s13 + $0x20] sm:$0xff]
    %v8797 = vld [vmem:[%s13 + $0x28] sm:$0xff]
    %v8798 = vld [vmem:[%s13 + $0x30] sm:$0xff]
    %v8799 = vld [vmem:[%s13 + $0x38] sm:$0xff]
    %v8800 = vld [vmem:[%s13 + $0x40] sm:$0xff]
    %v8801 = vld [vmem:[%s13 + $0x48] sm:$0xff]
    %v8802 = vld [vmem:[%s13 + $0x50] sm:$0xff]
    %v8803 = vld [vmem:[%s13 + $0x58] sm:$0xff]
    %v8804 = vld [vmem:[%s13 + $0x60] sm:$0xff]
    %v8805 = vld [vmem:[%s13 + $0x68] sm:$0xff]
    %v8806 = vld [vmem:[%s13 + $0x70] sm:$0xff]
    %v8807 = vld [vmem:[%s13 + $0x78] sm:$0xff]
    %v8808 = vld [vmem:[#allocation4 + $0x8] sm:$0xff]
    %v8809 = vld [vmem:[#allocation4 + $0x28] sm:$0xff]
    %v8810 = vld [vmem:[#allocation4 + $0x48] sm:$0xff]
    %v8811 = vld [vmem:[#allocation4 + $0x68] sm:$0xff]
    %v8812 = vld [vmem:[#allocation4 + $0x88] sm:$0xff]
    %v8813 = vld [vmem:[#allocation4 + $0xa8] sm:$0xff]
    %v8814 = vld [vmem:[#allocation4 + $0xc8] sm:$0xff]
    %v8815 = vld [vmem:[#allocation4 + $0xe8] sm:$0xff]
    %v8816 = vld [vmem:[#allocation4 + $0x108] sm:$0xff]
    %v8817 = vld [vmem:[#allocation4 + $0x128] sm:$0xff]
    %v8818 = vld [vmem:[#allocation4 + $0x148] sm:$0xff]
    %v8819 = vld [vmem:[#allocation4 + $0x168] sm:$0xff]
    %v8820 = vld [vmem:[#allocation4 + $0x188] sm:$0xff]
    %v8821 = vld [vmem:[#allocation4 + $0x1a8] sm:$0xff]
    %v8822 = vld [vmem:[#allocation4 + $0x1c8] sm:$0xff]
    %v8823 = vld [vmem:[#allocation4 + $0x1e8] sm:$0xff]
    %v8824 = vld [vmem:[#allocation4 + $0x208] sm:$0xff]
    %v8825 = vld [vmem:[#allocation4 + $0x228] sm:$0xff]
    %v8826 = vld [vmem:[#allocation4 + $0x248] sm:$0xff]
    %v8827 = vld [vmem:[#allocation4 + $0x268] sm:$0xff]
    %v8828 = vld [vmem:[#allocation4 + $0x288] sm:$0xff]
    %v8829 = vld [vmem:[#allocation4 + $0x2a8] sm:$0xff]
    %v8830 = vld [vmem:[#allocation4 + $0x2c8] sm:$0xff]
    %v8831 = vld [vmem:[#allocation4 + $0x2e8] sm:$0xff]
    %v8832 = vld [vmem:[#allocation4 + $0x308] sm:$0xff]
    %v8833 = vld [vmem:[#allocation4 + $0x328] sm:$0xff]
    %v8834 = vld [vmem:[#allocation4 + $0x348] sm:$0xff]
    %v8835 = vld [vmem:[#allocation4 + $0x368] sm:$0xff]
    %v8836 = vld [vmem:[#allocation4 + $0x388] sm:$0xff]
    %v8837 = vld [vmem:[#allocation4 + $0x3a8] sm:$0xff]
    %v8838 = vld [vmem:[#allocation4 + $0x3c8] sm:$0xff]
    %v8839 = vld [vmem:[#allocation4 + $0x3e8] sm:$0xff]
    %v8840 = vld [vmem:[#allocation4 + $0x408] sm:$0xff]
    %v8841 = vld [vmem:[#allocation4 + $0x428] sm:$0xff]
    %v8842 = vld [vmem:[#allocation4 + $0x448] sm:$0xff]
    %v8843 = vld [vmem:[#allocation4 + $0x468] sm:$0xff]
    %v8844 = vld [vmem:[#allocation4 + $0x488] sm:$0xff]
    %v8845 = vld [vmem:[#allocation4 + $0x4a8] sm:$0xff]
    %v8846 = vld [vmem:[#allocation4 + $0x4c8] sm:$0xff]
    %v8847 = vld [vmem:[#allocation4 + $0x4e8] sm:$0xff]
    %v8848 = vld [vmem:[#allocation4 + $0x508] sm:$0xff]
    %v8849 = vld [vmem:[#allocation4 + $0x528] sm:$0xff]
    %v8850 = vld [vmem:[#allocation4 + $0x548] sm:$0xff]
    %v8851 = vld [vmem:[#allocation4 + $0x568] sm:$0xff]
    %v8852 = vld [vmem:[#allocation4 + $0x588] sm:$0xff]
    %v8853 = vld [vmem:[#allocation4 + $0x5a8] sm:$0xff]
    %v8854 = vld [vmem:[#allocation4 + $0x5c8] sm:$0xff]
    %v8855 = vld [vmem:[#allocation4 + $0x5e8] sm:$0xff]
    %v8904 = vunpack.c.l.b16 %v8808
    %v8905 = vunpack.c.h.b16 %v8808
    %v8906 = vunpack.c.l.b16 %v8809
    %v8907 = vunpack.c.h.b16 %v8809
    %v8908 = vunpack.c.l.b16 %v8810
    %v8909 = vunpack.c.h.b16 %v8810
    %v8910 = vunpack.c.l.b16 %v8811
    %v8911 = vunpack.c.h.b16 %v8811
    %v8912 = vunpack.c.l.b16 %v8812
    %v8913 = vunpack.c.h.b16 %v8812
    %v8914 = vunpack.c.l.b16 %v8813
    %v8915 = vunpack.c.h.b16 %v8813
    %v8916 = vunpack.c.l.b16 %v8814
    %v8917 = vunpack.c.h.b16 %v8814
    %v8918 = vunpack.c.l.b16 %v8815
    %v8919 = vunpack.c.h.b16 %v8815
    %v8920 = vunpack.c.l.b16 %v8816
    %v8921 = vunpack.c.h.b16 %v8816
    %v8922 = vunpack.c.l.b16 %v8817
    %v8923 = vunpack.c.h.b16 %v8817
    %v8924 = vunpack.c.l.b16 %v8818
    %v8925 = vunpack.c.h.b16 %v8818
    %v8926 = vunpack.c.l.b16 %v8819
    %v8927 = vunpack.c.h.b16 %v8819
    %v8928 = vunpack.c.l.b16 %v8820
    %v8929 = vunpack.c.h.b16 %v8820
    %v8930 = vunpack.c.l.b16 %v8821
    %v8931 = vunpack.c.h.b16 %v8821
    %v8932 = vunpack.c.l.b16 %v8822
    %v8933 = vunpack.c.h.b16 %v8822
    %v8934 = vunpack.c.l.b16 %v8823
    %v8935 = vunpack.c.h.b16 %v8823
    %v8936 = vunpack.c.l.b16 %v8824
    %v8937 = vunpack.c.h.b16 %v8824
    %v8938 = vunpack.c.l.b16 %v8825
    %v8939 = vunpack.c.h.b16 %v8825
    %v8940 = vunpack.c.l.b16 %v8826
    %v8941 = vunpack.c.h.b16 %v8826
    %v8942 = vunpack.c.l.b16 %v8827
    %v8943 = vunpack.c.h.b16 %v8827
    %v8944 = vunpack.c.l.b16 %v8828
    %v8945 = vunpack.c.h.b16 %v8828
    %v8946 = vunpack.c.l.b16 %v8829
    %v8947 = vunpack.c.h.b16 %v8829
    %v8948 = vunpack.c.l.b16 %v8830
    %v8949 = vunpack.c.h.b16 %v8830
    %v8950 = vunpack.c.l.b16 %v8831
    %v8951 = vunpack.c.h.b16 %v8831
    %v8952 = vunpack.c.l.b16 %v8832
    %v8953 = vunpack.c.h.b16 %v8832
    %v8954 = vunpack.c.l.b16 %v8833
    %v8955 = vunpack.c.h.b16 %v8833
    %v8956 = vunpack.c.l.b16 %v8834
    %v8957 = vunpack.c.h.b16 %v8834
    %v8958 = vunpack.c.l.b16 %v8835
    %v8959 = vunpack.c.h.b16 %v8835
    %v8960 = vunpack.c.l.b16 %v8836
    %v8961 = vunpack.c.h.b16 %v8836
    %v8962 = vunpack.c.l.b16 %v8837
    %v8963 = vunpack.c.h.b16 %v8837
    %v8964 = vunpack.c.l.b16 %v8838
    %v8965 = vunpack.c.h.b16 %v8838
    %v8966 = vunpack.c.l.b16 %v8839
    %v8967 = vunpack.c.h.b16 %v8839
    %v8968 = vunpack.c.l.b16 %v8840
    %v8969 = vunpack.c.h.b16 %v8840
    %v8970 = vunpack.c.l.b16 %v8841
    %v8971 = vunpack.c.h.b16 %v8841
    %v8972 = vunpack.c.l.b16 %v8842
    %v8973 = vunpack.c.h.b16 %v8842
    %v8974 = vunpack.c.l.b16 %v8843
    %v8975 = vunpack.c.h.b16 %v8843
    %v8976 = vunpack.c.l.b16 %v8844
    %v8977 = vunpack.c.h.b16 %v8844
    %v8978 = vunpack.c.l.b16 %v8845
    %v8979 = vunpack.c.h.b16 %v8845
    %v8980 = vunpack.c.l.b16 %v8846
    %v8981 = vunpack.c.h.b16 %v8846
    %v8982 = vunpack.c.l.b16 %v8847
    %v8983 = vunpack.c.h.b16 %v8847
    %v8984 = vunpack.c.l.b16 %v8848
    %v8985 = vunpack.c.h.b16 %v8848
    %v8986 = vunpack.c.l.b16 %v8849
    %v8987 = vunpack.c.h.b16 %v8849
    %v8988 = vunpack.c.l.b16 %v8850
    %v8989 = vunpack.c.h.b16 %v8850
    %v8990 = vunpack.c.l.b16 %v8851
    %v8991 = vunpack.c.h.b16 %v8851
    %v8992 = vunpack.c.l.b16 %v8852
    %v8993 = vunpack.c.h.b16 %v8852
    %v8994 = vunpack.c.l.b16 %v8853
    %v8995 = vunpack.c.h.b16 %v8853
    %v8996 = vunpack.c.l.b16 %v8854
    %v8997 = vunpack.c.h.b16 %v8854
    %v8998 = vunpack.c.l.b16 %v8855
    %v8999 = vunpack.c.h.b16 %v8855
    %v9000 = vpack.c.b16 %v8906, %v8904
    %v9001 = vpack.c.b16 %v8907, %v8905
    %v9002 = vpack.c.b16 %v8910, %v8908
    %v9003 = vpack.c.b16 %v8911, %v8909
    %v9004 = vpack.c.b16 %v8914, %v8912
    %v9005 = vpack.c.b16 %v8915, %v8913
    %v9006 = vpack.c.b16 %v8918, %v8916
    %v9007 = vpack.c.b16 %v8919, %v8917
    %v9008 = vpack.c.b16 %v8922, %v8920
    %v9009 = vpack.c.b16 %v8923, %v8921
    %v9010 = vpack.c.b16 %v8926, %v8924
    %v9011 = vpack.c.b16 %v8927, %v8925
    %v9012 = vpack.c.b16 %v8930, %v8928
    %v9013 = vpack.c.b16 %v8931, %v8929
    %v9014 = vpack.c.b16 %v8934, %v8932
    %v9015 = vpack.c.b16 %v8935, %v8933
    %v9016 = vpack.c.b16 %v8938, %v8936
    %v9017 = vpack.c.b16 %v8939, %v8937
    %v9018 = vpack.c.b16 %v8942, %v8940
    %v9019 = vpack.c.b16 %v8943, %v8941
    %v9020 = vpack.c.b16 %v8946, %v8944
    %v9021 = vpack.c.b16 %v8947, %v8945
    %v9022 = vpack.c.b16 %v8950, %v8948
    %v9023 = vpack.c.b16 %v8951, %v8949
    %v9024 = vpack.c.b16 %v8954, %v8952
    %v9025 = vpack.c.b16 %v8955, %v8953
    %v9026 = vpack.c.b16 %v8958, %v8956
    %v9027 = vpack.c.b16 %v8959, %v8957
    %v9028 = vpack.c.b16 %v8962, %v8960
    %v9029 = vpack.c.b16 %v8963, %v8961
    %v9030 = vpack.c.b16 %v8966, %v8964
    %v9031 = vpack.c.b16 %v8967, %v8965
    %v9032 = vpack.c.b16 %v8970, %v8968
    %v9033 = vpack.c.b16 %v8971, %v8969
    %v9034 = vpack.c.b16 %v8974, %v8972
    %v9035 = vpack.c.b16 %v8975, %v8973
    %v9036 = vpack.c.b16 %v8978, %v8976
    %v9037 = vpack.c.b16 %v8979, %v8977
    %v9038 = vpack.c.b16 %v8982, %v8980
    %v9039 = vpack.c.b16 %v8983, %v8981
    %v9040 = vpack.c.b16 %v8986, %v8984
    %v9041 = vpack.c.b16 %v8987, %v8985
    %v9042 = vpack.c.b16 %v8990, %v8988
    %v9043 = vpack.c.b16 %v8991, %v8989
    %v9044 = vpack.c.b16 %v8994, %v8992
    %v9045 = vpack.c.b16 %v8995, %v8993
    %v9046 = vpack.c.b16 %v8998, %v8996
    %v9047 = vpack.c.b16 %v8999, %v8997
    %9096 = vmatpush.bf16.msra.mxu0 %v9014
    %9097 = vmatpush.bf16.msra.mxu0 %v9012
    %9098 = vmatpush.bf16.msra.mxu0 %v9010
    %9099 = vmatpush.bf16.msra.mxu0 %v9008
    %9100 = vmatpush.bf16.msra.mxu0 %v9006
    %9101 = vmatpush.bf16.msra.mxu0 %v9004
    %9102 = vmatpush.bf16.msra.mxu0 %v9002
    %9103 = vmatpush.bf16.msra.mxu0 %v9000
    %9104 = vmatmul.bf16.gmra.mxu0 %v8318
    %v9105 = vpop.f32.mrf.mxu0
    %v9106 = vadd.f32 0.0, %v9105
    %v9107 = vpop.f32.mrf.mxu0
    %v9108 = vadd.f32 0.0, %v9107
    %9109 = vmatmul.bf16.gmra.mxu0 %v8321
    %v9110 = vpop.f32.mrf.mxu0
    %v9111 = vadd.f32 0.0, %v9110
    %v9112 = vpop.f32.mrf.mxu0
    %v9113 = vadd.f32 0.0, %v9112
    %9114 = vmatmul.bf16.gmra.mxu0 %v8324
    %v9115 = vpop.f32.mrf.mxu0
    %v9116 = vadd.f32 0.0, %v9115
    %v9117 = vpop.f32.mrf.mxu0
    %v9118 = vadd.f32 0.0, %v9117
    %9119 = vmatmul.bf16.gmra.mxu0 %v8327
    %v9120 = vpop.f32.mrf.mxu0
    %v9121 = vadd.f32 0.0, %v9120
    %v9122 = vpop.f32.mrf.mxu0
    %v9123 = vadd.f32 0.0, %v9122
    %9124 = vdwg.mxu0
    %9125 = vmatpush.bf16.msra.mxu0 %v9030
    %9126 = vmatpush.bf16.msra.mxu0 %v9028
    %9127 = vmatpush.bf16.msra.mxu0 %v9026
    %9128 = vmatpush.bf16.msra.mxu0 %v9024
    %9129 = vmatpush.bf16.msra.mxu0 %v9022
    %9130 = vmatpush.bf16.msra.mxu0 %v9020
    %9131 = vmatpush.bf16.msra.mxu0 %v9018
    %9132 = vmatpush.bf16.msra.mxu0 %v9016
    %9133 = vmatmul.bf16.gmra.mxu0 %v8319
    %v9134 = vpop.f32.mrf.mxu0
    %v9135 = vadd.f32 %v9106, %v9134
    %v9136 = vpop.f32.mrf.mxu0
    %v9137 = vadd.f32 %v9108, %v9136
    %9138 = vmatmul.bf16.gmra.mxu0 %v8322
    %v9139 = vpop.f32.mrf.mxu0
    %v9140 = vadd.f32 %v9111, %v9139
    %v9141 = vpop.f32.mrf.mxu0
    %v9142 = vadd.f32 %v9113, %v9141
    %9143 = vmatmul.bf16.gmra.mxu0 %v8325
    %v9144 = vpop.f32.mrf.mxu0
    %v9145 = vadd.f32 %v9116, %v9144
    %v9146 = vpop.f32.mrf.mxu0
    %v9147 = vadd.f32 %v9118, %v9146
    %9148 = vmatmul.bf16.gmra.mxu0 %v8328
    %v9149 = vpop.f32.mrf.mxu0
    %v9150 = vadd.f32 %v9121, %v9149
    %v9151 = vpop.f32.mrf.mxu0
    %v9152 = vadd.f32 %v9123, %v9151
    %9153 = vdwg.mxu0
    %9154 = vmatpush.bf16.msra.mxu0 %v9046
    %9155 = vmatpush.bf16.msra.mxu0 %v9044
    %9156 = vmatpush.bf16.msra.mxu0 %v9042
    %9157 = vmatpush.bf16.msra.mxu0 %v9040
    %9158 = vmatpush.bf16.msra.mxu0 %v9038
    %9159 = vmatpush.bf16.msra.mxu0 %v9036
    %9160 = vmatpush.bf16.msra.mxu0 %v9034
    %9161 = vmatpush.bf16.msra.mxu0 %v9032
    %9162 = vmatmul.bf16.gmra.mxu0 %v8320
    %v9163 = vpop.f32.mrf.mxu0
    %v9164 = vadd.f32 %v9135, %v9163
    %v9165 = vpop.f32.mrf.mxu0
    %v9166 = vadd.f32 %v9137, %v9165
    %9167 = vmatmul.bf16.gmra.mxu0 %v8323
    %v9168 = vpop.f32.mrf.mxu0
    %v9169 = vadd.f32 %v9140, %v9168
    %v9170 = vpop.f32.mrf.mxu0
    %v9171 = vadd.f32 %v9142, %v9170
    %9172 = vmatmul.bf16.gmra.mxu0 %v8326
    %v9173 = vpop.f32.mrf.mxu0
    %v9174 = vadd.f32 %v9145, %v9173
    %v9175 = vpop.f32.mrf.mxu0
    %v9176 = vadd.f32 %v9147, %v9175
    %9177 = vmatmul.bf16.gmra.mxu0 %v8329
    %v9178 = vpop.f32.mrf.mxu0
    %v9179 = vadd.f32 %v9150, %v9178
    %v9180 = vpop.f32.mrf.mxu0
    %v9181 = vadd.f32 %v9152, %v9180
    %9182 = vdwg.mxu0
    %9183 = vmatpush.bf16.msra.mxu0 %v9015
    %9184 = vmatpush.bf16.msra.mxu0 %v9013
    %9185 = vmatpush.bf16.msra.mxu0 %v9011
    %9186 = vmatpush.bf16.msra.mxu0 %v9009
    %9187 = vmatpush.bf16.msra.mxu0 %v9007
    %9188 = vmatpush.bf16.msra.mxu0 %v9005
    %9189 = vmatpush.bf16.msra.mxu0 %v9003
    %9190 = vmatpush.bf16.msra.mxu0 %v9001
    %9191 = vmatmul.bf16.gmra.mxu0 %v8318
    %v9192 = vpop.f32.mrf.mxu0
    %v9193 = vadd.f32 0.0, %v9192
    %v9194 = vpop.f32.mrf.mxu0
    %v9195 = vadd.f32 0.0, %v9194
    %9196 = vmatmul.bf16.gmra.mxu0 %v8321
    %v9197 = vpop.f32.mrf.mxu0
    %v9198 = vadd.f32 0.0, %v9197
    %v9199 = vpop.f32.mrf.mxu0
    %v9200 = vadd.f32 0.0, %v9199
    %9201 = vmatmul.bf16.gmra.mxu0 %v8324
    %v9202 = vpop.f32.mrf.mxu0
    %v9203 = vadd.f32 0.0, %v9202
    %v9204 = vpop.f32.mrf.mxu0
    %v9205 = vadd.f32 0.0, %v9204
    %9206 = vmatmul.bf16.gmra.mxu0 %v8327
    %v9207 = vpop.f32.mrf.mxu0
    %v9208 = vadd.f32 0.0, %v9207
    %v9209 = vpop.f32.mrf.mxu0
    %v9210 = vadd.f32 0.0, %v9209
    %9211 = vdwg.mxu0
    %9212 = vmatpush.bf16.msra.mxu0 %v9031
    %9213 = vmatpush.bf16.msra.mxu0 %v9029
    %9214 = vmatpush.bf16.msra.mxu0 %v9027
    %9215 = vmatpush.bf16.msra.mxu0 %v9025
    %9216 = vmatpush.bf16.msra.mxu0 %v9023
    %9217 = vmatpush.bf16.msra.mxu0 %v9021
    %9218 = vmatpush.bf16.msra.mxu0 %v9019
    %9219 = vmatpush.bf16.msra.mxu0 %v9017
    %9220 = vmatmul.bf16.gmra.mxu0 %v8319
    %v9221 = vpop.f32.mrf.mxu0
    %v9222 = vadd.f32 %v9193, %v9221
    %v9223 = vpop.f32.mrf.mxu0
    %v9224 = vadd.f32 %v9195, %v9223
    %9225 = vmatmul.bf16.gmra.mxu0 %v8322
    %v9226 = vpop.f32.mrf.mxu0
    %v9227 = vadd.f32 %v9198, %v9226
    %v9228 = vpop.f32.mrf.mxu0
    %v9229 = vadd.f32 %v9200, %v9228
    %9230 = vmatmul.bf16.gmra.mxu0 %v8325
    %v9231 = vpop.f32.mrf.mxu0
    %v9232 = vadd.f32 %v9203, %v9231
    %v9233 = vpop.f32.mrf.mxu0
    %v9234 = vadd.f32 %v9205, %v9233
    %9235 = vmatmul.bf16.gmra.mxu0 %v8328
    %v9236 = vpop.f32.mrf.mxu0
    %v9237 = vadd.f32 %v9208, %v9236
    %v9238 = vpop.f32.mrf.mxu0
    %v9239 = vadd.f32 %v9210, %v9238
    %9240 = vdwg.mxu0
    %9241 = vmatpush.bf16.msra.mxu0 %v9047
    %9242 = vmatpush.bf16.msra.mxu0 %v9045
    %9243 = vmatpush.bf16.msra.mxu0 %v9043
    %9244 = vmatpush.bf16.msra.mxu0 %v9041
    %9245 = vmatpush.bf16.msra.mxu0 %v9039
    %9246 = vmatpush.bf16.msra.mxu0 %v9037
    %9247 = vmatpush.bf16.msra.mxu0 %v9035
    %9248 = vmatpush.bf16.msra.mxu0 %v9033
    %9249 = vmatmul.bf16.gmra.mxu0 %v8320
    %v9250 = vpop.f32.mrf.mxu0
    %v9251 = vadd.f32 %v9222, %v9250
    %v9252 = vpop.f32.mrf.mxu0
    %v9253 = vadd.f32 %v9224, %v9252
    %9254 = vmatmul.bf16.gmra.mxu0 %v8323
    %v9255 = vpop.f32.mrf.mxu0
    %v9256 = vadd.f32 %v9227, %v9255
    %v9257 = vpop.f32.mrf.mxu0
    %v9258 = vadd.f32 %v9229, %v9257
    %9259 = vmatmul.bf16.gmra.mxu0 %v8326
    %v9260 = vpop.f32.mrf.mxu0
    %v9261 = vadd.f32 %v9232, %v9260
    %v9262 = vpop.f32.mrf.mxu0
    %v9263 = vadd.f32 %v9234, %v9262
    %9264 = vmatmul.bf16.gmra.mxu0 %v8329
    %v9265 = vpop.f32.mrf.mxu0
    %v9266 = vadd.f32 %v9237, %v9265
    %v9267 = vpop.f32.mrf.mxu0
    %v9268 = vadd.f32 %v9239, %v9267
    %9269 = vdwg.mxu0
    %s9270 = scalar_lea.vmem %s13, 128
    %v9271 = vld [vmem:[%s9270] sm:$0xff]
    %v9272 = vld [vmem:[%s9270 + $0x8] sm:$0xff]
    %v9273 = vld [vmem:[%s9270 + $0x10] sm:$0xff]
    %v9274 = vld [vmem:[%s9270 + $0x18] sm:$0xff]
    %v9275 = vld [vmem:[%s9270 + $0x20] sm:$0xff]
    %v9276 = vld [vmem:[%s9270 + $0x28] sm:$0xff]
    %v9277 = vld [vmem:[%s9270 + $0x30] sm:$0xff]
    %v9278 = vld [vmem:[%s9270 + $0x38] sm:$0xff]
    %v9279 = vld [vmem:[%s9270 + $0x40] sm:$0xff]
    %v9280 = vld [vmem:[%s9270 + $0x48] sm:$0xff]
    %v9281 = vld [vmem:[%s9270 + $0x50] sm:$0xff]
    %v9282 = vld [vmem:[%s9270 + $0x58] sm:$0xff]
    %v9283 = vld [vmem:[%s9270 + $0x60] sm:$0xff]
    %v9284 = vld [vmem:[%s9270 + $0x68] sm:$0xff]
    %v9285 = vld [vmem:[%s9270 + $0x70] sm:$0xff]
    %v9286 = vld [vmem:[%s9270 + $0x78] sm:$0xff]
    %vm9287 = vcmask 523264
    %v9289 = vsel %vm9287, %v9271, 0
    %v9292 = vsel %vm9287, %v9272, 0
    %v9295 = vsel %vm9287, %v9273, 0
    %v9298 = vsel %vm9287, %v9274, 0
    %v9301 = vsel %vm9287, %v9275, 0
    %v9304 = vsel %vm9287, %v9276, 0
    %v9307 = vsel %vm9287, %v9277, 0
    %v9310 = vsel %vm9287, %v9278, 0
    %v9313 = vsel %vm9287, %v9279, 0
    %v9316 = vsel %vm9287, %v9280, 0
    %v9319 = vsel %vm9287, %v9281, 0
    %v9322 = vsel %vm9287, %v9282, 0
    %v9325 = vsel %vm9287, %v9283, 0
    %v9328 = vsel %vm9287, %v9284, 0
    %v9331 = vsel %vm9287, %v9285, 0
    %v9334 = vsel %vm9287, %v9286, 0
    %9336 = vmatpush.msra.mxu0 0.0
    %9337 = vmatpush.msra.mxu0 0.0
    %9338 = vmatpush.msra.mxu0 0.0
    %9339 = vmatpush.msra.mxu0 0.0
    %9340 = vmatpush.msra.mxu0 0.0
    %9341 = vmatpush.msra.mxu0 0.0
    %9342 = vmatpush.msra.mxu0 0.0
    %9343 = vmatpush.msra.mxu0 0.0
    %9344 = vmatpush.msra.mxu0 %v9181
    %9345 = vmatpush.msra.mxu0 %v9179
    %9346 = vmatpush.msra.mxu0 %v9176
    %9347 = vmatpush.msra.mxu0 %v9174
    %9348 = vmatpush.msra.mxu0 %v9171
    %9349 = vmatpush.msra.mxu0 %v9169
    %9350 = vmatpush.msra.mxu0 %v9166
    %9351 = vmatpush.msra.mxu0 %v9164
    %9352 = vmatmul.f32.gmra.mxu0 %v9289
    %v9353 = vpop.f32.mrf.mxu0
    %v9354 = vadd.f32 0.0, %v9353
    %9355 = vmatmul.f32.gmra.mxu0 %v9292
    %v9356 = vpop.f32.mrf.mxu0
    %v9357 = vadd.f32 0.0, %v9356
    %9358 = vmatmul.f32.gmra.mxu0 %v9295
    %v9359 = vpop.f32.mrf.mxu0
    %v9360 = vadd.f32 0.0, %v9359
    %9361 = vmatmul.f32.gmra.mxu0 %v9298
    %v9362 = vpop.f32.mrf.mxu0
    %v9363 = vadd.f32 0.0, %v9362
    %9364 = vmatmul.f32.gmra.mxu0 %v9301
    %v9365 = vpop.f32.mrf.mxu0
    %v9366 = vadd.f32 0.0, %v9365
    %9367 = vmatmul.f32.gmra.mxu0 %v9304
    %v9368 = vpop.f32.mrf.mxu0
    %v9369 = vadd.f32 0.0, %v9368
    %9370 = vmatmul.f32.gmra.mxu0 %v9307
    %v9371 = vpop.f32.mrf.mxu0
    %v9372 = vadd.f32 0.0, %v9371
    %9373 = vmatmul.f32.gmra.mxu0 %v9310
    %v9374 = vpop.f32.mrf.mxu0
    %v9375 = vadd.f32 0.0, %v9374
    %9376 = vmatmul.f32.gmra.mxu0 %v9313
    %v9377 = vpop.f32.mrf.mxu0
    %v9378 = vadd.f32 0.0, %v9377
    %9379 = vmatmul.f32.gmra.mxu0 %v9316
    %v9380 = vpop.f32.mrf.mxu0
    %v9381 = vadd.f32 0.0, %v9380
    %9382 = vmatmul.f32.gmra.mxu0 %v9319
    %v9383 = vpop.f32.mrf.mxu0
    %v9384 = vadd.f32 0.0, %v9383
    %9385 = vmatmul.f32.gmra.mxu0 %v9322
    %v9386 = vpop.f32.mrf.mxu0
    %v9387 = vadd.f32 0.0, %v9386
    %9388 = vmatmul.f32.gmra.mxu0 %v9325
    %v9389 = vpop.f32.mrf.mxu0
    %v9390 = vadd.f32 0.0, %v9389
    %9391 = vmatmul.f32.gmra.mxu0 %v9328
    %v9392 = vpop.f32.mrf.mxu0
    %v9393 = vadd.f32 0.0, %v9392
    %9394 = vmatmul.f32.gmra.mxu0 %v9331
    %v9395 = vpop.f32.mrf.mxu0
    %v9396 = vadd.f32 0.0, %v9395
    %9397 = vmatmul.f32.gmra.mxu0 %v9334
    %v9398 = vpop.f32.mrf.mxu0
    %v9399 = vadd.f32 0.0, %v9398
    %9400 = vdwg.mxu0
    %9401 = vmatpush.msra.mxu0 0.0
    %9402 = vmatpush.msra.mxu0 0.0
    %9403 = vmatpush.msra.mxu0 0.0
    %9404 = vmatpush.msra.mxu0 0.0
    %9405 = vmatpush.msra.mxu0 0.0
    %9406 = vmatpush.msra.mxu0 0.0
    %9407 = vmatpush.msra.mxu0 0.0
    %9408 = vmatpush.msra.mxu0 0.0
    %9409 = vmatpush.msra.mxu0 %v9268
    %9410 = vmatpush.msra.mxu0 %v9266
    %9411 = vmatpush.msra.mxu0 %v9263
    %9412 = vmatpush.msra.mxu0 %v9261
    %9413 = vmatpush.msra.mxu0 %v9258
    %9414 = vmatpush.msra.mxu0 %v9256
    %9415 = vmatpush.msra.mxu0 %v9253
    %9416 = vmatpush.msra.mxu0 %v9251
    %9417 = vmatmul.f32.gmra.mxu0 %v9289
    %v9418 = vpop.f32.mrf.mxu0
    %v9419 = vadd.f32 0.0, %v9418
    %9420 = vmatmul.f32.gmra.mxu0 %v9292
    %v9421 = vpop.f32.mrf.mxu0
    %v9422 = vadd.f32 0.0, %v9421
    %9423 = vmatmul.f32.gmra.mxu0 %v9295
    %v9424 = vpop.f32.mrf.mxu0
    %v9425 = vadd.f32 0.0, %v9424
    %9426 = vmatmul.f32.gmra.mxu0 %v9298
    %v9427 = vpop.f32.mrf.mxu0
    %v9428 = vadd.f32 0.0, %v9427
    %9429 = vmatmul.f32.gmra.mxu0 %v9301
    %v9430 = vpop.f32.mrf.mxu0
    %v9431 = vadd.f32 0.0, %v9430
    %9432 = vmatmul.f32.gmra.mxu0 %v9304
    %v9433 = vpop.f32.mrf.mxu0
    %v9434 = vadd.f32 0.0, %v9433
    %9435 = vmatmul.f32.gmra.mxu0 %v9307
    %v9436 = vpop.f32.mrf.mxu0
    %v9437 = vadd.f32 0.0, %v9436
    %9438 = vmatmul.f32.gmra.mxu0 %v9310
    %v9439 = vpop.f32.mrf.mxu0
    %v9440 = vadd.f32 0.0, %v9439
    %9441 = vmatmul.f32.gmra.mxu0 %v9313
    %v9442 = vpop.f32.mrf.mxu0
    %v9443 = vadd.f32 0.0, %v9442
    %9444 = vmatmul.f32.gmra.mxu0 %v9316
    %v9445 = vpop.f32.mrf.mxu0
    %v9446 = vadd.f32 0.0, %v9445
    %9447 = vmatmul.f32.gmra.mxu0 %v9319
    %v9448 = vpop.f32.mrf.mxu0
    %v9449 = vadd.f32 0.0, %v9448
    %9450 = vmatmul.f32.gmra.mxu0 %v9322
    %v9451 = vpop.f32.mrf.mxu0
    %v9452 = vadd.f32 0.0, %v9451
    %9453 = vmatmul.f32.gmra.mxu0 %v9325
    %v9454 = vpop.f32.mrf.mxu0
    %v9455 = vadd.f32 0.0, %v9454
    %9456 = vmatmul.f32.gmra.mxu0 %v9328
    %v9457 = vpop.f32.mrf.mxu0
    %v9458 = vadd.f32 0.0, %v9457
    %9459 = vmatmul.f32.gmra.mxu0 %v9331
    %v9460 = vpop.f32.mrf.mxu0
    %v9461 = vadd.f32 0.0, %v9460
    %9462 = vmatmul.f32.gmra.mxu0 %v9334
    %v9463 = vpop.f32.mrf.mxu0
    %v9464 = vadd.f32 0.0, %v9463
    %9465 = vdwg.mxu0
    %v9467 = vsel %vm9287, %v8792, 0
    %v9470 = vsel %vm9287, %v8793, 0
    %v9473 = vsel %vm9287, %v8794, 0
    %v9476 = vsel %vm9287, %v8795, 0
    %v9479 = vsel %vm9287, %v8796, 0
    %v9482 = vsel %vm9287, %v8797, 0
    %v9485 = vsel %vm9287, %v8798, 0
    %v9488 = vsel %vm9287, %v8799, 0
    %v9491 = vsel %vm9287, %v8800, 0
    %v9494 = vsel %vm9287, %v8801, 0
    %v9497 = vsel %vm9287, %v8802, 0
    %v9500 = vsel %vm9287, %v8803, 0
    %v9503 = vsel %vm9287, %v8804, 0
    %v9506 = vsel %vm9287, %v8805, 0
    %v9509 = vsel %vm9287, %v8806, 0
    %v9512 = vsel %vm9287, %v8807, 0
    %9514 = vmatpush.msra.mxu0 0.0
    %9515 = vmatpush.msra.mxu0 0.0
    %9516 = vmatpush.msra.mxu0 0.0
    %9517 = vmatpush.msra.mxu0 0.0
    %9518 = vmatpush.msra.mxu0 0.0
    %9519 = vmatpush.msra.mxu0 0.0
    %9520 = vmatpush.msra.mxu0 0.0
    %9521 = vmatpush.msra.mxu0 0.0
    %9522 = vmatpush.msra.mxu0 %v8703
    %9523 = vmatpush.msra.mxu0 %v8701
    %9524 = vmatpush.msra.mxu0 %v8698
    %9525 = vmatpush.msra.mxu0 %v8696
    %9526 = vmatpush.msra.mxu0 %v8693
    %9527 = vmatpush.msra.mxu0 %v8691
    %9528 = vmatpush.msra.mxu0 %v8688
    %9529 = vmatpush.msra.mxu0 %v8686
    %9530 = vmatmul.f32.gmra.mxu0 %v9467
    %v9531 = vpop.f32.mrf.mxu0
    %v9532 = vadd.f32 %v9354, %v9531
    %9533 = vmatmul.f32.gmra.mxu0 %v9470
    %v9534 = vpop.f32.mrf.mxu0
    %v9535 = vadd.f32 %v9357, %v9534
    %9536 = vmatmul.f32.gmra.mxu0 %v9473
    %v9537 = vpop.f32.mrf.mxu0
    %v9538 = vadd.f32 %v9360, %v9537
    %9539 = vmatmul.f32.gmra.mxu0 %v9476
    %v9540 = vpop.f32.mrf.mxu0
    %v9541 = vadd.f32 %v9363, %v9540
    %9542 = vmatmul.f32.gmra.mxu0 %v9479
    %v9543 = vpop.f32.mrf.mxu0
    %v9544 = vadd.f32 %v9366, %v9543
    %9545 = vmatmul.f32.gmra.mxu0 %v9482
    %v9546 = vpop.f32.mrf.mxu0
    %v9547 = vadd.f32 %v9369, %v9546
    %9548 = vmatmul.f32.gmra.mxu0 %v9485
    %v9549 = vpop.f32.mrf.mxu0
    %v9550 = vadd.f32 %v9372, %v9549
    %9551 = vmatmul.f32.gmra.mxu0 %v9488
    %v9552 = vpop.f32.mrf.mxu0
    %v9553 = vadd.f32 %v9375, %v9552
    %9554 = vmatmul.f32.gmra.mxu0 %v9491
    %v9555 = vpop.f32.mrf.mxu0
    %v9556 = vadd.f32 %v9378, %v9555
    %9557 = vmatmul.f32.gmra.mxu0 %v9494
    %v9558 = vpop.f32.mrf.mxu0
    %v9559 = vadd.f32 %v9381, %v9558
    %9560 = vmatmul.f32.gmra.mxu0 %v9497
    %v9561 = vpop.f32.mrf.mxu0
    %v9562 = vadd.f32 %v9384, %v9561
    %9563 = vmatmul.f32.gmra.mxu0 %v9500
    %v9564 = vpop.f32.mrf.mxu0
    %v9565 = vadd.f32 %v9387, %v9564
    %9566 = vmatmul.f32.gmra.mxu0 %v9503
    %v9567 = vpop.f32.mrf.mxu0
    %v9568 = vadd.f32 %v9390, %v9567
    %9569 = vmatmul.f32.gmra.mxu0 %v9506
    %v9570 = vpop.f32.mrf.mxu0
    %v9571 = vadd.f32 %v9393, %v9570
    %9572 = vmatmul.f32.gmra.mxu0 %v9509
    %v9573 = vpop.f32.mrf.mxu0
    %v9574 = vadd.f32 %v9396, %v9573
    %9575 = vmatmul.f32.gmra.mxu0 %v9512
    %v9576 = vpop.f32.mrf.mxu0
    %v9577 = vadd.f32 %v9399, %v9576
    %9578 = vdwg.mxu0
    %9579 = vmatpush.msra.mxu0 0.0
    %9580 = vmatpush.msra.mxu0 0.0
    %9581 = vmatpush.msra.mxu0 0.0
    %9582 = vmatpush.msra.mxu0 0.0
    %9583 = vmatpush.msra.mxu0 0.0
    %9584 = vmatpush.msra.mxu0 0.0
    %9585 = vmatpush.msra.mxu0 0.0
    %9586 = vmatpush.msra.mxu0 0.0
    %9587 = vmatpush.msra.mxu0 %v8790
    %9588 = vmatpush.msra.mxu0 %v8788
    %9589 = vmatpush.msra.mxu0 %v8785
    %9590 = vmatpush.msra.mxu0 %v8783
    %9591 = vmatpush.msra.mxu0 %v8780
    %9592 = vmatpush.msra.mxu0 %v8778
    %9593 = vmatpush.msra.mxu0 %v8775
    %9594 = vmatpush.msra.mxu0 %v8773
    %9595 = vmatmul.f32.gmra.mxu0 %v9467
    %v9596 = vpop.f32.mrf.mxu0
    %v9597 = vadd.f32 %v9419, %v9596
    %9598 = vmatmul.f32.gmra.mxu0 %v9470
    %v9599 = vpop.f32.mrf.mxu0
    %v9600 = vadd.f32 %v9422, %v9599
    %9601 = vmatmul.f32.gmra.mxu0 %v9473
    %v9602 = vpop.f32.mrf.mxu0
    %v9603 = vadd.f32 %v9425, %v9602
    %9604 = vmatmul.f32.gmra.mxu0 %v9476
    %v9605 = vpop.f32.mrf.mxu0
    %v9606 = vadd.f32 %v9428, %v9605
    %9607 = vmatmul.f32.gmra.mxu0 %v9479
    %v9608 = vpop.f32.mrf.mxu0
    %v9609 = vadd.f32 %v9431, %v9608
    %9610 = vmatmul.f32.gmra.mxu0 %v9482
    %v9611 = vpop.f32.mrf.mxu0
    %v9612 = vadd.f32 %v9434, %v9611
    %9613 = vmatmul.f32.gmra.mxu0 %v9485
    %v9614 = vpop.f32.mrf.mxu0
    %v9615 = vadd.f32 %v9437, %v9614
    %9616 = vmatmul.f32.gmra.mxu0 %v9488
    %v9617 = vpop.f32.mrf.mxu0
    %v9618 = vadd.f32 %v9440, %v9617
    %9619 = vmatmul.f32.gmra.mxu0 %v9491
    %v9620 = vpop.f32.mrf.mxu0
    %v9621 = vadd.f32 %v9443, %v9620
    %9622 = vmatmul.f32.gmra.mxu0 %v9494
    %v9623 = vpop.f32.mrf.mxu0
    %v9624 = vadd.f32 %v9446, %v9623
    %9625 = vmatmul.f32.gmra.mxu0 %v9497
    %v9626 = vpop.f32.mrf.mxu0
    %v9627 = vadd.f32 %v9449, %v9626
    %9628 = vmatmul.f32.gmra.mxu0 %v9500
    %v9629 = vpop.f32.mrf.mxu0
    %v9630 = vadd.f32 %v9452, %v9629
    %9631 = vmatmul.f32.gmra.mxu0 %v9503
    %v9632 = vpop.f32.mrf.mxu0
    %v9633 = vadd.f32 %v9455, %v9632
    %9634 = vmatmul.f32.gmra.mxu0 %v9506
    %v9635 = vpop.f32.mrf.mxu0
    %v9636 = vadd.f32 %v9458, %v9635
    %9637 = vmatmul.f32.gmra.mxu0 %v9509
    %v9638 = vpop.f32.mrf.mxu0
    %v9639 = vadd.f32 %v9461, %v9638
    %9640 = vmatmul.f32.gmra.mxu0 %v9512
    %v9641 = vpop.f32.mrf.mxu0
    %v9642 = vadd.f32 %v9464, %v9641
    %9643 = vdwg.mxu0
    %v9644 = vld [vmem:[#allocation4 + $0x10] sm:$0xff]
    %v9645 = vld [vmem:[#allocation4 + $0x30] sm:$0xff]
    %v9646 = vld [vmem:[#allocation4 + $0x50] sm:$0xff]
    %v9647 = vld [vmem:[#allocation4 + $0x70] sm:$0xff]
    %v9648 = vld [vmem:[#allocation4 + $0x90] sm:$0xff]
    %v9649 = vld [vmem:[#allocation4 + $0xb0] sm:$0xff]
    %v9650 = vld [vmem:[#allocation4 + $0xd0] sm:$0xff]
    %v9651 = vld [vmem:[#allocation4 + $0xf0] sm:$0xff]
    %v9652 = vld [vmem:[#allocation4 + $0x110] sm:$0xff]
    %v9653 = vld [vmem:[#allocation4 + $0x130] sm:$0xff]
    %v9654 = vld [vmem:[#allocation4 + $0x150] sm:$0xff]
    %v9655 = vld [vmem:[#allocation4 + $0x170] sm:$0xff]
    %v9656 = vld [vmem:[#allocation4 + $0x190] sm:$0xff]
    %v9657 = vld [vmem:[#allocation4 + $0x1b0] sm:$0xff]
    %v9658 = vld [vmem:[#allocation4 + $0x1d0] sm:$0xff]
    %v9659 = vld [vmem:[#allocation4 + $0x1f0] sm:$0xff]
    %v9660 = vld [vmem:[#allocation4 + $0x210] sm:$0xff]
    %v9661 = vld [vmem:[#allocation4 + $0x230] sm:$0xff]
    %v9662 = vld [vmem:[#allocation4 + $0x250] sm:$0xff]
    %v9663 = vld [vmem:[#allocation4 + $0x270] sm:$0xff]
    %v9664 = vld [vmem:[#allocation4 + $0x290] sm:$0xff]
    %v9665 = vld [vmem:[#allocation4 + $0x2b0] sm:$0xff]
    %v9666 = vld [vmem:[#allocation4 + $0x2d0] sm:$0xff]
    %v9667 = vld [vmem:[#allocation4 + $0x2f0] sm:$0xff]
    %v9668 = vld [vmem:[#allocation4 + $0x310] sm:$0xff]
    %v9669 = vld [vmem:[#allocation4 + $0x330] sm:$0xff]
    %v9670 = vld [vmem:[#allocation4 + $0x350] sm:$0xff]
    %v9671 = vld [vmem:[#allocation4 + $0x370] sm:$0xff]
    %v9672 = vld [vmem:[#allocation4 + $0x390] sm:$0xff]
    %v9673 = vld [vmem:[#allocation4 + $0x3b0] sm:$0xff]
    %v9674 = vld [vmem:[#allocation4 + $0x3d0] sm:$0xff]
    %v9675 = vld [vmem:[#allocation4 + $0x3f0] sm:$0xff]
    %v9676 = vld [vmem:[#allocation4 + $0x410] sm:$0xff]
    %v9677 = vld [vmem:[#allocation4 + $0x430] sm:$0xff]
    %v9678 = vld [vmem:[#allocation4 + $0x450] sm:$0xff]
    %v9679 = vld [vmem:[#allocation4 + $0x470] sm:$0xff]
    %v9680 = vld [vmem:[#allocation4 + $0x490] sm:$0xff]
    %v9681 = vld [vmem:[#allocation4 + $0x4b0] sm:$0xff]
    %v9682 = vld [vmem:[#allocation4 + $0x4d0] sm:$0xff]
    %v9683 = vld [vmem:[#allocation4 + $0x4f0] sm:$0xff]
    %v9684 = vld [vmem:[#allocation4 + $0x510] sm:$0xff]
    %v9685 = vld [vmem:[#allocation4 + $0x530] sm:$0xff]
    %v9686 = vld [vmem:[#allocation4 + $0x550] sm:$0xff]
    %v9687 = vld [vmem:[#allocation4 + $0x570] sm:$0xff]
    %v9688 = vld [vmem:[#allocation4 + $0x590] sm:$0xff]
    %v9689 = vld [vmem:[#allocation4 + $0x5b0] sm:$0xff]
    %v9690 = vld [vmem:[#allocation4 + $0x5d0] sm:$0xff]
    %v9691 = vld [vmem:[#allocation4 + $0x5f0] sm:$0xff]
    %v9740 = vunpack.c.l.b16 %v9644
    %v9741 = vunpack.c.h.b16 %v9644
    %v9742 = vunpack.c.l.b16 %v9645
    %v9743 = vunpack.c.h.b16 %v9645
    %v9744 = vunpack.c.l.b16 %v9646
    %v9745 = vunpack.c.h.b16 %v9646
    %v9746 = vunpack.c.l.b16 %v9647
    %v9747 = vunpack.c.h.b16 %v9647
    %v9748 = vunpack.c.l.b16 %v9648
    %v9749 = vunpack.c.h.b16 %v9648
    %v9750 = vunpack.c.l.b16 %v9649
    %v9751 = vunpack.c.h.b16 %v9649
    %v9752 = vunpack.c.l.b16 %v9650
    %v9753 = vunpack.c.h.b16 %v9650
    %v9754 = vunpack.c.l.b16 %v9651
    %v9755 = vunpack.c.h.b16 %v9651
    %v9756 = vunpack.c.l.b16 %v9652
    %v9757 = vunpack.c.h.b16 %v9652
    %v9758 = vunpack.c.l.b16 %v9653
    %v9759 = vunpack.c.h.b16 %v9653
    %v9760 = vunpack.c.l.b16 %v9654
    %v9761 = vunpack.c.h.b16 %v9654
    %v9762 = vunpack.c.l.b16 %v9655
    %v9763 = vunpack.c.h.b16 %v9655
    %v9764 = vunpack.c.l.b16 %v9656
    %v9765 = vunpack.c.h.b16 %v9656
    %v9766 = vunpack.c.l.b16 %v9657
    %v9767 = vunpack.c.h.b16 %v9657
    %v9768 = vunpack.c.l.b16 %v9658
    %v9769 = vunpack.c.h.b16 %v9658
    %v9770 = vunpack.c.l.b16 %v9659
    %v9771 = vunpack.c.h.b16 %v9659
    %v9772 = vunpack.c.l.b16 %v9660
    %v9773 = vunpack.c.h.b16 %v9660
    %v9774 = vunpack.c.l.b16 %v9661
    %v9775 = vunpack.c.h.b16 %v9661
    %v9776 = vunpack.c.l.b16 %v9662
    %v9777 = vunpack.c.h.b16 %v9662
    %v9778 = vunpack.c.l.b16 %v9663
    %v9779 = vunpack.c.h.b16 %v9663
    %v9780 = vunpack.c.l.b16 %v9664
    %v9781 = vunpack.c.h.b16 %v9664
    %v9782 = vunpack.c.l.b16 %v9665
    %v9783 = vunpack.c.h.b16 %v9665
    %v9784 = vunpack.c.l.b16 %v9666
    %v9785 = vunpack.c.h.b16 %v9666
    %v9786 = vunpack.c.l.b16 %v9667
    %v9787 = vunpack.c.h.b16 %v9667
    %v9788 = vunpack.c.l.b16 %v9668
    %v9789 = vunpack.c.h.b16 %v9668
    %v9790 = vunpack.c.l.b16 %v9669
    %v9791 = vunpack.c.h.b16 %v9669
    %v9792 = vunpack.c.l.b16 %v9670
    %v9793 = vunpack.c.h.b16 %v9670
    %v9794 = vunpack.c.l.b16 %v9671
    %v9795 = vunpack.c.h.b16 %v9671
    %v9796 = vunpack.c.l.b16 %v9672
    %v9797 = vunpack.c.h.b16 %v9672
    %v9798 = vunpack.c.l.b16 %v9673
    %v9799 = vunpack.c.h.b16 %v9673
    %v9800 = vunpack.c.l.b16 %v9674
    %v9801 = vunpack.c.h.b16 %v9674
    %v9802 = vunpack.c.l.b16 %v9675
    %v9803 = vunpack.c.h.b16 %v9675
    %v9804 = vunpack.c.l.b16 %v9676
    %v9805 = vunpack.c.h.b16 %v9676
    %v9806 = vunpack.c.l.b16 %v9677
    %v9807 = vunpack.c.h.b16 %v9677
    %v9808 = vunpack.c.l.b16 %v9678
    %v9809 = vunpack.c.h.b16 %v9678
    %v9810 = vunpack.c.l.b16 %v9679
    %v9811 = vunpack.c.h.b16 %v9679
    %v9812 = vunpack.c.l.b16 %v9680
    %v9813 = vunpack.c.h.b16 %v9680
    %v9814 = vunpack.c.l.b16 %v9681
    %v9815 = vunpack.c.h.b16 %v9681
    %v9816 = vunpack.c.l.b16 %v9682
    %v9817 = vunpack.c.h.b16 %v9682
    %v9818 = vunpack.c.l.b16 %v9683
    %v9819 = vunpack.c.h.b16 %v9683
    %v9820 = vunpack.c.l.b16 %v9684
    %v9821 = vunpack.c.h.b16 %v9684
    %v9822 = vunpack.c.l.b16 %v9685
    %v9823 = vunpack.c.h.b16 %v9685
    %v9824 = vunpack.c.l.b16 %v9686
    %v9825 = vunpack.c.h.b16 %v9686
    %v9826 = vunpack.c.l.b16 %v9687
    %v9827 = vunpack.c.h.b16 %v9687
    %v9828 = vunpack.c.l.b16 %v9688
    %v9829 = vunpack.c.h.b16 %v9688
    %v9830 = vunpack.c.l.b16 %v9689
    %v9831 = vunpack.c.h.b16 %v9689
    %v9832 = vunpack.c.l.b16 %v9690
    %v9833 = vunpack.c.h.b16 %v9690
    %v9834 = vunpack.c.l.b16 %v9691
    %v9835 = vunpack.c.h.b16 %v9691
    %v9836 = vpack.c.b16 %v9742, %v9740
    %v9837 = vpack.c.b16 %v9743, %v9741
    %v9838 = vpack.c.b16 %v9746, %v9744
    %v9839 = vpack.c.b16 %v9747, %v9745
    %v9840 = vpack.c.b16 %v9750, %v9748
    %v9841 = vpack.c.b16 %v9751, %v9749
    %v9842 = vpack.c.b16 %v9754, %v9752
    %v9843 = vpack.c.b16 %v9755, %v9753
    %v9844 = vpack.c.b16 %v9758, %v9756
    %v9845 = vpack.c.b16 %v9759, %v9757
    %v9846 = vpack.c.b16 %v9762, %v9760
    %v9847 = vpack.c.b16 %v9763, %v9761
    %v9848 = vpack.c.b16 %v9766, %v9764
    %v9849 = vpack.c.b16 %v9767, %v9765
    %v9850 = vpack.c.b16 %v9770, %v9768
    %v9851 = vpack.c.b16 %v9771, %v9769
    %v9852 = vpack.c.b16 %v9774, %v9772
    %v9853 = vpack.c.b16 %v9775, %v9773
    %v9854 = vpack.c.b16 %v9778, %v9776
    %v9855 = vpack.c.b16 %v9779, %v9777
    %v9856 = vpack.c.b16 %v9782, %v9780
    %v9857 = vpack.c.b16 %v9783, %v9781
    %v9858 = vpack.c.b16 %v9786, %v9784
    %v9859 = vpack.c.b16 %v9787, %v9785
    %v9860 = vpack.c.b16 %v9790, %v9788
    %v9861 = vpack.c.b16 %v9791, %v9789
    %v9862 = vpack.c.b16 %v9794, %v9792
    %v9863 = vpack.c.b16 %v9795, %v9793
    %v9864 = vpack.c.b16 %v9798, %v9796
    %v9865 = vpack.c.b16 %v9799, %v9797
    %v9866 = vpack.c.b16 %v9802, %v9800
    %v9867 = vpack.c.b16 %v9803, %v9801
    %v9868 = vpack.c.b16 %v9806, %v9804
    %v9869 = vpack.c.b16 %v9807, %v9805
    %v9870 = vpack.c.b16 %v9810, %v9808
    %v9871 = vpack.c.b16 %v9811, %v9809
    %v9872 = vpack.c.b16 %v9814, %v9812
    %v9873 = vpack.c.b16 %v9815, %v9813
    %v9874 = vpack.c.b16 %v9818, %v9816
    %v9875 = vpack.c.b16 %v9819, %v9817
    %v9876 = vpack.c.b16 %v9822, %v9820
    %v9877 = vpack.c.b16 %v9823, %v9821
    %v9878 = vpack.c.b16 %v9826, %v9824
    %v9879 = vpack.c.b16 %v9827, %v9825
    %v9880 = vpack.c.b16 %v9830, %v9828
    %v9881 = vpack.c.b16 %v9831, %v9829
    %v9882 = vpack.c.b16 %v9834, %v9832
    %v9883 = vpack.c.b16 %v9835, %v9833
    %9932 = vmatpush.bf16.msra.mxu0 %v9850
    %9933 = vmatpush.bf16.msra.mxu0 %v9848
    %9934 = vmatpush.bf16.msra.mxu0 %v9846
    %9935 = vmatpush.bf16.msra.mxu0 %v9844
    %9936 = vmatpush.bf16.msra.mxu0 %v9842
    %9937 = vmatpush.bf16.msra.mxu0 %v9840
    %9938 = vmatpush.bf16.msra.mxu0 %v9838
    %9939 = vmatpush.bf16.msra.mxu0 %v9836
    %9940 = vmatmul.bf16.gmra.mxu0 %v8318
    %v9941 = vpop.f32.mrf.mxu0
    %v9942 = vadd.f32 0.0, %v9941
    %v9943 = vpop.f32.mrf.mxu0
    %v9944 = vadd.f32 0.0, %v9943
    %9945 = vmatmul.bf16.gmra.mxu0 %v8321
    %v9946 = vpop.f32.mrf.mxu0
    %v9947 = vadd.f32 0.0, %v9946
    %v9948 = vpop.f32.mrf.mxu0
    %v9949 = vadd.f32 0.0, %v9948
    %9950 = vmatmul.bf16.gmra.mxu0 %v8324
    %v9951 = vpop.f32.mrf.mxu0
    %v9952 = vadd.f32 0.0, %v9951
    %v9953 = vpop.f32.mrf.mxu0
    %v9954 = vadd.f32 0.0, %v9953
    %9955 = vmatmul.bf16.gmra.mxu0 %v8327
    %v9956 = vpop.f32.mrf.mxu0
    %v9957 = vadd.f32 0.0, %v9956
    %v9958 = vpop.f32.mrf.mxu0
    %v9959 = vadd.f32 0.0, %v9958
    %9960 = vdwg.mxu0
    %9961 = vmatpush.bf16.msra.mxu0 %v9866
    %9962 = vmatpush.bf16.msra.mxu0 %v9864
    %9963 = vmatpush.bf16.msra.mxu0 %v9862
    %9964 = vmatpush.bf16.msra.mxu0 %v9860
    %9965 = vmatpush.bf16.msra.mxu0 %v9858
    %9966 = vmatpush.bf16.msra.mxu0 %v9856
    %9967 = vmatpush.bf16.msra.mxu0 %v9854
    %9968 = vmatpush.bf16.msra.mxu0 %v9852
    %9969 = vmatmul.bf16.gmra.mxu0 %v8319
    %v9970 = vpop.f32.mrf.mxu0
    %v9971 = vadd.f32 %v9942, %v9970
    %v9972 = vpop.f32.mrf.mxu0
    %v9973 = vadd.f32 %v9944, %v9972
    %9974 = vmatmul.bf16.gmra.mxu0 %v8322
    %v9975 = vpop.f32.mrf.mxu0
    %v9976 = vadd.f32 %v9947, %v9975
    %v9977 = vpop.f32.mrf.mxu0
    %v9978 = vadd.f32 %v9949, %v9977
    %9979 = vmatmul.bf16.gmra.mxu0 %v8325
    %v9980 = vpop.f32.mrf.mxu0
    %v9981 = vadd.f32 %v9952, %v9980
    %v9982 = vpop.f32.mrf.mxu0
    %v9983 = vadd.f32 %v9954, %v9982
    %9984 = vmatmul.bf16.gmra.mxu0 %v8328
    %v9985 = vpop.f32.mrf.mxu0
    %v9986 = vadd.f32 %v9957, %v9985
    %v9987 = vpop.f32.mrf.mxu0
    %v9988 = vadd.f32 %v9959, %v9987
    %9989 = vdwg.mxu0
    %9990 = vmatpush.bf16.msra.mxu0 %v9882
    %9991 = vmatpush.bf16.msra.mxu0 %v9880
    %9992 = vmatpush.bf16.msra.mxu0 %v9878
    %9993 = vmatpush.bf16.msra.mxu0 %v9876
    %9994 = vmatpush.bf16.msra.mxu0 %v9874
    %9995 = vmatpush.bf16.msra.mxu0 %v9872
    %9996 = vmatpush.bf16.msra.mxu0 %v9870
    %9997 = vmatpush.bf16.msra.mxu0 %v9868
    %9998 = vmatmul.bf16.gmra.mxu0 %v8320
    %v9999 = vpop.f32.mrf.mxu0
    %v10000 = vadd.f32 %v9971, %v9999
    %v10001 = vpop.f32.mrf.mxu0
    %v10002 = vadd.f32 %v9973, %v10001
    %10003 = vmatmul.bf16.gmra.mxu0 %v8323
    %v10004 = vpop.f32.mrf.mxu0
    %v10005 = vadd.f32 %v9976, %v10004
    %v10006 = vpop.f32.mrf.mxu0
    %v10007 = vadd.f32 %v9978, %v10006
    %10008 = vmatmul.bf16.gmra.mxu0 %v8326
    %v10009 = vpop.f32.mrf.mxu0
    %v10010 = vadd.f32 %v9981, %v10009
    %v10011 = vpop.f32.mrf.mxu0
    %v10012 = vadd.f32 %v9983, %v10011
    %10013 = vmatmul.bf16.gmra.mxu0 %v8329
    %v10014 = vpop.f32.mrf.mxu0
    %v10015 = vadd.f32 %v9986, %v10014
    %v10016 = vpop.f32.mrf.mxu0
    %v10017 = vadd.f32 %v9988, %v10016
    %10018 = vdwg.mxu0
    %10019 = vmatpush.bf16.msra.mxu0 %v9851
    %10020 = vmatpush.bf16.msra.mxu0 %v9849
    %10021 = vmatpush.bf16.msra.mxu0 %v9847
    %10022 = vmatpush.bf16.msra.mxu0 %v9845
    %10023 = vmatpush.bf16.msra.mxu0 %v9843
    %10024 = vmatpush.bf16.msra.mxu0 %v9841
    %10025 = vmatpush.bf16.msra.mxu0 %v9839
    %10026 = vmatpush.bf16.msra.mxu0 %v9837
    %10027 = vmatmul.bf16.gmra.mxu0 %v8318
    %v10028 = vpop.f32.mrf.mxu0
    %v10029 = vadd.f32 0.0, %v10028
    %v10030 = vpop.f32.mrf.mxu0
    %v10031 = vadd.f32 0.0, %v10030
    %10032 = vmatmul.bf16.gmra.mxu0 %v8321
    %v10033 = vpop.f32.mrf.mxu0
    %v10034 = vadd.f32 0.0, %v10033
    %v10035 = vpop.f32.mrf.mxu0
    %v10036 = vadd.f32 0.0, %v10035
    %10037 = vmatmul.bf16.gmra.mxu0 %v8324
    %v10038 = vpop.f32.mrf.mxu0
    %v10039 = vadd.f32 0.0, %v10038
    %v10040 = vpop.f32.mrf.mxu0
    %v10041 = vadd.f32 0.0, %v10040
    %10042 = vmatmul.bf16.gmra.mxu0 %v8327
    %v10043 = vpop.f32.mrf.mxu0
    %v10044 = vadd.f32 0.0, %v10043
    %v10045 = vpop.f32.mrf.mxu0
    %v10046 = vadd.f32 0.0, %v10045
    %10047 = vdwg.mxu0
    %10048 = vmatpush.bf16.msra.mxu0 %v9867
    %10049 = vmatpush.bf16.msra.mxu0 %v9865
    %10050 = vmatpush.bf16.msra.mxu0 %v9863
    %10051 = vmatpush.bf16.msra.mxu0 %v9861
    %10052 = vmatpush.bf16.msra.mxu0 %v9859
    %10053 = vmatpush.bf16.msra.mxu0 %v9857
    %10054 = vmatpush.bf16.msra.mxu0 %v9855
    %10055 = vmatpush.bf16.msra.mxu0 %v9853
    %10056 = vmatmul.bf16.gmra.mxu0 %v8319
    %v10057 = vpop.f32.mrf.mxu0
    %v10058 = vadd.f32 %v10029, %v10057
    %v10059 = vpop.f32.mrf.mxu0
    %v10060 = vadd.f32 %v10031, %v10059
    %10061 = vmatmul.bf16.gmra.mxu0 %v8322
    %v10062 = vpop.f32.mrf.mxu0
    %v10063 = vadd.f32 %v10034, %v10062
    %v10064 = vpop.f32.mrf.mxu0
    %v10065 = vadd.f32 %v10036, %v10064
    %10066 = vmatmul.bf16.gmra.mxu0 %v8325
    %v10067 = vpop.f32.mrf.mxu0
    %v10068 = vadd.f32 %v10039, %v10067
    %v10069 = vpop.f32.mrf.mxu0
    %v10070 = vadd.f32 %v10041, %v10069
    %10071 = vmatmul.bf16.gmra.mxu0 %v8328
    %v10072 = vpop.f32.mrf.mxu0
    %v10073 = vadd.f32 %v10044, %v10072
    %v10074 = vpop.f32.mrf.mxu0
    %v10075 = vadd.f32 %v10046, %v10074
    %10076 = vdwg.mxu0
    %10077 = vmatpush.bf16.msra.mxu0 %v9883
    %10078 = vmatpush.bf16.msra.mxu0 %v9881
    %10079 = vmatpush.bf16.msra.mxu0 %v9879
    %10080 = vmatpush.bf16.msra.mxu0 %v9877
    %10081 = vmatpush.bf16.msra.mxu0 %v9875
    %10082 = vmatpush.bf16.msra.mxu0 %v9873
    %10083 = vmatpush.bf16.msra.mxu0 %v9871
    %10084 = vmatpush.bf16.msra.mxu0 %v9869
    %10085 = vmatmul.bf16.gmra.mxu0 %v8320
    %v10086 = vpop.f32.mrf.mxu0
    %v10087 = vadd.f32 %v10058, %v10086
    %v10088 = vpop.f32.mrf.mxu0
    %v10089 = vadd.f32 %v10060, %v10088
    %10090 = vmatmul.bf16.gmra.mxu0 %v8323
    %v10091 = vpop.f32.mrf.mxu0
    %v10092 = vadd.f32 %v10063, %v10091
    %v10093 = vpop.f32.mrf.mxu0
    %v10094 = vadd.f32 %v10065, %v10093
    %10095 = vmatmul.bf16.gmra.mxu0 %v8326
    %v10096 = vpop.f32.mrf.mxu0
    %v10097 = vadd.f32 %v10068, %v10096
    %v10098 = vpop.f32.mrf.mxu0
    %v10099 = vadd.f32 %v10070, %v10098
    %10100 = vmatmul.bf16.gmra.mxu0 %v8329
    %v10101 = vpop.f32.mrf.mxu0
    %v10102 = vadd.f32 %v10073, %v10101
    %v10103 = vpop.f32.mrf.mxu0
    %v10104 = vadd.f32 %v10075, %v10103
    %10105 = vdwg.mxu0
    %s10106 = scalar_lea.vmem %s13, 256
    %v10107 = vld [vmem:[%s10106] sm:$0xff]
    %v10108 = vld [vmem:[%s10106 + $0x8] sm:$0xff]
    %v10109 = vld [vmem:[%s10106 + $0x10] sm:$0xff]
    %v10110 = vld [vmem:[%s10106 + $0x18] sm:$0xff]
    %v10111 = vld [vmem:[%s10106 + $0x20] sm:$0xff]
    %v10112 = vld [vmem:[%s10106 + $0x28] sm:$0xff]
    %v10113 = vld [vmem:[%s10106 + $0x30] sm:$0xff]
    %v10114 = vld [vmem:[%s10106 + $0x38] sm:$0xff]
    %v10115 = vld [vmem:[%s10106 + $0x40] sm:$0xff]
    %v10116 = vld [vmem:[%s10106 + $0x48] sm:$0xff]
    %v10117 = vld [vmem:[%s10106 + $0x50] sm:$0xff]
    %v10118 = vld [vmem:[%s10106 + $0x58] sm:$0xff]
    %v10119 = vld [vmem:[%s10106 + $0x60] sm:$0xff]
    %v10120 = vld [vmem:[%s10106 + $0x68] sm:$0xff]
    %v10121 = vld [vmem:[%s10106 + $0x70] sm:$0xff]
    %v10122 = vld [vmem:[%s10106 + $0x78] sm:$0xff]
    %v10124 = vsel %vm9287, %v10107, 0
    %v10127 = vsel %vm9287, %v10108, 0
    %v10130 = vsel %vm9287, %v10109, 0
    %v10133 = vsel %vm9287, %v10110, 0
    %v10136 = vsel %vm9287, %v10111, 0
    %v10139 = vsel %vm9287, %v10112, 0
    %v10142 = vsel %vm9287, %v10113, 0
    %v10145 = vsel %vm9287, %v10114, 0
    %v10148 = vsel %vm9287, %v10115, 0
    %v10151 = vsel %vm9287, %v10116, 0
    %v10154 = vsel %vm9287, %v10117, 0
    %v10157 = vsel %vm9287, %v10118, 0
    %v10160 = vsel %vm9287, %v10119, 0
    %v10163 = vsel %vm9287, %v10120, 0
    %v10166 = vsel %vm9287, %v10121, 0
    %v10169 = vsel %vm9287, %v10122, 0
    %10171 = vmatpush.msra.mxu0 0.0
    %10172 = vmatpush.msra.mxu0 0.0
    %10173 = vmatpush.msra.mxu0 0.0
    %10174 = vmatpush.msra.mxu0 0.0
    %10175 = vmatpush.msra.mxu0 0.0
    %10176 = vmatpush.msra.mxu0 0.0
    %10177 = vmatpush.msra.mxu0 0.0
    %10178 = vmatpush.msra.mxu0 0.0
    %10179 = vmatpush.msra.mxu0 %v10017
    %10180 = vmatpush.msra.mxu0 %v10015
    %10181 = vmatpush.msra.mxu0 %v10012
    %10182 = vmatpush.msra.mxu0 %v10010
    %10183 = vmatpush.msra.mxu0 %v10007
    %10184 = vmatpush.msra.mxu0 %v10005
    %10185 = vmatpush.msra.mxu0 %v10002
    %10186 = vmatpush.msra.mxu0 %v10000
    %10187 = vmatmul.f32.gmra.mxu0 %v10124
    %v10188 = vpop.f32.mrf.mxu0
    %v10189 = vadd.f32 0.0, %v10188
    %10190 = vmatmul.f32.gmra.mxu0 %v10127
    %v10191 = vpop.f32.mrf.mxu0
    %v10192 = vadd.f32 0.0, %v10191
    %10193 = vmatmul.f32.gmra.mxu0 %v10130
    %v10194 = vpop.f32.mrf.mxu0
    %v10195 = vadd.f32 0.0, %v10194
    %10196 = vmatmul.f32.gmra.mxu0 %v10133
    %v10197 = vpop.f32.mrf.mxu0
    %v10198 = vadd.f32 0.0, %v10197
    %10199 = vmatmul.f32.gmra.mxu0 %v10136
    %v10200 = vpop.f32.mrf.mxu0
    %v10201 = vadd.f32 0.0, %v10200
    %10202 = vmatmul.f32.gmra.mxu0 %v10139
    %v10203 = vpop.f32.mrf.mxu0
    %v10204 = vadd.f32 0.0, %v10203
    %10205 = vmatmul.f32.gmra.mxu0 %v10142
    %v10206 = vpop.f32.mrf.mxu0
    %v10207 = vadd.f32 0.0, %v10206
    %10208 = vmatmul.f32.gmra.mxu0 %v10145
    %v10209 = vpop.f32.mrf.mxu0
    %v10210 = vadd.f32 0.0, %v10209
    %10211 = vmatmul.f32.gmra.mxu0 %v10148
    %v10212 = vpop.f32.mrf.mxu0
    %v10213 = vadd.f32 0.0, %v10212
    %10214 = vmatmul.f32.gmra.mxu0 %v10151
    %v10215 = vpop.f32.mrf.mxu0
    %v10216 = vadd.f32 0.0, %v10215
    %10217 = vmatmul.f32.gmra.mxu0 %v10154
    %v10218 = vpop.f32.mrf.mxu0
    %v10219 = vadd.f32 0.0, %v10218
    %10220 = vmatmul.f32.gmra.mxu0 %v10157
    %v10221 = vpop.f32.mrf.mxu0
    %v10222 = vadd.f32 0.0, %v10221
    %10223 = vmatmul.f32.gmra.mxu0 %v10160
    %v10224 = vpop.f32.mrf.mxu0
    %v10225 = vadd.f32 0.0, %v10224
    %10226 = vmatmul.f32.gmra.mxu0 %v10163
    %v10227 = vpop.f32.mrf.mxu0
    %v10228 = vadd.f32 0.0, %v10227
    %10229 = vmatmul.f32.gmra.mxu0 %v10166
    %v10230 = vpop.f32.mrf.mxu0
    %v10231 = vadd.f32 0.0, %v10230
    %10232 = vmatmul.f32.gmra.mxu0 %v10169
    %v10233 = vpop.f32.mrf.mxu0
    %v10234 = vadd.f32 0.0, %v10233
    %10235 = vdwg.mxu0
    %10236 = vmatpush.msra.mxu0 0.0
    %10237 = vmatpush.msra.mxu0 0.0
    %10238 = vmatpush.msra.mxu0 0.0
    %10239 = vmatpush.msra.mxu0 0.0
    %10240 = vmatpush.msra.mxu0 0.0
    %10241 = vmatpush.msra.mxu0 0.0
    %10242 = vmatpush.msra.mxu0 0.0
    %10243 = vmatpush.msra.mxu0 0.0
    %10244 = vmatpush.msra.mxu0 %v10104
    %10245 = vmatpush.msra.mxu0 %v10102
    %10246 = vmatpush.msra.mxu0 %v10099
    %10247 = vmatpush.msra.mxu0 %v10097
    %10248 = vmatpush.msra.mxu0 %v10094
    %10249 = vmatpush.msra.mxu0 %v10092
    %10250 = vmatpush.msra.mxu0 %v10089
    %10251 = vmatpush.msra.mxu0 %v10087
    %10252 = vmatmul.f32.gmra.mxu0 %v10124
    %v10253 = vpop.f32.mrf.mxu0
    %v10254 = vadd.f32 0.0, %v10253
    %10255 = vmatmul.f32.gmra.mxu0 %v10127
    %v10256 = vpop.f32.mrf.mxu0
    %v10257 = vadd.f32 0.0, %v10256
    %10258 = vmatmul.f32.gmra.mxu0 %v10130
    %v10259 = vpop.f32.mrf.mxu0
    %v10260 = vadd.f32 0.0, %v10259
    %10261 = vmatmul.f32.gmra.mxu0 %v10133
    %v10262 = vpop.f32.mrf.mxu0
    %v10263 = vadd.f32 0.0, %v10262
    %10264 = vmatmul.f32.gmra.mxu0 %v10136
    %v10265 = vpop.f32.mrf.mxu0
    %v10266 = vadd.f32 0.0, %v10265
    %10267 = vmatmul.f32.gmra.mxu0 %v10139
    %v10268 = vpop.f32.mrf.mxu0
    %v10269 = vadd.f32 0.0, %v10268
    %10270 = vmatmul.f32.gmra.mxu0 %v10142
    %v10271 = vpop.f32.mrf.mxu0
    %v10272 = vadd.f32 0.0, %v10271
    %10273 = vmatmul.f32.gmra.mxu0 %v10145
    %v10274 = vpop.f32.mrf.mxu0
    %v10275 = vadd.f32 0.0, %v10274
    %10276 = vmatmul.f32.gmra.mxu0 %v10148
    %v10277 = vpop.f32.mrf.mxu0
    %v10278 = vadd.f32 0.0, %v10277
    %10279 = vmatmul.f32.gmra.mxu0 %v10151
    %v10280 = vpop.f32.mrf.mxu0
    %v10281 = vadd.f32 0.0, %v10280
    %10282 = vmatmul.f32.gmra.mxu0 %v10154
    %v10283 = vpop.f32.mrf.mxu0
    %v10284 = vadd.f32 0.0, %v10283
    %10285 = vmatmul.f32.gmra.mxu0 %v10157
    %v10286 = vpop.f32.mrf.mxu0
    %v10287 = vadd.f32 0.0, %v10286
    %10288 = vmatmul.f32.gmra.mxu0 %v10160
    %v10289 = vpop.f32.mrf.mxu0
    %v10290 = vadd.f32 0.0, %v10289
    %10291 = vmatmul.f32.gmra.mxu0 %v10163
    %v10292 = vpop.f32.mrf.mxu0
    %v10293 = vadd.f32 0.0, %v10292
    %10294 = vmatmul.f32.gmra.mxu0 %v10166
    %v10295 = vpop.f32.mrf.mxu0
    %v10296 = vadd.f32 0.0, %v10295
    %10297 = vmatmul.f32.gmra.mxu0 %v10169
    %v10298 = vpop.f32.mrf.mxu0
    %v10299 = vadd.f32 0.0, %v10298
    %10300 = vdwg.mxu0
    %v10301 = vadd.f32 %v9532, %v10189
    %v10302 = vadd.f32 %v9597, %v10254
    %v10303 = vadd.f32 %v9535, %v10192
    %v10304 = vadd.f32 %v9600, %v10257
    %v10305 = vadd.f32 %v9538, %v10195
    %v10306 = vadd.f32 %v9603, %v10260
    %v10307 = vadd.f32 %v9541, %v10198
    %v10308 = vadd.f32 %v9606, %v10263
    %v10309 = vadd.f32 %v9544, %v10201
    %v10310 = vadd.f32 %v9609, %v10266
    %v10311 = vadd.f32 %v9547, %v10204
    %v10312 = vadd.f32 %v9612, %v10269
    %v10313 = vadd.f32 %v9550, %v10207
    %v10314 = vadd.f32 %v9615, %v10272
    %v10315 = vadd.f32 %v9553, %v10210
    %v10316 = vadd.f32 %v9618, %v10275
    %v10317 = vadd.f32 %v9556, %v10213
    %v10318 = vadd.f32 %v9621, %v10278
    %v10319 = vadd.f32 %v9559, %v10216
    %v10320 = vadd.f32 %v9624, %v10281
    %v10321 = vadd.f32 %v9562, %v10219
    %v10322 = vadd.f32 %v9627, %v10284
    %v10323 = vadd.f32 %v9565, %v10222
    %v10324 = vadd.f32 %v9630, %v10287
    %v10325 = vadd.f32 %v9568, %v10225
    %v10326 = vadd.f32 %v9633, %v10290
    %v10327 = vadd.f32 %v9571, %v10228
    %v10328 = vadd.f32 %v9636, %v10293
    %v10329 = vadd.f32 %v9574, %v10231
    %v10330 = vadd.f32 %v9639, %v10296
    %v10331 = vadd.f32 %v9577, %v10234
    %v10332 = vadd.f32 %v9642, %v10299
    %v10333 = vld [vmem:[#allocation4 + $0x18] sm:$0xff]
    %v10334 = vld [vmem:[#allocation4 + $0x38] sm:$0xff]
    %v10335 = vld [vmem:[#allocation4 + $0x58] sm:$0xff]
    %v10336 = vld [vmem:[#allocation4 + $0x78] sm:$0xff]
    %v10337 = vld [vmem:[#allocation4 + $0x98] sm:$0xff]
    %v10338 = vld [vmem:[#allocation4 + $0xb8] sm:$0xff]
    %v10339 = vld [vmem:[#allocation4 + $0xd8] sm:$0xff]
    %v10340 = vld [vmem:[#allocation4 + $0xf8] sm:$0xff]
    %v10341 = vld [vmem:[#allocation4 + $0x118] sm:$0xff]
    %v10342 = vld [vmem:[#allocation4 + $0x138] sm:$0xff]
    %v10343 = vld [vmem:[#allocation4 + $0x158] sm:$0xff]
    %v10344 = vld [vmem:[#allocation4 + $0x178] sm:$0xff]
    %v10345 = vld [vmem:[#allocation4 + $0x198] sm:$0xff]
    %v10346 = vld [vmem:[#allocation4 + $0x1b8] sm:$0xff]
    %v10347 = vld [vmem:[#allocation4 + $0x1d8] sm:$0xff]
    %v10348 = vld [vmem:[#allocation4 + $0x1f8] sm:$0xff]
    %v10349 = vld [vmem:[#allocation4 + $0x218] sm:$0xff]
    %v10350 = vld [vmem:[#allocation4 + $0x238] sm:$0xff]
    %v10351 = vld [vmem:[#allocation4 + $0x258] sm:$0xff]
    %v10352 = vld [vmem:[#allocation4 + $0x278] sm:$0xff]
    %v10353 = vld [vmem:[#allocation4 + $0x298] sm:$0xff]
    %v10354 = vld [vmem:[#allocation4 + $0x2b8] sm:$0xff]
    %v10355 = vld [vmem:[#allocation4 + $0x2d8] sm:$0xff]
    %v10356 = vld [vmem:[#allocation4 + $0x2f8] sm:$0xff]
    %v10357 = vld [vmem:[#allocation4 + $0x318] sm:$0xff]
    %v10358 = vld [vmem:[#allocation4 + $0x338] sm:$0xff]
    %v10359 = vld [vmem:[#allocation4 + $0x358] sm:$0xff]
    %v10360 = vld [vmem:[#allocation4 + $0x378] sm:$0xff]
    %v10361 = vld [vmem:[#allocation4 + $0x398] sm:$0xff]
    %v10362 = vld [vmem:[#allocation4 + $0x3b8] sm:$0xff]
    %v10363 = vld [vmem:[#allocation4 + $0x3d8] sm:$0xff]
    %v10364 = vld [vmem:[#allocation4 + $0x3f8] sm:$0xff]
    %v10365 = vld [vmem:[#allocation4 + $0x418] sm:$0xff]
    %v10366 = vld [vmem:[#allocation4 + $0x438] sm:$0xff]
    %v10367 = vld [vmem:[#allocation4 + $0x458] sm:$0xff]
    %v10368 = vld [vmem:[#allocation4 + $0x478] sm:$0xff]
    %v10369 = vld [vmem:[#allocation4 + $0x498] sm:$0xff]
    %v10370 = vld [vmem:[#allocation4 + $0x4b8] sm:$0xff]
    %v10371 = vld [vmem:[#allocation4 + $0x4d8] sm:$0xff]
    %v10372 = vld [vmem:[#allocation4 + $0x4f8] sm:$0xff]
    %v10373 = vld [vmem:[#allocation4 + $0x518] sm:$0xff]
    %v10374 = vld [vmem:[#allocation4 + $0x538] sm:$0xff]
    %v10375 = vld [vmem:[#allocation4 + $0x558] sm:$0xff]
    %v10376 = vld [vmem:[#allocation4 + $0x578] sm:$0xff]
    %v10377 = vld [vmem:[#allocation4 + $0x598] sm:$0xff]
    %v10378 = vld [vmem:[#allocation4 + $0x5b8] sm:$0xff]
    %v10379 = vld [vmem:[#allocation4 + $0x5d8] sm:$0xff]
    %v10380 = vld [vmem:[#allocation4 + $0x5f8] sm:$0xff]
    %v10429 = vunpack.c.l.b16 %v10333
    %v10430 = vunpack.c.h.b16 %v10333
    %v10431 = vunpack.c.l.b16 %v10334
    %v10432 = vunpack.c.h.b16 %v10334
    %v10433 = vunpack.c.l.b16 %v10335
    %v10434 = vunpack.c.h.b16 %v10335
    %v10435 = vunpack.c.l.b16 %v10336
    %v10436 = vunpack.c.h.b16 %v10336
    %v10437 = vunpack.c.l.b16 %v10337
    %v10438 = vunpack.c.h.b16 %v10337
    %v10439 = vunpack.c.l.b16 %v10338
    %v10440 = vunpack.c.h.b16 %v10338
    %v10441 = vunpack.c.l.b16 %v10339
    %v10442 = vunpack.c.h.b16 %v10339
    %v10443 = vunpack.c.l.b16 %v10340
    %v10444 = vunpack.c.h.b16 %v10340
    %v10445 = vunpack.c.l.b16 %v10341
    %v10446 = vunpack.c.h.b16 %v10341
    %v10447 = vunpack.c.l.b16 %v10342
    %v10448 = vunpack.c.h.b16 %v10342
    %v10449 = vunpack.c.l.b16 %v10343
    %v10450 = vunpack.c.h.b16 %v10343
    %v10451 = vunpack.c.l.b16 %v10344
    %v10452 = vunpack.c.h.b16 %v10344
    %v10453 = vunpack.c.l.b16 %v10345
    %v10454 = vunpack.c.h.b16 %v10345
    %v10455 = vunpack.c.l.b16 %v10346
    %v10456 = vunpack.c.h.b16 %v10346
    %v10457 = vunpack.c.l.b16 %v10347
    %v10458 = vunpack.c.h.b16 %v10347
    %v10459 = vunpack.c.l.b16 %v10348
    %v10460 = vunpack.c.h.b16 %v10348
    %v10461 = vunpack.c.l.b16 %v10349
    %v10462 = vunpack.c.h.b16 %v10349
    %v10463 = vunpack.c.l.b16 %v10350
    %v10464 = vunpack.c.h.b16 %v10350
    %v10465 = vunpack.c.l.b16 %v10351
    %v10466 = vunpack.c.h.b16 %v10351
    %v10467 = vunpack.c.l.b16 %v10352
    %v10468 = vunpack.c.h.b16 %v10352
    %v10469 = vunpack.c.l.b16 %v10353
    %v10470 = vunpack.c.h.b16 %v10353
    %v10471 = vunpack.c.l.b16 %v10354
    %v10472 = vunpack.c.h.b16 %v10354
    %v10473 = vunpack.c.l.b16 %v10355
    %v10474 = vunpack.c.h.b16 %v10355
    %v10475 = vunpack.c.l.b16 %v10356
    %v10476 = vunpack.c.h.b16 %v10356
    %v10477 = vunpack.c.l.b16 %v10357
    %v10478 = vunpack.c.h.b16 %v10357
    %v10479 = vunpack.c.l.b16 %v10358
    %v10480 = vunpack.c.h.b16 %v10358
    %v10481 = vunpack.c.l.b16 %v10359
    %v10482 = vunpack.c.h.b16 %v10359
    %v10483 = vunpack.c.l.b16 %v10360
    %v10484 = vunpack.c.h.b16 %v10360
    %v10485 = vunpack.c.l.b16 %v10361
    %v10486 = vunpack.c.h.b16 %v10361
    %v10487 = vunpack.c.l.b16 %v10362
    %v10488 = vunpack.c.h.b16 %v10362
    %v10489 = vunpack.c.l.b16 %v10363
    %v10490 = vunpack.c.h.b16 %v10363
    %v10491 = vunpack.c.l.b16 %v10364
    %v10492 = vunpack.c.h.b16 %v10364
    %v10493 = vunpack.c.l.b16 %v10365
    %v10494 = vunpack.c.h.b16 %v10365
    %v10495 = vunpack.c.l.b16 %v10366
    %v10496 = vunpack.c.h.b16 %v10366
    %v10497 = vunpack.c.l.b16 %v10367
    %v10498 = vunpack.c.h.b16 %v10367
    %v10499 = vunpack.c.l.b16 %v10368
    %v10500 = vunpack.c.h.b16 %v10368
    %v10501 = vunpack.c.l.b16 %v10369
    %v10502 = vunpack.c.h.b16 %v10369
    %v10503 = vunpack.c.l.b16 %v10370
    %v10504 = vunpack.c.h.b16 %v10370
    %v10505 = vunpack.c.l.b16 %v10371
    %v10506 = vunpack.c.h.b16 %v10371
    %v10507 = vunpack.c.l.b16 %v10372
    %v10508 = vunpack.c.h.b16 %v10372
    %v10509 = vunpack.c.l.b16 %v10373
    %v10510 = vunpack.c.h.b16 %v10373
    %v10511 = vunpack.c.l.b16 %v10374
    %v10512 = vunpack.c.h.b16 %v10374
    %v10513 = vunpack.c.l.b16 %v10375
    %v10514 = vunpack.c.h.b16 %v10375
    %v10515 = vunpack.c.l.b16 %v10376
    %v10516 = vunpack.c.h.b16 %v10376
    %v10517 = vunpack.c.l.b16 %v10377
    %v10518 = vunpack.c.h.b16 %v10377
    %v10519 = vunpack.c.l.b16 %v10378
    %v10520 = vunpack.c.h.b16 %v10378
    %v10521 = vunpack.c.l.b16 %v10379
    %v10522 = vunpack.c.h.b16 %v10379
    %v10523 = vunpack.c.l.b16 %v10380
    %v10524 = vunpack.c.h.b16 %v10380
    %v10525 = vpack.c.b16 %v10431, %v10429
    %v10526 = vpack.c.b16 %v10432, %v10430
    %v10527 = vpack.c.b16 %v10435, %v10433
    %v10528 = vpack.c.b16 %v10436, %v10434
    %v10529 = vpack.c.b16 %v10439, %v10437
    %v10530 = vpack.c.b16 %v10440, %v10438
    %v10531 = vpack.c.b16 %v10443, %v10441
    %v10532 = vpack.c.b16 %v10444, %v10442
    %v10533 = vpack.c.b16 %v10447, %v10445
    %v10534 = vpack.c.b16 %v10448, %v10446
    %v10535 = vpack.c.b16 %v10451, %v10449
    %v10536 = vpack.c.b16 %v10452, %v10450
    %v10537 = vpack.c.b16 %v10455, %v10453
    %v10538 = vpack.c.b16 %v10456, %v10454
    %v10539 = vpack.c.b16 %v10459, %v10457
    %v10540 = vpack.c.b16 %v10460, %v10458
    %v10541 = vpack.c.b16 %v10463, %v10461
    %v10542 = vpack.c.b16 %v10464, %v10462
    %v10543 = vpack.c.b16 %v10467, %v10465
    %v10544 = vpack.c.b16 %v10468, %v10466
    %v10545 = vpack.c.b16 %v10471, %v10469
    %v10546 = vpack.c.b16 %v10472, %v10470
    %v10547 = vpack.c.b16 %v10475, %v10473
    %v10548 = vpack.c.b16 %v10476, %v10474
    %v10549 = vpack.c.b16 %v10479, %v10477
    %v10550 = vpack.c.b16 %v10480, %v10478
    %v10551 = vpack.c.b16 %v10483, %v10481
    %v10552 = vpack.c.b16 %v10484, %v10482
    %v10553 = vpack.c.b16 %v10487, %v10485
    %v10554 = vpack.c.b16 %v10488, %v10486
    %v10555 = vpack.c.b16 %v10491, %v10489
    %v10556 = vpack.c.b16 %v10492, %v10490
    %v10557 = vpack.c.b16 %v10495, %v10493
    %v10558 = vpack.c.b16 %v10496, %v10494
    %v10559 = vpack.c.b16 %v10499, %v10497
    %v10560 = vpack.c.b16 %v10500, %v10498
    %v10561 = vpack.c.b16 %v10503, %v10501
    %v10562 = vpack.c.b16 %v10504, %v10502
    %v10563 = vpack.c.b16 %v10507, %v10505
    %v10564 = vpack.c.b16 %v10508, %v10506
    %v10565 = vpack.c.b16 %v10511, %v10509
    %v10566 = vpack.c.b16 %v10512, %v10510
    %v10567 = vpack.c.b16 %v10515, %v10513
    %v10568 = vpack.c.b16 %v10516, %v10514
    %v10569 = vpack.c.b16 %v10519, %v10517
    %v10570 = vpack.c.b16 %v10520, %v10518
    %v10571 = vpack.c.b16 %v10523, %v10521
    %v10572 = vpack.c.b16 %v10524, %v10522
    %10621 = vmatpush.bf16.msra.mxu0 %v10539
    %10622 = vmatpush.bf16.msra.mxu0 %v10537
    %10623 = vmatpush.bf16.msra.mxu0 %v10535
    %10624 = vmatpush.bf16.msra.mxu0 %v10533
    %10625 = vmatpush.bf16.msra.mxu0 %v10531
    %10626 = vmatpush.bf16.msra.mxu0 %v10529
    %10627 = vmatpush.bf16.msra.mxu0 %v10527
    %10628 = vmatpush.bf16.msra.mxu0 %v10525
    %10629 = vmatmul.bf16.gmra.mxu0 %v8318
    %v10630 = vpop.f32.mrf.mxu0
    %v10631 = vadd.f32 0.0, %v10630
    %v10632 = vpop.f32.mrf.mxu0
    %v10633 = vadd.f32 0.0, %v10632
    %10634 = vmatmul.bf16.gmra.mxu0 %v8321
    %v10635 = vpop.f32.mrf.mxu0
    %v10636 = vadd.f32 0.0, %v10635
    %v10637 = vpop.f32.mrf.mxu0
    %v10638 = vadd.f32 0.0, %v10637
    %10639 = vmatmul.bf16.gmra.mxu0 %v8324
    %v10640 = vpop.f32.mrf.mxu0
    %v10641 = vadd.f32 0.0, %v10640
    %v10642 = vpop.f32.mrf.mxu0
    %v10643 = vadd.f32 0.0, %v10642
    %10644 = vmatmul.bf16.gmra.mxu0 %v8327
    %v10645 = vpop.f32.mrf.mxu0
    %v10646 = vadd.f32 0.0, %v10645
    %v10647 = vpop.f32.mrf.mxu0
    %v10648 = vadd.f32 0.0, %v10647
    %10649 = vdwg.mxu0
    %10650 = vmatpush.bf16.msra.mxu0 %v10555
    %10651 = vmatpush.bf16.msra.mxu0 %v10553
    %10652 = vmatpush.bf16.msra.mxu0 %v10551
    %10653 = vmatpush.bf16.msra.mxu0 %v10549
    %10654 = vmatpush.bf16.msra.mxu0 %v10547
    %10655 = vmatpush.bf16.msra.mxu0 %v10545
    %10656 = vmatpush.bf16.msra.mxu0 %v10543
    %10657 = vmatpush.bf16.msra.mxu0 %v10541
    %10658 = vmatmul.bf16.gmra.mxu0 %v8319
    %v10659 = vpop.f32.mrf.mxu0
    %v10660 = vadd.f32 %v10631, %v10659
    %v10661 = vpop.f32.mrf.mxu0
    %v10662 = vadd.f32 %v10633, %v10661
    %10663 = vmatmul.bf16.gmra.mxu0 %v8322
    %v10664 = vpop.f32.mrf.mxu0
    %v10665 = vadd.f32 %v10636, %v10664
    %v10666 = vpop.f32.mrf.mxu0
    %v10667 = vadd.f32 %v10638, %v10666
    %10668 = vmatmul.bf16.gmra.mxu0 %v8325
    %v10669 = vpop.f32.mrf.mxu0
    %v10670 = vadd.f32 %v10641, %v10669
    %v10671 = vpop.f32.mrf.mxu0
    %v10672 = vadd.f32 %v10643, %v10671
    %10673 = vmatmul.bf16.gmra.mxu0 %v8328
    %v10674 = vpop.f32.mrf.mxu0
    %v10675 = vadd.f32 %v10646, %v10674
    %v10676 = vpop.f32.mrf.mxu0
    %v10677 = vadd.f32 %v10648, %v10676
    %10678 = vdwg.mxu0
    %10679 = vmatpush.bf16.msra.mxu0 %v10571
    %10680 = vmatpush.bf16.msra.mxu0 %v10569
    %10681 = vmatpush.bf16.msra.mxu0 %v10567
    %10682 = vmatpush.bf16.msra.mxu0 %v10565
    %10683 = vmatpush.bf16.msra.mxu0 %v10563
    %10684 = vmatpush.bf16.msra.mxu0 %v10561
    %10685 = vmatpush.bf16.msra.mxu0 %v10559
    %10686 = vmatpush.bf16.msra.mxu0 %v10557
    %10687 = vmatmul.bf16.gmra.mxu0 %v8320
    %v10688 = vpop.f32.mrf.mxu0
    %v10689 = vadd.f32 %v10660, %v10688
    %v10690 = vpop.f32.mrf.mxu0
    %v10691 = vadd.f32 %v10662, %v10690
    %10692 = vmatmul.bf16.gmra.mxu0 %v8323
    %v10693 = vpop.f32.mrf.mxu0
    %v10694 = vadd.f32 %v10665, %v10693
    %v10695 = vpop.f32.mrf.mxu0
    %v10696 = vadd.f32 %v10667, %v10695
    %10697 = vmatmul.bf16.gmra.mxu0 %v8326
    %v10698 = vpop.f32.mrf.mxu0
    %v10699 = vadd.f32 %v10670, %v10698
    %v10700 = vpop.f32.mrf.mxu0
    %v10701 = vadd.f32 %v10672, %v10700
    %10702 = vmatmul.bf16.gmra.mxu0 %v8329
    %v10703 = vpop.f32.mrf.mxu0
    %v10704 = vadd.f32 %v10675, %v10703
    %v10705 = vpop.f32.mrf.mxu0
    %v10706 = vadd.f32 %v10677, %v10705
    %10707 = vdwg.mxu0
    %10708 = vmatpush.bf16.msra.mxu0 %v10540
    %10709 = vmatpush.bf16.msra.mxu0 %v10538
    %10710 = vmatpush.bf16.msra.mxu0 %v10536
    %10711 = vmatpush.bf16.msra.mxu0 %v10534
    %10712 = vmatpush.bf16.msra.mxu0 %v10532
    %10713 = vmatpush.bf16.msra.mxu0 %v10530
    %10714 = vmatpush.bf16.msra.mxu0 %v10528
    %10715 = vmatpush.bf16.msra.mxu0 %v10526
    %10716 = vmatmul.bf16.gmra.mxu0 %v8318
    %v10717 = vpop.f32.mrf.mxu0
    %v10718 = vadd.f32 0.0, %v10717
    %v10719 = vpop.f32.mrf.mxu0
    %v10720 = vadd.f32 0.0, %v10719
    %10721 = vmatmul.bf16.gmra.mxu0 %v8321
    %v10722 = vpop.f32.mrf.mxu0
    %v10723 = vadd.f32 0.0, %v10722
    %v10724 = vpop.f32.mrf.mxu0
    %v10725 = vadd.f32 0.0, %v10724
    %10726 = vmatmul.bf16.gmra.mxu0 %v8324
    %v10727 = vpop.f32.mrf.mxu0
    %v10728 = vadd.f32 0.0, %v10727
    %v10729 = vpop.f32.mrf.mxu0
    %v10730 = vadd.f32 0.0, %v10729
    %10731 = vmatmul.bf16.gmra.mxu0 %v8327
    %v10732 = vpop.f32.mrf.mxu0
    %v10733 = vadd.f32 0.0, %v10732
    %v10734 = vpop.f32.mrf.mxu0
    %v10735 = vadd.f32 0.0, %v10734
    %10736 = vdwg.mxu0
    %10737 = vmatpush.bf16.msra.mxu0 %v10556
    %10738 = vmatpush.bf16.msra.mxu0 %v10554
    %10739 = vmatpush.bf16.msra.mxu0 %v10552
    %10740 = vmatpush.bf16.msra.mxu0 %v10550
    %10741 = vmatpush.bf16.msra.mxu0 %v10548
    %10742 = vmatpush.bf16.msra.mxu0 %v10546
    %10743 = vmatpush.bf16.msra.mxu0 %v10544
    %10744 = vmatpush.bf16.msra.mxu0 %v10542
    %10745 = vmatmul.bf16.gmra.mxu0 %v8319
    %v10746 = vpop.f32.mrf.mxu0
    %v10747 = vadd.f32 %v10718, %v10746
    %v10748 = vpop.f32.mrf.mxu0
    %v10749 = vadd.f32 %v10720, %v10748
    %10750 = vmatmul.bf16.gmra.mxu0 %v8322
    %v10751 = vpop.f32.mrf.mxu0
    %v10752 = vadd.f32 %v10723, %v10751
    %v10753 = vpop.f32.mrf.mxu0
    %v10754 = vadd.f32 %v10725, %v10753
    %10755 = vmatmul.bf16.gmra.mxu0 %v8325
    %v10756 = vpop.f32.mrf.mxu0
    %v10757 = vadd.f32 %v10728, %v10756
    %v10758 = vpop.f32.mrf.mxu0
    %v10759 = vadd.f32 %v10730, %v10758
    %10760 = vmatmul.bf16.gmra.mxu0 %v8328
    %v10761 = vpop.f32.mrf.mxu0
    %v10762 = vadd.f32 %v10733, %v10761
    %v10763 = vpop.f32.mrf.mxu0
    %v10764 = vadd.f32 %v10735, %v10763
    %10765 = vdwg.mxu0
    %10766 = vmatpush.bf16.msra.mxu0 %v10572
    %10767 = vmatpush.bf16.msra.mxu0 %v10570
    %10768 = vmatpush.bf16.msra.mxu0 %v10568
    %10769 = vmatpush.bf16.msra.mxu0 %v10566
    %10770 = vmatpush.bf16.msra.mxu0 %v10564
    %10771 = vmatpush.bf16.msra.mxu0 %v10562
    %10772 = vmatpush.bf16.msra.mxu0 %v10560
    %10773 = vmatpush.bf16.msra.mxu0 %v10558
    %10774 = vmatmul.bf16.gmra.mxu0 %v8320
    %v10775 = vpop.f32.mrf.mxu0
    %v10776 = vadd.f32 %v10747, %v10775
    %v10777 = vpop.f32.mrf.mxu0
    %v10778 = vadd.f32 %v10749, %v10777
    %10779 = vmatmul.bf16.gmra.mxu0 %v8323
    %v10780 = vpop.f32.mrf.mxu0
    %v10781 = vadd.f32 %v10752, %v10780
    %v10782 = vpop.f32.mrf.mxu0
    %v10783 = vadd.f32 %v10754, %v10782
    %10784 = vmatmul.bf16.gmra.mxu0 %v8326
    %v10785 = vpop.f32.mrf.mxu0
    %v10786 = vadd.f32 %v10757, %v10785
    %v10787 = vpop.f32.mrf.mxu0
    %v10788 = vadd.f32 %v10759, %v10787
    %10789 = vmatmul.bf16.gmra.mxu0 %v8329
    %v10790 = vpop.f32.mrf.mxu0
    %v10791 = vadd.f32 %v10762, %v10790
    %v10792 = vpop.f32.mrf.mxu0
    %v10793 = vadd.f32 %v10764, %v10792
    %10794 = vdwg.mxu0
    %s10795 = scalar_lea.vmem %s13, 384
    %v10796 = vld [vmem:[%s10795] sm:$0xff]
    %v10797 = vld [vmem:[%s10795 + $0x8] sm:$0xff]
    %v10798 = vld [vmem:[%s10795 + $0x10] sm:$0xff]
    %v10799 = vld [vmem:[%s10795 + $0x18] sm:$0xff]
    %v10800 = vld [vmem:[%s10795 + $0x20] sm:$0xff]
    %v10801 = vld [vmem:[%s10795 + $0x28] sm:$0xff]
    %v10802 = vld [vmem:[%s10795 + $0x30] sm:$0xff]
    %v10803 = vld [vmem:[%s10795 + $0x38] sm:$0xff]
    %v10804 = vld [vmem:[%s10795 + $0x40] sm:$0xff]
    %v10805 = vld [vmem:[%s10795 + $0x48] sm:$0xff]
    %v10806 = vld [vmem:[%s10795 + $0x50] sm:$0xff]
    %v10807 = vld [vmem:[%s10795 + $0x58] sm:$0xff]
    %v10808 = vld [vmem:[%s10795 + $0x60] sm:$0xff]
    %v10809 = vld [vmem:[%s10795 + $0x68] sm:$0xff]
    %v10810 = vld [vmem:[%s10795 + $0x70] sm:$0xff]
    %v10811 = vld [vmem:[%s10795 + $0x78] sm:$0xff]
    %v10813 = vsel %vm9287, %v10796, 0
    %v10816 = vsel %vm9287, %v10797, 0
    %v10819 = vsel %vm9287, %v10798, 0
    %v10822 = vsel %vm9287, %v10799, 0
    %v10825 = vsel %vm9287, %v10800, 0
    %v10828 = vsel %vm9287, %v10801, 0
    %v10831 = vsel %vm9287, %v10802, 0
    %v10834 = vsel %vm9287, %v10803, 0
    %v10837 = vsel %vm9287, %v10804, 0
    %v10840 = vsel %vm9287, %v10805, 0
    %v10843 = vsel %vm9287, %v10806, 0
    %v10846 = vsel %vm9287, %v10807, 0
    %v10849 = vsel %vm9287, %v10808, 0
    %v10852 = vsel %vm9287, %v10809, 0
    %v10855 = vsel %vm9287, %v10810, 0
    %v10858 = vsel %vm9287, %v10811, 0
    %10860 = vmatpush.msra.mxu0 0.0
    %10861 = vmatpush.msra.mxu0 0.0
    %10862 = vmatpush.msra.mxu0 0.0
    %10863 = vmatpush.msra.mxu0 0.0
    %10864 = vmatpush.msra.mxu0 0.0
    %10865 = vmatpush.msra.mxu0 0.0
    %10866 = vmatpush.msra.mxu0 0.0
    %10867 = vmatpush.msra.mxu0 0.0
    %10868 = vmatpush.msra.mxu0 %v10706
    %10869 = vmatpush.msra.mxu0 %v10704
    %10870 = vmatpush.msra.mxu0 %v10701
    %10871 = vmatpush.msra.mxu0 %v10699
    %10872 = vmatpush.msra.mxu0 %v10696
    %10873 = vmatpush.msra.mxu0 %v10694
    %10874 = vmatpush.msra.mxu0 %v10691
    %10875 = vmatpush.msra.mxu0 %v10689
    %10876 = vmatmul.f32.gmra.mxu0 %v10813
    %v10877 = vpop.f32.mrf.mxu0
    %v10878 = vadd.f32 0.0, %v10877
    %10879 = vmatmul.f32.gmra.mxu0 %v10816
    %v10880 = vpop.f32.mrf.mxu0
    %v10881 = vadd.f32 0.0, %v10880
    %10882 = vmatmul.f32.gmra.mxu0 %v10819
    %v10883 = vpop.f32.mrf.mxu0
    %v10884 = vadd.f32 0.0, %v10883
    %10885 = vmatmul.f32.gmra.mxu0 %v10822
    %v10886 = vpop.f32.mrf.mxu0
    %v10887 = vadd.f32 0.0, %v10886
    %10888 = vmatmul.f32.gmra.mxu0 %v10825
    %v10889 = vpop.f32.mrf.mxu0
    %v10890 = vadd.f32 0.0, %v10889
    %10891 = vmatmul.f32.gmra.mxu0 %v10828
    %v10892 = vpop.f32.mrf.mxu0
    %v10893 = vadd.f32 0.0, %v10892
    %10894 = vmatmul.f32.gmra.mxu0 %v10831
    %v10895 = vpop.f32.mrf.mxu0
    %v10896 = vadd.f32 0.0, %v10895
    %10897 = vmatmul.f32.gmra.mxu0 %v10834
    %v10898 = vpop.f32.mrf.mxu0
    %v10899 = vadd.f32 0.0, %v10898
    %10900 = vmatmul.f32.gmra.mxu0 %v10837
    %v10901 = vpop.f32.mrf.mxu0
    %v10902 = vadd.f32 0.0, %v10901
    %10903 = vmatmul.f32.gmra.mxu0 %v10840
    %v10904 = vpop.f32.mrf.mxu0
    %v10905 = vadd.f32 0.0, %v10904
    %10906 = vmatmul.f32.gmra.mxu0 %v10843
    %v10907 = vpop.f32.mrf.mxu0
    %v10908 = vadd.f32 0.0, %v10907
    %10909 = vmatmul.f32.gmra.mxu0 %v10846
    %v10910 = vpop.f32.mrf.mxu0
    %v10911 = vadd.f32 0.0, %v10910
    %10912 = vmatmul.f32.gmra.mxu0 %v10849
    %v10913 = vpop.f32.mrf.mxu0
    %v10914 = vadd.f32 0.0, %v10913
    %10915 = vmatmul.f32.gmra.mxu0 %v10852
    %v10916 = vpop.f32.mrf.mxu0
    %v10917 = vadd.f32 0.0, %v10916
    %10918 = vmatmul.f32.gmra.mxu0 %v10855
    %v10919 = vpop.f32.mrf.mxu0
    %v10920 = vadd.f32 0.0, %v10919
    %10921 = vmatmul.f32.gmra.mxu0 %v10858
    %v10922 = vpop.f32.mrf.mxu0
    %v10923 = vadd.f32 0.0, %v10922
    %10924 = vdwg.mxu0
    %10925 = vmatpush.msra.mxu0 0.0
    %10926 = vmatpush.msra.mxu0 0.0
    %10927 = vmatpush.msra.mxu0 0.0
    %10928 = vmatpush.msra.mxu0 0.0
    %10929 = vmatpush.msra.mxu0 0.0
    %10930 = vmatpush.msra.mxu0 0.0
    %10931 = vmatpush.msra.mxu0 0.0
    %10932 = vmatpush.msra.mxu0 0.0
    %10933 = vmatpush.msra.mxu0 %v10793
    %10934 = vmatpush.msra.mxu0 %v10791
    %10935 = vmatpush.msra.mxu0 %v10788
    %10936 = vmatpush.msra.mxu0 %v10786
    %10937 = vmatpush.msra.mxu0 %v10783
    %10938 = vmatpush.msra.mxu0 %v10781
    %10939 = vmatpush.msra.mxu0 %v10778
    %10940 = vmatpush.msra.mxu0 %v10776
    %10941 = vmatmul.f32.gmra.mxu0 %v10813
    %v10942 = vpop.f32.mrf.mxu0
    %v10943 = vadd.f32 0.0, %v10942
    %10944 = vmatmul.f32.gmra.mxu0 %v10816
    %v10945 = vpop.f32.mrf.mxu0
    %v10946 = vadd.f32 0.0, %v10945
    %10947 = vmatmul.f32.gmra.mxu0 %v10819
    %v10948 = vpop.f32.mrf.mxu0
    %v10949 = vadd.f32 0.0, %v10948
    %10950 = vmatmul.f32.gmra.mxu0 %v10822
    %v10951 = vpop.f32.mrf.mxu0
    %v10952 = vadd.f32 0.0, %v10951
    %10953 = vmatmul.f32.gmra.mxu0 %v10825
    %v10954 = vpop.f32.mrf.mxu0
    %v10955 = vadd.f32 0.0, %v10954
    %10956 = vmatmul.f32.gmra.mxu0 %v10828
    %v10957 = vpop.f32.mrf.mxu0
    %v10958 = vadd.f32 0.0, %v10957
    %10959 = vmatmul.f32.gmra.mxu0 %v10831
    %v10960 = vpop.f32.mrf.mxu0
    %v10961 = vadd.f32 0.0, %v10960
    %10962 = vmatmul.f32.gmra.mxu0 %v10834
    %v10963 = vpop.f32.mrf.mxu0
    %v10964 = vadd.f32 0.0, %v10963
    %10965 = vmatmul.f32.gmra.mxu0 %v10837
    %v10966 = vpop.f32.mrf.mxu0
    %v10967 = vadd.f32 0.0, %v10966
    %10968 = vmatmul.f32.gmra.mxu0 %v10840
    %v10969 = vpop.f32.mrf.mxu0
    %v10970 = vadd.f32 0.0, %v10969
    %10971 = vmatmul.f32.gmra.mxu0 %v10843
    %v10972 = vpop.f32.mrf.mxu0
    %v10973 = vadd.f32 0.0, %v10972
    %10974 = vmatmul.f32.gmra.mxu0 %v10846
    %v10975 = vpop.f32.mrf.mxu0
    %v10976 = vadd.f32 0.0, %v10975
    %10977 = vmatmul.f32.gmra.mxu0 %v10849
    %v10978 = vpop.f32.mrf.mxu0
    %v10979 = vadd.f32 0.0, %v10978
    %10980 = vmatmul.f32.gmra.mxu0 %v10852
    %v10981 = vpop.f32.mrf.mxu0
    %v10982 = vadd.f32 0.0, %v10981
    %10983 = vmatmul.f32.gmra.mxu0 %v10855
    %v10984 = vpop.f32.mrf.mxu0
    %v10985 = vadd.f32 0.0, %v10984
    %10986 = vmatmul.f32.gmra.mxu0 %v10858
    %v10987 = vpop.f32.mrf.mxu0
    %v10988 = vadd.f32 0.0, %v10987
    %10989 = vdwg.mxu0
    %v10990 = vadd.f32 %v10301, %v10878
    %v10991 = vadd.f32 %v10302, %v10943
    %v10992 = vadd.f32 %v10303, %v10881
    %v10993 = vadd.f32 %v10304, %v10946
    %v10994 = vadd.f32 %v10305, %v10884
    %v10995 = vadd.f32 %v10306, %v10949
    %v10996 = vadd.f32 %v10307, %v10887
    %v10997 = vadd.f32 %v10308, %v10952
    %v10998 = vadd.f32 %v10309, %v10890
    %v10999 = vadd.f32 %v10310, %v10955
    %v11000 = vadd.f32 %v10311, %v10893
    %v11001 = vadd.f32 %v10312, %v10958
    %v11002 = vadd.f32 %v10313, %v10896
    %v11003 = vadd.f32 %v10314, %v10961
    %v11004 = vadd.f32 %v10315, %v10899
    %v11005 = vadd.f32 %v10316, %v10964
    %v11006 = vadd.f32 %v10317, %v10902
    %v11007 = vadd.f32 %v10318, %v10967
    %v11008 = vadd.f32 %v10319, %v10905
    %v11009 = vadd.f32 %v10320, %v10970
    %v11010 = vadd.f32 %v10321, %v10908
    %v11011 = vadd.f32 %v10322, %v10973
    %v11012 = vadd.f32 %v10323, %v10911
    %v11013 = vadd.f32 %v10324, %v10976
    %v11014 = vadd.f32 %v10325, %v10914
    %v11015 = vadd.f32 %v10326, %v10979
    %v11016 = vadd.f32 %v10327, %v10917
    %v11017 = vadd.f32 %v10328, %v10982
    %v11018 = vadd.f32 %v10329, %v10920
    %v11019 = vadd.f32 %v10330, %v10985
    %v11020 = vadd.f32 %v10331, %v10923
    %v11021 = vadd.f32 %v10332, %v10988
    %v11022 = vtanh.pop %v10990
    %v11023 = vtanh.pop %v10991
    %v11024 = vtanh.pop %v10992
    %v11025 = vtanh.pop %v10993
    %v11026 = vtanh.pop %v10994
    %v11027 = vtanh.pop %v10995
    %v11028 = vtanh.pop %v10996
    %v11029 = vtanh.pop %v10997
    %v11030 = vtanh.pop %v10998
    %v11031 = vtanh.pop %v10999
    %v11032 = vtanh.pop %v11000
    %v11033 = vtanh.pop %v11001
    %v11034 = vtanh.pop %v11002
    %v11035 = vtanh.pop %v11003
    %v11036 = vtanh.pop %v11004
    %v11037 = vtanh.pop %v11005
    %v11038 = vtanh.pop %v11006
    %v11039 = vtanh.pop %v11007
    %v11040 = vtanh.pop %v11008
    %v11041 = vtanh.pop %v11009
    %v11042 = vtanh.pop %v11010
    %v11043 = vtanh.pop %v11011
    %v11044 = vtanh.pop %v11012
    %v11045 = vtanh.pop %v11013
    %v11046 = vtanh.pop %v11014
    %v11047 = vtanh.pop %v11015
    %v11048 = vtanh.pop %v11016
    %v11049 = vtanh.pop %v11017
    %v11050 = vtanh.pop %v11018
    %v11051 = vtanh.pop %v11019
    %v11052 = vtanh.pop %v11020
    %v11053 = vtanh.pop %v11021
    %11054 = vst [vmem:[%s14] sm:$0xff] %v11022
    %11055 = vst [vmem:[%s14 + $0x8] sm:$0xff] %v11023
    %11056 = vst [vmem:[%s14 + $0x10] sm:$0xff] %v11024
    %11057 = vst [vmem:[%s14 + $0x18] sm:$0xff] %v11025
    %11058 = vst [vmem:[%s14 + $0x20] sm:$0xff] %v11026
    %11059 = vst [vmem:[%s14 + $0x28] sm:$0xff] %v11027
    %11060 = vst [vmem:[%s14 + $0x30] sm:$0xff] %v11028
    %11061 = vst [vmem:[%s14 + $0x38] sm:$0xff] %v11029
    %11062 = vst [vmem:[%s14 + $0x40] sm:$0xff] %v11030
    %11063 = vst [vmem:[%s14 + $0x48] sm:$0xff] %v11031
    %11064 = vst [vmem:[%s14 + $0x50] sm:$0xff] %v11032
    %11065 = vst [vmem:[%s14 + $0x58] sm:$0xff] %v11033
    %11066 = vst [vmem:[%s14 + $0x60] sm:$0xff] %v11034
    %11067 = vst [vmem:[%s14 + $0x68] sm:$0xff] %v11035
    %11068 = vst [vmem:[%s14 + $0x70] sm:$0xff] %v11036
    %11069 = vst [vmem:[%s14 + $0x78] sm:$0xff] %v11037
    %11070 = vst [vmem:[%s14 + $0x80] sm:$0xff] %v11038
    %11071 = vst [vmem:[%s14 + $0x88] sm:$0xff] %v11039
    %11072 = vst [vmem:[%s14 + $0x90] sm:$0xff] %v11040
    %11073 = vst [vmem:[%s14 + $0x98] sm:$0xff] %v11041
    %11074 = vst [vmem:[%s14 + $0xa0] sm:$0xff] %v11042
    %11075 = vst [vmem:[%s14 + $0xa8] sm:$0xff] %v11043
    %11076 = vst [vmem:[%s14 + $0xb0] sm:$0xff] %v11044
    %11077 = vst [vmem:[%s14 + $0xb8] sm:$0xff] %v11045
    %11078 = vst [vmem:[%s14 + $0xc0] sm:$0xff] %v11046
    %11079 = vst [vmem:[%s14 + $0xc8] sm:$0xff] %v11047
    %11080 = vst [vmem:[%s14 + $0xd0] sm:$0xff] %v11048
    %11081 = vst [vmem:[%s14 + $0xd8] sm:$0xff] %v11049
    %11082 = vst [vmem:[%s14 + $0xe0] sm:$0xff] %v11050
    %11083 = vst [vmem:[%s14 + $0xe8] sm:$0xff] %v11051
    %11084 = vst [vmem:[%s14 + $0xf0] sm:$0xff] %v11052
    %11085 = vst [vmem:[%s14 + $0xf8] sm:$0xff] %v11053
    // Predicated region
    $region66: #{generator_forward.1} parent=1 // pred_check
      _
    $region67: #{generator_forward.1} parent=1 // pred_check_branch
      %11087 = sbr.rel (0) target = $region69
    $region68: #{generator_forward.1} parent=1 // pred_region
      _
    $region69: #{generator_forward.1} parent=1 // pred_fallthru
      _
    // Predicated region
    $region70: #{generator_forward.1} parent=1 // pred_check
      _
    $region71: #{generator_forward.1} parent=1 // pred_check_branch
      %11089 = sbr.rel (0) target = $region73
    $region72: #{generator_forward.1} parent=1 // pred_region
      _
    $region73: #{generator_forward.1} parent=1 // pred_fallthru
      _
    %11090 = vsyncpa [#allocation3], 1
    %11091 = vsyncpa [#allocation5], 1

</llo_original>
